<compile_context>
chip_gen: v7x
topology: tpu7x:2x2x1
jax: 0.10.0
libtpu: 0.0.40
codegen_flags: <defaults>
</compile_context>

<pallas_src>
import jax
import jax.numpy as jnp
from jax.experimental import pallas as pl
from jax.experimental.pallas import tpu as pltpu

# ---- model hyper-parameters (reference constants are undefined; pick small) --
ROOT_VOCAB = 13            # channel 0 of src is dropped by the non-coop forward
CHORD_VOCAB = 24
EMBED_SIZE = 32            # d_model
NHEAD = 4
HEAD_DIM = EMBED_SIZE // NHEAD
NUM_ENC_LAYERS = 2         # nn.Transformer(..., num_encoder_layers=num_layers)
NUM_DEC_LAYERS = 6         # PyTorch nn.Transformer default num_decoder_layers
FFN_DIM = 2048             # PyTorch nn.Transformer default dim_feedforward
LN_EPS = 1e-5

B = 2                      # batch
T = 8                      # sequence length
BT = B * T

_VMEM = pl.BlockSpec(memory_space=pltpu.MemorySpace.VMEM)


# --------------------------- in-kernel building blocks ------------------------
def _layer_norm(x, g, b):
    mu = jnp.mean(x, axis=-1, keepdims=True)
    d = x - mu
    var = jnp.mean(d * d, axis=-1, keepdims=True)
    return d * jax.lax.rsqrt(var + LN_EPS) * g + b


def _ffn(x, w1, b1, w2, b2):
    h = jnp.maximum(jnp.dot(x, w1, preferred_element_type=jnp.float32) + b1, 0.0)
    return jnp.dot(h, w2, preferred_element_type=jnp.float32) + b2


def _mha(q_src, kv_src, w_in, b_in, w_out, b_out):
    """PyTorch-style multi-head attention (no mask, eval mode).

    q_src, kv_src: (B*T, E) rows, batch-major.
    w_in: (E, 3E) pre-transposed in_proj, b_in: (1, 3E)
    w_out: (E, E) pre-transposed out_proj, b_out: (1, E)
    """
    E = EMBED_SIZE
    q = jnp.dot(q_src, w_in[:, :E], preferred_element_type=jnp.float32) + b_in[:, :E]
    k = jnp.dot(kv_src, w_in[:, E:2 * E], preferred_element_type=jnp.float32) + b_in[:, E:2 * E]
    v = jnp.dot(kv_src, w_in[:, 2 * E:], preferred_element_type=jnp.float32) + b_in[:, 2 * E:]
    scale = 1.0 / (HEAD_DIM ** 0.5)

    ctx_rows = []
    for b in range(B):
        r0, r1 = b * T, (b + 1) * T
        heads = []
        for h in range(NHEAD):
            c0, c1 = h * HEAD_DIM, (h + 1) * HEAD_DIM
            qs = q[r0:r1, c0:c1]                              # (T, hd)
            ks = k[r0:r1, c0:c1]
            vs = v[r0:r1, c0:c1]
            s = jax.lax.dot_general(                          # q @ k^T
                qs, ks, (((1,), (1,)), ((), ())),
                preferred_element_type=jnp.float32) * scale   # (T, T)
            s = s - jnp.max(s, axis=-1, keepdims=True)
            p = jnp.exp(s)
            p = p / jnp.sum(p, axis=-1, keepdims=True)
            heads.append(jnp.dot(p, vs, preferred_element_type=jnp.float32))
        ctx_rows.append(jnp.concatenate(heads, axis=-1))      # (T, E)
    ctx = jnp.concatenate(ctx_rows, axis=0)                   # (B*T, E)
    return jnp.dot(ctx, w_out, preferred_element_type=jnp.float32) + b_out


# ------------------------------- the fused kernel -----------------------------
def _chord_transformer_kernel(
    ids_ref, emb_ref,
    e_in_w, e_in_b, e_out_w, e_out_b,
    e_ln1_g, e_ln1_b,
    e_ff1_w, e_ff1_b, e_ff2_w, e_ff2_b,
    e_ln2_g, e_ln2_b,
    e_norm_g, e_norm_b,
    d_sa_in_w, d_sa_in_b, d_sa_out_w, d_sa_out_b,
    d_ln1_g, d_ln1_b,
    d_ca_in_w, d_ca_in_b, d_ca_out_w, d_ca_out_b,
    d_ln2_g, d_ln2_b,
    d_ff1_w, d_ff1_b, d_ff2_w, d_ff2_b,
    d_ln3_g, d_ln3_b,
    d_norm_g, d_norm_b,
    fc_w, fc_b,
    o_ref,
):
    # ---- embedding lookup as a one-hot matmul (kept fully in-kernel) ----
    ids = ids_ref[...]                                                     # (BT, 1) i32
    onehot = (ids == jax.lax.broadcasted_iota(jnp.int32, (BT, CHORD_VOCAB), 1)
              ).astype(jnp.float32)                                        # (BT, V)
    x0 = jnp.dot(onehot, emb_ref[...], preferred_element_type=jnp.float32)  # (BT, E)

    # ---- encoder stack (post-norm, ReLU FFN) ----
    def enc_layer(l, x):
        a = _mha(x, x, e_in_w[l], e_in_b[l], e_out_w[l], e_out_b[l])
        x = _layer_norm(x + a, e_ln1_g[l], e_ln1_b[l])
        f = _ffn(x, e_ff1_w[l], e_ff1_b[l], e_ff2_w[l], e_ff2_b[l])
        return _layer_norm(x + f, e_ln2_g[l], e_ln2_b[l])

    mem = jax.lax.fori_loop(0, NUM_ENC_LAYERS, enc_layer, x0)
    mem = _layer_norm(mem, e_norm_g[...], e_norm_b[...])

    # ---- decoder stack (self-attn + cross-attn to encoder memory) ----
    def dec_layer(l, x):
        a = _mha(x, x, d_sa_in_w[l], d_sa_in_b[l], d_sa_out_w[l], d_sa_out_b[l])
        x = _layer_norm(x + a, d_ln1_g[l], d_ln1_b[l])
        a = _mha(x, mem, d_ca_in_w[l], d_ca_in_b[l], d_ca_out_w[l], d_ca_out_b[l])
        x = _layer_norm(x + a, d_ln2_g[l], d_ln2_b[l])
        f = _ffn(x, d_ff1_w[l], d_ff1_b[l], d_ff2_w[l], d_ff2_b[l])
        return _layer_norm(x + f, d_ln3_g[l], d_ln3_b[l])

    y = jax.lax.fori_loop(0, NUM_DEC_LAYERS, dec_layer, x0)   # tgt == embeddings
    y = _layer_norm(y, d_norm_g[...], d_norm_b[...])

    # ---- final Linear, applied only to the last time step of each batch row ----
    last = jnp.concatenate(
        [y[(b + 1) * T - 1:(b + 1) * T, :] for b in range(B)], axis=0)      # (B, E)
    o_ref[...] = jnp.dot(last, fc_w[...], preferred_element_type=jnp.float32) + fc_b[...]


# ------------------------------ host-side wrapper ------------------------------
def chord_network_non_coop(src, params):
    """src: (B, T, 2) int — returns logits (B, CHORD_VOCAB), like x[:, -1, :]."""
    chords = src[:, :, 1].astype(jnp.int32).reshape(BT, 1)      # batch-major rows
    enc, dec = params["enc"], params["dec"]
    args = [
        chords, params["chord_emb"],
        enc["in_w"], enc["in_b"], enc["out_w"], enc["out_b"],
        enc["ln1_g"], enc["ln1_b"],
        enc["ff1_w"], enc["ff1_b"], enc["ff2_w"], enc["ff2_b"],
        enc["ln2_g"], enc["ln2_b"],
        params["enc_norm_g"], params["enc_norm_b"],
        dec["sa_in_w"], dec["sa_in_b"], dec["sa_out_w"], dec["sa_out_b"],
        dec["ln1_g"], dec["ln1_b"],
        dec["ca_in_w"], dec["ca_in_b"], dec["ca_out_w"], dec["ca_out_b"],
        dec["ln2_g"], dec["ln2_b"],
        dec["ff1_w"], dec["ff1_b"], dec["ff2_w"], dec["ff2_b"],
        dec["ln3_g"], dec["ln3_b"],
        params["dec_norm_g"], params["dec_norm_b"],
        params["fc_w"], params["fc_b"],
    ]
    return pl.pallas_call(
        _chord_transformer_kernel,
        out_shape=jax.ShapeDtypeStruct((B, CHORD_VOCAB), jnp.float32),
        in_specs=[_VMEM] * len(args),
        out_specs=_VMEM,
        compiler_params=pltpu.CompilerParams(vmem_limit_bytes=32 * 1024 * 1024),
    )(*args)


# --------------------------------- parameters ----------------------------------
def init_params(key):
    E, F = EMBED_SIZE, FFN_DIM

    def xavier(k, shape):
        fan_in, fan_out = shape[-2], shape[-1]
        lim = (6.0 / (fan_in + fan_out)) ** 0.5
        return jax.random.uniform(k, shape, jnp.float32, -lim, lim)

    def lin_bias(k, shape, fan_in):
        lim = 1.0 / (fan_in ** 0.5)
        return jax.random.uniform(k, shape, jnp.float32, -lim, lim)

    keys = iter(jax.random.split(key, 32))

    def attn_block(L):
        return dict(
            in_w=xavier(next(keys), (L, E, 3 * E)),
            in_b=jnp.zeros((L, 1, 3 * E), jnp.float32),      # PyTorch MHA: zero bias
            out_w=xavier(next(keys), (L, E, E)),
            out_b=jnp.zeros((L, 1, E), jnp.float32),
        )

    def ln_pair(L):
        return jnp.ones((L, 1, E), jnp.float32), jnp.zeros((L, 1, E), jnp.float32)

    Le, Ld = NUM_ENC_LAYERS, NUM_DEC_LAYERS

    ea = attn_block(Le)
    enc = dict(
        in_w=ea["in_w"], in_b=ea["in_b"], out_w=ea["out_w"], out_b=ea["out_b"],
        ff1_w=xavier(next(keys), (Le, E, F)), ff1_b=lin_bias(next(keys), (Le, 1, F), E),
        ff2_w=xavier(next(keys), (Le, F, E)), ff2_b=lin_bias(next(keys), (Le, 1, E), F),
    )
    enc["ln1_g"], enc["ln1_b"] = ln_pair(Le)
    enc["ln2_g"], enc["ln2_b"] = ln_pair(Le)

    sa, ca = attn_block(Ld), attn_block(Ld)
    dec = dict(
        sa_in_w=sa["in_w"], sa_in_b=sa["in_b"], sa_out_w=sa["out_w"], sa_out_b=sa["out_b"],
        ca_in_w=ca["in_w"], ca_in_b=ca["in_b"], ca_out_w=ca["out_w"], ca_out_b=ca["out_b"],
        ff1_w=xavier(next(keys), (Ld, E, F)), ff1_b=lin_bias(next(keys), (Ld, 1, F), E),
        ff2_w=xavier(next(keys), (Ld, F, E)), ff2_b=lin_bias(next(keys), (Ld, 1, E), F),
    )
    dec["ln1_g"], dec["ln1_b"] = ln_pair(Ld)
    dec["ln2_g"], dec["ln2_b"] = ln_pair(Ld)
    dec["ln3_g"], dec["ln3_b"] = ln_pair(Ld)

    return dict(
        chord_emb=jax.random.normal(next(keys), (CHORD_VOCAB, E), jnp.float32),
        enc=enc, dec=dec,
        enc_norm_g=jnp.ones((1, E), jnp.float32), enc_norm_b=jnp.zeros((1, E), jnp.float32),
        dec_norm_g=jnp.ones((1, E), jnp.float32), dec_norm_b=jnp.zeros((1, E), jnp.float32),
        fc_w=xavier(next(keys), (E, CHORD_VOCAB)),
        fc_b=lin_bias(next(keys), (1, CHORD_VOCAB), E),
    )


# ------------------------------------ main --------------------------------------
if __name__ == "__main__":
    key = jax.random.PRNGKey(0)
    k_param, k_root, k_chord = jax.random.split(key, 3)

    params = init_params(k_param)

    roots = jax.random.randint(k_root, (B, T), 0, ROOT_VOCAB, dtype=jnp.int32)
    chords = jax.random.randint(k_chord, (B, T), 0, CHORD_VOCAB, dtype=jnp.int32)
    src = jnp.stack([roots, chords], axis=-1)                 # (B, T, 2)

    # TODO(synk): dropout (p=0.1) inside nn.Transformer is treated as eval-mode identity.
    out = jax.jit(chord_network_non_coop)(src, params)
    out = jax.block_until_ready(out)
    assert out.shape == (B, CHORD_VOCAB)
    assert bool(jnp.all(jnp.isfinite(out)))
    print("KERNEL_OK")
</pallas_src>

<mosaic_0001>
module attributes {stable_mosaic.version = 11 : i64} {
  func.func @_chord_transformer_kernel(%arg0: memref<16x1xi32, #tpu.memory_space<vmem>>, %arg1: memref<24x32xf32, #tpu.memory_space<vmem>>, %arg2: memref<2x32x96xf32, #tpu.memory_space<vmem>>, %arg3: memref<2x1x96xf32, #tpu.memory_space<vmem>>, %arg4: memref<2x32x32xf32, #tpu.memory_space<vmem>>, %arg5: memref<2x1x32xf32, #tpu.memory_space<vmem>>, %arg6: memref<2x1x32xf32, #tpu.memory_space<vmem>>, %arg7: memref<2x1x32xf32, #tpu.memory_space<vmem>>, %arg8: memref<2x32x2048xf32, #tpu.memory_space<vmem>>, %arg9: memref<2x1x2048xf32, #tpu.memory_space<vmem>>, %arg10: memref<2x2048x32xf32, #tpu.memory_space<vmem>>, %arg11: memref<2x1x32xf32, #tpu.memory_space<vmem>>, %arg12: memref<2x1x32xf32, #tpu.memory_space<vmem>>, %arg13: memref<2x1x32xf32, #tpu.memory_space<vmem>>, %arg14: memref<1x32xf32, #tpu.memory_space<vmem>>, %arg15: memref<1x32xf32, #tpu.memory_space<vmem>>, %arg16: memref<6x32x96xf32, #tpu.memory_space<vmem>>, %arg17: memref<6x1x96xf32, #tpu.memory_space<vmem>>, %arg18: memref<6x32x32xf32, #tpu.memory_space<vmem>>, %arg19: memref<6x1x32xf32, #tpu.memory_space<vmem>>, %arg20: memref<6x1x32xf32, #tpu.memory_space<vmem>>, %arg21: memref<6x1x32xf32, #tpu.memory_space<vmem>>, %arg22: memref<6x32x96xf32, #tpu.memory_space<vmem>>, %arg23: memref<6x1x96xf32, #tpu.memory_space<vmem>>, %arg24: memref<6x32x32xf32, #tpu.memory_space<vmem>>, %arg25: memref<6x1x32xf32, #tpu.memory_space<vmem>>, %arg26: memref<6x1x32xf32, #tpu.memory_space<vmem>>, %arg27: memref<6x1x32xf32, #tpu.memory_space<vmem>>, %arg28: memref<6x32x2048xf32, #tpu.memory_space<vmem>>, %arg29: memref<6x1x2048xf32, #tpu.memory_space<vmem>>, %arg30: memref<6x2048x32xf32, #tpu.memory_space<vmem>>, %arg31: memref<6x1x32xf32, #tpu.memory_space<vmem>>, %arg32: memref<6x1x32xf32, #tpu.memory_space<vmem>>, %arg33: memref<6x1x32xf32, #tpu.memory_space<vmem>>, %arg34: memref<1x32xf32, #tpu.memory_space<vmem>>, %arg35: memref<1x32xf32, #tpu.memory_space<vmem>>, %arg36: memref<32x24xf32, #tpu.memory_space<vmem>>, %arg37: memref<1x24xf32, #tpu.memory_space<vmem>>, %arg38: memref<2x24xf32, #tpu.memory_space<vmem>>) attributes {dimension_semantics = [], scalar_prefetch = 0 : i64, scratch_operands = 0 : i64, tpu.core_type = #tpu.core_type<tc>} {
    %c0 = arith.constant 0 : index
    %c0_0 = arith.constant 0 : index
    %0 = vector.load %arg0[%c0, %c0_0] : memref<16x1xi32, #tpu.memory_space<vmem>>, vector<16x1xi32>
    %1 = tpu.iota {dimensions = array<i32: 1>} : vector<16x24xi32>
    %2 = vector.broadcast %0 : vector<16x1xi32> to vector<16x24xi32>
    %3 = arith.cmpi eq, %2, %1 : vector<16x24xi32>
    %4 = arith.extui %3 : vector<16x24xi1> to vector<16x24xi32>
    %5 = arith.sitofp %4 : vector<16x24xi32> to vector<16x24xf32>
    %c0_1 = arith.constant 0 : index
    %c0_2 = arith.constant 0 : index
    %6 = vector.load %arg1[%c0_1, %c0_2] : memref<24x32xf32, #tpu.memory_space<vmem>>, vector<24x32xf32>
    %cst = arith.constant dense<0.000000e+00> : vector<16x32xf32>
    %7 = tpu.matmul %5, %6, %cst {dimension_numbers = #tpu.dot_dimension_numbers<[1], [0], [0], [1], [0, 0, 1, 1], [], []>} : vector<16x24xf32>, vector<24x32xf32>, vector<16x32xf32> -> vector<16x32xf32>
    %c0_i32 = arith.constant 0 : i32
    %c2_i32 = arith.constant 2 : i32
    %8 = arith.addi %c0_i32, %c2_i32 : i32
    %c1_i32 = arith.constant 1 : i32
    %9 = scf.for %arg39 = %c0_i32 to %8 step %c1_i32 iter_args(%arg40 = %7) -> (vector<16x32xf32>)  : i32 {
      %65 = arith.index_cast %arg39 : i32 to index
      %c0_32 = arith.constant 0 : index
      %c0_33 = arith.constant 0 : index
      %66 = vector.load %arg2[%65, %c0_32, %c0_33] : memref<2x32x96xf32, #tpu.memory_space<vmem>>, vector<1x32x96xf32>
      %67 = vector.shape_cast %66 : vector<1x32x96xf32> to vector<32x96xf32>
      %68 = arith.index_cast %arg39 : i32 to index
      %c0_34 = arith.constant 0 : index
      %c0_35 = arith.constant 0 : index
      %69 = vector.load %arg3[%68, %c0_34, %c0_35] : memref<2x1x96xf32, #tpu.memory_space<vmem>>, vector<1x1x96xf32>
      %70 = vector.shape_cast %69 : vector<1x1x96xf32> to vector<1x96xf32>
      %71 = arith.index_cast %arg39 : i32 to index
      %c0_36 = arith.constant 0 : index
      %c0_37 = arith.constant 0 : index
      %72 = vector.load %arg4[%71, %c0_36, %c0_37] : memref<2x32x32xf32, #tpu.memory_space<vmem>>, vector<1x32x32xf32>
      %73 = vector.shape_cast %72 : vector<1x32x32xf32> to vector<32x32xf32>
      %74 = arith.index_cast %arg39 : i32 to index
      %c0_38 = arith.constant 0 : index
      %c0_39 = arith.constant 0 : index
      %75 = vector.load %arg5[%74, %c0_38, %c0_39] : memref<2x1x32xf32, #tpu.memory_space<vmem>>, vector<1x1x32xf32>
      %76 = vector.shape_cast %75 : vector<1x1x32xf32> to vector<1x32xf32>
      %77 = vector.extract_strided_slice %67 {offsets = [0, 0], sizes = [32, 32], strides = [1, 1]} : vector<32x96xf32> to vector<32x32xf32>
      %cst_40 = arith.constant dense<0.000000e+00> : vector<16x32xf32>
      %78 = tpu.matmul %arg40, %77, %cst_40 {dimension_numbers = #tpu.dot_dimension_numbers<[1], [0], [0], [1], [0, 0, 1, 1], [], []>} : vector<16x32xf32>, vector<32x32xf32>, vector<16x32xf32> -> vector<16x32xf32>
      %79 = vector.extract_strided_slice %70 {offsets = [0, 0], sizes = [1, 32], strides = [1, 1]} : vector<1x96xf32> to vector<1x32xf32>
      %80 = vector.broadcast %79 : vector<1x32xf32> to vector<16x32xf32>
      %81 = arith.addf %78, %80 : vector<16x32xf32>
      %82 = vector.extract_strided_slice %67 {offsets = [0, 32], sizes = [32, 32], strides = [1, 1]} : vector<32x96xf32> to vector<32x32xf32>
      %cst_41 = arith.constant dense<0.000000e+00> : vector<16x32xf32>
      %83 = tpu.matmul %arg40, %82, %cst_41 {dimension_numbers = #tpu.dot_dimension_numbers<[1], [0], [0], [1], [0, 0, 1, 1], [], []>} : vector<16x32xf32>, vector<32x32xf32>, vector<16x32xf32> -> vector<16x32xf32>
      %84 = vector.extract_strided_slice %70 {offsets = [0, 32], sizes = [1, 32], strides = [1, 1]} : vector<1x96xf32> to vector<1x32xf32>
      %85 = vector.broadcast %84 : vector<1x32xf32> to vector<16x32xf32>
      %86 = arith.addf %83, %85 : vector<16x32xf32>
      %87 = vector.extract_strided_slice %67 {offsets = [0, 64], sizes = [32, 32], strides = [1, 1]} : vector<32x96xf32> to vector<32x32xf32>
      %cst_42 = arith.constant dense<0.000000e+00> : vector<16x32xf32>
      %88 = tpu.matmul %arg40, %87, %cst_42 {dimension_numbers = #tpu.dot_dimension_numbers<[1], [0], [0], [1], [0, 0, 1, 1], [], []>} : vector<16x32xf32>, vector<32x32xf32>, vector<16x32xf32> -> vector<16x32xf32>
      %89 = vector.extract_strided_slice %70 {offsets = [0, 64], sizes = [1, 32], strides = [1, 1]} : vector<1x96xf32> to vector<1x32xf32>
      %90 = vector.broadcast %89 : vector<1x32xf32> to vector<16x32xf32>
      %91 = arith.addf %88, %90 : vector<16x32xf32>
      %92 = vector.extract_strided_slice %81 {offsets = [0, 0], sizes = [8, 8], strides = [1, 1]} : vector<16x32xf32> to vector<8x8xf32>
      %93 = vector.extract_strided_slice %86 {offsets = [0, 0], sizes = [8, 8], strides = [1, 1]} : vector<16x32xf32> to vector<8x8xf32>
      %94 = vector.extract_strided_slice %91 {offsets = [0, 0], sizes = [8, 8], strides = [1, 1]} : vector<16x32xf32> to vector<8x8xf32>
      %cst_43 = arith.constant dense<0.000000e+00> : vector<8x8xf32>
      %95 = tpu.matmul %92, %93, %cst_43 {dimension_numbers = #tpu.dot_dimension_numbers<[1], [1], [0], [0], [0, 0, 1, 0], [], []>} : vector<8x8xf32>, vector<8x8xf32>, vector<8x8xf32> -> vector<8x8xf32>
      %cst_44 = arith.constant 0.353553385 : f32
      %96 = vector.broadcast %cst_44 : f32 to vector<8x8xf32>
      %97 = arith.mulf %95, %96 : vector<8x8xf32>
      %cst_45 = arith.constant dense<0xFF800000> : vector<8xf32>
      %98 = vector.multi_reduction <maximumf>, %97, %cst_45 [1] : vector<8x8xf32> to vector<8xf32>
      %99 = vector.shape_cast %98 : vector<8xf32> to vector<8x1xf32>
      %100 = vector.broadcast %99 : vector<8x1xf32> to vector<8x8xf32>
      %101 = arith.subf %97, %100 : vector<8x8xf32>
      %102 = math.exp %101 : vector<8x8xf32>
      %cst_46 = arith.constant dense<0.000000e+00> : vector<8xf32>
      %103 = vector.multi_reduction <add>, %102, %cst_46 [1] : vector<8x8xf32> to vector<8xf32>
      %104 = vector.shape_cast %103 : vector<8xf32> to vector<8x1xf32>
      %105 = vector.broadcast %104 : vector<8x1xf32> to vector<8x8xf32>
      %106 = arith.divf %102, %105 : vector<8x8xf32>
      %cst_47 = arith.constant dense<0.000000e+00> : vector<8x8xf32>
      %107 = tpu.matmul %106, %94, %cst_47 {dimension_numbers = #tpu.dot_dimension_numbers<[1], [0], [0], [1], [0, 0, 1, 1], [], []>} : vector<8x8xf32>, vector<8x8xf32>, vector<8x8xf32> -> vector<8x8xf32>
      %108 = vector.extract_strided_slice %81 {offsets = [0, 8], sizes = [8, 8], strides = [1, 1]} : vector<16x32xf32> to vector<8x8xf32>
      %109 = vector.extract_strided_slice %86 {offsets = [0, 8], sizes = [8, 8], strides = [1, 1]} : vector<16x32xf32> to vector<8x8xf32>
      %110 = vector.extract_strided_slice %91 {offsets = [0, 8], sizes = [8, 8], strides = [1, 1]} : vector<16x32xf32> to vector<8x8xf32>
      %cst_48 = arith.constant dense<0.000000e+00> : vector<8x8xf32>
      %111 = tpu.matmul %108, %109, %cst_48 {dimension_numbers = #tpu.dot_dimension_numbers<[1], [1], [0], [0], [0, 0, 1, 0], [], []>} : vector<8x8xf32>, vector<8x8xf32>, vector<8x8xf32> -> vector<8x8xf32>
      %cst_49 = arith.constant 0.353553385 : f32
      %112 = vector.broadcast %cst_49 : f32 to vector<8x8xf32>
      %113 = arith.mulf %111, %112 : vector<8x8xf32>
      %cst_50 = arith.constant dense<0xFF800000> : vector<8xf32>
      %114 = vector.multi_reduction <maximumf>, %113, %cst_50 [1] : vector<8x8xf32> to vector<8xf32>
      %115 = vector.shape_cast %114 : vector<8xf32> to vector<8x1xf32>
      %116 = vector.broadcast %115 : vector<8x1xf32> to vector<8x8xf32>
      %117 = arith.subf %113, %116 : vector<8x8xf32>
      %118 = math.exp %117 : vector<8x8xf32>
      %cst_51 = arith.constant dense<0.000000e+00> : vector<8xf32>
      %119 = vector.multi_reduction <add>, %118, %cst_51 [1] : vector<8x8xf32> to vector<8xf32>
      %120 = vector.shape_cast %119 : vector<8xf32> to vector<8x1xf32>
      %121 = vector.broadcast %120 : vector<8x1xf32> to vector<8x8xf32>
      %122 = arith.divf %118, %121 : vector<8x8xf32>
      %cst_52 = arith.constant dense<0.000000e+00> : vector<8x8xf32>
      %123 = tpu.matmul %122, %110, %cst_52 {dimension_numbers = #tpu.dot_dimension_numbers<[1], [0], [0], [1], [0, 0, 1, 1], [], []>} : vector<8x8xf32>, vector<8x8xf32>, vector<8x8xf32> -> vector<8x8xf32>
      %124 = vector.extract_strided_slice %81 {offsets = [0, 16], sizes = [8, 8], strides = [1, 1]} : vector<16x32xf32> to vector<8x8xf32>
      %125 = vector.extract_strided_slice %86 {offsets = [0, 16], sizes = [8, 8], strides = [1, 1]} : vector<16x32xf32> to vector<8x8xf32>
      %126 = vector.extract_strided_slice %91 {offsets = [0, 16], sizes = [8, 8], strides = [1, 1]} : vector<16x32xf32> to vector<8x8xf32>
      %cst_53 = arith.constant dense<0.000000e+00> : vector<8x8xf32>
      %127 = tpu.matmul %124, %125, %cst_53 {dimension_numbers = #tpu.dot_dimension_numbers<[1], [1], [0], [0], [0, 0, 1, 0], [], []>} : vector<8x8xf32>, vector<8x8xf32>, vector<8x8xf32> -> vector<8x8xf32>
      %cst_54 = arith.constant 0.353553385 : f32
      %128 = vector.broadcast %cst_54 : f32 to vector<8x8xf32>
      %129 = arith.mulf %127, %128 : vector<8x8xf32>
      %cst_55 = arith.constant dense<0xFF800000> : vector<8xf32>
      %130 = vector.multi_reduction <maximumf>, %129, %cst_55 [1] : vector<8x8xf32> to vector<8xf32>
      %131 = vector.shape_cast %130 : vector<8xf32> to vector<8x1xf32>
      %132 = vector.broadcast %131 : vector<8x1xf32> to vector<8x8xf32>
      %133 = arith.subf %129, %132 : vector<8x8xf32>
      %134 = math.exp %133 : vector<8x8xf32>
      %cst_56 = arith.constant dense<0.000000e+00> : vector<8xf32>
      %135 = vector.multi_reduction <add>, %134, %cst_56 [1] : vector<8x8xf32> to vector<8xf32>
      %136 = vector.shape_cast %135 : vector<8xf32> to vector<8x1xf32>
      %137 = vector.broadcast %136 : vector<8x1xf32> to vector<8x8xf32>
      %138 = arith.divf %134, %137 : vector<8x8xf32>
      %cst_57 = arith.constant dense<0.000000e+00> : vector<8x8xf32>
      %139 = tpu.matmul %138, %126, %cst_57 {dimension_numbers = #tpu.dot_dimension_numbers<[1], [0], [0], [1], [0, 0, 1, 1], [], []>} : vector<8x8xf32>, vector<8x8xf32>, vector<8x8xf32> -> vector<8x8xf32>
      %140 = vector.extract_strided_slice %81 {offsets = [0, 24], sizes = [8, 8], strides = [1, 1]} : vector<16x32xf32> to vector<8x8xf32>
      %141 = vector.extract_strided_slice %86 {offsets = [0, 24], sizes = [8, 8], strides = [1, 1]} : vector<16x32xf32> to vector<8x8xf32>
      %142 = vector.extract_strided_slice %91 {offsets = [0, 24], sizes = [8, 8], strides = [1, 1]} : vector<16x32xf32> to vector<8x8xf32>
      %cst_58 = arith.constant dense<0.000000e+00> : vector<8x8xf32>
      %143 = tpu.matmul %140, %141, %cst_58 {dimension_numbers = #tpu.dot_dimension_numbers<[1], [1], [0], [0], [0, 0, 1, 0], [], []>} : vector<8x8xf32>, vector<8x8xf32>, vector<8x8xf32> -> vector<8x8xf32>
      %cst_59 = arith.constant 0.353553385 : f32
      %144 = vector.broadcast %cst_59 : f32 to vector<8x8xf32>
      %145 = arith.mulf %143, %144 : vector<8x8xf32>
      %cst_60 = arith.constant dense<0xFF800000> : vector<8xf32>
      %146 = vector.multi_reduction <maximumf>, %145, %cst_60 [1] : vector<8x8xf32> to vector<8xf32>
      %147 = vector.shape_cast %146 : vector<8xf32> to vector<8x1xf32>
      %148 = vector.broadcast %147 : vector<8x1xf32> to vector<8x8xf32>
      %149 = arith.subf %145, %148 : vector<8x8xf32>
      %150 = math.exp %149 : vector<8x8xf32>
      %cst_61 = arith.constant dense<0.000000e+00> : vector<8xf32>
      %151 = vector.multi_reduction <add>, %150, %cst_61 [1] : vector<8x8xf32> to vector<8xf32>
      %152 = vector.shape_cast %151 : vector<8xf32> to vector<8x1xf32>
      %153 = vector.broadcast %152 : vector<8x1xf32> to vector<8x8xf32>
      %154 = arith.divf %150, %153 : vector<8x8xf32>
      %cst_62 = arith.constant dense<0.000000e+00> : vector<8x8xf32>
      %155 = tpu.matmul %154, %142, %cst_62 {dimension_numbers = #tpu.dot_dimension_numbers<[1], [0], [0], [1], [0, 0, 1, 1], [], []>} : vector<8x8xf32>, vector<8x8xf32>, vector<8x8xf32> -> vector<8x8xf32>
      %156 = tpu.concatenate %107, %123, %139, %155 in 1 : vector<8x8xf32>, vector<8x8xf32>, vector<8x8xf32>, vector<8x8xf32> -> vector<8x32xf32>
      %157 = vector.extract_strided_slice %81 {offsets = [8, 0], sizes = [8, 8], strides = [1, 1]} : vector<16x32xf32> to vector<8x8xf32>
      %158 = vector.extract_strided_slice %86 {offsets = [8, 0], sizes = [8, 8], strides = [1, 1]} : vector<16x32xf32> to vector<8x8xf32>
      %159 = vector.extract_strided_slice %91 {offsets = [8, 0], sizes = [8, 8], strides = [1, 1]} : vector<16x32xf32> to vector<8x8xf32>
      %cst_63 = arith.constant dense<0.000000e+00> : vector<8x8xf32>
      %160 = tpu.matmul %157, %158, %cst_63 {dimension_numbers = #tpu.dot_dimension_numbers<[1], [1], [0], [0], [0, 0, 1, 0], [], []>} : vector<8x8xf32>, vector<8x8xf32>, vector<8x8xf32> -> vector<8x8xf32>
      %cst_64 = arith.constant 0.353553385 : f32
      %161 = vector.broadcast %cst_64 : f32 to vector<8x8xf32>
      %162 = arith.mulf %160, %161 : vector<8x8xf32>
      %cst_65 = arith.constant dense<0xFF800000> : vector<8xf32>
      %163 = vector.multi_reduction <maximumf>, %162, %cst_65 [1] : vector<8x8xf32> to vector<8xf32>
      %164 = vector.shape_cast %163 : vector<8xf32> to vector<8x1xf32>
      %165 = vector.broadcast %164 : vector<8x1xf32> to vector<8x8xf32>
      %166 = arith.subf %162, %165 : vector<8x8xf32>
      %167 = math.exp %166 : vector<8x8xf32>
      %cst_66 = arith.constant dense<0.000000e+00> : vector<8xf32>
      %168 = vector.multi_reduction <add>, %167, %cst_66 [1] : vector<8x8xf32> to vector<8xf32>
      %169 = vector.shape_cast %168 : vector<8xf32> to vector<8x1xf32>
      %170 = vector.broadcast %169 : vector<8x1xf32> to vector<8x8xf32>
      %171 = arith.divf %167, %170 : vector<8x8xf32>
      %cst_67 = arith.constant dense<0.000000e+00> : vector<8x8xf32>
      %172 = tpu.matmul %171, %159, %cst_67 {dimension_numbers = #tpu.dot_dimension_numbers<[1], [0], [0], [1], [0, 0, 1, 1], [], []>} : vector<8x8xf32>, vector<8x8xf32>, vector<8x8xf32> -> vector<8x8xf32>
      %173 = vector.extract_strided_slice %81 {offsets = [8, 8], sizes = [8, 8], strides = [1, 1]} : vector<16x32xf32> to vector<8x8xf32>
      %174 = vector.extract_strided_slice %86 {offsets = [8, 8], sizes = [8, 8], strides = [1, 1]} : vector<16x32xf32> to vector<8x8xf32>
      %175 = vector.extract_strided_slice %91 {offsets = [8, 8], sizes = [8, 8], strides = [1, 1]} : vector<16x32xf32> to vector<8x8xf32>
      %cst_68 = arith.constant dense<0.000000e+00> : vector<8x8xf32>
      %176 = tpu.matmul %173, %174, %cst_68 {dimension_numbers = #tpu.dot_dimension_numbers<[1], [1], [0], [0], [0, 0, 1, 0], [], []>} : vector<8x8xf32>, vector<8x8xf32>, vector<8x8xf32> -> vector<8x8xf32>
      %cst_69 = arith.constant 0.353553385 : f32
      %177 = vector.broadcast %cst_69 : f32 to vector<8x8xf32>
      %178 = arith.mulf %176, %177 : vector<8x8xf32>
      %cst_70 = arith.constant dense<0xFF800000> : vector<8xf32>
      %179 = vector.multi_reduction <maximumf>, %178, %cst_70 [1] : vector<8x8xf32> to vector<8xf32>
      %180 = vector.shape_cast %179 : vector<8xf32> to vector<8x1xf32>
      %181 = vector.broadcast %180 : vector<8x1xf32> to vector<8x8xf32>
      %182 = arith.subf %178, %181 : vector<8x8xf32>
      %183 = math.exp %182 : vector<8x8xf32>
      %cst_71 = arith.constant dense<0.000000e+00> : vector<8xf32>
      %184 = vector.multi_reduction <add>, %183, %cst_71 [1] : vector<8x8xf32> to vector<8xf32>
      %185 = vector.shape_cast %184 : vector<8xf32> to vector<8x1xf32>
      %186 = vector.broadcast %185 : vector<8x1xf32> to vector<8x8xf32>
      %187 = arith.divf %183, %186 : vector<8x8xf32>
      %cst_72 = arith.constant dense<0.000000e+00> : vector<8x8xf32>
      %188 = tpu.matmul %187, %175, %cst_72 {dimension_numbers = #tpu.dot_dimension_numbers<[1], [0], [0], [1], [0, 0, 1, 1], [], []>} : vector<8x8xf32>, vector<8x8xf32>, vector<8x8xf32> -> vector<8x8xf32>
      %189 = vector.extract_strided_slice %81 {offsets = [8, 16], sizes = [8, 8], strides = [1, 1]} : vector<16x32xf32> to vector<8x8xf32>
      %190 = vector.extract_strided_slice %86 {offsets = [8, 16], sizes = [8, 8], strides = [1, 1]} : vector<16x32xf32> to vector<8x8xf32>
      %191 = vector.extract_strided_slice %91 {offsets = [8, 16], sizes = [8, 8], strides = [1, 1]} : vector<16x32xf32> to vector<8x8xf32>
      %cst_73 = arith.constant dense<0.000000e+00> : vector<8x8xf32>
      %192 = tpu.matmul %189, %190, %cst_73 {dimension_numbers = #tpu.dot_dimension_numbers<[1], [1], [0], [0], [0, 0, 1, 0], [], []>} : vector<8x8xf32>, vector<8x8xf32>, vector<8x8xf32> -> vector<8x8xf32>
      %cst_74 = arith.constant 0.353553385 : f32
      %193 = vector.broadcast %cst_74 : f32 to vector<8x8xf32>
      %194 = arith.mulf %192, %193 : vector<8x8xf32>
      %cst_75 = arith.constant dense<0xFF800000> : vector<8xf32>
      %195 = vector.multi_reduction <maximumf>, %194, %cst_75 [1] : vector<8x8xf32> to vector<8xf32>
      %196 = vector.shape_cast %195 : vector<8xf32> to vector<8x1xf32>
      %197 = vector.broadcast %196 : vector<8x1xf32> to vector<8x8xf32>
      %198 = arith.subf %194, %197 : vector<8x8xf32>
      %199 = math.exp %198 : vector<8x8xf32>
      %cst_76 = arith.constant dense<0.000000e+00> : vector<8xf32>
      %200 = vector.multi_reduction <add>, %199, %cst_76 [1] : vector<8x8xf32> to vector<8xf32>
      %201 = vector.shape_cast %200 : vector<8xf32> to vector<8x1xf32>
      %202 = vector.broadcast %201 : vector<8x1xf32> to vector<8x8xf32>
      %203 = arith.divf %199, %202 : vector<8x8xf32>
      %cst_77 = arith.constant dense<0.000000e+00> : vector<8x8xf32>
      %204 = tpu.matmul %203, %191, %cst_77 {dimension_numbers = #tpu.dot_dimension_numbers<[1], [0], [0], [1], [0, 0, 1, 1], [], []>} : vector<8x8xf32>, vector<8x8xf32>, vector<8x8xf32> -> vector<8x8xf32>
      %205 = vector.extract_strided_slice %81 {offsets = [8, 24], sizes = [8, 8], strides = [1, 1]} : vector<16x32xf32> to vector<8x8xf32>
      %206 = vector.extract_strided_slice %86 {offsets = [8, 24], sizes = [8, 8], strides = [1, 1]} : vector<16x32xf32> to vector<8x8xf32>
      %207 = vector.extract_strided_slice %91 {offsets = [8, 24], sizes = [8, 8], strides = [1, 1]} : vector<16x32xf32> to vector<8x8xf32>
      %cst_78 = arith.constant dense<0.000000e+00> : vector<8x8xf32>
      %208 = tpu.matmul %205, %206, %cst_78 {dimension_numbers = #tpu.dot_dimension_numbers<[1], [1], [0], [0], [0, 0, 1, 0], [], []>} : vector<8x8xf32>, vector<8x8xf32>, vector<8x8xf32> -> vector<8x8xf32>
      %cst_79 = arith.constant 0.353553385 : f32
      %209 = vector.broadcast %cst_79 : f32 to vector<8x8xf32>
      %210 = arith.mulf %208, %209 : vector<8x8xf32>
      %cst_80 = arith.constant dense<0xFF800000> : vector<8xf32>
      %211 = vector.multi_reduction <maximumf>, %210, %cst_80 [1] : vector<8x8xf32> to vector<8xf32>
      %212 = vector.shape_cast %211 : vector<8xf32> to vector<8x1xf32>
      %213 = vector.broadcast %212 : vector<8x1xf32> to vector<8x8xf32>
      %214 = arith.subf %210, %213 : vector<8x8xf32>
      %215 = math.exp %214 : vector<8x8xf32>
      %cst_81 = arith.constant dense<0.000000e+00> : vector<8xf32>
      %216 = vector.multi_reduction <add>, %215, %cst_81 [1] : vector<8x8xf32> to vector<8xf32>
      %217 = vector.shape_cast %216 : vector<8xf32> to vector<8x1xf32>
      %218 = vector.broadcast %217 : vector<8x1xf32> to vector<8x8xf32>
      %219 = arith.divf %215, %218 : vector<8x8xf32>
      %cst_82 = arith.constant dense<0.000000e+00> : vector<8x8xf32>
      %220 = tpu.matmul %219, %207, %cst_82 {dimension_numbers = #tpu.dot_dimension_numbers<[1], [0], [0], [1], [0, 0, 1, 1], [], []>} : vector<8x8xf32>, vector<8x8xf32>, vector<8x8xf32> -> vector<8x8xf32>
      %221 = tpu.concatenate %172, %188, %204, %220 in 1 : vector<8x8xf32>, vector<8x8xf32>, vector<8x8xf32>, vector<8x8xf32> -> vector<8x32xf32>
      %222 = tpu.concatenate %156, %221 in 0 : vector<8x32xf32>, vector<8x32xf32> -> vector<16x32xf32>
      %cst_83 = arith.constant dense<0.000000e+00> : vector<16x32xf32>
      %223 = tpu.matmul %222, %73, %cst_83 {dimension_numbers = #tpu.dot_dimension_numbers<[1], [0], [0], [1], [0, 0, 1, 1], [], []>} : vector<16x32xf32>, vector<32x32xf32>, vector<16x32xf32> -> vector<16x32xf32>
      %224 = vector.broadcast %76 : vector<1x32xf32> to vector<16x32xf32>
      %225 = arith.addf %223, %224 : vector<16x32xf32>
      %226 = arith.addf %arg40, %225 : vector<16x32xf32>
      %227 = arith.index_cast %arg39 : i32 to index
      %c0_84 = arith.constant 0 : index
      %c0_85 = arith.constant 0 : index
      %228 = vector.load %arg6[%227, %c0_84, %c0_85] : memref<2x1x32xf32, #tpu.memory_space<vmem>>, vector<1x1x32xf32>
      %229 = vector.shape_cast %228 : vector<1x1x32xf32> to vector<1x32xf32>
      %230 = arith.index_cast %arg39 : i32 to index
      %c0_86 = arith.constant 0 : index
      %c0_87 = arith.constant 0 : index
      %231 = vector.load %arg7[%230, %c0_86, %c0_87] : memref<2x1x32xf32, #tpu.memory_space<vmem>>, vector<1x1x32xf32>
      %232 = vector.shape_cast %231 : vector<1x1x32xf32> to vector<1x32xf32>
      %cst_88 = arith.constant dense<0.000000e+00> : vector<16xf32>
      %233 = vector.multi_reduction <add>, %226, %cst_88 [1] : vector<16x32xf32> to vector<16xf32>
      %234 = vector.shape_cast %233 : vector<16xf32> to vector<16x1xf32>
      %cst_89 = arith.constant 3.200000e+01 : f32
      %235 = vector.broadcast %cst_89 : f32 to vector<16x1xf32>
      %236 = arith.divf %234, %235 : vector<16x1xf32>
      %237 = vector.broadcast %236 : vector<16x1xf32> to vector<16x32xf32>
      %238 = arith.subf %226, %237 : vector<16x32xf32>
      %239 = arith.mulf %238, %238 : vector<16x32xf32>
      %cst_90 = arith.constant dense<0.000000e+00> : vector<16xf32>
      %240 = vector.multi_reduction <add>, %239, %cst_90 [1] : vector<16x32xf32> to vector<16xf32>
      %241 = vector.shape_cast %240 : vector<16xf32> to vector<16x1xf32>
      %cst_91 = arith.constant 3.200000e+01 : f32
      %242 = vector.broadcast %cst_91 : f32 to vector<16x1xf32>
      %243 = arith.divf %241, %242 : vector<16x1xf32>
      %cst_92 = arith.constant 9.99999974E-6 : f32
      %244 = vector.broadcast %cst_92 : f32 to vector<16x1xf32>
      %245 = arith.addf %243, %244 : vector<16x1xf32>
      %246 = math.rsqrt %245 : vector<16x1xf32>
      %247 = vector.broadcast %246 : vector<16x1xf32> to vector<16x32xf32>
      %248 = arith.mulf %238, %247 : vector<16x32xf32>
      %249 = vector.broadcast %229 : vector<1x32xf32> to vector<16x32xf32>
      %250 = arith.mulf %248, %249 : vector<16x32xf32>
      %251 = vector.broadcast %232 : vector<1x32xf32> to vector<16x32xf32>
      %252 = arith.addf %250, %251 : vector<16x32xf32>
      %253 = arith.index_cast %arg39 : i32 to index
      %c0_93 = arith.constant 0 : index
      %c0_94 = arith.constant 0 : index
      %254 = vector.load %arg8[%253, %c0_93, %c0_94] : memref<2x32x2048xf32, #tpu.memory_space<vmem>>, vector<1x32x2048xf32>
      %255 = vector.shape_cast %254 : vector<1x32x2048xf32> to vector<32x2048xf32>
      %256 = arith.index_cast %arg39 : i32 to index
      %c0_95 = arith.constant 0 : index
      %c0_96 = arith.constant 0 : index
      %257 = vector.load %arg9[%256, %c0_95, %c0_96] : memref<2x1x2048xf32, #tpu.memory_space<vmem>>, vector<1x1x2048xf32>
      %258 = vector.shape_cast %257 : vector<1x1x2048xf32> to vector<1x2048xf32>
      %259 = arith.index_cast %arg39 : i32 to index
      %c0_97 = arith.constant 0 : index
      %c0_98 = arith.constant 0 : index
      %260 = vector.load %arg10[%259, %c0_97, %c0_98] : memref<2x2048x32xf32, #tpu.memory_space<vmem>>, vector<1x2048x32xf32>
      %261 = vector.shape_cast %260 : vector<1x2048x32xf32> to vector<2048x32xf32>
      %262 = arith.index_cast %arg39 : i32 to index
      %c0_99 = arith.constant 0 : index
      %c0_100 = arith.constant 0 : index
      %263 = vector.load %arg11[%262, %c0_99, %c0_100] : memref<2x1x32xf32, #tpu.memory_space<vmem>>, vector<1x1x32xf32>
      %264 = vector.shape_cast %263 : vector<1x1x32xf32> to vector<1x32xf32>
      %cst_101 = arith.constant dense<0.000000e+00> : vector<16x2048xf32>
      %265 = tpu.matmul %252, %255, %cst_101 {dimension_numbers = #tpu.dot_dimension_numbers<[1], [0], [0], [1], [0, 0, 1, 1], [], []>} : vector<16x32xf32>, vector<32x2048xf32>, vector<16x2048xf32> -> vector<16x2048xf32>
      %266 = vector.broadcast %258 : vector<1x2048xf32> to vector<16x2048xf32>
      %267 = arith.addf %265, %266 : vector<16x2048xf32>
      %cst_102 = arith.constant 0.000000e+00 : f32
      %268 = vector.broadcast %cst_102 : f32 to vector<16x2048xf32>
      %269 = arith.maximumf %267, %268 : vector<16x2048xf32>
      %cst_103 = arith.constant dense<0.000000e+00> : vector<16x32xf32>
      %270 = tpu.matmul %269, %261, %cst_103 {dimension_numbers = #tpu.dot_dimension_numbers<[1], [0], [0], [1], [0, 0, 1, 1], [], []>} : vector<16x2048xf32>, vector<2048x32xf32>, vector<16x32xf32> -> vector<16x32xf32>
      %271 = vector.broadcast %264 : vector<1x32xf32> to vector<16x32xf32>
      %272 = arith.addf %270, %271 : vector<16x32xf32>
      %273 = arith.addf %252, %272 : vector<16x32xf32>
      %274 = arith.index_cast %arg39 : i32 to index
      %c0_104 = arith.constant 0 : index
      %c0_105 = arith.constant 0 : index
      %275 = vector.load %arg12[%274, %c0_104, %c0_105] : memref<2x1x32xf32, #tpu.memory_space<vmem>>, vector<1x1x32xf32>
      %276 = vector.shape_cast %275 : vector<1x1x32xf32> to vector<1x32xf32>
      %277 = arith.index_cast %arg39 : i32 to index
      %c0_106 = arith.constant 0 : index
      %c0_107 = arith.constant 0 : index
      %278 = vector.load %arg13[%277, %c0_106, %c0_107] : memref<2x1x32xf32, #tpu.memory_space<vmem>>, vector<1x1x32xf32>
      %279 = vector.shape_cast %278 : vector<1x1x32xf32> to vector<1x32xf32>
      %cst_108 = arith.constant dense<0.000000e+00> : vector<16xf32>
      %280 = vector.multi_reduction <add>, %273, %cst_108 [1] : vector<16x32xf32> to vector<16xf32>
      %281 = vector.shape_cast %280 : vector<16xf32> to vector<16x1xf32>
      %cst_109 = arith.constant 3.200000e+01 : f32
      %282 = vector.broadcast %cst_109 : f32 to vector<16x1xf32>
      %283 = arith.divf %281, %282 : vector<16x1xf32>
      %284 = vector.broadcast %283 : vector<16x1xf32> to vector<16x32xf32>
      %285 = arith.subf %273, %284 : vector<16x32xf32>
      %286 = arith.mulf %285, %285 : vector<16x32xf32>
      %cst_110 = arith.constant dense<0.000000e+00> : vector<16xf32>
      %287 = vector.multi_reduction <add>, %286, %cst_110 [1] : vector<16x32xf32> to vector<16xf32>
      %288 = vector.shape_cast %287 : vector<16xf32> to vector<16x1xf32>
      %cst_111 = arith.constant 3.200000e+01 : f32
      %289 = vector.broadcast %cst_111 : f32 to vector<16x1xf32>
      %290 = arith.divf %288, %289 : vector<16x1xf32>
      %cst_112 = arith.constant 9.99999974E-6 : f32
      %291 = vector.broadcast %cst_112 : f32 to vector<16x1xf32>
      %292 = arith.addf %290, %291 : vector<16x1xf32>
      %293 = math.rsqrt %292 : vector<16x1xf32>
      %294 = vector.broadcast %293 : vector<16x1xf32> to vector<16x32xf32>
      %295 = arith.mulf %285, %294 : vector<16x32xf32>
      %296 = vector.broadcast %276 : vector<1x32xf32> to vector<16x32xf32>
      %297 = arith.mulf %295, %296 : vector<16x32xf32>
      %298 = vector.broadcast %279 : vector<1x32xf32> to vector<16x32xf32>
      %299 = arith.addf %297, %298 : vector<16x32xf32>
      scf.yield %299 : vector<16x32xf32>
    }
    %c2_i32_3 = arith.constant 2 : i32
    %c0_4 = arith.constant 0 : index
    %c0_5 = arith.constant 0 : index
    %10 = vector.load %arg14[%c0_4, %c0_5] : memref<1x32xf32, #tpu.memory_space<vmem>>, vector<1x32xf32>
    %c0_6 = arith.constant 0 : index
    %c0_7 = arith.constant 0 : index
    %11 = vector.load %arg15[%c0_6, %c0_7] : memref<1x32xf32, #tpu.memory_space<vmem>>, vector<1x32xf32>
    %cst_8 = arith.constant dense<0.000000e+00> : vector<16xf32>
    %12 = vector.multi_reduction <add>, %9, %cst_8 [1] : vector<16x32xf32> to vector<16xf32>
    %13 = vector.shape_cast %12 : vector<16xf32> to vector<16x1xf32>
    %cst_9 = arith.constant 3.200000e+01 : f32
    %14 = vector.broadcast %cst_9 : f32 to vector<16x1xf32>
    %15 = arith.divf %13, %14 : vector<16x1xf32>
    %16 = vector.broadcast %15 : vector<16x1xf32> to vector<16x32xf32>
    %17 = arith.subf %9, %16 : vector<16x32xf32>
    %18 = arith.mulf %17, %17 : vector<16x32xf32>
    %cst_10 = arith.constant dense<0.000000e+00> : vector<16xf32>
    %19 = vector.multi_reduction <add>, %18, %cst_10 [1] : vector<16x32xf32> to vector<16xf32>
    %20 = vector.shape_cast %19 : vector<16xf32> to vector<16x1xf32>
    %cst_11 = arith.constant 3.200000e+01 : f32
    %21 = vector.broadcast %cst_11 : f32 to vector<16x1xf32>
    %22 = arith.divf %20, %21 : vector<16x1xf32>
    %cst_12 = arith.constant 9.99999974E-6 : f32
    %23 = vector.broadcast %cst_12 : f32 to vector<16x1xf32>
    %24 = arith.addf %22, %23 : vector<16x1xf32>
    %25 = math.rsqrt %24 : vector<16x1xf32>
    %26 = vector.broadcast %25 : vector<16x1xf32> to vector<16x32xf32>
    %27 = arith.mulf %17, %26 : vector<16x32xf32>
    %28 = vector.broadcast %10 : vector<1x32xf32> to vector<16x32xf32>
    %29 = arith.mulf %27, %28 : vector<16x32xf32>
    %30 = vector.broadcast %11 : vector<1x32xf32> to vector<16x32xf32>
    %31 = arith.addf %29, %30 : vector<16x32xf32>
    %c0_i32_13 = arith.constant 0 : i32
    %c6_i32 = arith.constant 6 : i32
    %32 = arith.addi %c0_i32_13, %c6_i32 : i32
    %c1_i32_14 = arith.constant 1 : i32
    %33 = scf.for %arg39 = %c0_i32_13 to %32 step %c1_i32_14 iter_args(%arg40 = %7) -> (vector<16x32xf32>)  : i32 {
      %65 = arith.index_cast %arg39 : i32 to index
      %c0_32 = arith.constant 0 : index
      %c0_33 = arith.constant 0 : index
      %66 = vector.load %arg16[%65, %c0_32, %c0_33] : memref<6x32x96xf32, #tpu.memory_space<vmem>>, vector<1x32x96xf32>
      %67 = vector.shape_cast %66 : vector<1x32x96xf32> to vector<32x96xf32>
      %68 = arith.index_cast %arg39 : i32 to index
      %c0_34 = arith.constant 0 : index
      %c0_35 = arith.constant 0 : index
      %69 = vector.load %arg17[%68, %c0_34, %c0_35] : memref<6x1x96xf32, #tpu.memory_space<vmem>>, vector<1x1x96xf32>
      %70 = vector.shape_cast %69 : vector<1x1x96xf32> to vector<1x96xf32>
      %71 = arith.index_cast %arg39 : i32 to index
      %c0_36 = arith.constant 0 : index
      %c0_37 = arith.constant 0 : index
      %72 = vector.load %arg18[%71, %c0_36, %c0_37] : memref<6x32x32xf32, #tpu.memory_space<vmem>>, vector<1x32x32xf32>
      %73 = vector.shape_cast %72 : vector<1x32x32xf32> to vector<32x32xf32>
      %74 = arith.index_cast %arg39 : i32 to index
      %c0_38 = arith.constant 0 : index
      %c0_39 = arith.constant 0 : index
      %75 = vector.load %arg19[%74, %c0_38, %c0_39] : memref<6x1x32xf32, #tpu.memory_space<vmem>>, vector<1x1x32xf32>
      %76 = vector.shape_cast %75 : vector<1x1x32xf32> to vector<1x32xf32>
      %77 = vector.extract_strided_slice %67 {offsets = [0, 0], sizes = [32, 32], strides = [1, 1]} : vector<32x96xf32> to vector<32x32xf32>
      %cst_40 = arith.constant dense<0.000000e+00> : vector<16x32xf32>
      %78 = tpu.matmul %arg40, %77, %cst_40 {dimension_numbers = #tpu.dot_dimension_numbers<[1], [0], [0], [1], [0, 0, 1, 1], [], []>} : vector<16x32xf32>, vector<32x32xf32>, vector<16x32xf32> -> vector<16x32xf32>
      %79 = vector.extract_strided_slice %70 {offsets = [0, 0], sizes = [1, 32], strides = [1, 1]} : vector<1x96xf32> to vector<1x32xf32>
      %80 = vector.broadcast %79 : vector<1x32xf32> to vector<16x32xf32>
      %81 = arith.addf %78, %80 : vector<16x32xf32>
      %82 = vector.extract_strided_slice %67 {offsets = [0, 32], sizes = [32, 32], strides = [1, 1]} : vector<32x96xf32> to vector<32x32xf32>
      %cst_41 = arith.constant dense<0.000000e+00> : vector<16x32xf32>
      %83 = tpu.matmul %arg40, %82, %cst_41 {dimension_numbers = #tpu.dot_dimension_numbers<[1], [0], [0], [1], [0, 0, 1, 1], [], []>} : vector<16x32xf32>, vector<32x32xf32>, vector<16x32xf32> -> vector<16x32xf32>
      %84 = vector.extract_strided_slice %70 {offsets = [0, 32], sizes = [1, 32], strides = [1, 1]} : vector<1x96xf32> to vector<1x32xf32>
      %85 = vector.broadcast %84 : vector<1x32xf32> to vector<16x32xf32>
      %86 = arith.addf %83, %85 : vector<16x32xf32>
      %87 = vector.extract_strided_slice %67 {offsets = [0, 64], sizes = [32, 32], strides = [1, 1]} : vector<32x96xf32> to vector<32x32xf32>
      %cst_42 = arith.constant dense<0.000000e+00> : vector<16x32xf32>
      %88 = tpu.matmul %arg40, %87, %cst_42 {dimension_numbers = #tpu.dot_dimension_numbers<[1], [0], [0], [1], [0, 0, 1, 1], [], []>} : vector<16x32xf32>, vector<32x32xf32>, vector<16x32xf32> -> vector<16x32xf32>
      %89 = vector.extract_strided_slice %70 {offsets = [0, 64], sizes = [1, 32], strides = [1, 1]} : vector<1x96xf32> to vector<1x32xf32>
      %90 = vector.broadcast %89 : vector<1x32xf32> to vector<16x32xf32>
      %91 = arith.addf %88, %90 : vector<16x32xf32>
      %92 = vector.extract_strided_slice %81 {offsets = [0, 0], sizes = [8, 8], strides = [1, 1]} : vector<16x32xf32> to vector<8x8xf32>
      %93 = vector.extract_strided_slice %86 {offsets = [0, 0], sizes = [8, 8], strides = [1, 1]} : vector<16x32xf32> to vector<8x8xf32>
      %94 = vector.extract_strided_slice %91 {offsets = [0, 0], sizes = [8, 8], strides = [1, 1]} : vector<16x32xf32> to vector<8x8xf32>
      %cst_43 = arith.constant dense<0.000000e+00> : vector<8x8xf32>
      %95 = tpu.matmul %92, %93, %cst_43 {dimension_numbers = #tpu.dot_dimension_numbers<[1], [1], [0], [0], [0, 0, 1, 0], [], []>} : vector<8x8xf32>, vector<8x8xf32>, vector<8x8xf32> -> vector<8x8xf32>
      %cst_44 = arith.constant 0.353553385 : f32
      %96 = vector.broadcast %cst_44 : f32 to vector<8x8xf32>
      %97 = arith.mulf %95, %96 : vector<8x8xf32>
      %cst_45 = arith.constant dense<0xFF800000> : vector<8xf32>
      %98 = vector.multi_reduction <maximumf>, %97, %cst_45 [1] : vector<8x8xf32> to vector<8xf32>
      %99 = vector.shape_cast %98 : vector<8xf32> to vector<8x1xf32>
      %100 = vector.broadcast %99 : vector<8x1xf32> to vector<8x8xf32>
      %101 = arith.subf %97, %100 : vector<8x8xf32>
      %102 = math.exp %101 : vector<8x8xf32>
      %cst_46 = arith.constant dense<0.000000e+00> : vector<8xf32>
      %103 = vector.multi_reduction <add>, %102, %cst_46 [1] : vector<8x8xf32> to vector<8xf32>
      %104 = vector.shape_cast %103 : vector<8xf32> to vector<8x1xf32>
      %105 = vector.broadcast %104 : vector<8x1xf32> to vector<8x8xf32>
      %106 = arith.divf %102, %105 : vector<8x8xf32>
      %cst_47 = arith.constant dense<0.000000e+00> : vector<8x8xf32>
      %107 = tpu.matmul %106, %94, %cst_47 {dimension_numbers = #tpu.dot_dimension_numbers<[1], [0], [0], [1], [0, 0, 1, 1], [], []>} : vector<8x8xf32>, vector<8x8xf32>, vector<8x8xf32> -> vector<8x8xf32>
      %108 = vector.extract_strided_slice %81 {offsets = [0, 8], sizes = [8, 8], strides = [1, 1]} : vector<16x32xf32> to vector<8x8xf32>
      %109 = vector.extract_strided_slice %86 {offsets = [0, 8], sizes = [8, 8], strides = [1, 1]} : vector<16x32xf32> to vector<8x8xf32>
      %110 = vector.extract_strided_slice %91 {offsets = [0, 8], sizes = [8, 8], strides = [1, 1]} : vector<16x32xf32> to vector<8x8xf32>
      %cst_48 = arith.constant dense<0.000000e+00> : vector<8x8xf32>
      %111 = tpu.matmul %108, %109, %cst_48 {dimension_numbers = #tpu.dot_dimension_numbers<[1], [1], [0], [0], [0, 0, 1, 0], [], []>} : vector<8x8xf32>, vector<8x8xf32>, vector<8x8xf32> -> vector<8x8xf32>
      %cst_49 = arith.constant 0.353553385 : f32
      %112 = vector.broadcast %cst_49 : f32 to vector<8x8xf32>
      %113 = arith.mulf %111, %112 : vector<8x8xf32>
      %cst_50 = arith.constant dense<0xFF800000> : vector<8xf32>
      %114 = vector.multi_reduction <maximumf>, %113, %cst_50 [1] : vector<8x8xf32> to vector<8xf32>
      %115 = vector.shape_cast %114 : vector<8xf32> to vector<8x1xf32>
      %116 = vector.broadcast %115 : vector<8x1xf32> to vector<8x8xf32>
      %117 = arith.subf %113, %116 : vector<8x8xf32>
      %118 = math.exp %117 : vector<8x8xf32>
      %cst_51 = arith.constant dense<0.000000e+00> : vector<8xf32>
      %119 = vector.multi_reduction <add>, %118, %cst_51 [1] : vector<8x8xf32> to vector<8xf32>
      %120 = vector.shape_cast %119 : vector<8xf32> to vector<8x1xf32>
      %121 = vector.broadcast %120 : vector<8x1xf32> to vector<8x8xf32>
      %122 = arith.divf %118, %121 : vector<8x8xf32>
      %cst_52 = arith.constant dense<0.000000e+00> : vector<8x8xf32>
      %123 = tpu.matmul %122, %110, %cst_52 {dimension_numbers = #tpu.dot_dimension_numbers<[1], [0], [0], [1], [0, 0, 1, 1], [], []>} : vector<8x8xf32>, vector<8x8xf32>, vector<8x8xf32> -> vector<8x8xf32>
      %124 = vector.extract_strided_slice %81 {offsets = [0, 16], sizes = [8, 8], strides = [1, 1]} : vector<16x32xf32> to vector<8x8xf32>
      %125 = vector.extract_strided_slice %86 {offsets = [0, 16], sizes = [8, 8], strides = [1, 1]} : vector<16x32xf32> to vector<8x8xf32>
      %126 = vector.extract_strided_slice %91 {offsets = [0, 16], sizes = [8, 8], strides = [1, 1]} : vector<16x32xf32> to vector<8x8xf32>
      %cst_53 = arith.constant dense<0.000000e+00> : vector<8x8xf32>
      %127 = tpu.matmul %124, %125, %cst_53 {dimension_numbers = #tpu.dot_dimension_numbers<[1], [1], [0], [0], [0, 0, 1, 0], [], []>} : vector<8x8xf32>, vector<8x8xf32>, vector<8x8xf32> -> vector<8x8xf32>
      %cst_54 = arith.constant 0.353553385 : f32
      %128 = vector.broadcast %cst_54 : f32 to vector<8x8xf32>
      %129 = arith.mulf %127, %128 : vector<8x8xf32>
      %cst_55 = arith.constant dense<0xFF800000> : vector<8xf32>
      %130 = vector.multi_reduction <maximumf>, %129, %cst_55 [1] : vector<8x8xf32> to vector<8xf32>
      %131 = vector.shape_cast %130 : vector<8xf32> to vector<8x1xf32>
      %132 = vector.broadcast %131 : vector<8x1xf32> to vector<8x8xf32>
      %133 = arith.subf %129, %132 : vector<8x8xf32>
      %134 = math.exp %133 : vector<8x8xf32>
      %cst_56 = arith.constant dense<0.000000e+00> : vector<8xf32>
      %135 = vector.multi_reduction <add>, %134, %cst_56 [1] : vector<8x8xf32> to vector<8xf32>
      %136 = vector.shape_cast %135 : vector<8xf32> to vector<8x1xf32>
      %137 = vector.broadcast %136 : vector<8x1xf32> to vector<8x8xf32>
      %138 = arith.divf %134, %137 : vector<8x8xf32>
      %cst_57 = arith.constant dense<0.000000e+00> : vector<8x8xf32>
      %139 = tpu.matmul %138, %126, %cst_57 {dimension_numbers = #tpu.dot_dimension_numbers<[1], [0], [0], [1], [0, 0, 1, 1], [], []>} : vector<8x8xf32>, vector<8x8xf32>, vector<8x8xf32> -> vector<8x8xf32>
      %140 = vector.extract_strided_slice %81 {offsets = [0, 24], sizes = [8, 8], strides = [1, 1]} : vector<16x32xf32> to vector<8x8xf32>
      %141 = vector.extract_strided_slice %86 {offsets = [0, 24], sizes = [8, 8], strides = [1, 1]} : vector<16x32xf32> to vector<8x8xf32>
      %142 = vector.extract_strided_slice %91 {offsets = [0, 24], sizes = [8, 8], strides = [1, 1]} : vector<16x32xf32> to vector<8x8xf32>
      %cst_58 = arith.constant dense<0.000000e+00> : vector<8x8xf32>
      %143 = tpu.matmul %140, %141, %cst_58 {dimension_numbers = #tpu.dot_dimension_numbers<[1], [1], [0], [0], [0, 0, 1, 0], [], []>} : vector<8x8xf32>, vector<8x8xf32>, vector<8x8xf32> -> vector<8x8xf32>
      %cst_59 = arith.constant 0.353553385 : f32
      %144 = vector.broadcast %cst_59 : f32 to vector<8x8xf32>
      %145 = arith.mulf %143, %144 : vector<8x8xf32>
      %cst_60 = arith.constant dense<0xFF800000> : vector<8xf32>
      %146 = vector.multi_reduction <maximumf>, %145, %cst_60 [1] : vector<8x8xf32> to vector<8xf32>
      %147 = vector.shape_cast %146 : vector<8xf32> to vector<8x1xf32>
      %148 = vector.broadcast %147 : vector<8x1xf32> to vector<8x8xf32>
      %149 = arith.subf %145, %148 : vector<8x8xf32>
      %150 = math.exp %149 : vector<8x8xf32>
      %cst_61 = arith.constant dense<0.000000e+00> : vector<8xf32>
      %151 = vector.multi_reduction <add>, %150, %cst_61 [1] : vector<8x8xf32> to vector<8xf32>
      %152 = vector.shape_cast %151 : vector<8xf32> to vector<8x1xf32>
      %153 = vector.broadcast %152 : vector<8x1xf32> to vector<8x8xf32>
      %154 = arith.divf %150, %153 : vector<8x8xf32>
      %cst_62 = arith.constant dense<0.000000e+00> : vector<8x8xf32>
      %155 = tpu.matmul %154, %142, %cst_62 {dimension_numbers = #tpu.dot_dimension_numbers<[1], [0], [0], [1], [0, 0, 1, 1], [], []>} : vector<8x8xf32>, vector<8x8xf32>, vector<8x8xf32> -> vector<8x8xf32>
      %156 = tpu.concatenate %107, %123, %139, %155 in 1 : vector<8x8xf32>, vector<8x8xf32>, vector<8x8xf32>, vector<8x8xf32> -> vector<8x32xf32>
      %157 = vector.extract_strided_slice %81 {offsets = [8, 0], sizes = [8, 8], strides = [1, 1]} : vector<16x32xf32> to vector<8x8xf32>
      %158 = vector.extract_strided_slice %86 {offsets = [8, 0], sizes = [8, 8], strides = [1, 1]} : vector<16x32xf32> to vector<8x8xf32>
      %159 = vector.extract_strided_slice %91 {offsets = [8, 0], sizes = [8, 8], strides = [1, 1]} : vector<16x32xf32> to vector<8x8xf32>
      %cst_63 = arith.constant dense<0.000000e+00> : vector<8x8xf32>
      %160 = tpu.matmul %157, %158, %cst_63 {dimension_numbers = #tpu.dot_dimension_numbers<[1], [1], [0], [0], [0, 0, 1, 0], [], []>} : vector<8x8xf32>, vector<8x8xf32>, vector<8x8xf32> -> vector<8x8xf32>
      %cst_64 = arith.constant 0.353553385 : f32
      %161 = vector.broadcast %cst_64 : f32 to vector<8x8xf32>
      %162 = arith.mulf %160, %161 : vector<8x8xf32>
      %cst_65 = arith.constant dense<0xFF800000> : vector<8xf32>
      %163 = vector.multi_reduction <maximumf>, %162, %cst_65 [1] : vector<8x8xf32> to vector<8xf32>
      %164 = vector.shape_cast %163 : vector<8xf32> to vector<8x1xf32>
      %165 = vector.broadcast %164 : vector<8x1xf32> to vector<8x8xf32>
      %166 = arith.subf %162, %165 : vector<8x8xf32>
      %167 = math.exp %166 : vector<8x8xf32>
      %cst_66 = arith.constant dense<0.000000e+00> : vector<8xf32>
      %168 = vector.multi_reduction <add>, %167, %cst_66 [1] : vector<8x8xf32> to vector<8xf32>
      %169 = vector.shape_cast %168 : vector<8xf32> to vector<8x1xf32>
      %170 = vector.broadcast %169 : vector<8x1xf32> to vector<8x8xf32>
      %171 = arith.divf %167, %170 : vector<8x8xf32>
      %cst_67 = arith.constant dense<0.000000e+00> : vector<8x8xf32>
      %172 = tpu.matmul %171, %159, %cst_67 {dimension_numbers = #tpu.dot_dimension_numbers<[1], [0], [0], [1], [0, 0, 1, 1], [], []>} : vector<8x8xf32>, vector<8x8xf32>, vector<8x8xf32> -> vector<8x8xf32>
      %173 = vector.extract_strided_slice %81 {offsets = [8, 8], sizes = [8, 8], strides = [1, 1]} : vector<16x32xf32> to vector<8x8xf32>
      %174 = vector.extract_strided_slice %86 {offsets = [8, 8], sizes = [8, 8], strides = [1, 1]} : vector<16x32xf32> to vector<8x8xf32>
      %175 = vector.extract_strided_slice %91 {offsets = [8, 8], sizes = [8, 8], strides = [1, 1]} : vector<16x32xf32> to vector<8x8xf32>
      %cst_68 = arith.constant dense<0.000000e+00> : vector<8x8xf32>
      %176 = tpu.matmul %173, %174, %cst_68 {dimension_numbers = #tpu.dot_dimension_numbers<[1], [1], [0], [0], [0, 0, 1, 0], [], []>} : vector<8x8xf32>, vector<8x8xf32>, vector<8x8xf32> -> vector<8x8xf32>
      %cst_69 = arith.constant 0.353553385 : f32
      %177 = vector.broadcast %cst_69 : f32 to vector<8x8xf32>
      %178 = arith.mulf %176, %177 : vector<8x8xf32>
      %cst_70 = arith.constant dense<0xFF800000> : vector<8xf32>
      %179 = vector.multi_reduction <maximumf>, %178, %cst_70 [1] : vector<8x8xf32> to vector<8xf32>
      %180 = vector.shape_cast %179 : vector<8xf32> to vector<8x1xf32>
      %181 = vector.broadcast %180 : vector<8x1xf32> to vector<8x8xf32>
      %182 = arith.subf %178, %181 : vector<8x8xf32>
      %183 = math.exp %182 : vector<8x8xf32>
      %cst_71 = arith.constant dense<0.000000e+00> : vector<8xf32>
      %184 = vector.multi_reduction <add>, %183, %cst_71 [1] : vector<8x8xf32> to vector<8xf32>
      %185 = vector.shape_cast %184 : vector<8xf32> to vector<8x1xf32>
      %186 = vector.broadcast %185 : vector<8x1xf32> to vector<8x8xf32>
      %187 = arith.divf %183, %186 : vector<8x8xf32>
      %cst_72 = arith.constant dense<0.000000e+00> : vector<8x8xf32>
      %188 = tpu.matmul %187, %175, %cst_72 {dimension_numbers = #tpu.dot_dimension_numbers<[1], [0], [0], [1], [0, 0, 1, 1], [], []>} : vector<8x8xf32>, vector<8x8xf32>, vector<8x8xf32> -> vector<8x8xf32>
      %189 = vector.extract_strided_slice %81 {offsets = [8, 16], sizes = [8, 8], strides = [1, 1]} : vector<16x32xf32> to vector<8x8xf32>
      %190 = vector.extract_strided_slice %86 {offsets = [8, 16], sizes = [8, 8], strides = [1, 1]} : vector<16x32xf32> to vector<8x8xf32>
      %191 = vector.extract_strided_slice %91 {offsets = [8, 16], sizes = [8, 8], strides = [1, 1]} : vector<16x32xf32> to vector<8x8xf32>
      %cst_73 = arith.constant dense<0.000000e+00> : vector<8x8xf32>
      %192 = tpu.matmul %189, %190, %cst_73 {dimension_numbers = #tpu.dot_dimension_numbers<[1], [1], [0], [0], [0, 0, 1, 0], [], []>} : vector<8x8xf32>, vector<8x8xf32>, vector<8x8xf32> -> vector<8x8xf32>
      %cst_74 = arith.constant 0.353553385 : f32
      %193 = vector.broadcast %cst_74 : f32 to vector<8x8xf32>
      %194 = arith.mulf %192, %193 : vector<8x8xf32>
      %cst_75 = arith.constant dense<0xFF800000> : vector<8xf32>
      %195 = vector.multi_reduction <maximumf>, %194, %cst_75 [1] : vector<8x8xf32> to vector<8xf32>
      %196 = vector.shape_cast %195 : vector<8xf32> to vector<8x1xf32>
      %197 = vector.broadcast %196 : vector<8x1xf32> to vector<8x8xf32>
      %198 = arith.subf %194, %197 : vector<8x8xf32>
      %199 = math.exp %198 : vector<8x8xf32>
      %cst_76 = arith.constant dense<0.000000e+00> : vector<8xf32>
      %200 = vector.multi_reduction <add>, %199, %cst_76 [1] : vector<8x8xf32> to vector<8xf32>
      %201 = vector.shape_cast %200 : vector<8xf32> to vector<8x1xf32>
      %202 = vector.broadcast %201 : vector<8x1xf32> to vector<8x8xf32>
      %203 = arith.divf %199, %202 : vector<8x8xf32>
      %cst_77 = arith.constant dense<0.000000e+00> : vector<8x8xf32>
      %204 = tpu.matmul %203, %191, %cst_77 {dimension_numbers = #tpu.dot_dimension_numbers<[1], [0], [0], [1], [0, 0, 1, 1], [], []>} : vector<8x8xf32>, vector<8x8xf32>, vector<8x8xf32> -> vector<8x8xf32>
      %205 = vector.extract_strided_slice %81 {offsets = [8, 24], sizes = [8, 8], strides = [1, 1]} : vector<16x32xf32> to vector<8x8xf32>
      %206 = vector.extract_strided_slice %86 {offsets = [8, 24], sizes = [8, 8], strides = [1, 1]} : vector<16x32xf32> to vector<8x8xf32>
      %207 = vector.extract_strided_slice %91 {offsets = [8, 24], sizes = [8, 8], strides = [1, 1]} : vector<16x32xf32> to vector<8x8xf32>
      %cst_78 = arith.constant dense<0.000000e+00> : vector<8x8xf32>
      %208 = tpu.matmul %205, %206, %cst_78 {dimension_numbers = #tpu.dot_dimension_numbers<[1], [1], [0], [0], [0, 0, 1, 0], [], []>} : vector<8x8xf32>, vector<8x8xf32>, vector<8x8xf32> -> vector<8x8xf32>
      %cst_79 = arith.constant 0.353553385 : f32
      %209 = vector.broadcast %cst_79 : f32 to vector<8x8xf32>
      %210 = arith.mulf %208, %209 : vector<8x8xf32>
      %cst_80 = arith.constant dense<0xFF800000> : vector<8xf32>
      %211 = vector.multi_reduction <maximumf>, %210, %cst_80 [1] : vector<8x8xf32> to vector<8xf32>
      %212 = vector.shape_cast %211 : vector<8xf32> to vector<8x1xf32>
      %213 = vector.broadcast %212 : vector<8x1xf32> to vector<8x8xf32>
      %214 = arith.subf %210, %213 : vector<8x8xf32>
      %215 = math.exp %214 : vector<8x8xf32>
      %cst_81 = arith.constant dense<0.000000e+00> : vector<8xf32>
      %216 = vector.multi_reduction <add>, %215, %cst_81 [1] : vector<8x8xf32> to vector<8xf32>
      %217 = vector.shape_cast %216 : vector<8xf32> to vector<8x1xf32>
      %218 = vector.broadcast %217 : vector<8x1xf32> to vector<8x8xf32>
      %219 = arith.divf %215, %218 : vector<8x8xf32>
      %cst_82 = arith.constant dense<0.000000e+00> : vector<8x8xf32>
      %220 = tpu.matmul %219, %207, %cst_82 {dimension_numbers = #tpu.dot_dimension_numbers<[1], [0], [0], [1], [0, 0, 1, 1], [], []>} : vector<8x8xf32>, vector<8x8xf32>, vector<8x8xf32> -> vector<8x8xf32>
      %221 = tpu.concatenate %172, %188, %204, %220 in 1 : vector<8x8xf32>, vector<8x8xf32>, vector<8x8xf32>, vector<8x8xf32> -> vector<8x32xf32>
      %222 = tpu.concatenate %156, %221 in 0 : vector<8x32xf32>, vector<8x32xf32> -> vector<16x32xf32>
      %cst_83 = arith.constant dense<0.000000e+00> : vector<16x32xf32>
      %223 = tpu.matmul %222, %73, %cst_83 {dimension_numbers = #tpu.dot_dimension_numbers<[1], [0], [0], [1], [0, 0, 1, 1], [], []>} : vector<16x32xf32>, vector<32x32xf32>, vector<16x32xf32> -> vector<16x32xf32>
      %224 = vector.broadcast %76 : vector<1x32xf32> to vector<16x32xf32>
      %225 = arith.addf %223, %224 : vector<16x32xf32>
      %226 = arith.addf %arg40, %225 : vector<16x32xf32>
      %227 = arith.index_cast %arg39 : i32 to index
      %c0_84 = arith.constant 0 : index
      %c0_85 = arith.constant 0 : index
      %228 = vector.load %arg20[%227, %c0_84, %c0_85] : memref<6x1x32xf32, #tpu.memory_space<vmem>>, vector<1x1x32xf32>
      %229 = vector.shape_cast %228 : vector<1x1x32xf32> to vector<1x32xf32>
      %230 = arith.index_cast %arg39 : i32 to index
      %c0_86 = arith.constant 0 : index
      %c0_87 = arith.constant 0 : index
      %231 = vector.load %arg21[%230, %c0_86, %c0_87] : memref<6x1x32xf32, #tpu.memory_space<vmem>>, vector<1x1x32xf32>
      %232 = vector.shape_cast %231 : vector<1x1x32xf32> to vector<1x32xf32>
      %cst_88 = arith.constant dense<0.000000e+00> : vector<16xf32>
      %233 = vector.multi_reduction <add>, %226, %cst_88 [1] : vector<16x32xf32> to vector<16xf32>
      %234 = vector.shape_cast %233 : vector<16xf32> to vector<16x1xf32>
      %cst_89 = arith.constant 3.200000e+01 : f32
      %235 = vector.broadcast %cst_89 : f32 to vector<16x1xf32>
      %236 = arith.divf %234, %235 : vector<16x1xf32>
      %237 = vector.broadcast %236 : vector<16x1xf32> to vector<16x32xf32>
      %238 = arith.subf %226, %237 : vector<16x32xf32>
      %239 = arith.mulf %238, %238 : vector<16x32xf32>
      %cst_90 = arith.constant dense<0.000000e+00> : vector<16xf32>
      %240 = vector.multi_reduction <add>, %239, %cst_90 [1] : vector<16x32xf32> to vector<16xf32>
      %241 = vector.shape_cast %240 : vector<16xf32> to vector<16x1xf32>
      %cst_91 = arith.constant 3.200000e+01 : f32
      %242 = vector.broadcast %cst_91 : f32 to vector<16x1xf32>
      %243 = arith.divf %241, %242 : vector<16x1xf32>
      %cst_92 = arith.constant 9.99999974E-6 : f32
      %244 = vector.broadcast %cst_92 : f32 to vector<16x1xf32>
      %245 = arith.addf %243, %244 : vector<16x1xf32>
      %246 = math.rsqrt %245 : vector<16x1xf32>
      %247 = vector.broadcast %246 : vector<16x1xf32> to vector<16x32xf32>
      %248 = arith.mulf %238, %247 : vector<16x32xf32>
      %249 = vector.broadcast %229 : vector<1x32xf32> to vector<16x32xf32>
      %250 = arith.mulf %248, %249 : vector<16x32xf32>
      %251 = vector.broadcast %232 : vector<1x32xf32> to vector<16x32xf32>
      %252 = arith.addf %250, %251 : vector<16x32xf32>
      %253 = arith.index_cast %arg39 : i32 to index
      %c0_93 = arith.constant 0 : index
      %c0_94 = arith.constant 0 : index
      %254 = vector.load %arg22[%253, %c0_93, %c0_94] : memref<6x32x96xf32, #tpu.memory_space<vmem>>, vector<1x32x96xf32>
      %255 = vector.shape_cast %254 : vector<1x32x96xf32> to vector<32x96xf32>
      %256 = arith.index_cast %arg39 : i32 to index
      %c0_95 = arith.constant 0 : index
      %c0_96 = arith.constant 0 : index
      %257 = vector.load %arg23[%256, %c0_95, %c0_96] : memref<6x1x96xf32, #tpu.memory_space<vmem>>, vector<1x1x96xf32>
      %258 = vector.shape_cast %257 : vector<1x1x96xf32> to vector<1x96xf32>
      %259 = arith.index_cast %arg39 : i32 to index
      %c0_97 = arith.constant 0 : index
      %c0_98 = arith.constant 0 : index
      %260 = vector.load %arg24[%259, %c0_97, %c0_98] : memref<6x32x32xf32, #tpu.memory_space<vmem>>, vector<1x32x32xf32>
      %261 = vector.shape_cast %260 : vector<1x32x32xf32> to vector<32x32xf32>
      %262 = arith.index_cast %arg39 : i32 to index
      %c0_99 = arith.constant 0 : index
      %c0_100 = arith.constant 0 : index
      %263 = vector.load %arg25[%262, %c0_99, %c0_100] : memref<6x1x32xf32, #tpu.memory_space<vmem>>, vector<1x1x32xf32>
      %264 = vector.shape_cast %263 : vector<1x1x32xf32> to vector<1x32xf32>
      %265 = vector.extract_strided_slice %255 {offsets = [0, 0], sizes = [32, 32], strides = [1, 1]} : vector<32x96xf32> to vector<32x32xf32>
      %cst_101 = arith.constant dense<0.000000e+00> : vector<16x32xf32>
      %266 = tpu.matmul %252, %265, %cst_101 {dimension_numbers = #tpu.dot_dimension_numbers<[1], [0], [0], [1], [0, 0, 1, 1], [], []>} : vector<16x32xf32>, vector<32x32xf32>, vector<16x32xf32> -> vector<16x32xf32>
      %267 = vector.extract_strided_slice %258 {offsets = [0, 0], sizes = [1, 32], strides = [1, 1]} : vector<1x96xf32> to vector<1x32xf32>
      %268 = vector.broadcast %267 : vector<1x32xf32> to vector<16x32xf32>
      %269 = arith.addf %266, %268 : vector<16x32xf32>
      %270 = vector.extract_strided_slice %255 {offsets = [0, 32], sizes = [32, 32], strides = [1, 1]} : vector<32x96xf32> to vector<32x32xf32>
      %cst_102 = arith.constant dense<0.000000e+00> : vector<16x32xf32>
      %271 = tpu.matmul %31, %270, %cst_102 {dimension_numbers = #tpu.dot_dimension_numbers<[1], [0], [0], [1], [0, 0, 1, 1], [], []>} : vector<16x32xf32>, vector<32x32xf32>, vector<16x32xf32> -> vector<16x32xf32>
      %272 = vector.extract_strided_slice %258 {offsets = [0, 32], sizes = [1, 32], strides = [1, 1]} : vector<1x96xf32> to vector<1x32xf32>
      %273 = vector.broadcast %272 : vector<1x32xf32> to vector<16x32xf32>
      %274 = arith.addf %271, %273 : vector<16x32xf32>
      %275 = vector.extract_strided_slice %255 {offsets = [0, 64], sizes = [32, 32], strides = [1, 1]} : vector<32x96xf32> to vector<32x32xf32>
      %cst_103 = arith.constant dense<0.000000e+00> : vector<16x32xf32>
      %276 = tpu.matmul %31, %275, %cst_103 {dimension_numbers = #tpu.dot_dimension_numbers<[1], [0], [0], [1], [0, 0, 1, 1], [], []>} : vector<16x32xf32>, vector<32x32xf32>, vector<16x32xf32> -> vector<16x32xf32>
      %277 = vector.extract_strided_slice %258 {offsets = [0, 64], sizes = [1, 32], strides = [1, 1]} : vector<1x96xf32> to vector<1x32xf32>
      %278 = vector.broadcast %277 : vector<1x32xf32> to vector<16x32xf32>
      %279 = arith.addf %276, %278 : vector<16x32xf32>
      %280 = vector.extract_strided_slice %269 {offsets = [0, 0], sizes = [8, 8], strides = [1, 1]} : vector<16x32xf32> to vector<8x8xf32>
      %281 = vector.extract_strided_slice %274 {offsets = [0, 0], sizes = [8, 8], strides = [1, 1]} : vector<16x32xf32> to vector<8x8xf32>
      %282 = vector.extract_strided_slice %279 {offsets = [0, 0], sizes = [8, 8], strides = [1, 1]} : vector<16x32xf32> to vector<8x8xf32>
      %cst_104 = arith.constant dense<0.000000e+00> : vector<8x8xf32>
      %283 = tpu.matmul %280, %281, %cst_104 {dimension_numbers = #tpu.dot_dimension_numbers<[1], [1], [0], [0], [0, 0, 1, 0], [], []>} : vector<8x8xf32>, vector<8x8xf32>, vector<8x8xf32> -> vector<8x8xf32>
      %cst_105 = arith.constant 0.353553385 : f32
      %284 = vector.broadcast %cst_105 : f32 to vector<8x8xf32>
      %285 = arith.mulf %283, %284 : vector<8x8xf32>
      %cst_106 = arith.constant dense<0xFF800000> : vector<8xf32>
      %286 = vector.multi_reduction <maximumf>, %285, %cst_106 [1] : vector<8x8xf32> to vector<8xf32>
      %287 = vector.shape_cast %286 : vector<8xf32> to vector<8x1xf32>
      %288 = vector.broadcast %287 : vector<8x1xf32> to vector<8x8xf32>
      %289 = arith.subf %285, %288 : vector<8x8xf32>
      %290 = math.exp %289 : vector<8x8xf32>
      %cst_107 = arith.constant dense<0.000000e+00> : vector<8xf32>
      %291 = vector.multi_reduction <add>, %290, %cst_107 [1] : vector<8x8xf32> to vector<8xf32>
      %292 = vector.shape_cast %291 : vector<8xf32> to vector<8x1xf32>
      %293 = vector.broadcast %292 : vector<8x1xf32> to vector<8x8xf32>
      %294 = arith.divf %290, %293 : vector<8x8xf32>
      %cst_108 = arith.constant dense<0.000000e+00> : vector<8x8xf32>
      %295 = tpu.matmul %294, %282, %cst_108 {dimension_numbers = #tpu.dot_dimension_numbers<[1], [0], [0], [1], [0, 0, 1, 1], [], []>} : vector<8x8xf32>, vector<8x8xf32>, vector<8x8xf32> -> vector<8x8xf32>
      %296 = vector.extract_strided_slice %269 {offsets = [0, 8], sizes = [8, 8], strides = [1, 1]} : vector<16x32xf32> to vector<8x8xf32>
      %297 = vector.extract_strided_slice %274 {offsets = [0, 8], sizes = [8, 8], strides = [1, 1]} : vector<16x32xf32> to vector<8x8xf32>
      %298 = vector.extract_strided_slice %279 {offsets = [0, 8], sizes = [8, 8], strides = [1, 1]} : vector<16x32xf32> to vector<8x8xf32>
      %cst_109 = arith.constant dense<0.000000e+00> : vector<8x8xf32>
      %299 = tpu.matmul %296, %297, %cst_109 {dimension_numbers = #tpu.dot_dimension_numbers<[1], [1], [0], [0], [0, 0, 1, 0], [], []>} : vector<8x8xf32>, vector<8x8xf32>, vector<8x8xf32> -> vector<8x8xf32>
      %cst_110 = arith.constant 0.353553385 : f32
      %300 = vector.broadcast %cst_110 : f32 to vector<8x8xf32>
      %301 = arith.mulf %299, %300 : vector<8x8xf32>
      %cst_111 = arith.constant dense<0xFF800000> : vector<8xf32>
      %302 = vector.multi_reduction <maximumf>, %301, %cst_111 [1] : vector<8x8xf32> to vector<8xf32>
      %303 = vector.shape_cast %302 : vector<8xf32> to vector<8x1xf32>
      %304 = vector.broadcast %303 : vector<8x1xf32> to vector<8x8xf32>
      %305 = arith.subf %301, %304 : vector<8x8xf32>
      %306 = math.exp %305 : vector<8x8xf32>
      %cst_112 = arith.constant dense<0.000000e+00> : vector<8xf32>
      %307 = vector.multi_reduction <add>, %306, %cst_112 [1] : vector<8x8xf32> to vector<8xf32>
      %308 = vector.shape_cast %307 : vector<8xf32> to vector<8x1xf32>
      %309 = vector.broadcast %308 : vector<8x1xf32> to vector<8x8xf32>
      %310 = arith.divf %306, %309 : vector<8x8xf32>
      %cst_113 = arith.constant dense<0.000000e+00> : vector<8x8xf32>
      %311 = tpu.matmul %310, %298, %cst_113 {dimension_numbers = #tpu.dot_dimension_numbers<[1], [0], [0], [1], [0, 0, 1, 1], [], []>} : vector<8x8xf32>, vector<8x8xf32>, vector<8x8xf32> -> vector<8x8xf32>
      %312 = vector.extract_strided_slice %269 {offsets = [0, 16], sizes = [8, 8], strides = [1, 1]} : vector<16x32xf32> to vector<8x8xf32>
      %313 = vector.extract_strided_slice %274 {offsets = [0, 16], sizes = [8, 8], strides = [1, 1]} : vector<16x32xf32> to vector<8x8xf32>
      %314 = vector.extract_strided_slice %279 {offsets = [0, 16], sizes = [8, 8], strides = [1, 1]} : vector<16x32xf32> to vector<8x8xf32>
      %cst_114 = arith.constant dense<0.000000e+00> : vector<8x8xf32>
      %315 = tpu.matmul %312, %313, %cst_114 {dimension_numbers = #tpu.dot_dimension_numbers<[1], [1], [0], [0], [0, 0, 1, 0], [], []>} : vector<8x8xf32>, vector<8x8xf32>, vector<8x8xf32> -> vector<8x8xf32>
      %cst_115 = arith.constant 0.353553385 : f32
      %316 = vector.broadcast %cst_115 : f32 to vector<8x8xf32>
      %317 = arith.mulf %315, %316 : vector<8x8xf32>
      %cst_116 = arith.constant dense<0xFF800000> : vector<8xf32>
      %318 = vector.multi_reduction <maximumf>, %317, %cst_116 [1] : vector<8x8xf32> to vector<8xf32>
      %319 = vector.shape_cast %318 : vector<8xf32> to vector<8x1xf32>
      %320 = vector.broadcast %319 : vector<8x1xf32> to vector<8x8xf32>
      %321 = arith.subf %317, %320 : vector<8x8xf32>
      %322 = math.exp %321 : vector<8x8xf32>
      %cst_117 = arith.constant dense<0.000000e+00> : vector<8xf32>
      %323 = vector.multi_reduction <add>, %322, %cst_117 [1] : vector<8x8xf32> to vector<8xf32>
      %324 = vector.shape_cast %323 : vector<8xf32> to vector<8x1xf32>
      %325 = vector.broadcast %324 : vector<8x1xf32> to vector<8x8xf32>
      %326 = arith.divf %322, %325 : vector<8x8xf32>
      %cst_118 = arith.constant dense<0.000000e+00> : vector<8x8xf32>
      %327 = tpu.matmul %326, %314, %cst_118 {dimension_numbers = #tpu.dot_dimension_numbers<[1], [0], [0], [1], [0, 0, 1, 1], [], []>} : vector<8x8xf32>, vector<8x8xf32>, vector<8x8xf32> -> vector<8x8xf32>
      %328 = vector.extract_strided_slice %269 {offsets = [0, 24], sizes = [8, 8], strides = [1, 1]} : vector<16x32xf32> to vector<8x8xf32>
      %329 = vector.extract_strided_slice %274 {offsets = [0, 24], sizes = [8, 8], strides = [1, 1]} : vector<16x32xf32> to vector<8x8xf32>
      %330 = vector.extract_strided_slice %279 {offsets = [0, 24], sizes = [8, 8], strides = [1, 1]} : vector<16x32xf32> to vector<8x8xf32>
      %cst_119 = arith.constant dense<0.000000e+00> : vector<8x8xf32>
      %331 = tpu.matmul %328, %329, %cst_119 {dimension_numbers = #tpu.dot_dimension_numbers<[1], [1], [0], [0], [0, 0, 1, 0], [], []>} : vector<8x8xf32>, vector<8x8xf32>, vector<8x8xf32> -> vector<8x8xf32>
      %cst_120 = arith.constant 0.353553385 : f32
      %332 = vector.broadcast %cst_120 : f32 to vector<8x8xf32>
      %333 = arith.mulf %331, %332 : vector<8x8xf32>
      %cst_121 = arith.constant dense<0xFF800000> : vector<8xf32>
      %334 = vector.multi_reduction <maximumf>, %333, %cst_121 [1] : vector<8x8xf32> to vector<8xf32>
      %335 = vector.shape_cast %334 : vector<8xf32> to vector<8x1xf32>
      %336 = vector.broadcast %335 : vector<8x1xf32> to vector<8x8xf32>
      %337 = arith.subf %333, %336 : vector<8x8xf32>
      %338 = math.exp %337 : vector<8x8xf32>
      %cst_122 = arith.constant dense<0.000000e+00> : vector<8xf32>
      %339 = vector.multi_reduction <add>, %338, %cst_122 [1] : vector<8x8xf32> to vector<8xf32>
      %340 = vector.shape_cast %339 : vector<8xf32> to vector<8x1xf32>
      %341 = vector.broadcast %340 : vector<8x1xf32> to vector<8x8xf32>
      %342 = arith.divf %338, %341 : vector<8x8xf32>
      %cst_123 = arith.constant dense<0.000000e+00> : vector<8x8xf32>
      %343 = tpu.matmul %342, %330, %cst_123 {dimension_numbers = #tpu.dot_dimension_numbers<[1], [0], [0], [1], [0, 0, 1, 1], [], []>} : vector<8x8xf32>, vector<8x8xf32>, vector<8x8xf32> -> vector<8x8xf32>
      %344 = tpu.concatenate %295, %311, %327, %343 in 1 : vector<8x8xf32>, vector<8x8xf32>, vector<8x8xf32>, vector<8x8xf32> -> vector<8x32xf32>
      %345 = vector.extract_strided_slice %269 {offsets = [8, 0], sizes = [8, 8], strides = [1, 1]} : vector<16x32xf32> to vector<8x8xf32>
      %346 = vector.extract_strided_slice %274 {offsets = [8, 0], sizes = [8, 8], strides = [1, 1]} : vector<16x32xf32> to vector<8x8xf32>
      %347 = vector.extract_strided_slice %279 {offsets = [8, 0], sizes = [8, 8], strides = [1, 1]} : vector<16x32xf32> to vector<8x8xf32>
      %cst_124 = arith.constant dense<0.000000e+00> : vector<8x8xf32>
      %348 = tpu.matmul %345, %346, %cst_124 {dimension_numbers = #tpu.dot_dimension_numbers<[1], [1], [0], [0], [0, 0, 1, 0], [], []>} : vector<8x8xf32>, vector<8x8xf32>, vector<8x8xf32> -> vector<8x8xf32>
      %cst_125 = arith.constant 0.353553385 : f32
      %349 = vector.broadcast %cst_125 : f32 to vector<8x8xf32>
      %350 = arith.mulf %348, %349 : vector<8x8xf32>
      %cst_126 = arith.constant dense<0xFF800000> : vector<8xf32>
      %351 = vector.multi_reduction <maximumf>, %350, %cst_126 [1] : vector<8x8xf32> to vector<8xf32>
      %352 = vector.shape_cast %351 : vector<8xf32> to vector<8x1xf32>
      %353 = vector.broadcast %352 : vector<8x1xf32> to vector<8x8xf32>
      %354 = arith.subf %350, %353 : vector<8x8xf32>
      %355 = math.exp %354 : vector<8x8xf32>
      %cst_127 = arith.constant dense<0.000000e+00> : vector<8xf32>
      %356 = vector.multi_reduction <add>, %355, %cst_127 [1] : vector<8x8xf32> to vector<8xf32>
      %357 = vector.shape_cast %356 : vector<8xf32> to vector<8x1xf32>
      %358 = vector.broadcast %357 : vector<8x1xf32> to vector<8x8xf32>
      %359 = arith.divf %355, %358 : vector<8x8xf32>
      %cst_128 = arith.constant dense<0.000000e+00> : vector<8x8xf32>
      %360 = tpu.matmul %359, %347, %cst_128 {dimension_numbers = #tpu.dot_dimension_numbers<[1], [0], [0], [1], [0, 0, 1, 1], [], []>} : vector<8x8xf32>, vector<8x8xf32>, vector<8x8xf32> -> vector<8x8xf32>
      %361 = vector.extract_strided_slice %269 {offsets = [8, 8], sizes = [8, 8], strides = [1, 1]} : vector<16x32xf32> to vector<8x8xf32>
      %362 = vector.extract_strided_slice %274 {offsets = [8, 8], sizes = [8, 8], strides = [1, 1]} : vector<16x32xf32> to vector<8x8xf32>
      %363 = vector.extract_strided_slice %279 {offsets = [8, 8], sizes = [8, 8], strides = [1, 1]} : vector<16x32xf32> to vector<8x8xf32>
      %cst_129 = arith.constant dense<0.000000e+00> : vector<8x8xf32>
      %364 = tpu.matmul %361, %362, %cst_129 {dimension_numbers = #tpu.dot_dimension_numbers<[1], [1], [0], [0], [0, 0, 1, 0], [], []>} : vector<8x8xf32>, vector<8x8xf32>, vector<8x8xf32> -> vector<8x8xf32>
      %cst_130 = arith.constant 0.353553385 : f32
      %365 = vector.broadcast %cst_130 : f32 to vector<8x8xf32>
      %366 = arith.mulf %364, %365 : vector<8x8xf32>
      %cst_131 = arith.constant dense<0xFF800000> : vector<8xf32>
      %367 = vector.multi_reduction <maximumf>, %366, %cst_131 [1] : vector<8x8xf32> to vector<8xf32>
      %368 = vector.shape_cast %367 : vector<8xf32> to vector<8x1xf32>
      %369 = vector.broadcast %368 : vector<8x1xf32> to vector<8x8xf32>
      %370 = arith.subf %366, %369 : vector<8x8xf32>
      %371 = math.exp %370 : vector<8x8xf32>
      %cst_132 = arith.constant dense<0.000000e+00> : vector<8xf32>
      %372 = vector.multi_reduction <add>, %371, %cst_132 [1] : vector<8x8xf32> to vector<8xf32>
      %373 = vector.shape_cast %372 : vector<8xf32> to vector<8x1xf32>
      %374 = vector.broadcast %373 : vector<8x1xf32> to vector<8x8xf32>
      %375 = arith.divf %371, %374 : vector<8x8xf32>
      %cst_133 = arith.constant dense<0.000000e+00> : vector<8x8xf32>
      %376 = tpu.matmul %375, %363, %cst_133 {dimension_numbers = #tpu.dot_dimension_numbers<[1], [0], [0], [1], [0, 0, 1, 1], [], []>} : vector<8x8xf32>, vector<8x8xf32>, vector<8x8xf32> -> vector<8x8xf32>
      %377 = vector.extract_strided_slice %269 {offsets = [8, 16], sizes = [8, 8], strides = [1, 1]} : vector<16x32xf32> to vector<8x8xf32>
      %378 = vector.extract_strided_slice %274 {offsets = [8, 16], sizes = [8, 8], strides = [1, 1]} : vector<16x32xf32> to vector<8x8xf32>
      %379 = vector.extract_strided_slice %279 {offsets = [8, 16], sizes = [8, 8], strides = [1, 1]} : vector<16x32xf32> to vector<8x8xf32>
      %cst_134 = arith.constant dense<0.000000e+00> : vector<8x8xf32>
      %380 = tpu.matmul %377, %378, %cst_134 {dimension_numbers = #tpu.dot_dimension_numbers<[1], [1], [0], [0], [0, 0, 1, 0], [], []>} : vector<8x8xf32>, vector<8x8xf32>, vector<8x8xf32> -> vector<8x8xf32>
      %cst_135 = arith.constant 0.353553385 : f32
      %381 = vector.broadcast %cst_135 : f32 to vector<8x8xf32>
      %382 = arith.mulf %380, %381 : vector<8x8xf32>
      %cst_136 = arith.constant dense<0xFF800000> : vector<8xf32>
      %383 = vector.multi_reduction <maximumf>, %382, %cst_136 [1] : vector<8x8xf32> to vector<8xf32>
      %384 = vector.shape_cast %383 : vector<8xf32> to vector<8x1xf32>
      %385 = vector.broadcast %384 : vector<8x1xf32> to vector<8x8xf32>
      %386 = arith.subf %382, %385 : vector<8x8xf32>
      %387 = math.exp %386 : vector<8x8xf32>
      %cst_137 = arith.constant dense<0.000000e+00> : vector<8xf32>
      %388 = vector.multi_reduction <add>, %387, %cst_137 [1] : vector<8x8xf32> to vector<8xf32>
      %389 = vector.shape_cast %388 : vector<8xf32> to vector<8x1xf32>
      %390 = vector.broadcast %389 : vector<8x1xf32> to vector<8x8xf32>
      %391 = arith.divf %387, %390 : vector<8x8xf32>
      %cst_138 = arith.constant dense<0.000000e+00> : vector<8x8xf32>
      %392 = tpu.matmul %391, %379, %cst_138 {dimension_numbers = #tpu.dot_dimension_numbers<[1], [0], [0], [1], [0, 0, 1, 1], [], []>} : vector<8x8xf32>, vector<8x8xf32>, vector<8x8xf32> -> vector<8x8xf32>
      %393 = vector.extract_strided_slice %269 {offsets = [8, 24], sizes = [8, 8], strides = [1, 1]} : vector<16x32xf32> to vector<8x8xf32>
      %394 = vector.extract_strided_slice %274 {offsets = [8, 24], sizes = [8, 8], strides = [1, 1]} : vector<16x32xf32> to vector<8x8xf32>
      %395 = vector.extract_strided_slice %279 {offsets = [8, 24], sizes = [8, 8], strides = [1, 1]} : vector<16x32xf32> to vector<8x8xf32>
      %cst_139 = arith.constant dense<0.000000e+00> : vector<8x8xf32>
      %396 = tpu.matmul %393, %394, %cst_139 {dimension_numbers = #tpu.dot_dimension_numbers<[1], [1], [0], [0], [0, 0, 1, 0], [], []>} : vector<8x8xf32>, vector<8x8xf32>, vector<8x8xf32> -> vector<8x8xf32>
      %cst_140 = arith.constant 0.353553385 : f32
      %397 = vector.broadcast %cst_140 : f32 to vector<8x8xf32>
      %398 = arith.mulf %396, %397 : vector<8x8xf32>
      %cst_141 = arith.constant dense<0xFF800000> : vector<8xf32>
      %399 = vector.multi_reduction <maximumf>, %398, %cst_141 [1] : vector<8x8xf32> to vector<8xf32>
      %400 = vector.shape_cast %399 : vector<8xf32> to vector<8x1xf32>
      %401 = vector.broadcast %400 : vector<8x1xf32> to vector<8x8xf32>
      %402 = arith.subf %398, %401 : vector<8x8xf32>
      %403 = math.exp %402 : vector<8x8xf32>
      %cst_142 = arith.constant dense<0.000000e+00> : vector<8xf32>
      %404 = vector.multi_reduction <add>, %403, %cst_142 [1] : vector<8x8xf32> to vector<8xf32>
      %405 = vector.shape_cast %404 : vector<8xf32> to vector<8x1xf32>
      %406 = vector.broadcast %405 : vector<8x1xf32> to vector<8x8xf32>
      %407 = arith.divf %403, %406 : vector<8x8xf32>
      %cst_143 = arith.constant dense<0.000000e+00> : vector<8x8xf32>
      %408 = tpu.matmul %407, %395, %cst_143 {dimension_numbers = #tpu.dot_dimension_numbers<[1], [0], [0], [1], [0, 0, 1, 1], [], []>} : vector<8x8xf32>, vector<8x8xf32>, vector<8x8xf32> -> vector<8x8xf32>
      %409 = tpu.concatenate %360, %376, %392, %408 in 1 : vector<8x8xf32>, vector<8x8xf32>, vector<8x8xf32>, vector<8x8xf32> -> vector<8x32xf32>
      %410 = tpu.concatenate %344, %409 in 0 : vector<8x32xf32>, vector<8x32xf32> -> vector<16x32xf32>
      %cst_144 = arith.constant dense<0.000000e+00> : vector<16x32xf32>
      %411 = tpu.matmul %410, %261, %cst_144 {dimension_numbers = #tpu.dot_dimension_numbers<[1], [0], [0], [1], [0, 0, 1, 1], [], []>} : vector<16x32xf32>, vector<32x32xf32>, vector<16x32xf32> -> vector<16x32xf32>
      %412 = vector.broadcast %264 : vector<1x32xf32> to vector<16x32xf32>
      %413 = arith.addf %411, %412 : vector<16x32xf32>
      %414 = arith.addf %252, %413 : vector<16x32xf32>
      %415 = arith.index_cast %arg39 : i32 to index
      %c0_145 = arith.constant 0 : index
      %c0_146 = arith.constant 0 : index
      %416 = vector.load %arg26[%415, %c0_145, %c0_146] : memref<6x1x32xf32, #tpu.memory_space<vmem>>, vector<1x1x32xf32>
      %417 = vector.shape_cast %416 : vector<1x1x32xf32> to vector<1x32xf32>
      %418 = arith.index_cast %arg39 : i32 to index
      %c0_147 = arith.constant 0 : index
      %c0_148 = arith.constant 0 : index
      %419 = vector.load %arg27[%418, %c0_147, %c0_148] : memref<6x1x32xf32, #tpu.memory_space<vmem>>, vector<1x1x32xf32>
      %420 = vector.shape_cast %419 : vector<1x1x32xf32> to vector<1x32xf32>
      %cst_149 = arith.constant dense<0.000000e+00> : vector<16xf32>
      %421 = vector.multi_reduction <add>, %414, %cst_149 [1] : vector<16x32xf32> to vector<16xf32>
      %422 = vector.shape_cast %421 : vector<16xf32> to vector<16x1xf32>
      %cst_150 = arith.constant 3.200000e+01 : f32
      %423 = vector.broadcast %cst_150 : f32 to vector<16x1xf32>
      %424 = arith.divf %422, %423 : vector<16x1xf32>
      %425 = vector.broadcast %424 : vector<16x1xf32> to vector<16x32xf32>
      %426 = arith.subf %414, %425 : vector<16x32xf32>
      %427 = arith.mulf %426, %426 : vector<16x32xf32>
      %cst_151 = arith.constant dense<0.000000e+00> : vector<16xf32>
      %428 = vector.multi_reduction <add>, %427, %cst_151 [1] : vector<16x32xf32> to vector<16xf32>
      %429 = vector.shape_cast %428 : vector<16xf32> to vector<16x1xf32>
      %cst_152 = arith.constant 3.200000e+01 : f32
      %430 = vector.broadcast %cst_152 : f32 to vector<16x1xf32>
      %431 = arith.divf %429, %430 : vector<16x1xf32>
      %cst_153 = arith.constant 9.99999974E-6 : f32
      %432 = vector.broadcast %cst_153 : f32 to vector<16x1xf32>
      %433 = arith.addf %431, %432 : vector<16x1xf32>
      %434 = math.rsqrt %433 : vector<16x1xf32>
      %435 = vector.broadcast %434 : vector<16x1xf32> to vector<16x32xf32>
      %436 = arith.mulf %426, %435 : vector<16x32xf32>
      %437 = vector.broadcast %417 : vector<1x32xf32> to vector<16x32xf32>
      %438 = arith.mulf %436, %437 : vector<16x32xf32>
      %439 = vector.broadcast %420 : vector<1x32xf32> to vector<16x32xf32>
      %440 = arith.addf %438, %439 : vector<16x32xf32>
      %441 = arith.index_cast %arg39 : i32 to index
      %c0_154 = arith.constant 0 : index
      %c0_155 = arith.constant 0 : index
      %442 = vector.load %arg28[%441, %c0_154, %c0_155] : memref<6x32x2048xf32, #tpu.memory_space<vmem>>, vector<1x32x2048xf32>
      %443 = vector.shape_cast %442 : vector<1x32x2048xf32> to vector<32x2048xf32>
      %444 = arith.index_cast %arg39 : i32 to index
      %c0_156 = arith.constant 0 : index
      %c0_157 = arith.constant 0 : index
      %445 = vector.load %arg29[%444, %c0_156, %c0_157] : memref<6x1x2048xf32, #tpu.memory_space<vmem>>, vector<1x1x2048xf32>
      %446 = vector.shape_cast %445 : vector<1x1x2048xf32> to vector<1x2048xf32>
      %447 = arith.index_cast %arg39 : i32 to index
      %c0_158 = arith.constant 0 : index
      %c0_159 = arith.constant 0 : index
      %448 = vector.load %arg30[%447, %c0_158, %c0_159] : memref<6x2048x32xf32, #tpu.memory_space<vmem>>, vector<1x2048x32xf32>
      %449 = vector.shape_cast %448 : vector<1x2048x32xf32> to vector<2048x32xf32>
      %450 = arith.index_cast %arg39 : i32 to index
      %c0_160 = arith.constant 0 : index
      %c0_161 = arith.constant 0 : index
      %451 = vector.load %arg31[%450, %c0_160, %c0_161] : memref<6x1x32xf32, #tpu.memory_space<vmem>>, vector<1x1x32xf32>
      %452 = vector.shape_cast %451 : vector<1x1x32xf32> to vector<1x32xf32>
      %cst_162 = arith.constant dense<0.000000e+00> : vector<16x2048xf32>
      %453 = tpu.matmul %440, %443, %cst_162 {dimension_numbers = #tpu.dot_dimension_numbers<[1], [0], [0], [1], [0, 0, 1, 1], [], []>} : vector<16x32xf32>, vector<32x2048xf32>, vector<16x2048xf32> -> vector<16x2048xf32>
      %454 = vector.broadcast %446 : vector<1x2048xf32> to vector<16x2048xf32>
      %455 = arith.addf %453, %454 : vector<16x2048xf32>
      %cst_163 = arith.constant 0.000000e+00 : f32
      %456 = vector.broadcast %cst_163 : f32 to vector<16x2048xf32>
      %457 = arith.maximumf %455, %456 : vector<16x2048xf32>
      %cst_164 = arith.constant dense<0.000000e+00> : vector<16x32xf32>
      %458 = tpu.matmul %457, %449, %cst_164 {dimension_numbers = #tpu.dot_dimension_numbers<[1], [0], [0], [1], [0, 0, 1, 1], [], []>} : vector<16x2048xf32>, vector<2048x32xf32>, vector<16x32xf32> -> vector<16x32xf32>
      %459 = vector.broadcast %452 : vector<1x32xf32> to vector<16x32xf32>
      %460 = arith.addf %458, %459 : vector<16x32xf32>
      %461 = arith.addf %440, %460 : vector<16x32xf32>
      %462 = arith.index_cast %arg39 : i32 to index
      %c0_165 = arith.constant 0 : index
      %c0_166 = arith.constant 0 : index
      %463 = vector.load %arg32[%462, %c0_165, %c0_166] : memref<6x1x32xf32, #tpu.memory_space<vmem>>, vector<1x1x32xf32>
      %464 = vector.shape_cast %463 : vector<1x1x32xf32> to vector<1x32xf32>
      %465 = arith.index_cast %arg39 : i32 to index
      %c0_167 = arith.constant 0 : index
      %c0_168 = arith.constant 0 : index
      %466 = vector.load %arg33[%465, %c0_167, %c0_168] : memref<6x1x32xf32, #tpu.memory_space<vmem>>, vector<1x1x32xf32>
      %467 = vector.shape_cast %466 : vector<1x1x32xf32> to vector<1x32xf32>
      %cst_169 = arith.constant dense<0.000000e+00> : vector<16xf32>
      %468 = vector.multi_reduction <add>, %461, %cst_169 [1] : vector<16x32xf32> to vector<16xf32>
      %469 = vector.shape_cast %468 : vector<16xf32> to vector<16x1xf32>
      %cst_170 = arith.constant 3.200000e+01 : f32
      %470 = vector.broadcast %cst_170 : f32 to vector<16x1xf32>
      %471 = arith.divf %469, %470 : vector<16x1xf32>
      %472 = vector.broadcast %471 : vector<16x1xf32> to vector<16x32xf32>
      %473 = arith.subf %461, %472 : vector<16x32xf32>
      %474 = arith.mulf %473, %473 : vector<16x32xf32>
      %cst_171 = arith.constant dense<0.000000e+00> : vector<16xf32>
      %475 = vector.multi_reduction <add>, %474, %cst_171 [1] : vector<16x32xf32> to vector<16xf32>
      %476 = vector.shape_cast %475 : vector<16xf32> to vector<16x1xf32>
      %cst_172 = arith.constant 3.200000e+01 : f32
      %477 = vector.broadcast %cst_172 : f32 to vector<16x1xf32>
      %478 = arith.divf %476, %477 : vector<16x1xf32>
      %cst_173 = arith.constant 9.99999974E-6 : f32
      %479 = vector.broadcast %cst_173 : f32 to vector<16x1xf32>
      %480 = arith.addf %478, %479 : vector<16x1xf32>
      %481 = math.rsqrt %480 : vector<16x1xf32>
      %482 = vector.broadcast %481 : vector<16x1xf32> to vector<16x32xf32>
      %483 = arith.mulf %473, %482 : vector<16x32xf32>
      %484 = vector.broadcast %464 : vector<1x32xf32> to vector<16x32xf32>
      %485 = arith.mulf %483, %484 : vector<16x32xf32>
      %486 = vector.broadcast %467 : vector<1x32xf32> to vector<16x32xf32>
      %487 = arith.addf %485, %486 : vector<16x32xf32>
      scf.yield %487 : vector<16x32xf32>
    }
    %c6_i32_15 = arith.constant 6 : i32
    %c0_16 = arith.constant 0 : index
    %c0_17 = arith.constant 0 : index
    %34 = vector.load %arg34[%c0_16, %c0_17] : memref<1x32xf32, #tpu.memory_space<vmem>>, vector<1x32xf32>
    %c0_18 = arith.constant 0 : index
    %c0_19 = arith.constant 0 : index
    %35 = vector.load %arg35[%c0_18, %c0_19] : memref<1x32xf32, #tpu.memory_space<vmem>>, vector<1x32xf32>
    %cst_20 = arith.constant dense<0.000000e+00> : vector<16xf32>
    %36 = vector.multi_reduction <add>, %33, %cst_20 [1] : vector<16x32xf32> to vector<16xf32>
    %37 = vector.shape_cast %36 : vector<16xf32> to vector<16x1xf32>
    %cst_21 = arith.constant 3.200000e+01 : f32
    %38 = vector.broadcast %cst_21 : f32 to vector<16x1xf32>
    %39 = arith.divf %37, %38 : vector<16x1xf32>
    %40 = vector.broadcast %39 : vector<16x1xf32> to vector<16x32xf32>
    %41 = arith.subf %33, %40 : vector<16x32xf32>
    %42 = arith.mulf %41, %41 : vector<16x32xf32>
    %cst_22 = arith.constant dense<0.000000e+00> : vector<16xf32>
    %43 = vector.multi_reduction <add>, %42, %cst_22 [1] : vector<16x32xf32> to vector<16xf32>
    %44 = vector.shape_cast %43 : vector<16xf32> to vector<16x1xf32>
    %cst_23 = arith.constant 3.200000e+01 : f32
    %45 = vector.broadcast %cst_23 : f32 to vector<16x1xf32>
    %46 = arith.divf %44, %45 : vector<16x1xf32>
    %cst_24 = arith.constant 9.99999974E-6 : f32
    %47 = vector.broadcast %cst_24 : f32 to vector<16x1xf32>
    %48 = arith.addf %46, %47 : vector<16x1xf32>
    %49 = math.rsqrt %48 : vector<16x1xf32>
    %50 = vector.broadcast %49 : vector<16x1xf32> to vector<16x32xf32>
    %51 = arith.mulf %41, %50 : vector<16x32xf32>
    %52 = vector.broadcast %34 : vector<1x32xf32> to vector<16x32xf32>
    %53 = arith.mulf %51, %52 : vector<16x32xf32>
    %54 = vector.broadcast %35 : vector<1x32xf32> to vector<16x32xf32>
    %55 = arith.addf %53, %54 : vector<16x32xf32>
    %56 = vector.extract_strided_slice %55 {offsets = [7, 0], sizes = [1, 32], strides = [1, 1]} : vector<16x32xf32> to vector<1x32xf32>
    %57 = vector.extract_strided_slice %55 {offsets = [15, 0], sizes = [1, 32], strides = [1, 1]} : vector<16x32xf32> to vector<1x32xf32>
    %58 = tpu.concatenate %56, %57 in 0 : vector<1x32xf32>, vector<1x32xf32> -> vector<2x32xf32>
    %c0_25 = arith.constant 0 : index
    %c0_26 = arith.constant 0 : index
    %59 = vector.load %arg36[%c0_25, %c0_26] : memref<32x24xf32, #tpu.memory_space<vmem>>, vector<32x24xf32>
    %cst_27 = arith.constant dense<0.000000e+00> : vector<2x24xf32>
    %60 = tpu.matmul %58, %59, %cst_27 {dimension_numbers = #tpu.dot_dimension_numbers<[1], [0], [0], [1], [0, 0, 1, 1], [], []>} : vector<2x32xf32>, vector<32x24xf32>, vector<2x24xf32> -> vector<2x24xf32>
    %c0_28 = arith.constant 0 : index
    %c0_29 = arith.constant 0 : index
    %61 = vector.load %arg37[%c0_28, %c0_29] : memref<1x24xf32, #tpu.memory_space<vmem>>, vector<1x24xf32>
    %62 = vector.broadcast %61 : vector<1x24xf32> to vector<2x24xf32>
    %63 = arith.addf %60, %62 : vector<2x24xf32>
    %c0_30 = arith.constant 0 : index
    %c0_31 = arith.constant 0 : index
    %64 = vector.load %arg38[%c0_30, %c0_31] : memref<2x24xf32, #tpu.memory_space<vmem>>, vector<2x24xf32>
    tpu.vector_store %arg38[%c0_30, %c0_31], %63 {strides = array<i32>} : memref<2x24xf32, #tpu.memory_space<vmem>>, vector<2x24xf32>,
    return
  }
}

</mosaic_0001>

<llo_original>
// kernel: squeeze.0
$region0: #{squeeze.0}
  %s0 = inlined_call_operand.vmem [shape: s32[2,8], index: 0, kind: input, shape index: {}]
  %s1 = inlined_call_operand.vmem [shape: s32[16,1], index: 1, kind: output, shape index: {}]
  $region1: #{squeeze.0} parent=0
    #allocation0 [shape = 'u8[4096]{0}', space=vmem, size = 0x1000, scoped, tag = 'scoped mem for input reshape']
    %s3 = sshllo.u32 0, 2
    %v4 = vld [vmem:[%s0] sm:%s3]
    %5 = vst [vmem:[#allocation0] sm:%s3] %v4
    %v6 = vld [vmem:[#allocation0] sm:$0x3]
    %vm7 = vcmask 7168
    %8 = vst.msk [vmem:[%s1] ss:$8 sm:$0x3] %vm7, %v6
    %v9 = vld [vmem:[#allocation0] sm:$0x3]
    %10 = vrot.lane.b32.xlu0 %v9, 127
    %v11 = vpop.permute.xlu0 %10
    %vm12 = vcmask 7168
    %s13 = scalar_lea.vmem %s1, 1
    %14 = vst.msk [vmem:[%s13] ss:$8 sm:$0x3] %vm12, %v11
    %v15 = vld [vmem:[#allocation0] sm:$0x3]
    %16 = vrot.lane.b32.xlu0 %v15, 126
    %v17 = vpop.permute.xlu0 %16
    %vm18 = vcmask 7168
    %s19 = scalar_lea.vmem %s1, 2
    %20 = vst.msk [vmem:[%s19] ss:$8 sm:$0x3] %vm18, %v17
    %v21 = vld [vmem:[#allocation0] sm:$0x3]
    %22 = vrot.lane.b32.xlu0 %v21, 125
    %v23 = vpop.permute.xlu0 %22
    %vm24 = vcmask 7168
    %s25 = scalar_lea.vmem %s1, 3
    %26 = vst.msk [vmem:[%s25] ss:$8 sm:$0x3] %vm24, %v23
    %v27 = vld [vmem:[#allocation0] sm:$0x3]
    %28 = vrot.lane.b32.xlu0 %v27, 124
    %v29 = vpop.permute.xlu0 %28
    %vm30 = vcmask 7168
    %s31 = scalar_lea.vmem %s1, 4
    %32 = vst.msk [vmem:[%s31] ss:$8 sm:$0x3] %vm30, %v29
    %v33 = vld [vmem:[#allocation0] sm:$0x3]
    %34 = vrot.lane.b32.xlu0 %v33, 123
    %v35 = vpop.permute.xlu0 %34
    %vm36 = vcmask 7168
    %s37 = scalar_lea.vmem %s1, 5
    %38 = vst.msk [vmem:[%s37] ss:$8 sm:$0x3] %vm36, %v35
    %v39 = vld [vmem:[#allocation0] sm:$0x3]
    %40 = vrot.lane.b32.xlu0 %v39, 122
    %v41 = vpop.permute.xlu0 %40
    %vm42 = vcmask 7168
    %s43 = scalar_lea.vmem %s1, 6
    %44 = vst.msk [vmem:[%s43] ss:$8 sm:$0x3] %vm42, %v41
    %v45 = vld [vmem:[#allocation0] sm:$0x3]
    %46 = vrot.lane.b32.xlu0 %v45, 121
    %v47 = vpop.permute.xlu0 %46
    %vm48 = vcmask 7168
    %s49 = scalar_lea.vmem %s1, 7
    %50 = vst.msk [vmem:[%s49] ss:$8 sm:$0x3] %vm48, %v47

// kernel: chord_network_non_coop.1
$region0: #{chord_network_non_coop.1}
  #allocation0 [shape = 'u32[]', space=smem, size = 0x4, offset = 0x4, fixed_abs, tag = 'smem constant byte address 0x4 - core index']
  #allocation1 [shape = 'u32[144,128]{1,0:T(1,128)}', space=vmem, size = 0x12000, scoped, tag = 'internal scratch']
  %s0 = inlined_call_operand.smem [shape: u32[39], index: -1, kind: input, shape index: {}]
  %s1 = sld [smem:[%s0]]
  %s2 = scalar_lea.smem %s0, 1
  %s3 = sld [smem:[%s2]]
  %s4 = scalar_lea.smem %s0, 2
  %s5 = sld [smem:[%s4]]
  %s6 = scalar_lea.smem %s0, 3
  %s7 = sld [smem:[%s6]]
  %s8 = scalar_lea.smem %s0, 4
  %s9 = sld [smem:[%s8]]
  %s10 = scalar_lea.smem %s0, 5
  %s11 = sld [smem:[%s10]]
  %s12 = scalar_lea.smem %s0, 6
  %s13 = sld [smem:[%s12]]
  %s14 = scalar_lea.smem %s0, 7
  %s15 = sld [smem:[%s14]]
  %s16 = scalar_lea.smem %s0, 8
  %s17 = sld [smem:[%s16]]
  %s18 = scalar_lea.smem %s0, 9
  %s19 = sld [smem:[%s18]]
  %s20 = scalar_lea.smem %s0, 10
  %s21 = sld [smem:[%s20]]
  %s22 = scalar_lea.smem %s0, 11
  %s23 = sld [smem:[%s22]]
  %s24 = scalar_lea.smem %s0, 12
  %s25 = sld [smem:[%s24]]
  %s26 = scalar_lea.smem %s0, 13
  %s27 = sld [smem:[%s26]]
  %s28 = scalar_lea.smem %s0, 14
  %s29 = sld [smem:[%s28]]
  %s30 = scalar_lea.smem %s0, 15
  %s31 = sld [smem:[%s30]]
  %s32 = scalar_lea.smem %s0, 16
  %s33 = sld [smem:[%s32]]
  %s34 = scalar_lea.smem %s0, 17
  %s35 = sld [smem:[%s34]]
  %s36 = scalar_lea.smem %s0, 18
  %s37 = sld [smem:[%s36]]
  %s38 = scalar_lea.smem %s0, 19
  %s39 = sld [smem:[%s38]]
  %s40 = scalar_lea.smem %s0, 20
  %s41 = sld [smem:[%s40]]
  %s42 = scalar_lea.smem %s0, 21
  %s43 = sld [smem:[%s42]]
  %s44 = scalar_lea.smem %s0, 22
  %s45 = sld [smem:[%s44]]
  %s46 = scalar_lea.smem %s0, 23
  %s47 = sld [smem:[%s46]]
  %s48 = scalar_lea.smem %s0, 24
  %s49 = sld [smem:[%s48]]
  %s50 = scalar_lea.smem %s0, 25
  %s51 = sld [smem:[%s50]]
  %s52 = scalar_lea.smem %s0, 26
  %s53 = sld [smem:[%s52]]
  %s54 = scalar_lea.smem %s0, 27
  %s55 = sld [smem:[%s54]]
  %s56 = scalar_lea.smem %s0, 28
  %s57 = sld [smem:[%s56]]
  %s58 = scalar_lea.smem %s0, 29
  %s59 = sld [smem:[%s58]]
  %s60 = scalar_lea.smem %s0, 30
  %s61 = sld [smem:[%s60]]
  %s62 = scalar_lea.smem %s0, 31
  %s63 = sld [smem:[%s62]]
  %s64 = scalar_lea.smem %s0, 32
  %s65 = sld [smem:[%s64]]
  %s66 = scalar_lea.smem %s0, 33
  %s67 = sld [smem:[%s66]]
  %s68 = scalar_lea.smem %s0, 34
  %s69 = sld [smem:[%s68]]
  %s70 = scalar_lea.smem %s0, 35
  %s71 = sld [smem:[%s70]]
  %s72 = scalar_lea.smem %s0, 36
  %s73 = sld [smem:[%s72]]
  %s74 = scalar_lea.smem %s0, 37
  %s75 = sld [smem:[%s74]]
  %s76 = scalar_lea.smem %s0, 38
  %s77 = sld [smem:[%s76]]
  %s78 = sld [smem:[#allocation0]]
  $region176: #{chord_network_non_coop.1} parent=0
    _
  %s80 = ssub.s32 1, %s78
  %s81 = scalar_select 0, %s80, %s78
  $region1: #{chord_network_non_coop.1} parent=0
    #allocation2 [shape = 'u8[1024]{0}', space=vmem, size = 0x400, scoped, tag = 'output window, operand 0, single buffered']
    #allocation3 [shape = 's32[1]{0}', space=sflag, size = 0x4, scoped, tag = 'scoped memory for chord_network_non_coop.1']
    %82 = vsyncpa [#allocation3], 0
    // Predicated region
    $region2: #{chord_network_non_coop.1} parent=1 // pred_check
      _
    $region3: #{chord_network_non_coop.1} parent=1 // pred_check_branch
      %84 = sbr.rel (0) target = $region5
    $region4: #{chord_network_non_coop.1} parent=1 // pred_region
      _
    $region5: #{chord_network_non_coop.1} parent=1 // pred_fallthru
      _
    // Predicated region
    $region6: #{chord_network_non_coop.1} parent=1 // pred_check
      _
    $region7: #{chord_network_non_coop.1} parent=1 // pred_check_branch
      %86 = sbr.rel (0) target = $region9
    $region8: #{chord_network_non_coop.1} parent=1 // pred_region
      _
    $region9: #{chord_network_non_coop.1} parent=1 // pred_fallthru
      _
    // Predicated region
    $region10: #{chord_network_non_coop.1} parent=1 // pred_check
      _
    $region11: #{chord_network_non_coop.1} parent=1 // pred_check_branch
      %88 = sbr.rel (0) target = $region13
    $region12: #{chord_network_non_coop.1} parent=1 // pred_region
      _
    $region13: #{chord_network_non_coop.1} parent=1 // pred_fallthru
      _
    // Predicated region
    $region14: #{chord_network_non_coop.1} parent=1 // pred_check
      _
    $region15: #{chord_network_non_coop.1} parent=1 // pred_check_branch
      %90 = sbr.rel (0) target = $region17
    $region16: #{chord_network_non_coop.1} parent=1 // pred_region
      _
    $region17: #{chord_network_non_coop.1} parent=1 // pred_fallthru
      _
    // Predicated region
    $region18: #{chord_network_non_coop.1} parent=1 // pred_check
      _
    $region19: #{chord_network_non_coop.1} parent=1 // pred_check_branch
      %92 = sbr.rel (0) target = $region21
    $region20: #{chord_network_non_coop.1} parent=1 // pred_region
      _
    $region21: #{chord_network_non_coop.1} parent=1 // pred_fallthru
      _
    // Predicated region
    $region22: #{chord_network_non_coop.1} parent=1 // pred_check
      _
    $region23: #{chord_network_non_coop.1} parent=1 // pred_check_branch
      %94 = sbr.rel (0) target = $region25
    $region24: #{chord_network_non_coop.1} parent=1 // pred_region
      _
    $region25: #{chord_network_non_coop.1} parent=1 // pred_fallthru
      _
    // Predicated region
    $region26: #{chord_network_non_coop.1} parent=1 // pred_check
      _
    $region27: #{chord_network_non_coop.1} parent=1 // pred_check_branch
      %96 = sbr.rel (0) target = $region29
    $region28: #{chord_network_non_coop.1} parent=1 // pred_region
      _
    $region29: #{chord_network_non_coop.1} parent=1 // pred_fallthru
      _
    // Predicated region
    $region30: #{chord_network_non_coop.1} parent=1 // pred_check
      _
    $region31: #{chord_network_non_coop.1} parent=1 // pred_check_branch
      %98 = sbr.rel (0) target = $region33
    $region32: #{chord_network_non_coop.1} parent=1 // pred_region
      _
    $region33: #{chord_network_non_coop.1} parent=1 // pred_fallthru
      _
    // Predicated region
    $region34: #{chord_network_non_coop.1} parent=1 // pred_check
      _
    $region35: #{chord_network_non_coop.1} parent=1 // pred_check_branch
      %100 = sbr.rel (0) target = $region37
    $region36: #{chord_network_non_coop.1} parent=1 // pred_region
      _
    $region37: #{chord_network_non_coop.1} parent=1 // pred_fallthru
      _
    // Predicated region
    $region38: #{chord_network_non_coop.1} parent=1 // pred_check
      _
    $region39: #{chord_network_non_coop.1} parent=1 // pred_check_branch
      %102 = sbr.rel (0) target = $region41
    $region40: #{chord_network_non_coop.1} parent=1 // pred_region
      _
    $region41: #{chord_network_non_coop.1} parent=1 // pred_fallthru
      _
    // Predicated region
    $region42: #{chord_network_non_coop.1} parent=1 // pred_check
      _
    $region43: #{chord_network_non_coop.1} parent=1 // pred_check_branch
      %104 = sbr.rel (0) target = $region45
    $region44: #{chord_network_non_coop.1} parent=1 // pred_region
      _
    $region45: #{chord_network_non_coop.1} parent=1 // pred_fallthru
      _
    // Predicated region
    $region46: #{chord_network_non_coop.1} parent=1 // pred_check
      _
    $region47: #{chord_network_non_coop.1} parent=1 // pred_check_branch
      %106 = sbr.rel (0) target = $region49
    $region48: #{chord_network_non_coop.1} parent=1 // pred_region
      _
    $region49: #{chord_network_non_coop.1} parent=1 // pred_fallthru
      _
    // Predicated region
    $region50: #{chord_network_non_coop.1} parent=1 // pred_check
      _
    $region51: #{chord_network_non_coop.1} parent=1 // pred_check_branch
      %108 = sbr.rel (0) target = $region53
    $region52: #{chord_network_non_coop.1} parent=1 // pred_region
      _
    $region53: #{chord_network_non_coop.1} parent=1 // pred_fallthru
      _
    // Predicated region
    $region54: #{chord_network_non_coop.1} parent=1 // pred_check
      _
    $region55: #{chord_network_non_coop.1} parent=1 // pred_check_branch
      %110 = sbr.rel (0) target = $region57
    $region56: #{chord_network_non_coop.1} parent=1 // pred_region
      _
    $region57: #{chord_network_non_coop.1} parent=1 // pred_fallthru
      _
    // Predicated region
    $region58: #{chord_network_non_coop.1} parent=1 // pred_check
      _
    $region59: #{chord_network_non_coop.1} parent=1 // pred_check_branch
      %112 = sbr.rel (0) target = $region61
    $region60: #{chord_network_non_coop.1} parent=1 // pred_region
      _
    $region61: #{chord_network_non_coop.1} parent=1 // pred_fallthru
      _
    // Predicated region
    $region62: #{chord_network_non_coop.1} parent=1 // pred_check
      _
    $region63: #{chord_network_non_coop.1} parent=1 // pred_check_branch
      %114 = sbr.rel (0) target = $region65
    $region64: #{chord_network_non_coop.1} parent=1 // pred_region
      _
    $region65: #{chord_network_non_coop.1} parent=1 // pred_fallthru
      _
    // Predicated region
    $region66: #{chord_network_non_coop.1} parent=1 // pred_check
      _
    $region67: #{chord_network_non_coop.1} parent=1 // pred_check_branch
      %116 = sbr.rel (0) target = $region69
    $region68: #{chord_network_non_coop.1} parent=1 // pred_region
      _
    $region69: #{chord_network_non_coop.1} parent=1 // pred_fallthru
      _
    // Predicated region
    $region70: #{chord_network_non_coop.1} parent=1 // pred_check
      _
    $region71: #{chord_network_non_coop.1} parent=1 // pred_check_branch
      %118 = sbr.rel (0) target = $region73
    $region72: #{chord_network_non_coop.1} parent=1 // pred_region
      _
    $region73: #{chord_network_non_coop.1} parent=1 // pred_fallthru
      _
    // Predicated region
    $region74: #{chord_network_non_coop.1} parent=1 // pred_check
      _
    $region75: #{chord_network_non_coop.1} parent=1 // pred_check_branch
      %120 = sbr.rel (0) target = $region77
    $region76: #{chord_network_non_coop.1} parent=1 // pred_region
      _
    $region77: #{chord_network_non_coop.1} parent=1 // pred_fallthru
      _
    // Predicated region
    $region78: #{chord_network_non_coop.1} parent=1 // pred_check
      _
    $region79: #{chord_network_non_coop.1} parent=1 // pred_check_branch
      %122 = sbr.rel (0) target = $region81
    $region80: #{chord_network_non_coop.1} parent=1 // pred_region
      _
    $region81: #{chord_network_non_coop.1} parent=1 // pred_fallthru
      _
    // Predicated region
    $region82: #{chord_network_non_coop.1} parent=1 // pred_check
      _
    $region83: #{chord_network_non_coop.1} parent=1 // pred_check_branch
      %124 = sbr.rel (0) target = $region85
    $region84: #{chord_network_non_coop.1} parent=1 // pred_region
      _
    $region85: #{chord_network_non_coop.1} parent=1 // pred_fallthru
      _
    // Predicated region
    $region86: #{chord_network_non_coop.1} parent=1 // pred_check
      _
    $region87: #{chord_network_non_coop.1} parent=1 // pred_check_branch
      %126 = sbr.rel (0) target = $region89
    $region88: #{chord_network_non_coop.1} parent=1 // pred_region
      _
    $region89: #{chord_network_non_coop.1} parent=1 // pred_fallthru
      _
    // Predicated region
    $region90: #{chord_network_non_coop.1} parent=1 // pred_check
      _
    $region91: #{chord_network_non_coop.1} parent=1 // pred_check_branch
      %128 = sbr.rel (0) target = $region93
    $region92: #{chord_network_non_coop.1} parent=1 // pred_region
      _
    $region93: #{chord_network_non_coop.1} parent=1 // pred_fallthru
      _
    // Predicated region
    $region94: #{chord_network_non_coop.1} parent=1 // pred_check
      _
    $region95: #{chord_network_non_coop.1} parent=1 // pred_check_branch
      %130 = sbr.rel (0) target = $region97
    $region96: #{chord_network_non_coop.1} parent=1 // pred_region
      _
    $region97: #{chord_network_non_coop.1} parent=1 // pred_fallthru
      _
    // Predicated region
    $region98: #{chord_network_non_coop.1} parent=1 // pred_check
      _
    $region99: #{chord_network_non_coop.1} parent=1 // pred_check_branch
      %132 = sbr.rel (0) target = $region101
    $region100: #{chord_network_non_coop.1} parent=1 // pred_region
      _
    $region101: #{chord_network_non_coop.1} parent=1 // pred_fallthru
      _
    // Predicated region
    $region102: #{chord_network_non_coop.1} parent=1 // pred_check
      _
    $region103: #{chord_network_non_coop.1} parent=1 // pred_check_branch
      %134 = sbr.rel (0) target = $region105
    $region104: #{chord_network_non_coop.1} parent=1 // pred_region
      _
    $region105: #{chord_network_non_coop.1} parent=1 // pred_fallthru
      _
    // Predicated region
    $region106: #{chord_network_non_coop.1} parent=1 // pred_check
      _
    $region107: #{chord_network_non_coop.1} parent=1 // pred_check_branch
      %136 = sbr.rel (0) target = $region109
    $region108: #{chord_network_non_coop.1} parent=1 // pred_region
      _
    $region109: #{chord_network_non_coop.1} parent=1 // pred_fallthru
      _
    // Predicated region
    $region110: #{chord_network_non_coop.1} parent=1 // pred_check
      _
    $region111: #{chord_network_non_coop.1} parent=1 // pred_check_branch
      %138 = sbr.rel (0) target = $region113
    $region112: #{chord_network_non_coop.1} parent=1 // pred_region
      _
    $region113: #{chord_network_non_coop.1} parent=1 // pred_fallthru
      _
    // Predicated region
    $region114: #{chord_network_non_coop.1} parent=1 // pred_check
      _
    $region115: #{chord_network_non_coop.1} parent=1 // pred_check_branch
      %140 = sbr.rel (0) target = $region117
    $region116: #{chord_network_non_coop.1} parent=1 // pred_region
      _
    $region117: #{chord_network_non_coop.1} parent=1 // pred_fallthru
      _
    // Predicated region
    $region118: #{chord_network_non_coop.1} parent=1 // pred_check
      _
    $region119: #{chord_network_non_coop.1} parent=1 // pred_check_branch
      %142 = sbr.rel (0) target = $region121
    $region120: #{chord_network_non_coop.1} parent=1 // pred_region
      _
    $region121: #{chord_network_non_coop.1} parent=1 // pred_fallthru
      _
    // Predicated region
    $region122: #{chord_network_non_coop.1} parent=1 // pred_check
      _
    $region123: #{chord_network_non_coop.1} parent=1 // pred_check_branch
      %144 = sbr.rel (0) target = $region125
    $region124: #{chord_network_non_coop.1} parent=1 // pred_region
      _
    $region125: #{chord_network_non_coop.1} parent=1 // pred_fallthru
      _
    // Predicated region
    $region126: #{chord_network_non_coop.1} parent=1 // pred_check
      _
    $region127: #{chord_network_non_coop.1} parent=1 // pred_check_branch
      %146 = sbr.rel (0) target = $region129
    $region128: #{chord_network_non_coop.1} parent=1 // pred_region
      _
    $region129: #{chord_network_non_coop.1} parent=1 // pred_fallthru
      _
    // Predicated region
    $region130: #{chord_network_non_coop.1} parent=1 // pred_check
      _
    $region131: #{chord_network_non_coop.1} parent=1 // pred_check_branch
      %148 = sbr.rel (0) target = $region133
    $region132: #{chord_network_non_coop.1} parent=1 // pred_region
      _
    $region133: #{chord_network_non_coop.1} parent=1 // pred_fallthru
      _
    // Predicated region
    $region134: #{chord_network_non_coop.1} parent=1 // pred_check
      _
    $region135: #{chord_network_non_coop.1} parent=1 // pred_check_branch
      %150 = sbr.rel (0) target = $region137
    $region136: #{chord_network_non_coop.1} parent=1 // pred_region
      _
    $region137: #{chord_network_non_coop.1} parent=1 // pred_fallthru
      _
    // Predicated region
    $region138: #{chord_network_non_coop.1} parent=1 // pred_check
      _
    $region139: #{chord_network_non_coop.1} parent=1 // pred_check_branch
      %152 = sbr.rel (0) target = $region141
    $region140: #{chord_network_non_coop.1} parent=1 // pred_region
      _
    $region141: #{chord_network_non_coop.1} parent=1 // pred_fallthru
      _
    // Predicated region
    $region142: #{chord_network_non_coop.1} parent=1 // pred_check
      _
    $region143: #{chord_network_non_coop.1} parent=1 // pred_check_branch
      %154 = sbr.rel (0) target = $region145
    $region144: #{chord_network_non_coop.1} parent=1 // pred_region
      _
    $region145: #{chord_network_non_coop.1} parent=1 // pred_fallthru
      _
    // Predicated region
    $region146: #{chord_network_non_coop.1} parent=1 // pred_check
      _
    $region147: #{chord_network_non_coop.1} parent=1 // pred_check_branch
      %156 = sbr.rel (0) target = $region149
    $region148: #{chord_network_non_coop.1} parent=1 // pred_region
      _
    $region149: #{chord_network_non_coop.1} parent=1 // pred_fallthru
      _
    // Predicated region
    $region150: #{chord_network_non_coop.1} parent=1 // pred_check
      _
    $region151: #{chord_network_non_coop.1} parent=1 // pred_check_branch
      %158 = sbr.rel (0) target = $region153
    $region152: #{chord_network_non_coop.1} parent=1 // pred_region
      _
    $region153: #{chord_network_non_coop.1} parent=1 // pred_fallthru
      _
    %v159 = vld [vmem:[%s1] sm:$0xff]
    %v160 = vld [vmem:[%s1 + $0x8] sm:$0xff]
    %v161 = vlaneseq
    %v162 = vand.u32 %v161, 127
    %163 = vset.pattern.permute.xlu0 0
    %164 = vperm.xlu0 %163, %v159
    %v165 = vpop.permute.xlu0 %164
    %166 = vset.pattern.permute.xlu0 0
    %167 = vperm.xlu0 %166, %v160
    %v168 = vpop.permute.xlu0 %167
    %vm169 = vcmp.eq.s32.totalorder %v165, %v162
    %vm170 = vcmp.eq.s32.totalorder %v168, %v162
    %v171 = vsel %vm169, 1, 0
    %v172 = vsel %vm170, 1, 0
    %v173 = vcvt.s32.f32 %v171
    %v174 = vcvt.s32.f32 %v172
    %v175 = vld [vmem:[%s3] sm:$0xff]
    %v176 = vld [vmem:[%s3 + $0x8] sm:$0xff]
    %v177 = vld [vmem:[%s3 + $0x10] sm:$0xff]
    %vm178 = vcmask 195584
    %v180 = vsel %vm178, %v173, 0
    %v183 = vsel %vm178, %v174, 0
    %185 = vmatprep.subr.mxu0 0.0
    %186 = vmatpush1.msra.mxu0 %v175
    %187 = vmatprep.subr.mxu0 0.0
    %188 = vmatpush1.msra.mxu0 %v176
    %189 = vmatprep.subr.mxu0 0.0
    %190 = vmatpush1.msra.mxu0 %v177
    %191 = vmatprep.subr.mxu0 0.0
    %192 = vmatpush1.msra.mxu0 0.0
    %193 = vmatprep.subr.mxu0 0.0
    %194 = vmatpush1.msra.mxu0 0.0
    %195 = vmatprep.subr.mxu0 0.0
    %196 = vmatpush1.msra.mxu0 0.0
    %197 = vmatprep.subr.mxu0 0.0
    %198 = vmatpush1.msra.mxu0 0.0
    %199 = vmatprep.subr.mxu0 0.0
    %200 = vmatpush1.msra.mxu0 0.0
    %201 = vmatprep.subr.mxu0 0.0
    %202 = vmatpush1.msra.mxu0 0.0
    %203 = vmatprep.subr.mxu0 0.0
    %204 = vmatpush1.msra.mxu0 0.0
    %205 = vmatprep.subr.mxu0 0.0
    %206 = vmatpush1.msra.mxu0 0.0
    %207 = vmatprep.subr.mxu0 0.0
    %208 = vmatpush1.msra.mxu0 0.0
    %209 = vmatprep.subr.mxu0 0.0
    %210 = vmatpush1.msra.mxu0 0.0
    %211 = vmatprep.subr.mxu0 0.0
    %212 = vmatpush1.msra.mxu0 0.0
    %213 = vmatprep.subr.mxu0 0.0
    %214 = vmatpush1.msra.mxu0 0.0
    %215 = vmatprep.subr.mxu0 0.0
    %216 = vmatpush1.msra.mxu0 0.0
    %217 = vmatprep.subr.mxu0 0.0
    %218 = vmatpush1.msra.mxu0 0.0
    %219 = vmatprep.subr.mxu0 0.0
    %220 = vmatpush1.msra.mxu0 0.0
    %221 = vmatprep.subr.mxu0 0.0
    %222 = vmatpush1.msra.mxu0 0.0
    %223 = vmatprep.subr.mxu0 0.0
    %224 = vmatpush1.msra.mxu0 0.0
    %225 = vmatprep.subr.mxu0 0.0
    %226 = vmatpush1.msra.mxu0 0.0
    %227 = vmatprep.subr.mxu0 0.0
    %228 = vmatpush1.msra.mxu0 0.0
    %229 = vmatprep.subr.mxu0 0.0
    %230 = vmatpush1.msra.mxu0 0.0
    %231 = vmatprep.subr.mxu0 0.0
    %232 = vmatpush1.msra.mxu0 0.0
    %233 = vmatprep.subr.mxu0 0.0
    %234 = vmatpush1.msra.mxu0 0.0
    %235 = vmatprep.subr.mxu0 0.0
    %236 = vmatpush1.msra.mxu0 0.0
    %237 = vmatprep.subr.mxu0 0.0
    %238 = vmatpush1.msra.mxu0 0.0
    %239 = vmatprep.subr.mxu0 0.0
    %240 = vmatpush1.msra.mxu0 0.0
    %241 = vmatprep.subr.mxu0 0.0
    %242 = vmatpush1.msra.mxu0 0.0
    %243 = vmatprep.subr.mxu0 0.0
    %244 = vmatpush1.msra.mxu0 0.0
    %245 = vmatprep.subr.mxu0 0.0
    %246 = vmatpush1.msra.mxu0 0.0
    %247 = vmatprep.subr.mxu0 0.0
    %248 = vmatpush1.msra.mxu0 0.0
    %249 = vmatprep.mubr.f32.mxu0 0.0
    %250 = vmatmul.mubr.f32.gmra.mrb[0].mxu0 %v180
    %v251 = vpop.f32.mrb[0].mxu0
    %v252 = vadd.f32 0.0, %v251
    %v253 = vpop.f32.mrb[0].mxu0
    %254 = vmatprep.mubr.f32.mxu0 0.0
    %255 = vmatmul.mubr.f32.gmra.mrb[0].mxu0 %v183
    %v256 = vpop.f32.mrb[0].mxu0
    %v257 = vadd.f32 0.0, %v256
    %v258 = vpop.f32.mrb[0].mxu0
    %259 = vdwg.mxu0
    loop: start=0, step=1, limit=2
    $region154: #{chord_network_non_coop.1} parent=1 // loop_pre_header
      _
    $region155: #{chord_network_non_coop.1} parent=1 // loop_header
      %s261 = sphi 0, %s265
      %p262 = scmp.ge.s32.totalorder %s261, 2
      %v266 = vphi %v252, %v3762
      %v267 = vphi %v257, %v3763
    $region156: #{chord_network_non_coop.1} parent=1 // loop_header_branch
      %264 = sbr.rel (%p262) target = $region160
    $region157: #{chord_network_non_coop.1} parent=1 // loop_body
      %s268 = smul.u32 %s261, 32
      %s269 = scalar_lea.vmem %s5, %s268
      %v270 = vld [vmem:[%s269] sm:$0xff]
      %v271 = vld [vmem:[%s269 + $0x8] sm:$0xff]
      %v272 = vld [vmem:[%s269 + $0x10] sm:$0xff]
      %v273 = vld [vmem:[%s269 + $0x18] sm:$0xff]
      %s274 = scalar_lea.vmem %s7, %s261
      %v275 = vld [vmem:[%s274] sm:$0x1]
      %s276 = scalar_lea.vmem %s9, %s268
      %v277 = vld [vmem:[%s276] sm:$0xff]
      %v278 = vld [vmem:[%s276 + $0x8] sm:$0xff]
      %v279 = vld [vmem:[%s276 + $0x10] sm:$0xff]
      %v280 = vld [vmem:[%s276 + $0x18] sm:$0xff]
      %s281 = scalar_lea.vmem %s11, %s261
      %v282 = vld [vmem:[%s281] sm:$0x1]
      %v284 = vlaneseq
      %v285 = vshrl.u32 %v284, 7
      %v286 = vsub.s32 0, %v285
      %v287 = vrot.slane %v275, %v286
      %vm289 = vcmask 261120
      %v291 = vsel %vm289, %v266, 0
      %v294 = vsel %vm289, %v267, 0
      %296 = vmatprep.subr.mxu0 0.0
      %297 = vmatpush1.msra.mxu0 %v270
      %298 = vmatprep.subr.mxu0 0.0
      %299 = vmatpush1.msra.mxu0 %v271
      %300 = vmatprep.subr.mxu0 0.0
      %301 = vmatpush1.msra.mxu0 %v272
      %302 = vmatprep.subr.mxu0 0.0
      %303 = vmatpush1.msra.mxu0 %v273
      %304 = vmatprep.subr.mxu0 0.0
      %305 = vmatpush1.msra.mxu0 0.0
      %306 = vmatprep.subr.mxu0 0.0
      %307 = vmatpush1.msra.mxu0 0.0
      %308 = vmatprep.subr.mxu0 0.0
      %309 = vmatpush1.msra.mxu0 0.0
      %310 = vmatprep.subr.mxu0 0.0
      %311 = vmatpush1.msra.mxu0 0.0
      %312 = vmatprep.subr.mxu0 0.0
      %313 = vmatpush1.msra.mxu0 0.0
      %314 = vmatprep.subr.mxu0 0.0
      %315 = vmatpush1.msra.mxu0 0.0
      %316 = vmatprep.subr.mxu0 0.0
      %317 = vmatpush1.msra.mxu0 0.0
      %318 = vmatprep.subr.mxu0 0.0
      %319 = vmatpush1.msra.mxu0 0.0
      %320 = vmatprep.subr.mxu0 0.0
      %321 = vmatpush1.msra.mxu0 0.0
      %322 = vmatprep.subr.mxu0 0.0
      %323 = vmatpush1.msra.mxu0 0.0
      %324 = vmatprep.subr.mxu0 0.0
      %325 = vmatpush1.msra.mxu0 0.0
      %326 = vmatprep.subr.mxu0 0.0
      %327 = vmatpush1.msra.mxu0 0.0
      %328 = vmatprep.subr.mxu0 0.0
      %329 = vmatpush1.msra.mxu0 0.0
      %330 = vmatprep.subr.mxu0 0.0
      %331 = vmatpush1.msra.mxu0 0.0
      %332 = vmatprep.subr.mxu0 0.0
      %333 = vmatpush1.msra.mxu0 0.0
      %334 = vmatprep.subr.mxu0 0.0
      %335 = vmatpush1.msra.mxu0 0.0
      %336 = vmatprep.subr.mxu0 0.0
      %337 = vmatpush1.msra.mxu0 0.0
      %338 = vmatprep.subr.mxu0 0.0
      %339 = vmatpush1.msra.mxu0 0.0
      %340 = vmatprep.subr.mxu0 0.0
      %341 = vmatpush1.msra.mxu0 0.0
      %342 = vmatprep.subr.mxu0 0.0
      %343 = vmatpush1.msra.mxu0 0.0
      %344 = vmatprep.subr.mxu0 0.0
      %345 = vmatpush1.msra.mxu0 0.0
      %346 = vmatprep.subr.mxu0 0.0
      %347 = vmatpush1.msra.mxu0 0.0
      %348 = vmatprep.subr.mxu0 0.0
      %349 = vmatpush1.msra.mxu0 0.0
      %350 = vmatprep.subr.mxu0 0.0
      %351 = vmatpush1.msra.mxu0 0.0
      %352 = vmatprep.subr.mxu0 0.0
      %353 = vmatpush1.msra.mxu0 0.0
      %354 = vmatprep.subr.mxu0 0.0
      %355 = vmatpush1.msra.mxu0 0.0
      %356 = vmatprep.subr.mxu0 0.0
      %357 = vmatpush1.msra.mxu0 0.0
      %358 = vmatprep.subr.mxu0 0.0
      %359 = vmatpush1.msra.mxu0 0.0
      %360 = vmatprep.mubr.f32.mxu0 0.0
      %361 = vmatmul.mubr.f32.gmra.mrb[0].mxu0 %v291
      %v362 = vpop.f32.mrb[0].mxu0
      %v363 = vadd.f32 %v287, %v362
      %v364 = vpop.f32.mrb[0].mxu0
      %365 = vmatprep.mubr.f32.mxu0 0.0
      %366 = vmatmul.mubr.f32.gmra.mrb[0].mxu0 %v294
      %v367 = vpop.f32.mrb[0].mxu0
      %v368 = vadd.f32 %v287, %v367
      %v369 = vpop.f32.mrb[0].mxu0
      %370 = vdwg.mxu0
      %375 = vrot.lane.b32.xlu0 %v270, 96
      %v376 = vpop.permute.xlu0 %375
      %377 = vrot.lane.b32.xlu0 %v271, 96
      %v378 = vpop.permute.xlu0 %377
      %379 = vrot.lane.b32.xlu0 %v272, 96
      %v380 = vpop.permute.xlu0 %379
      %381 = vrot.lane.b32.xlu0 %v273, 96
      %v382 = vpop.permute.xlu0 %381
      %387 = vrot.lane.b32.xlu0 %v287, 96
      %v388 = vpop.permute.xlu0 %387
      %390 = vmatprep.subr.mxu0 0.0
      %391 = vmatpush1.msra.mxu0 %v376
      %392 = vmatprep.subr.mxu0 0.0
      %393 = vmatpush1.msra.mxu0 %v378
      %394 = vmatprep.subr.mxu0 0.0
      %395 = vmatpush1.msra.mxu0 %v380
      %396 = vmatprep.subr.mxu0 0.0
      %397 = vmatpush1.msra.mxu0 %v382
      %398 = vmatprep.subr.mxu0 0.0
      %399 = vmatpush1.msra.mxu0 0.0
      %400 = vmatprep.subr.mxu0 0.0
      %401 = vmatpush1.msra.mxu0 0.0
      %402 = vmatprep.subr.mxu0 0.0
      %403 = vmatpush1.msra.mxu0 0.0
      %404 = vmatprep.subr.mxu0 0.0
      %405 = vmatpush1.msra.mxu0 0.0
      %406 = vmatprep.subr.mxu0 0.0
      %407 = vmatpush1.msra.mxu0 0.0
      %408 = vmatprep.subr.mxu0 0.0
      %409 = vmatpush1.msra.mxu0 0.0
      %410 = vmatprep.subr.mxu0 0.0
      %411 = vmatpush1.msra.mxu0 0.0
      %412 = vmatprep.subr.mxu0 0.0
      %413 = vmatpush1.msra.mxu0 0.0
      %414 = vmatprep.subr.mxu0 0.0
      %415 = vmatpush1.msra.mxu0 0.0
      %416 = vmatprep.subr.mxu0 0.0
      %417 = vmatpush1.msra.mxu0 0.0
      %418 = vmatprep.subr.mxu0 0.0
      %419 = vmatpush1.msra.mxu0 0.0
      %420 = vmatprep.subr.mxu0 0.0
      %421 = vmatpush1.msra.mxu0 0.0
      %422 = vmatprep.subr.mxu0 0.0
      %423 = vmatpush1.msra.mxu0 0.0
      %424 = vmatprep.subr.mxu0 0.0
      %425 = vmatpush1.msra.mxu0 0.0
      %426 = vmatprep.subr.mxu0 0.0
      %427 = vmatpush1.msra.mxu0 0.0
      %428 = vmatprep.subr.mxu0 0.0
      %429 = vmatpush1.msra.mxu0 0.0
      %430 = vmatprep.subr.mxu0 0.0
      %431 = vmatpush1.msra.mxu0 0.0
      %432 = vmatprep.subr.mxu0 0.0
      %433 = vmatpush1.msra.mxu0 0.0
      %434 = vmatprep.subr.mxu0 0.0
      %435 = vmatpush1.msra.mxu0 0.0
      %436 = vmatprep.subr.mxu0 0.0
      %437 = vmatpush1.msra.mxu0 0.0
      %438 = vmatprep.subr.mxu0 0.0
      %439 = vmatpush1.msra.mxu0 0.0
      %440 = vmatprep.subr.mxu0 0.0
      %441 = vmatpush1.msra.mxu0 0.0
      %442 = vmatprep.subr.mxu0 0.0
      %443 = vmatpush1.msra.mxu0 0.0
      %444 = vmatprep.subr.mxu0 0.0
      %445 = vmatpush1.msra.mxu0 0.0
      %446 = vmatprep.subr.mxu0 0.0
      %447 = vmatpush1.msra.mxu0 0.0
      %448 = vmatprep.subr.mxu0 0.0
      %449 = vmatpush1.msra.mxu0 0.0
      %450 = vmatprep.subr.mxu0 0.0
      %451 = vmatpush1.msra.mxu0 0.0
      %452 = vmatprep.subr.mxu0 0.0
      %453 = vmatpush1.msra.mxu0 0.0
      %454 = vmatprep.mubr.f32.mxu0 0.0
      %455 = vmatmul.mubr.f32.gmra.mrb[0].mxu0 %v291
      %v456 = vpop.f32.mrb[0].mxu0
      %v457 = vadd.f32 %v388, %v456
      %v458 = vpop.f32.mrb[0].mxu0
      %459 = vmatprep.mubr.f32.mxu0 0.0
      %460 = vmatmul.mubr.f32.gmra.mrb[0].mxu0 %v294
      %v461 = vpop.f32.mrb[0].mxu0
      %v462 = vadd.f32 %v388, %v461
      %v463 = vpop.f32.mrb[0].mxu0
      %464 = vdwg.mxu0
      %465 = vrot.lane.b32.xlu0 %v270, 64
      %v466 = vpop.permute.xlu0 %465
      %467 = vrot.lane.b32.xlu0 %v271, 64
      %v468 = vpop.permute.xlu0 %467
      %469 = vrot.lane.b32.xlu0 %v272, 64
      %v470 = vpop.permute.xlu0 %469
      %471 = vrot.lane.b32.xlu0 %v273, 64
      %v472 = vpop.permute.xlu0 %471
      %477 = vrot.lane.b32.xlu0 %v287, 64
      %v478 = vpop.permute.xlu0 %477
      %480 = vmatprep.subr.mxu0 0.0
      %481 = vmatpush1.msra.mxu0 %v466
      %482 = vmatprep.subr.mxu0 0.0
      %483 = vmatpush1.msra.mxu0 %v468
      %484 = vmatprep.subr.mxu0 0.0
      %485 = vmatpush1.msra.mxu0 %v470
      %486 = vmatprep.subr.mxu0 0.0
      %487 = vmatpush1.msra.mxu0 %v472
      %488 = vmatprep.subr.mxu0 0.0
      %489 = vmatpush1.msra.mxu0 0.0
      %490 = vmatprep.subr.mxu0 0.0
      %491 = vmatpush1.msra.mxu0 0.0
      %492 = vmatprep.subr.mxu0 0.0
      %493 = vmatpush1.msra.mxu0 0.0
      %494 = vmatprep.subr.mxu0 0.0
      %495 = vmatpush1.msra.mxu0 0.0
      %496 = vmatprep.subr.mxu0 0.0
      %497 = vmatpush1.msra.mxu0 0.0
      %498 = vmatprep.subr.mxu0 0.0
      %499 = vmatpush1.msra.mxu0 0.0
      %500 = vmatprep.subr.mxu0 0.0
      %501 = vmatpush1.msra.mxu0 0.0
      %502 = vmatprep.subr.mxu0 0.0
      %503 = vmatpush1.msra.mxu0 0.0
      %504 = vmatprep.subr.mxu0 0.0
      %505 = vmatpush1.msra.mxu0 0.0
      %506 = vmatprep.subr.mxu0 0.0
      %507 = vmatpush1.msra.mxu0 0.0
      %508 = vmatprep.subr.mxu0 0.0
      %509 = vmatpush1.msra.mxu0 0.0
      %510 = vmatprep.subr.mxu0 0.0
      %511 = vmatpush1.msra.mxu0 0.0
      %512 = vmatprep.subr.mxu0 0.0
      %513 = vmatpush1.msra.mxu0 0.0
      %514 = vmatprep.subr.mxu0 0.0
      %515 = vmatpush1.msra.mxu0 0.0
      %516 = vmatprep.subr.mxu0 0.0
      %517 = vmatpush1.msra.mxu0 0.0
      %518 = vmatprep.subr.mxu0 0.0
      %519 = vmatpush1.msra.mxu0 0.0
      %520 = vmatprep.subr.mxu0 0.0
      %521 = vmatpush1.msra.mxu0 0.0
      %522 = vmatprep.subr.mxu0 0.0
      %523 = vmatpush1.msra.mxu0 0.0
      %524 = vmatprep.subr.mxu0 0.0
      %525 = vmatpush1.msra.mxu0 0.0
      %526 = vmatprep.subr.mxu0 0.0
      %527 = vmatpush1.msra.mxu0 0.0
      %528 = vmatprep.subr.mxu0 0.0
      %529 = vmatpush1.msra.mxu0 0.0
      %530 = vmatprep.subr.mxu0 0.0
      %531 = vmatpush1.msra.mxu0 0.0
      %532 = vmatprep.subr.mxu0 0.0
      %533 = vmatpush1.msra.mxu0 0.0
      %534 = vmatprep.subr.mxu0 0.0
      %535 = vmatpush1.msra.mxu0 0.0
      %536 = vmatprep.subr.mxu0 0.0
      %537 = vmatpush1.msra.mxu0 0.0
      %538 = vmatprep.subr.mxu0 0.0
      %539 = vmatpush1.msra.mxu0 0.0
      %540 = vmatprep.subr.mxu0 0.0
      %541 = vmatpush1.msra.mxu0 0.0
      %542 = vmatprep.subr.mxu0 0.0
      %543 = vmatpush1.msra.mxu0 0.0
      %544 = vmatprep.mubr.f32.mxu0 0.0
      %545 = vmatmul.mubr.f32.gmra.mrb[0].mxu0 %v291
      %v546 = vpop.f32.mrb[0].mxu0
      %v547 = vadd.f32 %v478, %v546
      %v548 = vpop.f32.mrb[0].mxu0
      %549 = vmatprep.mubr.f32.mxu0 0.0
      %550 = vmatmul.mubr.f32.gmra.mrb[0].mxu0 %v294
      %v551 = vpop.f32.mrb[0].mxu0
      %v552 = vadd.f32 %v478, %v551
      %v553 = vpop.f32.mrb[0].mxu0
      %554 = vdwg.mxu0
      %vm555 = vcmask 64512
      %v557 = vsel %vm555, %v363, 0
      %v560 = vsel %vm555, %v457, 0
      %562 = vmatprep.subr.mxu0 0.0
      %563 = vmatpush1.xpose.msra.mxu0 %v560
      %564 = vmatprep.subr.mxu0 0.0
      %565 = vmatpush1.xpose.msra.mxu0 0.0
      %566 = vmatprep.subr.mxu0 0.0
      %567 = vmatpush1.xpose.msra.mxu0 0.0
      %568 = vmatprep.subr.mxu0 0.0
      %569 = vmatpush1.xpose.msra.mxu0 0.0
      %570 = vmatprep.subr.mxu0 0.0
      %571 = vmatpush1.xpose.msra.mxu0 0.0
      %572 = vmatprep.subr.mxu0 0.0
      %573 = vmatpush1.xpose.msra.mxu0 0.0
      %574 = vmatprep.subr.mxu0 0.0
      %575 = vmatpush1.xpose.msra.mxu0 0.0
      %576 = vmatprep.subr.mxu0 0.0
      %577 = vmatpush1.xpose.msra.mxu0 0.0
      %578 = vmatprep.subr.mxu0 0.0
      %579 = vmatpush1.xpose.msra.mxu0 0.0
      %580 = vmatprep.subr.mxu0 0.0
      %581 = vmatpush1.xpose.msra.mxu0 0.0
      %582 = vmatprep.subr.mxu0 0.0
      %583 = vmatpush1.xpose.msra.mxu0 0.0
      %584 = vmatprep.subr.mxu0 0.0
      %585 = vmatpush1.xpose.msra.mxu0 0.0
      %586 = vmatprep.subr.mxu0 0.0
      %587 = vmatpush1.xpose.msra.mxu0 0.0
      %588 = vmatprep.subr.mxu0 0.0
      %589 = vmatpush1.xpose.msra.mxu0 0.0
      %590 = vmatprep.subr.mxu0 0.0
      %591 = vmatpush1.xpose.msra.mxu0 0.0
      %592 = vmatprep.subr.mxu0 0.0
      %593 = vmatpush1.xpose.msra.mxu0 0.0
      %594 = vmatprep.subr.mxu0 0.0
      %595 = vmatpush1.xpose.msra.mxu0 0.0
      %596 = vmatprep.subr.mxu0 0.0
      %597 = vmatpush1.xpose.msra.mxu0 0.0
      %598 = vmatprep.subr.mxu0 0.0
      %599 = vmatpush1.xpose.msra.mxu0 0.0
      %600 = vmatprep.subr.mxu0 0.0
      %601 = vmatpush1.xpose.msra.mxu0 0.0
      %602 = vmatprep.subr.mxu0 0.0
      %603 = vmatpush1.xpose.msra.mxu0 0.0
      %604 = vmatprep.subr.mxu0 0.0
      %605 = vmatpush1.xpose.msra.mxu0 0.0
      %606 = vmatprep.subr.mxu0 0.0
      %607 = vmatpush1.xpose.msra.mxu0 0.0
      %608 = vmatprep.subr.mxu0 0.0
      %609 = vmatpush1.xpose.msra.mxu0 0.0
      %610 = vmatprep.subr.mxu0 0.0
      %611 = vmatpush1.xpose.msra.mxu0 0.0
      %612 = vmatprep.subr.mxu0 0.0
      %613 = vmatpush1.xpose.msra.mxu0 0.0
      %614 = vmatprep.subr.mxu0 0.0
      %615 = vmatpush1.xpose.msra.mxu0 0.0
      %616 = vmatprep.subr.mxu0 0.0
      %617 = vmatpush1.xpose.msra.mxu0 0.0
      %618 = vmatprep.subr.mxu0 0.0
      %619 = vmatpush1.xpose.msra.mxu0 0.0
      %620 = vmatprep.subr.mxu0 0.0
      %621 = vmatpush1.xpose.msra.mxu0 0.0
      %622 = vmatprep.subr.mxu0 0.0
      %623 = vmatpush1.xpose.msra.mxu0 0.0
      %624 = vmatprep.subr.mxu0 0.0
      %625 = vmatpush1.xpose.msra.mxu0 0.0
      %626 = vmatprep.mubr.f32.mxu0 0.0
      %627 = vmatmul.mubr.f32.gmra.mrb[0].mxu0 %v557
      %v628 = vpop.f32.mrb[0].mxu0
      %v629 = vadd.f32 0.0, %v628
      %v630 = vpop.f32.mrb[0].mxu0
      %631 = vdwg.mxu0
      %v632 = vmul.f32 %v629, 0.35355338
      %v633 = vsel %vm555, %v632, -inf
      %634 = vmax.xlane.f32.xlu0 %v633
      %v635 = vpop.xlane.xlu0 %634
      %v636 = vsub.f32 %v632, %v635
      %v637 = vmul.f32 %v636, 1.442695
      %v638 = vpow.pop %v637
      %v639 = vsel %vm555, %v638, 0.0
      %640 = vadd.xlane.f32.xlu0 %v639
      %v641 = vpop.xlane.xlu0 %640
      %v642 = vrcp.pop %v641
      %v643 = vmul.f32 %v638, %v642
      %v645 = vsel %vm555, %v643, 0
      %647 = vmatprep.subr.mxu0 0.0
      %648 = vmatpush1.msra.mxu0 %v547
      %649 = vmatprep.subr.mxu0 0.0
      %650 = vmatpush1.msra.mxu0 0.0
      %651 = vmatprep.subr.mxu0 0.0
      %652 = vmatpush1.msra.mxu0 0.0
      %653 = vmatprep.subr.mxu0 0.0
      %654 = vmatpush1.msra.mxu0 0.0
      %655 = vmatprep.subr.mxu0 0.0
      %656 = vmatpush1.msra.mxu0 0.0
      %657 = vmatprep.subr.mxu0 0.0
      %658 = vmatpush1.msra.mxu0 0.0
      %659 = vmatprep.subr.mxu0 0.0
      %660 = vmatpush1.msra.mxu0 0.0
      %661 = vmatprep.subr.mxu0 0.0
      %662 = vmatpush1.msra.mxu0 0.0
      %663 = vmatprep.subr.mxu0 0.0
      %664 = vmatpush1.msra.mxu0 0.0
      %665 = vmatprep.subr.mxu0 0.0
      %666 = vmatpush1.msra.mxu0 0.0
      %667 = vmatprep.subr.mxu0 0.0
      %668 = vmatpush1.msra.mxu0 0.0
      %669 = vmatprep.subr.mxu0 0.0
      %670 = vmatpush1.msra.mxu0 0.0
      %671 = vmatprep.subr.mxu0 0.0
      %672 = vmatpush1.msra.mxu0 0.0
      %673 = vmatprep.subr.mxu0 0.0
      %674 = vmatpush1.msra.mxu0 0.0
      %675 = vmatprep.subr.mxu0 0.0
      %676 = vmatpush1.msra.mxu0 0.0
      %677 = vmatprep.subr.mxu0 0.0
      %678 = vmatpush1.msra.mxu0 0.0
      %679 = vmatprep.subr.mxu0 0.0
      %680 = vmatpush1.msra.mxu0 0.0
      %681 = vmatprep.subr.mxu0 0.0
      %682 = vmatpush1.msra.mxu0 0.0
      %683 = vmatprep.subr.mxu0 0.0
      %684 = vmatpush1.msra.mxu0 0.0
      %685 = vmatprep.subr.mxu0 0.0
      %686 = vmatpush1.msra.mxu0 0.0
      %687 = vmatprep.subr.mxu0 0.0
      %688 = vmatpush1.msra.mxu0 0.0
      %689 = vmatprep.subr.mxu0 0.0
      %690 = vmatpush1.msra.mxu0 0.0
      %691 = vmatprep.subr.mxu0 0.0
      %692 = vmatpush1.msra.mxu0 0.0
      %693 = vmatprep.subr.mxu0 0.0
      %694 = vmatpush1.msra.mxu0 0.0
      %695 = vmatprep.subr.mxu0 0.0
      %696 = vmatpush1.msra.mxu0 0.0
      %697 = vmatprep.subr.mxu0 0.0
      %698 = vmatpush1.msra.mxu0 0.0
      %699 = vmatprep.subr.mxu0 0.0
      %700 = vmatpush1.msra.mxu0 0.0
      %701 = vmatprep.subr.mxu0 0.0
      %702 = vmatpush1.msra.mxu0 0.0
      %703 = vmatprep.subr.mxu0 0.0
      %704 = vmatpush1.msra.mxu0 0.0
      %705 = vmatprep.subr.mxu0 0.0
      %706 = vmatpush1.msra.mxu0 0.0
      %707 = vmatprep.subr.mxu0 0.0
      %708 = vmatpush1.msra.mxu0 0.0
      %709 = vmatprep.subr.mxu0 0.0
      %710 = vmatpush1.msra.mxu0 0.0
      %711 = vmatprep.mubr.f32.mxu0 0.0
      %712 = vmatmul.mubr.f32.gmra.mrb[0].mxu0 %v645
      %v713 = vpop.f32.mrb[0].mxu0
      %v714 = vadd.f32 0.0, %v713
      %v715 = vpop.f32.mrb[0].mxu0
      %716 = vdwg.mxu0
      %717 = vrot.lane.b32.xlu0 %v363, 120
      %v718 = vpop.permute.xlu0 %717
      %719 = vrot.lane.b32.xlu0 %v457, 120
      %v720 = vpop.permute.xlu0 %719
      %v721 = vsel %vm555, %v718, 0
      %v723 = vsel %vm555, %v720, 0
      %725 = vmatprep.subr.mxu0 0.0
      %726 = vmatpush1.xpose.msra.mxu0 %v723
      %727 = vmatprep.subr.mxu0 0.0
      %728 = vmatpush1.xpose.msra.mxu0 0.0
      %729 = vmatprep.subr.mxu0 0.0
      %730 = vmatpush1.xpose.msra.mxu0 0.0
      %731 = vmatprep.subr.mxu0 0.0
      %732 = vmatpush1.xpose.msra.mxu0 0.0
      %733 = vmatprep.subr.mxu0 0.0
      %734 = vmatpush1.xpose.msra.mxu0 0.0
      %735 = vmatprep.subr.mxu0 0.0
      %736 = vmatpush1.xpose.msra.mxu0 0.0
      %737 = vmatprep.subr.mxu0 0.0
      %738 = vmatpush1.xpose.msra.mxu0 0.0
      %739 = vmatprep.subr.mxu0 0.0
      %740 = vmatpush1.xpose.msra.mxu0 0.0
      %741 = vmatprep.subr.mxu0 0.0
      %742 = vmatpush1.xpose.msra.mxu0 0.0
      %743 = vmatprep.subr.mxu0 0.0
      %744 = vmatpush1.xpose.msra.mxu0 0.0
      %745 = vmatprep.subr.mxu0 0.0
      %746 = vmatpush1.xpose.msra.mxu0 0.0
      %747 = vmatprep.subr.mxu0 0.0
      %748 = vmatpush1.xpose.msra.mxu0 0.0
      %749 = vmatprep.subr.mxu0 0.0
      %750 = vmatpush1.xpose.msra.mxu0 0.0
      %751 = vmatprep.subr.mxu0 0.0
      %752 = vmatpush1.xpose.msra.mxu0 0.0
      %753 = vmatprep.subr.mxu0 0.0
      %754 = vmatpush1.xpose.msra.mxu0 0.0
      %755 = vmatprep.subr.mxu0 0.0
      %756 = vmatpush1.xpose.msra.mxu0 0.0
      %757 = vmatprep.subr.mxu0 0.0
      %758 = vmatpush1.xpose.msra.mxu0 0.0
      %759 = vmatprep.subr.mxu0 0.0
      %760 = vmatpush1.xpose.msra.mxu0 0.0
      %761 = vmatprep.subr.mxu0 0.0
      %762 = vmatpush1.xpose.msra.mxu0 0.0
      %763 = vmatprep.subr.mxu0 0.0
      %764 = vmatpush1.xpose.msra.mxu0 0.0
      %765 = vmatprep.subr.mxu0 0.0
      %766 = vmatpush1.xpose.msra.mxu0 0.0
      %767 = vmatprep.subr.mxu0 0.0
      %768 = vmatpush1.xpose.msra.mxu0 0.0
      %769 = vmatprep.subr.mxu0 0.0
      %770 = vmatpush1.xpose.msra.mxu0 0.0
      %771 = vmatprep.subr.mxu0 0.0
      %772 = vmatpush1.xpose.msra.mxu0 0.0
      %773 = vmatprep.subr.mxu0 0.0
      %774 = vmatpush1.xpose.msra.mxu0 0.0
      %775 = vmatprep.subr.mxu0 0.0
      %776 = vmatpush1.xpose.msra.mxu0 0.0
      %777 = vmatprep.subr.mxu0 0.0
      %778 = vmatpush1.xpose.msra.mxu0 0.0
      %779 = vmatprep.subr.mxu0 0.0
      %780 = vmatpush1.xpose.msra.mxu0 0.0
      %781 = vmatprep.subr.mxu0 0.0
      %782 = vmatpush1.xpose.msra.mxu0 0.0
      %783 = vmatprep.subr.mxu0 0.0
      %784 = vmatpush1.xpose.msra.mxu0 0.0
      %785 = vmatprep.subr.mxu0 0.0
      %786 = vmatpush1.xpose.msra.mxu0 0.0
      %787 = vmatprep.subr.mxu0 0.0
      %788 = vmatpush1.xpose.msra.mxu0 0.0
      %789 = vmatprep.mubr.f32.mxu0 0.0
      %790 = vmatmul.mubr.f32.gmra.mrb[0].mxu0 %v721
      %v791 = vpop.f32.mrb[0].mxu0
      %v792 = vadd.f32 0.0, %v791
      %v793 = vpop.f32.mrb[0].mxu0
      %794 = vdwg.mxu0
      %v795 = vmul.f32 %v792, 0.35355338
      %v796 = vsel %vm555, %v795, -inf
      %797 = vmax.xlane.f32.xlu0 %v796
      %v798 = vpop.xlane.xlu0 %797
      %v799 = vsub.f32 %v795, %v798
      %v800 = vmul.f32 %v799, 1.442695
      %v801 = vpow.pop %v800
      %v802 = vsel %vm555, %v801, 0.0
      %803 = vadd.xlane.f32.xlu0 %v802
      %v804 = vpop.xlane.xlu0 %803
      %v805 = vrcp.pop %v804
      %v806 = vmul.f32 %v801, %v805
      %808 = vrot.lane.b32.xlu0 %v547, 120
      %v809 = vpop.permute.xlu0 %808
      %v812 = vsel %vm555, %v806, 0
      %814 = vmatprep.subr.mxu0 0.0
      %815 = vmatpush1.msra.mxu0 %v809
      %816 = vmatprep.subr.mxu0 0.0
      %817 = vmatpush1.msra.mxu0 0.0
      %818 = vmatprep.subr.mxu0 0.0
      %819 = vmatpush1.msra.mxu0 0.0
      %820 = vmatprep.subr.mxu0 0.0
      %821 = vmatpush1.msra.mxu0 0.0
      %822 = vmatprep.subr.mxu0 0.0
      %823 = vmatpush1.msra.mxu0 0.0
      %824 = vmatprep.subr.mxu0 0.0
      %825 = vmatpush1.msra.mxu0 0.0
      %826 = vmatprep.subr.mxu0 0.0
      %827 = vmatpush1.msra.mxu0 0.0
      %828 = vmatprep.subr.mxu0 0.0
      %829 = vmatpush1.msra.mxu0 0.0
      %830 = vmatprep.subr.mxu0 0.0
      %831 = vmatpush1.msra.mxu0 0.0
      %832 = vmatprep.subr.mxu0 0.0
      %833 = vmatpush1.msra.mxu0 0.0
      %834 = vmatprep.subr.mxu0 0.0
      %835 = vmatpush1.msra.mxu0 0.0
      %836 = vmatprep.subr.mxu0 0.0
      %837 = vmatpush1.msra.mxu0 0.0
      %838 = vmatprep.subr.mxu0 0.0
      %839 = vmatpush1.msra.mxu0 0.0
      %840 = vmatprep.subr.mxu0 0.0
      %841 = vmatpush1.msra.mxu0 0.0
      %842 = vmatprep.subr.mxu0 0.0
      %843 = vmatpush1.msra.mxu0 0.0
      %844 = vmatprep.subr.mxu0 0.0
      %845 = vmatpush1.msra.mxu0 0.0
      %846 = vmatprep.subr.mxu0 0.0
      %847 = vmatpush1.msra.mxu0 0.0
      %848 = vmatprep.subr.mxu0 0.0
      %849 = vmatpush1.msra.mxu0 0.0
      %850 = vmatprep.subr.mxu0 0.0
      %851 = vmatpush1.msra.mxu0 0.0
      %852 = vmatprep.subr.mxu0 0.0
      %853 = vmatpush1.msra.mxu0 0.0
      %854 = vmatprep.subr.mxu0 0.0
      %855 = vmatpush1.msra.mxu0 0.0
      %856 = vmatprep.subr.mxu0 0.0
      %857 = vmatpush1.msra.mxu0 0.0
      %858 = vmatprep.subr.mxu0 0.0
      %859 = vmatpush1.msra.mxu0 0.0
      %860 = vmatprep.subr.mxu0 0.0
      %861 = vmatpush1.msra.mxu0 0.0
      %862 = vmatprep.subr.mxu0 0.0
      %863 = vmatpush1.msra.mxu0 0.0
      %864 = vmatprep.subr.mxu0 0.0
      %865 = vmatpush1.msra.mxu0 0.0
      %866 = vmatprep.subr.mxu0 0.0
      %867 = vmatpush1.msra.mxu0 0.0
      %868 = vmatprep.subr.mxu0 0.0
      %869 = vmatpush1.msra.mxu0 0.0
      %870 = vmatprep.subr.mxu0 0.0
      %871 = vmatpush1.msra.mxu0 0.0
      %872 = vmatprep.subr.mxu0 0.0
      %873 = vmatpush1.msra.mxu0 0.0
      %874 = vmatprep.subr.mxu0 0.0
      %875 = vmatpush1.msra.mxu0 0.0
      %876 = vmatprep.subr.mxu0 0.0
      %877 = vmatpush1.msra.mxu0 0.0
      %878 = vmatprep.mubr.f32.mxu0 0.0
      %879 = vmatmul.mubr.f32.gmra.mrb[0].mxu0 %v812
      %v880 = vpop.f32.mrb[0].mxu0
      %v881 = vadd.f32 0.0, %v880
      %v882 = vpop.f32.mrb[0].mxu0
      %883 = vdwg.mxu0
      %884 = vrot.lane.b32.xlu0 %v363, 112
      %v885 = vpop.permute.xlu0 %884
      %886 = vrot.lane.b32.xlu0 %v457, 112
      %v887 = vpop.permute.xlu0 %886
      %v888 = vsel %vm555, %v885, 0
      %v890 = vsel %vm555, %v887, 0
      %892 = vmatprep.subr.mxu0 0.0
      %893 = vmatpush1.xpose.msra.mxu0 %v890
      %894 = vmatprep.subr.mxu0 0.0
      %895 = vmatpush1.xpose.msra.mxu0 0.0
      %896 = vmatprep.subr.mxu0 0.0
      %897 = vmatpush1.xpose.msra.mxu0 0.0
      %898 = vmatprep.subr.mxu0 0.0
      %899 = vmatpush1.xpose.msra.mxu0 0.0
      %900 = vmatprep.subr.mxu0 0.0
      %901 = vmatpush1.xpose.msra.mxu0 0.0
      %902 = vmatprep.subr.mxu0 0.0
      %903 = vmatpush1.xpose.msra.mxu0 0.0
      %904 = vmatprep.subr.mxu0 0.0
      %905 = vmatpush1.xpose.msra.mxu0 0.0
      %906 = vmatprep.subr.mxu0 0.0
      %907 = vmatpush1.xpose.msra.mxu0 0.0
      %908 = vmatprep.subr.mxu0 0.0
      %909 = vmatpush1.xpose.msra.mxu0 0.0
      %910 = vmatprep.subr.mxu0 0.0
      %911 = vmatpush1.xpose.msra.mxu0 0.0
      %912 = vmatprep.subr.mxu0 0.0
      %913 = vmatpush1.xpose.msra.mxu0 0.0
      %914 = vmatprep.subr.mxu0 0.0
      %915 = vmatpush1.xpose.msra.mxu0 0.0
      %916 = vmatprep.subr.mxu0 0.0
      %917 = vmatpush1.xpose.msra.mxu0 0.0
      %918 = vmatprep.subr.mxu0 0.0
      %919 = vmatpush1.xpose.msra.mxu0 0.0
      %920 = vmatprep.subr.mxu0 0.0
      %921 = vmatpush1.xpose.msra.mxu0 0.0
      %922 = vmatprep.subr.mxu0 0.0
      %923 = vmatpush1.xpose.msra.mxu0 0.0
      %924 = vmatprep.subr.mxu0 0.0
      %925 = vmatpush1.xpose.msra.mxu0 0.0
      %926 = vmatprep.subr.mxu0 0.0
      %927 = vmatpush1.xpose.msra.mxu0 0.0
      %928 = vmatprep.subr.mxu0 0.0
      %929 = vmatpush1.xpose.msra.mxu0 0.0
      %930 = vmatprep.subr.mxu0 0.0
      %931 = vmatpush1.xpose.msra.mxu0 0.0
      %932 = vmatprep.subr.mxu0 0.0
      %933 = vmatpush1.xpose.msra.mxu0 0.0
      %934 = vmatprep.subr.mxu0 0.0
      %935 = vmatpush1.xpose.msra.mxu0 0.0
      %936 = vmatprep.subr.mxu0 0.0
      %937 = vmatpush1.xpose.msra.mxu0 0.0
      %938 = vmatprep.subr.mxu0 0.0
      %939 = vmatpush1.xpose.msra.mxu0 0.0
      %940 = vmatprep.subr.mxu0 0.0
      %941 = vmatpush1.xpose.msra.mxu0 0.0
      %942 = vmatprep.subr.mxu0 0.0
      %943 = vmatpush1.xpose.msra.mxu0 0.0
      %944 = vmatprep.subr.mxu0 0.0
      %945 = vmatpush1.xpose.msra.mxu0 0.0
      %946 = vmatprep.subr.mxu0 0.0
      %947 = vmatpush1.xpose.msra.mxu0 0.0
      %948 = vmatprep.subr.mxu0 0.0
      %949 = vmatpush1.xpose.msra.mxu0 0.0
      %950 = vmatprep.subr.mxu0 0.0
      %951 = vmatpush1.xpose.msra.mxu0 0.0
      %952 = vmatprep.subr.mxu0 0.0
      %953 = vmatpush1.xpose.msra.mxu0 0.0
      %954 = vmatprep.subr.mxu0 0.0
      %955 = vmatpush1.xpose.msra.mxu0 0.0
      %956 = vmatprep.mubr.f32.mxu0 0.0
      %957 = vmatmul.mubr.f32.gmra.mrb[0].mxu0 %v888
      %v958 = vpop.f32.mrb[0].mxu0
      %v959 = vadd.f32 0.0, %v958
      %v960 = vpop.f32.mrb[0].mxu0
      %961 = vdwg.mxu0
      %v962 = vmul.f32 %v959, 0.35355338
      %v963 = vsel %vm555, %v962, -inf
      %964 = vmax.xlane.f32.xlu0 %v963
      %v965 = vpop.xlane.xlu0 %964
      %v966 = vsub.f32 %v962, %v965
      %v967 = vmul.f32 %v966, 1.442695
      %v968 = vpow.pop %v967
      %v969 = vsel %vm555, %v968, 0.0
      %970 = vadd.xlane.f32.xlu0 %v969
      %v971 = vpop.xlane.xlu0 %970
      %v972 = vrcp.pop %v971
      %v973 = vmul.f32 %v968, %v972
      %974 = vrot.lane.b32.xlu0 %v547, 112
      %v975 = vpop.permute.xlu0 %974
      %v978 = vsel %vm555, %v973, 0
      %980 = vmatprep.subr.mxu0 0.0
      %981 = vmatpush1.msra.mxu0 %v975
      %982 = vmatprep.subr.mxu0 0.0
      %983 = vmatpush1.msra.mxu0 0.0
      %984 = vmatprep.subr.mxu0 0.0
      %985 = vmatpush1.msra.mxu0 0.0
      %986 = vmatprep.subr.mxu0 0.0
      %987 = vmatpush1.msra.mxu0 0.0
      %988 = vmatprep.subr.mxu0 0.0
      %989 = vmatpush1.msra.mxu0 0.0
      %990 = vmatprep.subr.mxu0 0.0
      %991 = vmatpush1.msra.mxu0 0.0
      %992 = vmatprep.subr.mxu0 0.0
      %993 = vmatpush1.msra.mxu0 0.0
      %994 = vmatprep.subr.mxu0 0.0
      %995 = vmatpush1.msra.mxu0 0.0
      %996 = vmatprep.subr.mxu0 0.0
      %997 = vmatpush1.msra.mxu0 0.0
      %998 = vmatprep.subr.mxu0 0.0
      %999 = vmatpush1.msra.mxu0 0.0
      %1000 = vmatprep.subr.mxu0 0.0
      %1001 = vmatpush1.msra.mxu0 0.0
      %1002 = vmatprep.subr.mxu0 0.0
      %1003 = vmatpush1.msra.mxu0 0.0
      %1004 = vmatprep.subr.mxu0 0.0
      %1005 = vmatpush1.msra.mxu0 0.0
      %1006 = vmatprep.subr.mxu0 0.0
      %1007 = vmatpush1.msra.mxu0 0.0
      %1008 = vmatprep.subr.mxu0 0.0
      %1009 = vmatpush1.msra.mxu0 0.0
      %1010 = vmatprep.subr.mxu0 0.0
      %1011 = vmatpush1.msra.mxu0 0.0
      %1012 = vmatprep.subr.mxu0 0.0
      %1013 = vmatpush1.msra.mxu0 0.0
      %1014 = vmatprep.subr.mxu0 0.0
      %1015 = vmatpush1.msra.mxu0 0.0
      %1016 = vmatprep.subr.mxu0 0.0
      %1017 = vmatpush1.msra.mxu0 0.0
      %1018 = vmatprep.subr.mxu0 0.0
      %1019 = vmatpush1.msra.mxu0 0.0
      %1020 = vmatprep.subr.mxu0 0.0
      %1021 = vmatpush1.msra.mxu0 0.0
      %1022 = vmatprep.subr.mxu0 0.0
      %1023 = vmatpush1.msra.mxu0 0.0
      %1024 = vmatprep.subr.mxu0 0.0
      %1025 = vmatpush1.msra.mxu0 0.0
      %1026 = vmatprep.subr.mxu0 0.0
      %1027 = vmatpush1.msra.mxu0 0.0
      %1028 = vmatprep.subr.mxu0 0.0
      %1029 = vmatpush1.msra.mxu0 0.0
      %1030 = vmatprep.subr.mxu0 0.0
      %1031 = vmatpush1.msra.mxu0 0.0
      %1032 = vmatprep.subr.mxu0 0.0
      %1033 = vmatpush1.msra.mxu0 0.0
      %1034 = vmatprep.subr.mxu0 0.0
      %1035 = vmatpush1.msra.mxu0 0.0
      %1036 = vmatprep.subr.mxu0 0.0
      %1037 = vmatpush1.msra.mxu0 0.0
      %1038 = vmatprep.subr.mxu0 0.0
      %1039 = vmatpush1.msra.mxu0 0.0
      %1040 = vmatprep.subr.mxu0 0.0
      %1041 = vmatpush1.msra.mxu0 0.0
      %1042 = vmatprep.subr.mxu0 0.0
      %1043 = vmatpush1.msra.mxu0 0.0
      %1044 = vmatprep.mubr.f32.mxu0 0.0
      %1045 = vmatmul.mubr.f32.gmra.mrb[0].mxu0 %v978
      %v1046 = vpop.f32.mrb[0].mxu0
      %v1047 = vadd.f32 0.0, %v1046
      %v1048 = vpop.f32.mrb[0].mxu0
      %1049 = vdwg.mxu0
      %1050 = vrot.lane.b32.xlu0 %v363, 104
      %v1051 = vpop.permute.xlu0 %1050
      %1052 = vrot.lane.b32.xlu0 %v457, 104
      %v1053 = vpop.permute.xlu0 %1052
      %v1054 = vsel %vm555, %v1051, 0
      %v1056 = vsel %vm555, %v1053, 0
      %1058 = vmatprep.subr.mxu0 0.0
      %1059 = vmatpush1.xpose.msra.mxu0 %v1056
      %1060 = vmatprep.subr.mxu0 0.0
      %1061 = vmatpush1.xpose.msra.mxu0 0.0
      %1062 = vmatprep.subr.mxu0 0.0
      %1063 = vmatpush1.xpose.msra.mxu0 0.0
      %1064 = vmatprep.subr.mxu0 0.0
      %1065 = vmatpush1.xpose.msra.mxu0 0.0
      %1066 = vmatprep.subr.mxu0 0.0
      %1067 = vmatpush1.xpose.msra.mxu0 0.0
      %1068 = vmatprep.subr.mxu0 0.0
      %1069 = vmatpush1.xpose.msra.mxu0 0.0
      %1070 = vmatprep.subr.mxu0 0.0
      %1071 = vmatpush1.xpose.msra.mxu0 0.0
      %1072 = vmatprep.subr.mxu0 0.0
      %1073 = vmatpush1.xpose.msra.mxu0 0.0
      %1074 = vmatprep.subr.mxu0 0.0
      %1075 = vmatpush1.xpose.msra.mxu0 0.0
      %1076 = vmatprep.subr.mxu0 0.0
      %1077 = vmatpush1.xpose.msra.mxu0 0.0
      %1078 = vmatprep.subr.mxu0 0.0
      %1079 = vmatpush1.xpose.msra.mxu0 0.0
      %1080 = vmatprep.subr.mxu0 0.0
      %1081 = vmatpush1.xpose.msra.mxu0 0.0
      %1082 = vmatprep.subr.mxu0 0.0
      %1083 = vmatpush1.xpose.msra.mxu0 0.0
      %1084 = vmatprep.subr.mxu0 0.0
      %1085 = vmatpush1.xpose.msra.mxu0 0.0
      %1086 = vmatprep.subr.mxu0 0.0
      %1087 = vmatpush1.xpose.msra.mxu0 0.0
      %1088 = vmatprep.subr.mxu0 0.0
      %1089 = vmatpush1.xpose.msra.mxu0 0.0
      %1090 = vmatprep.subr.mxu0 0.0
      %1091 = vmatpush1.xpose.msra.mxu0 0.0
      %1092 = vmatprep.subr.mxu0 0.0
      %1093 = vmatpush1.xpose.msra.mxu0 0.0
      %1094 = vmatprep.subr.mxu0 0.0
      %1095 = vmatpush1.xpose.msra.mxu0 0.0
      %1096 = vmatprep.subr.mxu0 0.0
      %1097 = vmatpush1.xpose.msra.mxu0 0.0
      %1098 = vmatprep.subr.mxu0 0.0
      %1099 = vmatpush1.xpose.msra.mxu0 0.0
      %1100 = vmatprep.subr.mxu0 0.0
      %1101 = vmatpush1.xpose.msra.mxu0 0.0
      %1102 = vmatprep.subr.mxu0 0.0
      %1103 = vmatpush1.xpose.msra.mxu0 0.0
      %1104 = vmatprep.subr.mxu0 0.0
      %1105 = vmatpush1.xpose.msra.mxu0 0.0
      %1106 = vmatprep.subr.mxu0 0.0
      %1107 = vmatpush1.xpose.msra.mxu0 0.0
      %1108 = vmatprep.subr.mxu0 0.0
      %1109 = vmatpush1.xpose.msra.mxu0 0.0
      %1110 = vmatprep.subr.mxu0 0.0
      %1111 = vmatpush1.xpose.msra.mxu0 0.0
      %1112 = vmatprep.subr.mxu0 0.0
      %1113 = vmatpush1.xpose.msra.mxu0 0.0
      %1114 = vmatprep.subr.mxu0 0.0
      %1115 = vmatpush1.xpose.msra.mxu0 0.0
      %1116 = vmatprep.subr.mxu0 0.0
      %1117 = vmatpush1.xpose.msra.mxu0 0.0
      %1118 = vmatprep.subr.mxu0 0.0
      %1119 = vmatpush1.xpose.msra.mxu0 0.0
      %1120 = vmatprep.subr.mxu0 0.0
      %1121 = vmatpush1.xpose.msra.mxu0 0.0
      %1122 = vmatprep.mubr.f32.mxu0 0.0
      %1123 = vmatmul.mubr.f32.gmra.mrb[0].mxu0 %v1054
      %v1124 = vpop.f32.mrb[0].mxu0
      %v1125 = vadd.f32 0.0, %v1124
      %v1126 = vpop.f32.mrb[0].mxu0
      %1127 = vdwg.mxu0
      %v1128 = vmul.f32 %v1125, 0.35355338
      %v1129 = vsel %vm555, %v1128, -inf
      %1130 = vmax.xlane.f32.xlu0 %v1129
      %v1131 = vpop.xlane.xlu0 %1130
      %v1132 = vsub.f32 %v1128, %v1131
      %v1133 = vmul.f32 %v1132, 1.442695
      %v1134 = vpow.pop %v1133
      %v1135 = vsel %vm555, %v1134, 0.0
      %1136 = vadd.xlane.f32.xlu0 %v1135
      %v1137 = vpop.xlane.xlu0 %1136
      %v1138 = vrcp.pop %v1137
      %v1139 = vmul.f32 %v1134, %v1138
      %1140 = vrot.lane.b32.xlu0 %v547, 104
      %v1141 = vpop.permute.xlu0 %1140
      %v1144 = vsel %vm555, %v1139, 0
      %1146 = vmatprep.subr.mxu0 0.0
      %1147 = vmatpush1.msra.mxu0 %v1141
      %1148 = vmatprep.subr.mxu0 0.0
      %1149 = vmatpush1.msra.mxu0 0.0
      %1150 = vmatprep.subr.mxu0 0.0
      %1151 = vmatpush1.msra.mxu0 0.0
      %1152 = vmatprep.subr.mxu0 0.0
      %1153 = vmatpush1.msra.mxu0 0.0
      %1154 = vmatprep.subr.mxu0 0.0
      %1155 = vmatpush1.msra.mxu0 0.0
      %1156 = vmatprep.subr.mxu0 0.0
      %1157 = vmatpush1.msra.mxu0 0.0
      %1158 = vmatprep.subr.mxu0 0.0
      %1159 = vmatpush1.msra.mxu0 0.0
      %1160 = vmatprep.subr.mxu0 0.0
      %1161 = vmatpush1.msra.mxu0 0.0
      %1162 = vmatprep.subr.mxu0 0.0
      %1163 = vmatpush1.msra.mxu0 0.0
      %1164 = vmatprep.subr.mxu0 0.0
      %1165 = vmatpush1.msra.mxu0 0.0
      %1166 = vmatprep.subr.mxu0 0.0
      %1167 = vmatpush1.msra.mxu0 0.0
      %1168 = vmatprep.subr.mxu0 0.0
      %1169 = vmatpush1.msra.mxu0 0.0
      %1170 = vmatprep.subr.mxu0 0.0
      %1171 = vmatpush1.msra.mxu0 0.0
      %1172 = vmatprep.subr.mxu0 0.0
      %1173 = vmatpush1.msra.mxu0 0.0
      %1174 = vmatprep.subr.mxu0 0.0
      %1175 = vmatpush1.msra.mxu0 0.0
      %1176 = vmatprep.subr.mxu0 0.0
      %1177 = vmatpush1.msra.mxu0 0.0
      %1178 = vmatprep.subr.mxu0 0.0
      %1179 = vmatpush1.msra.mxu0 0.0
      %1180 = vmatprep.subr.mxu0 0.0
      %1181 = vmatpush1.msra.mxu0 0.0
      %1182 = vmatprep.subr.mxu0 0.0
      %1183 = vmatpush1.msra.mxu0 0.0
      %1184 = vmatprep.subr.mxu0 0.0
      %1185 = vmatpush1.msra.mxu0 0.0
      %1186 = vmatprep.subr.mxu0 0.0
      %1187 = vmatpush1.msra.mxu0 0.0
      %1188 = vmatprep.subr.mxu0 0.0
      %1189 = vmatpush1.msra.mxu0 0.0
      %1190 = vmatprep.subr.mxu0 0.0
      %1191 = vmatpush1.msra.mxu0 0.0
      %1192 = vmatprep.subr.mxu0 0.0
      %1193 = vmatpush1.msra.mxu0 0.0
      %1194 = vmatprep.subr.mxu0 0.0
      %1195 = vmatpush1.msra.mxu0 0.0
      %1196 = vmatprep.subr.mxu0 0.0
      %1197 = vmatpush1.msra.mxu0 0.0
      %1198 = vmatprep.subr.mxu0 0.0
      %1199 = vmatpush1.msra.mxu0 0.0
      %1200 = vmatprep.subr.mxu0 0.0
      %1201 = vmatpush1.msra.mxu0 0.0
      %1202 = vmatprep.subr.mxu0 0.0
      %1203 = vmatpush1.msra.mxu0 0.0
      %1204 = vmatprep.subr.mxu0 0.0
      %1205 = vmatpush1.msra.mxu0 0.0
      %1206 = vmatprep.subr.mxu0 0.0
      %1207 = vmatpush1.msra.mxu0 0.0
      %1208 = vmatprep.subr.mxu0 0.0
      %1209 = vmatpush1.msra.mxu0 0.0
      %1210 = vmatprep.mubr.f32.mxu0 0.0
      %1211 = vmatmul.mubr.f32.gmra.mrb[0].mxu0 %v1144
      %v1212 = vpop.f32.mrb[0].mxu0
      %v1213 = vadd.f32 0.0, %v1212
      %v1214 = vpop.f32.mrb[0].mxu0
      %1215 = vdwg.mxu0
      %1217 = vrot.lane.b32.xlu0 %v881, 8
      %v1218 = vpop.permute.xlu0 %1217
      %1221 = vrot.lane.b32.xlu0 %v1047, 16
      %v1222 = vpop.permute.xlu0 %1221
      %1225 = vrot.lane.b32.xlu0 %v1213, 24
      %v1226 = vpop.permute.xlu0 %1225
      %v1228 = vsel %vm555, %v714, %v1218
      %vm1229 = vcmask 130048
      %v1230 = vsel %vm1229, %v1228, %v1222
      %v1231 = vsel %vm178, %v1230, %v1226
      %v1233 = vsel %vm555, %v368, 0
      %v1236 = vsel %vm555, %v462, 0
      %1238 = vmatprep.subr.mxu0 0.0
      %1239 = vmatpush1.xpose.msra.mxu0 %v1236
      %1240 = vmatprep.subr.mxu0 0.0
      %1241 = vmatpush1.xpose.msra.mxu0 0.0
      %1242 = vmatprep.subr.mxu0 0.0
      %1243 = vmatpush1.xpose.msra.mxu0 0.0
      %1244 = vmatprep.subr.mxu0 0.0
      %1245 = vmatpush1.xpose.msra.mxu0 0.0
      %1246 = vmatprep.subr.mxu0 0.0
      %1247 = vmatpush1.xpose.msra.mxu0 0.0
      %1248 = vmatprep.subr.mxu0 0.0
      %1249 = vmatpush1.xpose.msra.mxu0 0.0
      %1250 = vmatprep.subr.mxu0 0.0
      %1251 = vmatpush1.xpose.msra.mxu0 0.0
      %1252 = vmatprep.subr.mxu0 0.0
      %1253 = vmatpush1.xpose.msra.mxu0 0.0
      %1254 = vmatprep.subr.mxu0 0.0
      %1255 = vmatpush1.xpose.msra.mxu0 0.0
      %1256 = vmatprep.subr.mxu0 0.0
      %1257 = vmatpush1.xpose.msra.mxu0 0.0
      %1258 = vmatprep.subr.mxu0 0.0
      %1259 = vmatpush1.xpose.msra.mxu0 0.0
      %1260 = vmatprep.subr.mxu0 0.0
      %1261 = vmatpush1.xpose.msra.mxu0 0.0
      %1262 = vmatprep.subr.mxu0 0.0
      %1263 = vmatpush1.xpose.msra.mxu0 0.0
      %1264 = vmatprep.subr.mxu0 0.0
      %1265 = vmatpush1.xpose.msra.mxu0 0.0
      %1266 = vmatprep.subr.mxu0 0.0
      %1267 = vmatpush1.xpose.msra.mxu0 0.0
      %1268 = vmatprep.subr.mxu0 0.0
      %1269 = vmatpush1.xpose.msra.mxu0 0.0
      %1270 = vmatprep.subr.mxu0 0.0
      %1271 = vmatpush1.xpose.msra.mxu0 0.0
      %1272 = vmatprep.subr.mxu0 0.0
      %1273 = vmatpush1.xpose.msra.mxu0 0.0
      %1274 = vmatprep.subr.mxu0 0.0
      %1275 = vmatpush1.xpose.msra.mxu0 0.0
      %1276 = vmatprep.subr.mxu0 0.0
      %1277 = vmatpush1.xpose.msra.mxu0 0.0
      %1278 = vmatprep.subr.mxu0 0.0
      %1279 = vmatpush1.xpose.msra.mxu0 0.0
      %1280 = vmatprep.subr.mxu0 0.0
      %1281 = vmatpush1.xpose.msra.mxu0 0.0
      %1282 = vmatprep.subr.mxu0 0.0
      %1283 = vmatpush1.xpose.msra.mxu0 0.0
      %1284 = vmatprep.subr.mxu0 0.0
      %1285 = vmatpush1.xpose.msra.mxu0 0.0
      %1286 = vmatprep.subr.mxu0 0.0
      %1287 = vmatpush1.xpose.msra.mxu0 0.0
      %1288 = vmatprep.subr.mxu0 0.0
      %1289 = vmatpush1.xpose.msra.mxu0 0.0
      %1290 = vmatprep.subr.mxu0 0.0
      %1291 = vmatpush1.xpose.msra.mxu0 0.0
      %1292 = vmatprep.subr.mxu0 0.0
      %1293 = vmatpush1.xpose.msra.mxu0 0.0
      %1294 = vmatprep.subr.mxu0 0.0
      %1295 = vmatpush1.xpose.msra.mxu0 0.0
      %1296 = vmatprep.subr.mxu0 0.0
      %1297 = vmatpush1.xpose.msra.mxu0 0.0
      %1298 = vmatprep.subr.mxu0 0.0
      %1299 = vmatpush1.xpose.msra.mxu0 0.0
      %1300 = vmatprep.subr.mxu0 0.0
      %1301 = vmatpush1.xpose.msra.mxu0 0.0
      %1302 = vmatprep.mubr.f32.mxu0 0.0
      %1303 = vmatmul.mubr.f32.gmra.mrb[0].mxu0 %v1233
      %v1304 = vpop.f32.mrb[0].mxu0
      %v1305 = vadd.f32 0.0, %v1304
      %v1306 = vpop.f32.mrb[0].mxu0
      %1307 = vdwg.mxu0
      %v1308 = vmul.f32 %v1305, 0.35355338
      %v1309 = vsel %vm555, %v1308, -inf
      %1310 = vmax.xlane.f32.xlu0 %v1309
      %v1311 = vpop.xlane.xlu0 %1310
      %v1312 = vsub.f32 %v1308, %v1311
      %v1313 = vmul.f32 %v1312, 1.442695
      %v1314 = vpow.pop %v1313
      %v1315 = vsel %vm555, %v1314, 0.0
      %1316 = vadd.xlane.f32.xlu0 %v1315
      %v1317 = vpop.xlane.xlu0 %1316
      %v1318 = vrcp.pop %v1317
      %v1319 = vmul.f32 %v1314, %v1318
      %v1321 = vsel %vm555, %v1319, 0
      %1323 = vmatprep.subr.mxu0 0.0
      %1324 = vmatpush1.msra.mxu0 %v552
      %1325 = vmatprep.subr.mxu0 0.0
      %1326 = vmatpush1.msra.mxu0 0.0
      %1327 = vmatprep.subr.mxu0 0.0
      %1328 = vmatpush1.msra.mxu0 0.0
      %1329 = vmatprep.subr.mxu0 0.0
      %1330 = vmatpush1.msra.mxu0 0.0
      %1331 = vmatprep.subr.mxu0 0.0
      %1332 = vmatpush1.msra.mxu0 0.0
      %1333 = vmatprep.subr.mxu0 0.0
      %1334 = vmatpush1.msra.mxu0 0.0
      %1335 = vmatprep.subr.mxu0 0.0
      %1336 = vmatpush1.msra.mxu0 0.0
      %1337 = vmatprep.subr.mxu0 0.0
      %1338 = vmatpush1.msra.mxu0 0.0
      %1339 = vmatprep.subr.mxu0 0.0
      %1340 = vmatpush1.msra.mxu0 0.0
      %1341 = vmatprep.subr.mxu0 0.0
      %1342 = vmatpush1.msra.mxu0 0.0
      %1343 = vmatprep.subr.mxu0 0.0
      %1344 = vmatpush1.msra.mxu0 0.0
      %1345 = vmatprep.subr.mxu0 0.0
      %1346 = vmatpush1.msra.mxu0 0.0
      %1347 = vmatprep.subr.mxu0 0.0
      %1348 = vmatpush1.msra.mxu0 0.0
      %1349 = vmatprep.subr.mxu0 0.0
      %1350 = vmatpush1.msra.mxu0 0.0
      %1351 = vmatprep.subr.mxu0 0.0
      %1352 = vmatpush1.msra.mxu0 0.0
      %1353 = vmatprep.subr.mxu0 0.0
      %1354 = vmatpush1.msra.mxu0 0.0
      %1355 = vmatprep.subr.mxu0 0.0
      %1356 = vmatpush1.msra.mxu0 0.0
      %1357 = vmatprep.subr.mxu0 0.0
      %1358 = vmatpush1.msra.mxu0 0.0
      %1359 = vmatprep.subr.mxu0 0.0
      %1360 = vmatpush1.msra.mxu0 0.0
      %1361 = vmatprep.subr.mxu0 0.0
      %1362 = vmatpush1.msra.mxu0 0.0
      %1363 = vmatprep.subr.mxu0 0.0
      %1364 = vmatpush1.msra.mxu0 0.0
      %1365 = vmatprep.subr.mxu0 0.0
      %1366 = vmatpush1.msra.mxu0 0.0
      %1367 = vmatprep.subr.mxu0 0.0
      %1368 = vmatpush1.msra.mxu0 0.0
      %1369 = vmatprep.subr.mxu0 0.0
      %1370 = vmatpush1.msra.mxu0 0.0
      %1371 = vmatprep.subr.mxu0 0.0
      %1372 = vmatpush1.msra.mxu0 0.0
      %1373 = vmatprep.subr.mxu0 0.0
      %1374 = vmatpush1.msra.mxu0 0.0
      %1375 = vmatprep.subr.mxu0 0.0
      %1376 = vmatpush1.msra.mxu0 0.0
      %1377 = vmatprep.subr.mxu0 0.0
      %1378 = vmatpush1.msra.mxu0 0.0
      %1379 = vmatprep.subr.mxu0 0.0
      %1380 = vmatpush1.msra.mxu0 0.0
      %1381 = vmatprep.subr.mxu0 0.0
      %1382 = vmatpush1.msra.mxu0 0.0
      %1383 = vmatprep.subr.mxu0 0.0
      %1384 = vmatpush1.msra.mxu0 0.0
      %1385 = vmatprep.subr.mxu0 0.0
      %1386 = vmatpush1.msra.mxu0 0.0
      %1387 = vmatprep.mubr.f32.mxu0 0.0
      %1388 = vmatmul.mubr.f32.gmra.mrb[0].mxu0 %v1321
      %v1389 = vpop.f32.mrb[0].mxu0
      %v1390 = vadd.f32 0.0, %v1389
      %v1391 = vpop.f32.mrb[0].mxu0
      %1392 = vdwg.mxu0
      %1393 = vrot.lane.b32.xlu0 %v368, 120
      %v1394 = vpop.permute.xlu0 %1393
      %1395 = vrot.lane.b32.xlu0 %v462, 120
      %v1396 = vpop.permute.xlu0 %1395
      %v1397 = vsel %vm555, %v1394, 0
      %v1399 = vsel %vm555, %v1396, 0
      %1401 = vmatprep.subr.mxu0 0.0
      %1402 = vmatpush1.xpose.msra.mxu0 %v1399
      %1403 = vmatprep.subr.mxu0 0.0
      %1404 = vmatpush1.xpose.msra.mxu0 0.0
      %1405 = vmatprep.subr.mxu0 0.0
      %1406 = vmatpush1.xpose.msra.mxu0 0.0
      %1407 = vmatprep.subr.mxu0 0.0
      %1408 = vmatpush1.xpose.msra.mxu0 0.0
      %1409 = vmatprep.subr.mxu0 0.0
      %1410 = vmatpush1.xpose.msra.mxu0 0.0
      %1411 = vmatprep.subr.mxu0 0.0
      %1412 = vmatpush1.xpose.msra.mxu0 0.0
      %1413 = vmatprep.subr.mxu0 0.0
      %1414 = vmatpush1.xpose.msra.mxu0 0.0
      %1415 = vmatprep.subr.mxu0 0.0
      %1416 = vmatpush1.xpose.msra.mxu0 0.0
      %1417 = vmatprep.subr.mxu0 0.0
      %1418 = vmatpush1.xpose.msra.mxu0 0.0
      %1419 = vmatprep.subr.mxu0 0.0
      %1420 = vmatpush1.xpose.msra.mxu0 0.0
      %1421 = vmatprep.subr.mxu0 0.0
      %1422 = vmatpush1.xpose.msra.mxu0 0.0
      %1423 = vmatprep.subr.mxu0 0.0
      %1424 = vmatpush1.xpose.msra.mxu0 0.0
      %1425 = vmatprep.subr.mxu0 0.0
      %1426 = vmatpush1.xpose.msra.mxu0 0.0
      %1427 = vmatprep.subr.mxu0 0.0
      %1428 = vmatpush1.xpose.msra.mxu0 0.0
      %1429 = vmatprep.subr.mxu0 0.0
      %1430 = vmatpush1.xpose.msra.mxu0 0.0
      %1431 = vmatprep.subr.mxu0 0.0
      %1432 = vmatpush1.xpose.msra.mxu0 0.0
      %1433 = vmatprep.subr.mxu0 0.0
      %1434 = vmatpush1.xpose.msra.mxu0 0.0
      %1435 = vmatprep.subr.mxu0 0.0
      %1436 = vmatpush1.xpose.msra.mxu0 0.0
      %1437 = vmatprep.subr.mxu0 0.0
      %1438 = vmatpush1.xpose.msra.mxu0 0.0
      %1439 = vmatprep.subr.mxu0 0.0
      %1440 = vmatpush1.xpose.msra.mxu0 0.0
      %1441 = vmatprep.subr.mxu0 0.0
      %1442 = vmatpush1.xpose.msra.mxu0 0.0
      %1443 = vmatprep.subr.mxu0 0.0
      %1444 = vmatpush1.xpose.msra.mxu0 0.0
      %1445 = vmatprep.subr.mxu0 0.0
      %1446 = vmatpush1.xpose.msra.mxu0 0.0
      %1447 = vmatprep.subr.mxu0 0.0
      %1448 = vmatpush1.xpose.msra.mxu0 0.0
      %1449 = vmatprep.subr.mxu0 0.0
      %1450 = vmatpush1.xpose.msra.mxu0 0.0
      %1451 = vmatprep.subr.mxu0 0.0
      %1452 = vmatpush1.xpose.msra.mxu0 0.0
      %1453 = vmatprep.subr.mxu0 0.0
      %1454 = vmatpush1.xpose.msra.mxu0 0.0
      %1455 = vmatprep.subr.mxu0 0.0
      %1456 = vmatpush1.xpose.msra.mxu0 0.0
      %1457 = vmatprep.subr.mxu0 0.0
      %1458 = vmatpush1.xpose.msra.mxu0 0.0
      %1459 = vmatprep.subr.mxu0 0.0
      %1460 = vmatpush1.xpose.msra.mxu0 0.0
      %1461 = vmatprep.subr.mxu0 0.0
      %1462 = vmatpush1.xpose.msra.mxu0 0.0
      %1463 = vmatprep.subr.mxu0 0.0
      %1464 = vmatpush1.xpose.msra.mxu0 0.0
      %1465 = vmatprep.mubr.f32.mxu0 0.0
      %1466 = vmatmul.mubr.f32.gmra.mrb[0].mxu0 %v1397
      %v1467 = vpop.f32.mrb[0].mxu0
      %v1468 = vadd.f32 0.0, %v1467
      %v1469 = vpop.f32.mrb[0].mxu0
      %1470 = vdwg.mxu0
      %v1471 = vmul.f32 %v1468, 0.35355338
      %v1472 = vsel %vm555, %v1471, -inf
      %1473 = vmax.xlane.f32.xlu0 %v1472
      %v1474 = vpop.xlane.xlu0 %1473
      %v1475 = vsub.f32 %v1471, %v1474
      %v1476 = vmul.f32 %v1475, 1.442695
      %v1477 = vpow.pop %v1476
      %v1478 = vsel %vm555, %v1477, 0.0
      %1479 = vadd.xlane.f32.xlu0 %v1478
      %v1480 = vpop.xlane.xlu0 %1479
      %v1481 = vrcp.pop %v1480
      %v1482 = vmul.f32 %v1477, %v1481
      %1484 = vrot.lane.b32.xlu0 %v552, 120
      %v1485 = vpop.permute.xlu0 %1484
      %v1488 = vsel %vm555, %v1482, 0
      %1490 = vmatprep.subr.mxu0 0.0
      %1491 = vmatpush1.msra.mxu0 %v1485
      %1492 = vmatprep.subr.mxu0 0.0
      %1493 = vmatpush1.msra.mxu0 0.0
      %1494 = vmatprep.subr.mxu0 0.0
      %1495 = vmatpush1.msra.mxu0 0.0
      %1496 = vmatprep.subr.mxu0 0.0
      %1497 = vmatpush1.msra.mxu0 0.0
      %1498 = vmatprep.subr.mxu0 0.0
      %1499 = vmatpush1.msra.mxu0 0.0
      %1500 = vmatprep.subr.mxu0 0.0
      %1501 = vmatpush1.msra.mxu0 0.0
      %1502 = vmatprep.subr.mxu0 0.0
      %1503 = vmatpush1.msra.mxu0 0.0
      %1504 = vmatprep.subr.mxu0 0.0
      %1505 = vmatpush1.msra.mxu0 0.0
      %1506 = vmatprep.subr.mxu0 0.0
      %1507 = vmatpush1.msra.mxu0 0.0
      %1508 = vmatprep.subr.mxu0 0.0
      %1509 = vmatpush1.msra.mxu0 0.0
      %1510 = vmatprep.subr.mxu0 0.0
      %1511 = vmatpush1.msra.mxu0 0.0
      %1512 = vmatprep.subr.mxu0 0.0
      %1513 = vmatpush1.msra.mxu0 0.0
      %1514 = vmatprep.subr.mxu0 0.0
      %1515 = vmatpush1.msra.mxu0 0.0
      %1516 = vmatprep.subr.mxu0 0.0
      %1517 = vmatpush1.msra.mxu0 0.0
      %1518 = vmatprep.subr.mxu0 0.0
      %1519 = vmatpush1.msra.mxu0 0.0
      %1520 = vmatprep.subr.mxu0 0.0
      %1521 = vmatpush1.msra.mxu0 0.0
      %1522 = vmatprep.subr.mxu0 0.0
      %1523 = vmatpush1.msra.mxu0 0.0
      %1524 = vmatprep.subr.mxu0 0.0
      %1525 = vmatpush1.msra.mxu0 0.0
      %1526 = vmatprep.subr.mxu0 0.0
      %1527 = vmatpush1.msra.mxu0 0.0
      %1528 = vmatprep.subr.mxu0 0.0
      %1529 = vmatpush1.msra.mxu0 0.0
      %1530 = vmatprep.subr.mxu0 0.0
      %1531 = vmatpush1.msra.mxu0 0.0
      %1532 = vmatprep.subr.mxu0 0.0
      %1533 = vmatpush1.msra.mxu0 0.0
      %1534 = vmatprep.subr.mxu0 0.0
      %1535 = vmatpush1.msra.mxu0 0.0
      %1536 = vmatprep.subr.mxu0 0.0
      %1537 = vmatpush1.msra.mxu0 0.0
      %1538 = vmatprep.subr.mxu0 0.0
      %1539 = vmatpush1.msra.mxu0 0.0
      %1540 = vmatprep.subr.mxu0 0.0
      %1541 = vmatpush1.msra.mxu0 0.0
      %1542 = vmatprep.subr.mxu0 0.0
      %1543 = vmatpush1.msra.mxu0 0.0
      %1544 = vmatprep.subr.mxu0 0.0
      %1545 = vmatpush1.msra.mxu0 0.0
      %1546 = vmatprep.subr.mxu0 0.0
      %1547 = vmatpush1.msra.mxu0 0.0
      %1548 = vmatprep.subr.mxu0 0.0
      %1549 = vmatpush1.msra.mxu0 0.0
      %1550 = vmatprep.subr.mxu0 0.0
      %1551 = vmatpush1.msra.mxu0 0.0
      %1552 = vmatprep.subr.mxu0 0.0
      %1553 = vmatpush1.msra.mxu0 0.0
      %1554 = vmatprep.mubr.f32.mxu0 0.0
      %1555 = vmatmul.mubr.f32.gmra.mrb[0].mxu0 %v1488
      %v1556 = vpop.f32.mrb[0].mxu0
      %v1557 = vadd.f32 0.0, %v1556
      %v1558 = vpop.f32.mrb[0].mxu0
      %1559 = vdwg.mxu0
      %1560 = vrot.lane.b32.xlu0 %v368, 112
      %v1561 = vpop.permute.xlu0 %1560
      %1562 = vrot.lane.b32.xlu0 %v462, 112
      %v1563 = vpop.permute.xlu0 %1562
      %v1564 = vsel %vm555, %v1561, 0
      %v1566 = vsel %vm555, %v1563, 0
      %1568 = vmatprep.subr.mxu0 0.0
      %1569 = vmatpush1.xpose.msra.mxu0 %v1566
      %1570 = vmatprep.subr.mxu0 0.0
      %1571 = vmatpush1.xpose.msra.mxu0 0.0
      %1572 = vmatprep.subr.mxu0 0.0
      %1573 = vmatpush1.xpose.msra.mxu0 0.0
      %1574 = vmatprep.subr.mxu0 0.0
      %1575 = vmatpush1.xpose.msra.mxu0 0.0
      %1576 = vmatprep.subr.mxu0 0.0
      %1577 = vmatpush1.xpose.msra.mxu0 0.0
      %1578 = vmatprep.subr.mxu0 0.0
      %1579 = vmatpush1.xpose.msra.mxu0 0.0
      %1580 = vmatprep.subr.mxu0 0.0
      %1581 = vmatpush1.xpose.msra.mxu0 0.0
      %1582 = vmatprep.subr.mxu0 0.0
      %1583 = vmatpush1.xpose.msra.mxu0 0.0
      %1584 = vmatprep.subr.mxu0 0.0
      %1585 = vmatpush1.xpose.msra.mxu0 0.0
      %1586 = vmatprep.subr.mxu0 0.0
      %1587 = vmatpush1.xpose.msra.mxu0 0.0
      %1588 = vmatprep.subr.mxu0 0.0
      %1589 = vmatpush1.xpose.msra.mxu0 0.0
      %1590 = vmatprep.subr.mxu0 0.0
      %1591 = vmatpush1.xpose.msra.mxu0 0.0
      %1592 = vmatprep.subr.mxu0 0.0
      %1593 = vmatpush1.xpose.msra.mxu0 0.0
      %1594 = vmatprep.subr.mxu0 0.0
      %1595 = vmatpush1.xpose.msra.mxu0 0.0
      %1596 = vmatprep.subr.mxu0 0.0
      %1597 = vmatpush1.xpose.msra.mxu0 0.0
      %1598 = vmatprep.subr.mxu0 0.0
      %1599 = vmatpush1.xpose.msra.mxu0 0.0
      %1600 = vmatprep.subr.mxu0 0.0
      %1601 = vmatpush1.xpose.msra.mxu0 0.0
      %1602 = vmatprep.subr.mxu0 0.0
      %1603 = vmatpush1.xpose.msra.mxu0 0.0
      %1604 = vmatprep.subr.mxu0 0.0
      %1605 = vmatpush1.xpose.msra.mxu0 0.0
      %1606 = vmatprep.subr.mxu0 0.0
      %1607 = vmatpush1.xpose.msra.mxu0 0.0
      %1608 = vmatprep.subr.mxu0 0.0
      %1609 = vmatpush1.xpose.msra.mxu0 0.0
      %1610 = vmatprep.subr.mxu0 0.0
      %1611 = vmatpush1.xpose.msra.mxu0 0.0
      %1612 = vmatprep.subr.mxu0 0.0
      %1613 = vmatpush1.xpose.msra.mxu0 0.0
      %1614 = vmatprep.subr.mxu0 0.0
      %1615 = vmatpush1.xpose.msra.mxu0 0.0
      %1616 = vmatprep.subr.mxu0 0.0
      %1617 = vmatpush1.xpose.msra.mxu0 0.0
      %1618 = vmatprep.subr.mxu0 0.0
      %1619 = vmatpush1.xpose.msra.mxu0 0.0
      %1620 = vmatprep.subr.mxu0 0.0
      %1621 = vmatpush1.xpose.msra.mxu0 0.0
      %1622 = vmatprep.subr.mxu0 0.0
      %1623 = vmatpush1.xpose.msra.mxu0 0.0
      %1624 = vmatprep.subr.mxu0 0.0
      %1625 = vmatpush1.xpose.msra.mxu0 0.0
      %1626 = vmatprep.subr.mxu0 0.0
      %1627 = vmatpush1.xpose.msra.mxu0 0.0
      %1628 = vmatprep.subr.mxu0 0.0
      %1629 = vmatpush1.xpose.msra.mxu0 0.0
      %1630 = vmatprep.subr.mxu0 0.0
      %1631 = vmatpush1.xpose.msra.mxu0 0.0
      %1632 = vmatprep.mubr.f32.mxu0 0.0
      %1633 = vmatmul.mubr.f32.gmra.mrb[0].mxu0 %v1564
      %v1634 = vpop.f32.mrb[0].mxu0
      %v1635 = vadd.f32 0.0, %v1634
      %v1636 = vpop.f32.mrb[0].mxu0
      %1637 = vdwg.mxu0
      %v1638 = vmul.f32 %v1635, 0.35355338
      %v1639 = vsel %vm555, %v1638, -inf
      %1640 = vmax.xlane.f32.xlu0 %v1639
      %v1641 = vpop.xlane.xlu0 %1640
      %v1642 = vsub.f32 %v1638, %v1641
      %v1643 = vmul.f32 %v1642, 1.442695
      %v1644 = vpow.pop %v1643
      %v1645 = vsel %vm555, %v1644, 0.0
      %1646 = vadd.xlane.f32.xlu0 %v1645
      %v1647 = vpop.xlane.xlu0 %1646
      %v1648 = vrcp.pop %v1647
      %v1649 = vmul.f32 %v1644, %v1648
      %1650 = vrot.lane.b32.xlu0 %v552, 112
      %v1651 = vpop.permute.xlu0 %1650
      %v1654 = vsel %vm555, %v1649, 0
      %1656 = vmatprep.subr.mxu0 0.0
      %1657 = vmatpush1.msra.mxu0 %v1651
      %1658 = vmatprep.subr.mxu0 0.0
      %1659 = vmatpush1.msra.mxu0 0.0
      %1660 = vmatprep.subr.mxu0 0.0
      %1661 = vmatpush1.msra.mxu0 0.0
      %1662 = vmatprep.subr.mxu0 0.0
      %1663 = vmatpush1.msra.mxu0 0.0
      %1664 = vmatprep.subr.mxu0 0.0
      %1665 = vmatpush1.msra.mxu0 0.0
      %1666 = vmatprep.subr.mxu0 0.0
      %1667 = vmatpush1.msra.mxu0 0.0
      %1668 = vmatprep.subr.mxu0 0.0
      %1669 = vmatpush1.msra.mxu0 0.0
      %1670 = vmatprep.subr.mxu0 0.0
      %1671 = vmatpush1.msra.mxu0 0.0
      %1672 = vmatprep.subr.mxu0 0.0
      %1673 = vmatpush1.msra.mxu0 0.0
      %1674 = vmatprep.subr.mxu0 0.0
      %1675 = vmatpush1.msra.mxu0 0.0
      %1676 = vmatprep.subr.mxu0 0.0
      %1677 = vmatpush1.msra.mxu0 0.0
      %1678 = vmatprep.subr.mxu0 0.0
      %1679 = vmatpush1.msra.mxu0 0.0
      %1680 = vmatprep.subr.mxu0 0.0
      %1681 = vmatpush1.msra.mxu0 0.0
      %1682 = vmatprep.subr.mxu0 0.0
      %1683 = vmatpush1.msra.mxu0 0.0
      %1684 = vmatprep.subr.mxu0 0.0
      %1685 = vmatpush1.msra.mxu0 0.0
      %1686 = vmatprep.subr.mxu0 0.0
      %1687 = vmatpush1.msra.mxu0 0.0
      %1688 = vmatprep.subr.mxu0 0.0
      %1689 = vmatpush1.msra.mxu0 0.0
      %1690 = vmatprep.subr.mxu0 0.0
      %1691 = vmatpush1.msra.mxu0 0.0
      %1692 = vmatprep.subr.mxu0 0.0
      %1693 = vmatpush1.msra.mxu0 0.0
      %1694 = vmatprep.subr.mxu0 0.0
      %1695 = vmatpush1.msra.mxu0 0.0
      %1696 = vmatprep.subr.mxu0 0.0
      %1697 = vmatpush1.msra.mxu0 0.0
      %1698 = vmatprep.subr.mxu0 0.0
      %1699 = vmatpush1.msra.mxu0 0.0
      %1700 = vmatprep.subr.mxu0 0.0
      %1701 = vmatpush1.msra.mxu0 0.0
      %1702 = vmatprep.subr.mxu0 0.0
      %1703 = vmatpush1.msra.mxu0 0.0
      %1704 = vmatprep.subr.mxu0 0.0
      %1705 = vmatpush1.msra.mxu0 0.0
      %1706 = vmatprep.subr.mxu0 0.0
      %1707 = vmatpush1.msra.mxu0 0.0
      %1708 = vmatprep.subr.mxu0 0.0
      %1709 = vmatpush1.msra.mxu0 0.0
      %1710 = vmatprep.subr.mxu0 0.0
      %1711 = vmatpush1.msra.mxu0 0.0
      %1712 = vmatprep.subr.mxu0 0.0
      %1713 = vmatpush1.msra.mxu0 0.0
      %1714 = vmatprep.subr.mxu0 0.0
      %1715 = vmatpush1.msra.mxu0 0.0
      %1716 = vmatprep.subr.mxu0 0.0
      %1717 = vmatpush1.msra.mxu0 0.0
      %1718 = vmatprep.subr.mxu0 0.0
      %1719 = vmatpush1.msra.mxu0 0.0
      %1720 = vmatprep.mubr.f32.mxu0 0.0
      %1721 = vmatmul.mubr.f32.gmra.mrb[0].mxu0 %v1654
      %v1722 = vpop.f32.mrb[0].mxu0
      %v1723 = vadd.f32 0.0, %v1722
      %v1724 = vpop.f32.mrb[0].mxu0
      %1725 = vdwg.mxu0
      %1726 = vrot.lane.b32.xlu0 %v368, 104
      %v1727 = vpop.permute.xlu0 %1726
      %1728 = vrot.lane.b32.xlu0 %v462, 104
      %v1729 = vpop.permute.xlu0 %1728
      %v1730 = vsel %vm555, %v1727, 0
      %v1732 = vsel %vm555, %v1729, 0
      %1734 = vmatprep.subr.mxu0 0.0
      %1735 = vmatpush1.xpose.msra.mxu0 %v1732
      %1736 = vmatprep.subr.mxu0 0.0
      %1737 = vmatpush1.xpose.msra.mxu0 0.0
      %1738 = vmatprep.subr.mxu0 0.0
      %1739 = vmatpush1.xpose.msra.mxu0 0.0
      %1740 = vmatprep.subr.mxu0 0.0
      %1741 = vmatpush1.xpose.msra.mxu0 0.0
      %1742 = vmatprep.subr.mxu0 0.0
      %1743 = vmatpush1.xpose.msra.mxu0 0.0
      %1744 = vmatprep.subr.mxu0 0.0
      %1745 = vmatpush1.xpose.msra.mxu0 0.0
      %1746 = vmatprep.subr.mxu0 0.0
      %1747 = vmatpush1.xpose.msra.mxu0 0.0
      %1748 = vmatprep.subr.mxu0 0.0
      %1749 = vmatpush1.xpose.msra.mxu0 0.0
      %1750 = vmatprep.subr.mxu0 0.0
      %1751 = vmatpush1.xpose.msra.mxu0 0.0
      %1752 = vmatprep.subr.mxu0 0.0
      %1753 = vmatpush1.xpose.msra.mxu0 0.0
      %1754 = vmatprep.subr.mxu0 0.0
      %1755 = vmatpush1.xpose.msra.mxu0 0.0
      %1756 = vmatprep.subr.mxu0 0.0
      %1757 = vmatpush1.xpose.msra.mxu0 0.0
      %1758 = vmatprep.subr.mxu0 0.0
      %1759 = vmatpush1.xpose.msra.mxu0 0.0
      %1760 = vmatprep.subr.mxu0 0.0
      %1761 = vmatpush1.xpose.msra.mxu0 0.0
      %1762 = vmatprep.subr.mxu0 0.0
      %1763 = vmatpush1.xpose.msra.mxu0 0.0
      %1764 = vmatprep.subr.mxu0 0.0
      %1765 = vmatpush1.xpose.msra.mxu0 0.0
      %1766 = vmatprep.subr.mxu0 0.0
      %1767 = vmatpush1.xpose.msra.mxu0 0.0
      %1768 = vmatprep.subr.mxu0 0.0
      %1769 = vmatpush1.xpose.msra.mxu0 0.0
      %1770 = vmatprep.subr.mxu0 0.0
      %1771 = vmatpush1.xpose.msra.mxu0 0.0
      %1772 = vmatprep.subr.mxu0 0.0
      %1773 = vmatpush1.xpose.msra.mxu0 0.0
      %1774 = vmatprep.subr.mxu0 0.0
      %1775 = vmatpush1.xpose.msra.mxu0 0.0
      %1776 = vmatprep.subr.mxu0 0.0
      %1777 = vmatpush1.xpose.msra.mxu0 0.0
      %1778 = vmatprep.subr.mxu0 0.0
      %1779 = vmatpush1.xpose.msra.mxu0 0.0
      %1780 = vmatprep.subr.mxu0 0.0
      %1781 = vmatpush1.xpose.msra.mxu0 0.0
      %1782 = vmatprep.subr.mxu0 0.0
      %1783 = vmatpush1.xpose.msra.mxu0 0.0
      %1784 = vmatprep.subr.mxu0 0.0
      %1785 = vmatpush1.xpose.msra.mxu0 0.0
      %1786 = vmatprep.subr.mxu0 0.0
      %1787 = vmatpush1.xpose.msra.mxu0 0.0
      %1788 = vmatprep.subr.mxu0 0.0
      %1789 = vmatpush1.xpose.msra.mxu0 0.0
      %1790 = vmatprep.subr.mxu0 0.0
      %1791 = vmatpush1.xpose.msra.mxu0 0.0
      %1792 = vmatprep.subr.mxu0 0.0
      %1793 = vmatpush1.xpose.msra.mxu0 0.0
      %1794 = vmatprep.subr.mxu0 0.0
      %1795 = vmatpush1.xpose.msra.mxu0 0.0
      %1796 = vmatprep.subr.mxu0 0.0
      %1797 = vmatpush1.xpose.msra.mxu0 0.0
      %1798 = vmatprep.mubr.f32.mxu0 0.0
      %1799 = vmatmul.mubr.f32.gmra.mrb[0].mxu0 %v1730
      %v1800 = vpop.f32.mrb[0].mxu0
      %v1801 = vadd.f32 0.0, %v1800
      %v1802 = vpop.f32.mrb[0].mxu0
      %1803 = vdwg.mxu0
      %v1804 = vmul.f32 %v1801, 0.35355338
      %v1805 = vsel %vm555, %v1804, -inf
      %1806 = vmax.xlane.f32.xlu0 %v1805
      %v1807 = vpop.xlane.xlu0 %1806
      %v1808 = vsub.f32 %v1804, %v1807
      %v1809 = vmul.f32 %v1808, 1.442695
      %v1810 = vpow.pop %v1809
      %v1811 = vsel %vm555, %v1810, 0.0
      %1812 = vadd.xlane.f32.xlu0 %v1811
      %v1813 = vpop.xlane.xlu0 %1812
      %v1814 = vrcp.pop %v1813
      %v1815 = vmul.f32 %v1810, %v1814
      %1816 = vrot.lane.b32.xlu0 %v552, 104
      %v1817 = vpop.permute.xlu0 %1816
      %v1820 = vsel %vm555, %v1815, 0
      %1822 = vmatprep.subr.mxu0 0.0
      %1823 = vmatpush1.msra.mxu0 %v1817
      %1824 = vmatprep.subr.mxu0 0.0
      %1825 = vmatpush1.msra.mxu0 0.0
      %1826 = vmatprep.subr.mxu0 0.0
      %1827 = vmatpush1.msra.mxu0 0.0
      %1828 = vmatprep.subr.mxu0 0.0
      %1829 = vmatpush1.msra.mxu0 0.0
      %1830 = vmatprep.subr.mxu0 0.0
      %1831 = vmatpush1.msra.mxu0 0.0
      %1832 = vmatprep.subr.mxu0 0.0
      %1833 = vmatpush1.msra.mxu0 0.0
      %1834 = vmatprep.subr.mxu0 0.0
      %1835 = vmatpush1.msra.mxu0 0.0
      %1836 = vmatprep.subr.mxu0 0.0
      %1837 = vmatpush1.msra.mxu0 0.0
      %1838 = vmatprep.subr.mxu0 0.0
      %1839 = vmatpush1.msra.mxu0 0.0
      %1840 = vmatprep.subr.mxu0 0.0
      %1841 = vmatpush1.msra.mxu0 0.0
      %1842 = vmatprep.subr.mxu0 0.0
      %1843 = vmatpush1.msra.mxu0 0.0
      %1844 = vmatprep.subr.mxu0 0.0
      %1845 = vmatpush1.msra.mxu0 0.0
      %1846 = vmatprep.subr.mxu0 0.0
      %1847 = vmatpush1.msra.mxu0 0.0
      %1848 = vmatprep.subr.mxu0 0.0
      %1849 = vmatpush1.msra.mxu0 0.0
      %1850 = vmatprep.subr.mxu0 0.0
      %1851 = vmatpush1.msra.mxu0 0.0
      %1852 = vmatprep.subr.mxu0 0.0
      %1853 = vmatpush1.msra.mxu0 0.0
      %1854 = vmatprep.subr.mxu0 0.0
      %1855 = vmatpush1.msra.mxu0 0.0
      %1856 = vmatprep.subr.mxu0 0.0
      %1857 = vmatpush1.msra.mxu0 0.0
      %1858 = vmatprep.subr.mxu0 0.0
      %1859 = vmatpush1.msra.mxu0 0.0
      %1860 = vmatprep.subr.mxu0 0.0
      %1861 = vmatpush1.msra.mxu0 0.0
      %1862 = vmatprep.subr.mxu0 0.0
      %1863 = vmatpush1.msra.mxu0 0.0
      %1864 = vmatprep.subr.mxu0 0.0
      %1865 = vmatpush1.msra.mxu0 0.0
      %1866 = vmatprep.subr.mxu0 0.0
      %1867 = vmatpush1.msra.mxu0 0.0
      %1868 = vmatprep.subr.mxu0 0.0
      %1869 = vmatpush1.msra.mxu0 0.0
      %1870 = vmatprep.subr.mxu0 0.0
      %1871 = vmatpush1.msra.mxu0 0.0
      %1872 = vmatprep.subr.mxu0 0.0
      %1873 = vmatpush1.msra.mxu0 0.0
      %1874 = vmatprep.subr.mxu0 0.0
      %1875 = vmatpush1.msra.mxu0 0.0
      %1876 = vmatprep.subr.mxu0 0.0
      %1877 = vmatpush1.msra.mxu0 0.0
      %1878 = vmatprep.subr.mxu0 0.0
      %1879 = vmatpush1.msra.mxu0 0.0
      %1880 = vmatprep.subr.mxu0 0.0
      %1881 = vmatpush1.msra.mxu0 0.0
      %1882 = vmatprep.subr.mxu0 0.0
      %1883 = vmatpush1.msra.mxu0 0.0
      %1884 = vmatprep.subr.mxu0 0.0
      %1885 = vmatpush1.msra.mxu0 0.0
      %1886 = vmatprep.mubr.f32.mxu0 0.0
      %1887 = vmatmul.mubr.f32.gmra.mrb[0].mxu0 %v1820
      %v1888 = vpop.f32.mrb[0].mxu0
      %v1889 = vadd.f32 0.0, %v1888
      %v1890 = vpop.f32.mrb[0].mxu0
      %1891 = vdwg.mxu0
      %1893 = vrot.lane.b32.xlu0 %v1557, 8
      %v1894 = vpop.permute.xlu0 %1893
      %1897 = vrot.lane.b32.xlu0 %v1723, 16
      %v1898 = vpop.permute.xlu0 %1897
      %1901 = vrot.lane.b32.xlu0 %v1889, 24
      %v1902 = vpop.permute.xlu0 %1901
      %v1904 = vsel %vm555, %v1390, %v1894
      %v1905 = vsel %vm1229, %v1904, %v1898
      %v1906 = vsel %vm178, %v1905, %v1902
      %v1908 = vlaneseq
      %v1909 = vshrl.u32 %v1908, 7
      %v1910 = vsub.s32 0, %v1909
      %v1911 = vrot.slane %v282, %v1910
      %v1914 = vsel %vm289, %v1231, 0
      %v1917 = vsel %vm289, %v1906, 0
      %1919 = vmatprep.subr.mxu0 0.0
      %1920 = vmatpush1.msra.mxu0 %v277
      %1921 = vmatprep.subr.mxu0 0.0
      %1922 = vmatpush1.msra.mxu0 %v278
      %1923 = vmatprep.subr.mxu0 0.0
      %1924 = vmatpush1.msra.mxu0 %v279
      %1925 = vmatprep.subr.mxu0 0.0
      %1926 = vmatpush1.msra.mxu0 %v280
      %1927 = vmatprep.subr.mxu0 0.0
      %1928 = vmatpush1.msra.mxu0 0.0
      %1929 = vmatprep.subr.mxu0 0.0
      %1930 = vmatpush1.msra.mxu0 0.0
      %1931 = vmatprep.subr.mxu0 0.0
      %1932 = vmatpush1.msra.mxu0 0.0
      %1933 = vmatprep.subr.mxu0 0.0
      %1934 = vmatpush1.msra.mxu0 0.0
      %1935 = vmatprep.subr.mxu0 0.0
      %1936 = vmatpush1.msra.mxu0 0.0
      %1937 = vmatprep.subr.mxu0 0.0
      %1938 = vmatpush1.msra.mxu0 0.0
      %1939 = vmatprep.subr.mxu0 0.0
      %1940 = vmatpush1.msra.mxu0 0.0
      %1941 = vmatprep.subr.mxu0 0.0
      %1942 = vmatpush1.msra.mxu0 0.0
      %1943 = vmatprep.subr.mxu0 0.0
      %1944 = vmatpush1.msra.mxu0 0.0
      %1945 = vmatprep.subr.mxu0 0.0
      %1946 = vmatpush1.msra.mxu0 0.0
      %1947 = vmatprep.subr.mxu0 0.0
      %1948 = vmatpush1.msra.mxu0 0.0
      %1949 = vmatprep.subr.mxu0 0.0
      %1950 = vmatpush1.msra.mxu0 0.0
      %1951 = vmatprep.subr.mxu0 0.0
      %1952 = vmatpush1.msra.mxu0 0.0
      %1953 = vmatprep.subr.mxu0 0.0
      %1954 = vmatpush1.msra.mxu0 0.0
      %1955 = vmatprep.subr.mxu0 0.0
      %1956 = vmatpush1.msra.mxu0 0.0
      %1957 = vmatprep.subr.mxu0 0.0
      %1958 = vmatpush1.msra.mxu0 0.0
      %1959 = vmatprep.subr.mxu0 0.0
      %1960 = vmatpush1.msra.mxu0 0.0
      %1961 = vmatprep.subr.mxu0 0.0
      %1962 = vmatpush1.msra.mxu0 0.0
      %1963 = vmatprep.subr.mxu0 0.0
      %1964 = vmatpush1.msra.mxu0 0.0
      %1965 = vmatprep.subr.mxu0 0.0
      %1966 = vmatpush1.msra.mxu0 0.0
      %1967 = vmatprep.subr.mxu0 0.0
      %1968 = vmatpush1.msra.mxu0 0.0
      %1969 = vmatprep.subr.mxu0 0.0
      %1970 = vmatpush1.msra.mxu0 0.0
      %1971 = vmatprep.subr.mxu0 0.0
      %1972 = vmatpush1.msra.mxu0 0.0
      %1973 = vmatprep.subr.mxu0 0.0
      %1974 = vmatpush1.msra.mxu0 0.0
      %1975 = vmatprep.subr.mxu0 0.0
      %1976 = vmatpush1.msra.mxu0 0.0
      %1977 = vmatprep.subr.mxu0 0.0
      %1978 = vmatpush1.msra.mxu0 0.0
      %1979 = vmatprep.subr.mxu0 0.0
      %1980 = vmatpush1.msra.mxu0 0.0
      %1981 = vmatprep.subr.mxu0 0.0
      %1982 = vmatpush1.msra.mxu0 0.0
      %1983 = vmatprep.mubr.f32.mxu0 0.0
      %1984 = vmatmul.mubr.f32.gmra.mrb[0].mxu0 %v1914
      %v1985 = vpop.f32.mrb[0].mxu0
      %v1986 = vadd.f32 %v1911, %v1985
      %v1987 = vpop.f32.mrb[0].mxu0
      %1988 = vmatprep.mubr.f32.mxu0 0.0
      %1989 = vmatmul.mubr.f32.gmra.mrb[0].mxu0 %v1917
      %v1990 = vpop.f32.mrb[0].mxu0
      %v1991 = vadd.f32 %v1911, %v1990
      %v1992 = vpop.f32.mrb[0].mxu0
      %1993 = vdwg.mxu0
      %v1994 = vadd.f32 %v266, %v1986
      %v1995 = vadd.f32 %v267, %v1991
      %s1996 = scalar_lea.vmem %s13, %s261
      %v1997 = vld [vmem:[%s1996] sm:$0x1]
      %s1998 = scalar_lea.vmem %s15, %s261
      %v1999 = vld [vmem:[%s1998] sm:$0x1]
      %v2000 = vsel %vm289, %v1994, 0.0
      %2001 = vadd.xlane.f32.xlu0 %v2000
      %v2002 = vpop.xlane.xlu0 %2001
      %v2003 = vsel %vm289, %v1995, 0.0
      %2004 = vadd.xlane.f32.xlu0 %v2003
      %v2005 = vpop.xlane.xlu0 %2004
      %v2006 = vrcp.pop 32.0
      %v2007 = vmul.f32 %v2002, %v2006
      %v2008 = vmul.f32 %v2005, %v2006
      %v2009 = vsub.f32 %v1994, %v2007
      %v2010 = vsub.f32 %v1995, %v2008
      %v2011 = vmul.f32 %v2009, %v2009
      %v2012 = vmul.f32 %v2010, %v2010
      %v2013 = vsel %vm289, %v2011, 0.0
      %2014 = vadd.xlane.f32.xlu0 %v2013
      %v2015 = vpop.xlane.xlu0 %2014
      %v2016 = vsel %vm289, %v2012, 0.0
      %2017 = vadd.xlane.f32.xlu0 %v2016
      %v2018 = vpop.xlane.xlu0 %2017
      %v2019 = vmul.f32 %v2015, %v2006
      %v2020 = vmul.f32 %v2018, %v2006
      %v2021 = vadd.f32 %v2019, 1e-05
      %v2022 = vadd.f32 %v2020, 1e-05
      %v2023 = vrsqrt.pop %v2021
      %v2024 = vrsqrt.pop %v2022
      %v2025 = vmul.f32 %v2009, %v2023
      %v2026 = vmul.f32 %v2010, %v2024
      %v2028 = vlaneseq
      %v2029 = vshrl.u32 %v2028, 7
      %v2030 = vsub.s32 0, %v2029
      %v2031 = vrot.slane %v1997, %v2030
      %v2033 = vmul.f32 %v2025, %v2031
      %v2034 = vmul.f32 %v2026, %v2031
      %v2036 = vlaneseq
      %v2037 = vshrl.u32 %v2036, 7
      %v2038 = vsub.s32 0, %v2037
      %v2039 = vrot.slane %v1999, %v2038
      %v2041 = vadd.f32 %v2033, %v2039
      %v2042 = vadd.f32 %v2034, %v2039
      %s2043 = smul.u32 %s261, 64
      %s2044 = smul.addr %s2043, 8
      %s2045 = scalar_lea.vmem %s17, %s2044
      %v2046 = vld [vmem:[%s2045] sm:$0xff]
      %v2047 = vld [vmem:[%s2045 + $0x8] sm:$0xff]
      %v2048 = vld [vmem:[%s2045 + $0x10] sm:$0xff]
      %v2049 = vld [vmem:[%s2045 + $0x18] sm:$0xff]
      %v2050 = vld [vmem:[%s2045 + $0x20] sm:$0xff]
      %v2051 = vld [vmem:[%s2045 + $0x28] sm:$0xff]
      %v2052 = vld [vmem:[%s2045 + $0x30] sm:$0xff]
      %v2053 = vld [vmem:[%s2045 + $0x38] sm:$0xff]
      %v2054 = vld [vmem:[%s2045 + $0x40] sm:$0xff]
      %v2055 = vld [vmem:[%s2045 + $0x48] sm:$0xff]
      %v2056 = vld [vmem:[%s2045 + $0x50] sm:$0xff]
      %v2057 = vld [vmem:[%s2045 + $0x58] sm:$0xff]
      %v2058 = vld [vmem:[%s2045 + $0x60] sm:$0xff]
      %v2059 = vld [vmem:[%s2045 + $0x68] sm:$0xff]
      %v2060 = vld [vmem:[%s2045 + $0x70] sm:$0xff]
      %v2061 = vld [vmem:[%s2045 + $0x78] sm:$0xff]
      %v2062 = vld [vmem:[%s2045 + $0x80] sm:$0xff]
      %v2063 = vld [vmem:[%s2045 + $0x88] sm:$0xff]
      %v2064 = vld [vmem:[%s2045 + $0x90] sm:$0xff]
      %v2065 = vld [vmem:[%s2045 + $0x98] sm:$0xff]
      %v2066 = vld [vmem:[%s2045 + $0xa0] sm:$0xff]
      %v2067 = vld [vmem:[%s2045 + $0xa8] sm:$0xff]
      %v2068 = vld [vmem:[%s2045 + $0xb0] sm:$0xff]
      %v2069 = vld [vmem:[%s2045 + $0xb8] sm:$0xff]
      %v2070 = vld [vmem:[%s2045 + $0xc0] sm:$0xff]
      %v2071 = vld [vmem:[%s2045 + $0xc8] sm:$0xff]
      %v2072 = vld [vmem:[%s2045 + $0xd0] sm:$0xff]
      %v2073 = vld [vmem:[%s2045 + $0xd8] sm:$0xff]
      %v2074 = vld [vmem:[%s2045 + $0xe0] sm:$0xff]
      %v2075 = vld [vmem:[%s2045 + $0xe8] sm:$0xff]
      %v2076 = vld [vmem:[%s2045 + $0xf0] sm:$0xff]
      %v2077 = vld [vmem:[%s2045 + $0xf8] sm:$0xff]
      %v2078 = vld [vmem:[%s2045 + $0x100] sm:$0xff]
      %v2079 = vld [vmem:[%s2045 + $0x108] sm:$0xff]
      %v2080 = vld [vmem:[%s2045 + $0x110] sm:$0xff]
      %v2081 = vld [vmem:[%s2045 + $0x118] sm:$0xff]
      %v2082 = vld [vmem:[%s2045 + $0x120] sm:$0xff]
      %v2083 = vld [vmem:[%s2045 + $0x128] sm:$0xff]
      %v2084 = vld [vmem:[%s2045 + $0x130] sm:$0xff]
      %v2085 = vld [vmem:[%s2045 + $0x138] sm:$0xff]
      %v2086 = vld [vmem:[%s2045 + $0x140] sm:$0xff]
      %v2087 = vld [vmem:[%s2045 + $0x148] sm:$0xff]
      %v2088 = vld [vmem:[%s2045 + $0x150] sm:$0xff]
      %v2089 = vld [vmem:[%s2045 + $0x158] sm:$0xff]
      %v2090 = vld [vmem:[%s2045 + $0x160] sm:$0xff]
      %v2091 = vld [vmem:[%s2045 + $0x168] sm:$0xff]
      %v2092 = vld [vmem:[%s2045 + $0x170] sm:$0xff]
      %v2093 = vld [vmem:[%s2045 + $0x178] sm:$0xff]
      %v2094 = vld [vmem:[%s2045 + $0x180] sm:$0xff]
      %v2095 = vld [vmem:[%s2045 + $0x188] sm:$0xff]
      %v2096 = vld [vmem:[%s2045 + $0x190] sm:$0xff]
      %v2097 = vld [vmem:[%s2045 + $0x198] sm:$0xff]
      %v2098 = vld [vmem:[%s2045 + $0x1a0] sm:$0xff]
      %v2099 = vld [vmem:[%s2045 + $0x1a8] sm:$0xff]
      %v2100 = vld [vmem:[%s2045 + $0x1b0] sm:$0xff]
      %v2101 = vld [vmem:[%s2045 + $0x1b8] sm:$0xff]
      %v2102 = vld [vmem:[%s2045 + $0x1c0] sm:$0xff]
      %v2103 = vld [vmem:[%s2045 + $0x1c8] sm:$0xff]
      %v2104 = vld [vmem:[%s2045 + $0x1d0] sm:$0xff]
      %v2105 = vld [vmem:[%s2045 + $0x1d8] sm:$0xff]
      %v2106 = vld [vmem:[%s2045 + $0x1e0] sm:$0xff]
      %v2107 = vld [vmem:[%s2045 + $0x1e8] sm:$0xff]
      %v2108 = vld [vmem:[%s2045 + $0x1f0] sm:$0xff]
      %v2109 = vld [vmem:[%s2045 + $0x1f8] sm:$0xff]
      %s2110 = smul.u32 %s261, 16
      %s2111 = scalar_lea.vmem %s19, %s2110
      %v2112 = vld [vmem:[%s2111] sm:$0xff]
      %v2113 = vld [vmem:[%s2111 + $0x8] sm:$0xff]
      %s2114 = smul.u32 %s261, 2048
      %s2115 = scalar_lea.vmem %s21, %s2114
      %v2116 = vld [vmem:[%s2115] sm:$0xff]
      %v2117 = vld [vmem:[%s2115 + $0x8] sm:$0xff]
      %v2118 = vld [vmem:[%s2115 + $0x10] sm:$0xff]
      %v2119 = vld [vmem:[%s2115 + $0x18] sm:$0xff]
      %v2120 = vld [vmem:[%s2115 + $0x20] sm:$0xff]
      %v2121 = vld [vmem:[%s2115 + $0x28] sm:$0xff]
      %v2122 = vld [vmem:[%s2115 + $0x30] sm:$0xff]
      %v2123 = vld [vmem:[%s2115 + $0x38] sm:$0xff]
      %v2124 = vld [vmem:[%s2115 + $0x40] sm:$0xff]
      %v2125 = vld [vmem:[%s2115 + $0x48] sm:$0xff]
      %v2126 = vld [vmem:[%s2115 + $0x50] sm:$0xff]
      %v2127 = vld [vmem:[%s2115 + $0x58] sm:$0xff]
      %v2128 = vld [vmem:[%s2115 + $0x60] sm:$0xff]
      %v2129 = vld [vmem:[%s2115 + $0x68] sm:$0xff]
      %v2130 = vld [vmem:[%s2115 + $0x70] sm:$0xff]
      %v2131 = vld [vmem:[%s2115 + $0x78] sm:$0xff]
      %v2132 = vld [vmem:[%s2115 + $0x80] sm:$0xff]
      %v2133 = vld [vmem:[%s2115 + $0x88] sm:$0xff]
      %v2134 = vld [vmem:[%s2115 + $0x90] sm:$0xff]
      %v2135 = vld [vmem:[%s2115 + $0x98] sm:$0xff]
      %v2136 = vld [vmem:[%s2115 + $0xa0] sm:$0xff]
      %v2137 = vld [vmem:[%s2115 + $0xa8] sm:$0xff]
      %v2138 = vld [vmem:[%s2115 + $0xb0] sm:$0xff]
      %v2139 = vld [vmem:[%s2115 + $0xb8] sm:$0xff]
      %v2140 = vld [vmem:[%s2115 + $0xc0] sm:$0xff]
      %v2141 = vld [vmem:[%s2115 + $0xc8] sm:$0xff]
      %v2142 = vld [vmem:[%s2115 + $0xd0] sm:$0xff]
      %v2143 = vld [vmem:[%s2115 + $0xd8] sm:$0xff]
      %v2144 = vld [vmem:[%s2115 + $0xe0] sm:$0xff]
      %v2145 = vld [vmem:[%s2115 + $0xe8] sm:$0xff]
      %v2146 = vld [vmem:[%s2115 + $0xf0] sm:$0xff]
      %v2147 = vld [vmem:[%s2115 + $0xf8] sm:$0xff]
      %v2148 = vld [vmem:[%s2115 + $0x100] sm:$0xff]
      %v2149 = vld [vmem:[%s2115 + $0x108] sm:$0xff]
      %v2150 = vld [vmem:[%s2115 + $0x110] sm:$0xff]
      %v2151 = vld [vmem:[%s2115 + $0x118] sm:$0xff]
      %v2152 = vld [vmem:[%s2115 + $0x120] sm:$0xff]
      %v2153 = vld [vmem:[%s2115 + $0x128] sm:$0xff]
      %v2154 = vld [vmem:[%s2115 + $0x130] sm:$0xff]
      %v2155 = vld [vmem:[%s2115 + $0x138] sm:$0xff]
      %v2156 = vld [vmem:[%s2115 + $0x140] sm:$0xff]
      %v2157 = vld [vmem:[%s2115 + $0x148] sm:$0xff]
      %v2158 = vld [vmem:[%s2115 + $0x150] sm:$0xff]
      %v2159 = vld [vmem:[%s2115 + $0x158] sm:$0xff]
      %v2160 = vld [vmem:[%s2115 + $0x160] sm:$0xff]
      %v2161 = vld [vmem:[%s2115 + $0x168] sm:$0xff]
      %v2162 = vld [vmem:[%s2115 + $0x170] sm:$0xff]
      %v2163 = vld [vmem:[%s2115 + $0x178] sm:$0xff]
      %v2164 = vld [vmem:[%s2115 + $0x180] sm:$0xff]
      %v2165 = vld [vmem:[%s2115 + $0x188] sm:$0xff]
      %v2166 = vld [vmem:[%s2115 + $0x190] sm:$0xff]
      %v2167 = vld [vmem:[%s2115 + $0x198] sm:$0xff]
      %v2168 = vld [vmem:[%s2115 + $0x1a0] sm:$0xff]
      %v2169 = vld [vmem:[%s2115 + $0x1a8] sm:$0xff]
      %v2170 = vld [vmem:[%s2115 + $0x1b0] sm:$0xff]
      %v2171 = vld [vmem:[%s2115 + $0x1b8] sm:$0xff]
      %v2172 = vld [vmem:[%s2115 + $0x1c0] sm:$0xff]
      %v2173 = vld [vmem:[%s2115 + $0x1c8] sm:$0xff]
      %v2174 = vld [vmem:[%s2115 + $0x1d0] sm:$0xff]
      %v2175 = vld [vmem:[%s2115 + $0x1d8] sm:$0xff]
      %v2176 = vld [vmem:[%s2115 + $0x1e0] sm:$0xff]
      %v2177 = vld [vmem:[%s2115 + $0x1e8] sm:$0xff]
      %v2178 = vld [vmem:[%s2115 + $0x1f0] sm:$0xff]
      %v2179 = vld [vmem:[%s2115 + $0x1f8] sm:$0xff]
      %v2180 = vld [vmem:[%s2115 + $0x200] sm:$0xff]
      %v2181 = vld [vmem:[%s2115 + $0x208] sm:$0xff]
      %v2182 = vld [vmem:[%s2115 + $0x210] sm:$0xff]
      %v2183 = vld [vmem:[%s2115 + $0x218] sm:$0xff]
      %v2184 = vld [vmem:[%s2115 + $0x220] sm:$0xff]
      %v2185 = vld [vmem:[%s2115 + $0x228] sm:$0xff]
      %v2186 = vld [vmem:[%s2115 + $0x230] sm:$0xff]
      %v2187 = vld [vmem:[%s2115 + $0x238] sm:$0xff]
      %v2188 = vld [vmem:[%s2115 + $0x240] sm:$0xff]
      %v2189 = vld [vmem:[%s2115 + $0x248] sm:$0xff]
      %v2190 = vld [vmem:[%s2115 + $0x250] sm:$0xff]
      %v2191 = vld [vmem:[%s2115 + $0x258] sm:$0xff]
      %v2192 = vld [vmem:[%s2115 + $0x260] sm:$0xff]
      %v2193 = vld [vmem:[%s2115 + $0x268] sm:$0xff]
      %v2194 = vld [vmem:[%s2115 + $0x270] sm:$0xff]
      %v2195 = vld [vmem:[%s2115 + $0x278] sm:$0xff]
      %v2196 = vld [vmem:[%s2115 + $0x280] sm:$0xff]
      %v2197 = vld [vmem:[%s2115 + $0x288] sm:$0xff]
      %v2198 = vld [vmem:[%s2115 + $0x290] sm:$0xff]
      %v2199 = vld [vmem:[%s2115 + $0x298] sm:$0xff]
      %v2200 = vld [vmem:[%s2115 + $0x2a0] sm:$0xff]
      %v2201 = vld [vmem:[%s2115 + $0x2a8] sm:$0xff]
      %v2202 = vld [vmem:[%s2115 + $0x2b0] sm:$0xff]
      %v2203 = vld [vmem:[%s2115 + $0x2b8] sm:$0xff]
      %v2204 = vld [vmem:[%s2115 + $0x2c0] sm:$0xff]
      %v2205 = vld [vmem:[%s2115 + $0x2c8] sm:$0xff]
      %v2206 = vld [vmem:[%s2115 + $0x2d0] sm:$0xff]
      %v2207 = vld [vmem:[%s2115 + $0x2d8] sm:$0xff]
      %v2208 = vld [vmem:[%s2115 + $0x2e0] sm:$0xff]
      %v2209 = vld [vmem:[%s2115 + $0x2e8] sm:$0xff]
      %v2210 = vld [vmem:[%s2115 + $0x2f0] sm:$0xff]
      %v2211 = vld [vmem:[%s2115 + $0x2f8] sm:$0xff]
      %v2212 = vld [vmem:[%s2115 + $0x300] sm:$0xff]
      %v2213 = vld [vmem:[%s2115 + $0x308] sm:$0xff]
      %v2214 = vld [vmem:[%s2115 + $0x310] sm:$0xff]
      %v2215 = vld [vmem:[%s2115 + $0x318] sm:$0xff]
      %v2216 = vld [vmem:[%s2115 + $0x320] sm:$0xff]
      %v2217 = vld [vmem:[%s2115 + $0x328] sm:$0xff]
      %v2218 = vld [vmem:[%s2115 + $0x330] sm:$0xff]
      %v2219 = vld [vmem:[%s2115 + $0x338] sm:$0xff]
      %v2220 = vld [vmem:[%s2115 + $0x340] sm:$0xff]
      %v2221 = vld [vmem:[%s2115 + $0x348] sm:$0xff]
      %v2222 = vld [vmem:[%s2115 + $0x350] sm:$0xff]
      %v2223 = vld [vmem:[%s2115 + $0x358] sm:$0xff]
      %v2224 = vld [vmem:[%s2115 + $0x360] sm:$0xff]
      %v2225 = vld [vmem:[%s2115 + $0x368] sm:$0xff]
      %v2226 = vld [vmem:[%s2115 + $0x370] sm:$0xff]
      %v2227 = vld [vmem:[%s2115 + $0x378] sm:$0xff]
      %v2228 = vld [vmem:[%s2115 + $0x380] sm:$0xff]
      %v2229 = vld [vmem:[%s2115 + $0x388] sm:$0xff]
      %v2230 = vld [vmem:[%s2115 + $0x390] sm:$0xff]
      %v2231 = vld [vmem:[%s2115 + $0x398] sm:$0xff]
      %v2232 = vld [vmem:[%s2115 + $0x3a0] sm:$0xff]
      %v2233 = vld [vmem:[%s2115 + $0x3a8] sm:$0xff]
      %v2234 = vld [vmem:[%s2115 + $0x3b0] sm:$0xff]
      %v2235 = vld [vmem:[%s2115 + $0x3b8] sm:$0xff]
      %v2236 = vld [vmem:[%s2115 + $0x3c0] sm:$0xff]
      %v2237 = vld [vmem:[%s2115 + $0x3c8] sm:$0xff]
      %v2238 = vld [vmem:[%s2115 + $0x3d0] sm:$0xff]
      %v2239 = vld [vmem:[%s2115 + $0x3d8] sm:$0xff]
      %v2240 = vld [vmem:[%s2115 + $0x3e0] sm:$0xff]
      %v2241 = vld [vmem:[%s2115 + $0x3e8] sm:$0xff]
      %v2242 = vld [vmem:[%s2115 + $0x3f0] sm:$0xff]
      %v2243 = vld [vmem:[%s2115 + $0x3f8] sm:$0xff]
      %v2244 = vld [vmem:[%s2115 + $0x400] sm:$0xff]
      %v2245 = vld [vmem:[%s2115 + $0x408] sm:$0xff]
      %v2246 = vld [vmem:[%s2115 + $0x410] sm:$0xff]
      %v2247 = vld [vmem:[%s2115 + $0x418] sm:$0xff]
      %v2248 = vld [vmem:[%s2115 + $0x420] sm:$0xff]
      %v2249 = vld [vmem:[%s2115 + $0x428] sm:$0xff]
      %v2250 = vld [vmem:[%s2115 + $0x430] sm:$0xff]
      %v2251 = vld [vmem:[%s2115 + $0x438] sm:$0xff]
      %v2252 = vld [vmem:[%s2115 + $0x440] sm:$0xff]
      %v2253 = vld [vmem:[%s2115 + $0x448] sm:$0xff]
      %v2254 = vld [vmem:[%s2115 + $0x450] sm:$0xff]
      %v2255 = vld [vmem:[%s2115 + $0x458] sm:$0xff]
      %v2256 = vld [vmem:[%s2115 + $0x460] sm:$0xff]
      %v2257 = vld [vmem:[%s2115 + $0x468] sm:$0xff]
      %v2258 = vld [vmem:[%s2115 + $0x470] sm:$0xff]
      %v2259 = vld [vmem:[%s2115 + $0x478] sm:$0xff]
      %v2260 = vld [vmem:[%s2115 + $0x480] sm:$0xff]
      %v2261 = vld [vmem:[%s2115 + $0x488] sm:$0xff]
      %v2262 = vld [vmem:[%s2115 + $0x490] sm:$0xff]
      %v2263 = vld [vmem:[%s2115 + $0x498] sm:$0xff]
      %v2264 = vld [vmem:[%s2115 + $0x4a0] sm:$0xff]
      %v2265 = vld [vmem:[%s2115 + $0x4a8] sm:$0xff]
      %v2266 = vld [vmem:[%s2115 + $0x4b0] sm:$0xff]
      %v2267 = vld [vmem:[%s2115 + $0x4b8] sm:$0xff]
      %v2268 = vld [vmem:[%s2115 + $0x4c0] sm:$0xff]
      %v2269 = vld [vmem:[%s2115 + $0x4c8] sm:$0xff]
      %v2270 = vld [vmem:[%s2115 + $0x4d0] sm:$0xff]
      %v2271 = vld [vmem:[%s2115 + $0x4d8] sm:$0xff]
      %v2272 = vld [vmem:[%s2115 + $0x4e0] sm:$0xff]
      %v2273 = vld [vmem:[%s2115 + $0x4e8] sm:$0xff]
      %v2274 = vld [vmem:[%s2115 + $0x4f0] sm:$0xff]
      %v2275 = vld [vmem:[%s2115 + $0x4f8] sm:$0xff]
      %v2276 = vld [vmem:[%s2115 + $0x500] sm:$0xff]
      %v2277 = vld [vmem:[%s2115 + $0x508] sm:$0xff]
      %v2278 = vld [vmem:[%s2115 + $0x510] sm:$0xff]
      %v2279 = vld [vmem:[%s2115 + $0x518] sm:$0xff]
      %v2280 = vld [vmem:[%s2115 + $0x520] sm:$0xff]
      %v2281 = vld [vmem:[%s2115 + $0x528] sm:$0xff]
      %v2282 = vld [vmem:[%s2115 + $0x530] sm:$0xff]
      %v2283 = vld [vmem:[%s2115 + $0x538] sm:$0xff]
      %v2284 = vld [vmem:[%s2115 + $0x540] sm:$0xff]
      %v2285 = vld [vmem:[%s2115 + $0x548] sm:$0xff]
      %v2286 = vld [vmem:[%s2115 + $0x550] sm:$0xff]
      %v2287 = vld [vmem:[%s2115 + $0x558] sm:$0xff]
      %v2288 = vld [vmem:[%s2115 + $0x560] sm:$0xff]
      %v2289 = vld [vmem:[%s2115 + $0x568] sm:$0xff]
      %v2290 = vld [vmem:[%s2115 + $0x570] sm:$0xff]
      %v2291 = vld [vmem:[%s2115 + $0x578] sm:$0xff]
      %v2292 = vld [vmem:[%s2115 + $0x580] sm:$0xff]
      %v2293 = vld [vmem:[%s2115 + $0x588] sm:$0xff]
      %v2294 = vld [vmem:[%s2115 + $0x590] sm:$0xff]
      %v2295 = vld [vmem:[%s2115 + $0x598] sm:$0xff]
      %v2296 = vld [vmem:[%s2115 + $0x5a0] sm:$0xff]
      %v2297 = vld [vmem:[%s2115 + $0x5a8] sm:$0xff]
      %v2298 = vld [vmem:[%s2115 + $0x5b0] sm:$0xff]
      %v2299 = vld [vmem:[%s2115 + $0x5b8] sm:$0xff]
      %v2300 = vld [vmem:[%s2115 + $0x5c0] sm:$0xff]
      %v2301 = vld [vmem:[%s2115 + $0x5c8] sm:$0xff]
      %v2302 = vld [vmem:[%s2115 + $0x5d0] sm:$0xff]
      %v2303 = vld [vmem:[%s2115 + $0x5d8] sm:$0xff]
      %v2304 = vld [vmem:[%s2115 + $0x5e0] sm:$0xff]
      %v2305 = vld [vmem:[%s2115 + $0x5e8] sm:$0xff]
      %v2306 = vld [vmem:[%s2115 + $0x5f0] sm:$0xff]
      %v2307 = vld [vmem:[%s2115 + $0x5f8] sm:$0xff]
      %v2308 = vld [vmem:[%s2115 + $0x600] sm:$0xff]
      %v2309 = vld [vmem:[%s2115 + $0x608] sm:$0xff]
      %v2310 = vld [vmem:[%s2115 + $0x610] sm:$0xff]
      %v2311 = vld [vmem:[%s2115 + $0x618] sm:$0xff]
      %v2312 = vld [vmem:[%s2115 + $0x620] sm:$0xff]
      %v2313 = vld [vmem:[%s2115 + $0x628] sm:$0xff]
      %v2314 = vld [vmem:[%s2115 + $0x630] sm:$0xff]
      %v2315 = vld [vmem:[%s2115 + $0x638] sm:$0xff]
      %v2316 = vld [vmem:[%s2115 + $0x640] sm:$0xff]
      %v2317 = vld [vmem:[%s2115 + $0x648] sm:$0xff]
      %v2318 = vld [vmem:[%s2115 + $0x650] sm:$0xff]
      %v2319 = vld [vmem:[%s2115 + $0x658] sm:$0xff]
      %v2320 = vld [vmem:[%s2115 + $0x660] sm:$0xff]
      %v2321 = vld [vmem:[%s2115 + $0x668] sm:$0xff]
      %v2322 = vld [vmem:[%s2115 + $0x670] sm:$0xff]
      %v2323 = vld [vmem:[%s2115 + $0x678] sm:$0xff]
      %v2324 = vld [vmem:[%s2115 + $0x680] sm:$0xff]
      %v2325 = vld [vmem:[%s2115 + $0x688] sm:$0xff]
      %v2326 = vld [vmem:[%s2115 + $0x690] sm:$0xff]
      %v2327 = vld [vmem:[%s2115 + $0x698] sm:$0xff]
      %v2328 = vld [vmem:[%s2115 + $0x6a0] sm:$0xff]
      %v2329 = vld [vmem:[%s2115 + $0x6a8] sm:$0xff]
      %v2330 = vld [vmem:[%s2115 + $0x6b0] sm:$0xff]
      %v2331 = vld [vmem:[%s2115 + $0x6b8] sm:$0xff]
      %v2332 = vld [vmem:[%s2115 + $0x6c0] sm:$0xff]
      %v2333 = vld [vmem:[%s2115 + $0x6c8] sm:$0xff]
      %v2334 = vld [vmem:[%s2115 + $0x6d0] sm:$0xff]
      %v2335 = vld [vmem:[%s2115 + $0x6d8] sm:$0xff]
      %v2336 = vld [vmem:[%s2115 + $0x6e0] sm:$0xff]
      %v2337 = vld [vmem:[%s2115 + $0x6e8] sm:$0xff]
      %v2338 = vld [vmem:[%s2115 + $0x6f0] sm:$0xff]
      %v2339 = vld [vmem:[%s2115 + $0x6f8] sm:$0xff]
      %v2340 = vld [vmem:[%s2115 + $0x700] sm:$0xff]
      %v2341 = vld [vmem:[%s2115 + $0x708] sm:$0xff]
      %v2342 = vld [vmem:[%s2115 + $0x710] sm:$0xff]
      %v2343 = vld [vmem:[%s2115 + $0x718] sm:$0xff]
      %v2344 = vld [vmem:[%s2115 + $0x720] sm:$0xff]
      %v2345 = vld [vmem:[%s2115 + $0x728] sm:$0xff]
      %v2346 = vld [vmem:[%s2115 + $0x730] sm:$0xff]
      %v2347 = vld [vmem:[%s2115 + $0x738] sm:$0xff]
      %v2348 = vld [vmem:[%s2115 + $0x740] sm:$0xff]
      %v2349 = vld [vmem:[%s2115 + $0x748] sm:$0xff]
      %v2350 = vld [vmem:[%s2115 + $0x750] sm:$0xff]
      %v2351 = vld [vmem:[%s2115 + $0x758] sm:$0xff]
      %v2352 = vld [vmem:[%s2115 + $0x760] sm:$0xff]
      %v2353 = vld [vmem:[%s2115 + $0x768] sm:$0xff]
      %v2354 = vld [vmem:[%s2115 + $0x770] sm:$0xff]
      %v2355 = vld [vmem:[%s2115 + $0x778] sm:$0xff]
      %v2356 = vld [vmem:[%s2115 + $0x780] sm:$0xff]
      %v2357 = vld [vmem:[%s2115 + $0x788] sm:$0xff]
      %v2358 = vld [vmem:[%s2115 + $0x790] sm:$0xff]
      %v2359 = vld [vmem:[%s2115 + $0x798] sm:$0xff]
      %v2360 = vld [vmem:[%s2115 + $0x7a0] sm:$0xff]
      %v2361 = vld [vmem:[%s2115 + $0x7a8] sm:$0xff]
      %v2362 = vld [vmem:[%s2115 + $0x7b0] sm:$0xff]
      %v2363 = vld [vmem:[%s2115 + $0x7b8] sm:$0xff]
      %v2364 = vld [vmem:[%s2115 + $0x7c0] sm:$0xff]
      %v2365 = vld [vmem:[%s2115 + $0x7c8] sm:$0xff]
      %v2366 = vld [vmem:[%s2115 + $0x7d0] sm:$0xff]
      %v2367 = vld [vmem:[%s2115 + $0x7d8] sm:$0xff]
      %v2368 = vld [vmem:[%s2115 + $0x7e0] sm:$0xff]
      %v2369 = vld [vmem:[%s2115 + $0x7e8] sm:$0xff]
      %v2370 = vld [vmem:[%s2115 + $0x7f0] sm:$0xff]
      %v2371 = vld [vmem:[%s2115 + $0x7f8] sm:$0xff]
      %s2372 = scalar_lea.vmem %s23, %s261
      %v2373 = vld [vmem:[%s2372] sm:$0x1]
      %v2376 = vlaneseq
      %v2377 = vshrl.u32 %v2376, 7
      %v2378 = vsub.s32 0, %v2377
      %v2379 = vrot.slane %v2112, %v2378
      %v2380 = vlaneseq
      %v2381 = vshrl.u32 %v2380, 7
      %v2382 = vsub.s32 1, %v2381
      %v2383 = vrot.slane %v2112, %v2382
      %v2384 = vlaneseq
      %v2385 = vshrl.u32 %v2384, 7
      %v2386 = vsub.s32 2, %v2385
      %v2387 = vrot.slane %v2112, %v2386
      %v2388 = vlaneseq
      %v2389 = vshrl.u32 %v2388, 7
      %v2390 = vsub.s32 3, %v2389
      %v2391 = vrot.slane %v2112, %v2390
      %v2392 = vlaneseq
      %v2393 = vshrl.u32 %v2392, 7
      %v2394 = vsub.s32 4, %v2393
      %v2395 = vrot.slane %v2112, %v2394
      %v2396 = vlaneseq
      %v2397 = vshrl.u32 %v2396, 7
      %v2398 = vsub.s32 5, %v2397
      %v2399 = vrot.slane %v2112, %v2398
      %v2400 = vlaneseq
      %v2401 = vshrl.u32 %v2400, 7
      %v2402 = vsub.s32 6, %v2401
      %v2403 = vrot.slane %v2112, %v2402
      %v2404 = vlaneseq
      %v2405 = vshrl.u32 %v2404, 7
      %v2406 = vsub.s32 7, %v2405
      %v2407 = vrot.slane %v2112, %v2406
      %v2408 = vlaneseq
      %v2409 = vshrl.u32 %v2408, 7
      %v2410 = vsub.s32 0, %v2409
      %v2411 = vrot.slane %v2113, %v2410
      %v2412 = vlaneseq
      %v2413 = vshrl.u32 %v2412, 7
      %v2414 = vsub.s32 1, %v2413
      %v2415 = vrot.slane %v2113, %v2414
      %v2416 = vlaneseq
      %v2417 = vshrl.u32 %v2416, 7
      %v2418 = vsub.s32 2, %v2417
      %v2419 = vrot.slane %v2113, %v2418
      %v2420 = vlaneseq
      %v2421 = vshrl.u32 %v2420, 7
      %v2422 = vsub.s32 3, %v2421
      %v2423 = vrot.slane %v2113, %v2422
      %v2424 = vlaneseq
      %v2425 = vshrl.u32 %v2424, 7
      %v2426 = vsub.s32 4, %v2425
      %v2427 = vrot.slane %v2113, %v2426
      %v2428 = vlaneseq
      %v2429 = vshrl.u32 %v2428, 7
      %v2430 = vsub.s32 5, %v2429
      %v2431 = vrot.slane %v2113, %v2430
      %v2432 = vlaneseq
      %v2433 = vshrl.u32 %v2432, 7
      %v2434 = vsub.s32 6, %v2433
      %v2435 = vrot.slane %v2113, %v2434
      %v2436 = vlaneseq
      %v2437 = vshrl.u32 %v2436, 7
      %v2438 = vsub.s32 7, %v2437
      %v2439 = vrot.slane %v2113, %v2438
      %v2457 = vsel %vm289, %v2041, 0
      %v2460 = vsel %vm289, %v2042, 0
      %2462 = vmatprep.subr.mxu0 %v2047
      %2463 = vmatpush1.msra.mxu0 %v2046
      %2464 = vmatprep.subr.mxu0 %v2063
      %2465 = vmatpush1.msra.mxu0 %v2062
      %2466 = vmatprep.subr.mxu0 %v2079
      %2467 = vmatpush1.msra.mxu0 %v2078
      %2468 = vmatprep.subr.mxu0 %v2095
      %2469 = vmatpush1.msra.mxu0 %v2094
      %2470 = vmatprep.subr.mxu0 0.0
      %2471 = vmatpush1.msra.mxu0 0.0
      %2472 = vmatprep.subr.mxu0 0.0
      %2473 = vmatpush1.msra.mxu0 0.0
      %2474 = vmatprep.subr.mxu0 0.0
      %2475 = vmatpush1.msra.mxu0 0.0
      %2476 = vmatprep.subr.mxu0 0.0
      %2477 = vmatpush1.msra.mxu0 0.0
      %2478 = vmatprep.subr.mxu0 0.0
      %2479 = vmatpush1.msra.mxu0 0.0
      %2480 = vmatprep.subr.mxu0 0.0
      %2481 = vmatpush1.msra.mxu0 0.0
      %2482 = vmatprep.subr.mxu0 0.0
      %2483 = vmatpush1.msra.mxu0 0.0
      %2484 = vmatprep.subr.mxu0 0.0
      %2485 = vmatpush1.msra.mxu0 0.0
      %2486 = vmatprep.subr.mxu0 0.0
      %2487 = vmatpush1.msra.mxu0 0.0
      %2488 = vmatprep.subr.mxu0 0.0
      %2489 = vmatpush1.msra.mxu0 0.0
      %2490 = vmatprep.subr.mxu0 0.0
      %2491 = vmatpush1.msra.mxu0 0.0
      %2492 = vmatprep.subr.mxu0 0.0
      %2493 = vmatpush1.msra.mxu0 0.0
      %2494 = vmatprep.subr.mxu0 0.0
      %2495 = vmatpush1.msra.mxu0 0.0
      %2496 = vmatprep.subr.mxu0 0.0
      %2497 = vmatpush1.msra.mxu0 0.0
      %2498 = vmatprep.subr.mxu0 0.0
      %2499 = vmatpush1.msra.mxu0 0.0
      %2500 = vmatprep.subr.mxu0 0.0
      %2501 = vmatpush1.msra.mxu0 0.0
      %2502 = vmatprep.subr.mxu0 0.0
      %2503 = vmatpush1.msra.mxu0 0.0
      %2504 = vmatprep.subr.mxu0 0.0
      %2505 = vmatpush1.msra.mxu0 0.0
      %2506 = vmatprep.subr.mxu0 0.0
      %2507 = vmatpush1.msra.mxu0 0.0
      %2508 = vmatprep.subr.mxu0 0.0
      %2509 = vmatpush1.msra.mxu0 0.0
      %2510 = vmatprep.subr.mxu0 0.0
      %2511 = vmatpush1.msra.mxu0 0.0
      %2512 = vmatprep.subr.mxu0 0.0
      %2513 = vmatpush1.msra.mxu0 0.0
      %2514 = vmatprep.subr.mxu0 0.0
      %2515 = vmatpush1.msra.mxu0 0.0
      %2516 = vmatprep.subr.mxu0 0.0
      %2517 = vmatpush1.msra.mxu0 0.0
      %2518 = vmatprep.subr.mxu0 0.0
      %2519 = vmatpush1.msra.mxu0 0.0
      %2520 = vmatprep.subr.mxu0 0.0
      %2521 = vmatpush1.msra.mxu0 0.0
      %2522 = vmatprep.subr.mxu0 0.0
      %2523 = vmatpush1.msra.mxu0 0.0
      %2524 = vmatprep.subr.mxu0 0.0
      %2525 = vmatpush1.msra.mxu0 0.0
      %2526 = vmatprep.mubr.f32.mxu0 0.0
      %2527 = vmatmul.mubr.f32.gmra.mrb[0].mxu0 %v2457
      %v2528 = vpop.f32.mrb[0].mxu0
      %v2529 = vadd.f32 %v2379, %v2528
      %v2530 = vpop.f32.mrb[0].mxu0
      %v2531 = vadd.f32 %v2383, %v2530
      %2532 = vmatprep.mubr.f32.mxu0 0.0
      %2533 = vmatmul.mubr.f32.gmra.mrb[0].mxu0 %v2460
      %v2534 = vpop.f32.mrb[0].mxu0
      %v2535 = vadd.f32 %v2379, %v2534
      %v2536 = vpop.f32.mrb[0].mxu0
      %v2537 = vadd.f32 %v2383, %v2536
      %2538 = vdwg.mxu0
      %2539 = vmatprep.subr.mxu0 %v2049
      %2540 = vmatpush1.msra.mxu0 %v2048
      %2541 = vmatprep.subr.mxu0 %v2065
      %2542 = vmatpush1.msra.mxu0 %v2064
      %2543 = vmatprep.subr.mxu0 %v2081
      %2544 = vmatpush1.msra.mxu0 %v2080
      %2545 = vmatprep.subr.mxu0 %v2097
      %2546 = vmatpush1.msra.mxu0 %v2096
      %2547 = vmatprep.subr.mxu0 0.0
      %2548 = vmatpush1.msra.mxu0 0.0
      %2549 = vmatprep.subr.mxu0 0.0
      %2550 = vmatpush1.msra.mxu0 0.0
      %2551 = vmatprep.subr.mxu0 0.0
      %2552 = vmatpush1.msra.mxu0 0.0
      %2553 = vmatprep.subr.mxu0 0.0
      %2554 = vmatpush1.msra.mxu0 0.0
      %2555 = vmatprep.subr.mxu0 0.0
      %2556 = vmatpush1.msra.mxu0 0.0
      %2557 = vmatprep.subr.mxu0 0.0
      %2558 = vmatpush1.msra.mxu0 0.0
      %2559 = vmatprep.subr.mxu0 0.0
      %2560 = vmatpush1.msra.mxu0 0.0
      %2561 = vmatprep.subr.mxu0 0.0
      %2562 = vmatpush1.msra.mxu0 0.0
      %2563 = vmatprep.subr.mxu0 0.0
      %2564 = vmatpush1.msra.mxu0 0.0
      %2565 = vmatprep.subr.mxu0 0.0
      %2566 = vmatpush1.msra.mxu0 0.0
      %2567 = vmatprep.subr.mxu0 0.0
      %2568 = vmatpush1.msra.mxu0 0.0
      %2569 = vmatprep.subr.mxu0 0.0
      %2570 = vmatpush1.msra.mxu0 0.0
      %2571 = vmatprep.subr.mxu0 0.0
      %2572 = vmatpush1.msra.mxu0 0.0
      %2573 = vmatprep.subr.mxu0 0.0
      %2574 = vmatpush1.msra.mxu0 0.0
      %2575 = vmatprep.subr.mxu0 0.0
      %2576 = vmatpush1.msra.mxu0 0.0
      %2577 = vmatprep.subr.mxu0 0.0
      %2578 = vmatpush1.msra.mxu0 0.0
      %2579 = vmatprep.subr.mxu0 0.0
      %2580 = vmatpush1.msra.mxu0 0.0
      %2581 = vmatprep.subr.mxu0 0.0
      %2582 = vmatpush1.msra.mxu0 0.0
      %2583 = vmatprep.subr.mxu0 0.0
      %2584 = vmatpush1.msra.mxu0 0.0
      %2585 = vmatprep.subr.mxu0 0.0
      %2586 = vmatpush1.msra.mxu0 0.0
      %2587 = vmatprep.subr.mxu0 0.0
      %2588 = vmatpush1.msra.mxu0 0.0
      %2589 = vmatprep.subr.mxu0 0.0
      %2590 = vmatpush1.msra.mxu0 0.0
      %2591 = vmatprep.subr.mxu0 0.0
      %2592 = vmatpush1.msra.mxu0 0.0
      %2593 = vmatprep.subr.mxu0 0.0
      %2594 = vmatpush1.msra.mxu0 0.0
      %2595 = vmatprep.subr.mxu0 0.0
      %2596 = vmatpush1.msra.mxu0 0.0
      %2597 = vmatprep.subr.mxu0 0.0
      %2598 = vmatpush1.msra.mxu0 0.0
      %2599 = vmatprep.subr.mxu0 0.0
      %2600 = vmatpush1.msra.mxu0 0.0
      %2601 = vmatprep.subr.mxu0 0.0
      %2602 = vmatpush1.msra.mxu0 0.0
      %2603 = vmatprep.mubr.f32.mxu0 0.0
      %2604 = vmatmul.mubr.f32.gmra.mrb[0].mxu0 %v2457
      %v2605 = vpop.f32.mrb[0].mxu0
      %v2606 = vadd.f32 %v2387, %v2605
      %v2607 = vpop.f32.mrb[0].mxu0
      %v2608 = vadd.f32 %v2391, %v2607
      %2609 = vmatprep.mubr.f32.mxu0 0.0
      %2610 = vmatmul.mubr.f32.gmra.mrb[0].mxu0 %v2460
      %v2611 = vpop.f32.mrb[0].mxu0
      %v2612 = vadd.f32 %v2387, %v2611
      %v2613 = vpop.f32.mrb[0].mxu0
      %v2614 = vadd.f32 %v2391, %v2613
      %2615 = vdwg.mxu0
      %2616 = vmatprep.subr.mxu0 %v2051
      %2617 = vmatpush1.msra.mxu0 %v2050
      %2618 = vmatprep.subr.mxu0 %v2067
      %2619 = vmatpush1.msra.mxu0 %v2066
      %2620 = vmatprep.subr.mxu0 %v2083
      %2621 = vmatpush1.msra.mxu0 %v2082
      %2622 = vmatprep.subr.mxu0 %v2099
      %2623 = vmatpush1.msra.mxu0 %v2098
      %2624 = vmatprep.subr.mxu0 0.0
      %2625 = vmatpush1.msra.mxu0 0.0
      %2626 = vmatprep.subr.mxu0 0.0
      %2627 = vmatpush1.msra.mxu0 0.0
      %2628 = vmatprep.subr.mxu0 0.0
      %2629 = vmatpush1.msra.mxu0 0.0
      %2630 = vmatprep.subr.mxu0 0.0
      %2631 = vmatpush1.msra.mxu0 0.0
      %2632 = vmatprep.subr.mxu0 0.0
      %2633 = vmatpush1.msra.mxu0 0.0
      %2634 = vmatprep.subr.mxu0 0.0
      %2635 = vmatpush1.msra.mxu0 0.0
      %2636 = vmatprep.subr.mxu0 0.0
      %2637 = vmatpush1.msra.mxu0 0.0
      %2638 = vmatprep.subr.mxu0 0.0
      %2639 = vmatpush1.msra.mxu0 0.0
      %2640 = vmatprep.subr.mxu0 0.0
      %2641 = vmatpush1.msra.mxu0 0.0
      %2642 = vmatprep.subr.mxu0 0.0
      %2643 = vmatpush1.msra.mxu0 0.0
      %2644 = vmatprep.subr.mxu0 0.0
      %2645 = vmatpush1.msra.mxu0 0.0
      %2646 = vmatprep.subr.mxu0 0.0
      %2647 = vmatpush1.msra.mxu0 0.0
      %2648 = vmatprep.subr.mxu0 0.0
      %2649 = vmatpush1.msra.mxu0 0.0
      %2650 = vmatprep.subr.mxu0 0.0
      %2651 = vmatpush1.msra.mxu0 0.0
      %2652 = vmatprep.subr.mxu0 0.0
      %2653 = vmatpush1.msra.mxu0 0.0
      %2654 = vmatprep.subr.mxu0 0.0
      %2655 = vmatpush1.msra.mxu0 0.0
      %2656 = vmatprep.subr.mxu0 0.0
      %2657 = vmatpush1.msra.mxu0 0.0
      %2658 = vmatprep.subr.mxu0 0.0
      %2659 = vmatpush1.msra.mxu0 0.0
      %2660 = vmatprep.subr.mxu0 0.0
      %2661 = vmatpush1.msra.mxu0 0.0
      %2662 = vmatprep.subr.mxu0 0.0
      %2663 = vmatpush1.msra.mxu0 0.0
      %2664 = vmatprep.subr.mxu0 0.0
      %2665 = vmatpush1.msra.mxu0 0.0
      %2666 = vmatprep.subr.mxu0 0.0
      %2667 = vmatpush1.msra.mxu0 0.0
      %2668 = vmatprep.subr.mxu0 0.0
      %2669 = vmatpush1.msra.mxu0 0.0
      %2670 = vmatprep.subr.mxu0 0.0
      %2671 = vmatpush1.msra.mxu0 0.0
      %2672 = vmatprep.subr.mxu0 0.0
      %2673 = vmatpush1.msra.mxu0 0.0
      %2674 = vmatprep.subr.mxu0 0.0
      %2675 = vmatpush1.msra.mxu0 0.0
      %2676 = vmatprep.subr.mxu0 0.0
      %2677 = vmatpush1.msra.mxu0 0.0
      %2678 = vmatprep.subr.mxu0 0.0
      %2679 = vmatpush1.msra.mxu0 0.0
      %2680 = vmatprep.mubr.f32.mxu0 0.0
      %2681 = vmatmul.mubr.f32.gmra.mrb[0].mxu0 %v2457
      %v2682 = vpop.f32.mrb[0].mxu0
      %v2683 = vadd.f32 %v2395, %v2682
      %v2684 = vpop.f32.mrb[0].mxu0
      %v2685 = vadd.f32 %v2399, %v2684
      %2686 = vmatprep.mubr.f32.mxu0 0.0
      %2687 = vmatmul.mubr.f32.gmra.mrb[0].mxu0 %v2460
      %v2688 = vpop.f32.mrb[0].mxu0
      %v2689 = vadd.f32 %v2395, %v2688
      %v2690 = vpop.f32.mrb[0].mxu0
      %v2691 = vadd.f32 %v2399, %v2690
      %2692 = vdwg.mxu0
      %2693 = vmatprep.subr.mxu0 %v2053
      %2694 = vmatpush1.msra.mxu0 %v2052
      %2695 = vmatprep.subr.mxu0 %v2069
      %2696 = vmatpush1.msra.mxu0 %v2068
      %2697 = vmatprep.subr.mxu0 %v2085
      %2698 = vmatpush1.msra.mxu0 %v2084
      %2699 = vmatprep.subr.mxu0 %v2101
      %2700 = vmatpush1.msra.mxu0 %v2100
      %2701 = vmatprep.subr.mxu0 0.0
      %2702 = vmatpush1.msra.mxu0 0.0
      %2703 = vmatprep.subr.mxu0 0.0
      %2704 = vmatpush1.msra.mxu0 0.0
      %2705 = vmatprep.subr.mxu0 0.0
      %2706 = vmatpush1.msra.mxu0 0.0
      %2707 = vmatprep.subr.mxu0 0.0
      %2708 = vmatpush1.msra.mxu0 0.0
      %2709 = vmatprep.subr.mxu0 0.0
      %2710 = vmatpush1.msra.mxu0 0.0
      %2711 = vmatprep.subr.mxu0 0.0
      %2712 = vmatpush1.msra.mxu0 0.0
      %2713 = vmatprep.subr.mxu0 0.0
      %2714 = vmatpush1.msra.mxu0 0.0
      %2715 = vmatprep.subr.mxu0 0.0
      %2716 = vmatpush1.msra.mxu0 0.0
      %2717 = vmatprep.subr.mxu0 0.0
      %2718 = vmatpush1.msra.mxu0 0.0
      %2719 = vmatprep.subr.mxu0 0.0
      %2720 = vmatpush1.msra.mxu0 0.0
      %2721 = vmatprep.subr.mxu0 0.0
      %2722 = vmatpush1.msra.mxu0 0.0
      %2723 = vmatprep.subr.mxu0 0.0
      %2724 = vmatpush1.msra.mxu0 0.0
      %2725 = vmatprep.subr.mxu0 0.0
      %2726 = vmatpush1.msra.mxu0 0.0
      %2727 = vmatprep.subr.mxu0 0.0
      %2728 = vmatpush1.msra.mxu0 0.0
      %2729 = vmatprep.subr.mxu0 0.0
      %2730 = vmatpush1.msra.mxu0 0.0
      %2731 = vmatprep.subr.mxu0 0.0
      %2732 = vmatpush1.msra.mxu0 0.0
      %2733 = vmatprep.subr.mxu0 0.0
      %2734 = vmatpush1.msra.mxu0 0.0
      %2735 = vmatprep.subr.mxu0 0.0
      %2736 = vmatpush1.msra.mxu0 0.0
      %2737 = vmatprep.subr.mxu0 0.0
      %2738 = vmatpush1.msra.mxu0 0.0
      %2739 = vmatprep.subr.mxu0 0.0
      %2740 = vmatpush1.msra.mxu0 0.0
      %2741 = vmatprep.subr.mxu0 0.0
      %2742 = vmatpush1.msra.mxu0 0.0
      %2743 = vmatprep.subr.mxu0 0.0
      %2744 = vmatpush1.msra.mxu0 0.0
      %2745 = vmatprep.subr.mxu0 0.0
      %2746 = vmatpush1.msra.mxu0 0.0
      %2747 = vmatprep.subr.mxu0 0.0
      %2748 = vmatpush1.msra.mxu0 0.0
      %2749 = vmatprep.subr.mxu0 0.0
      %2750 = vmatpush1.msra.mxu0 0.0
      %2751 = vmatprep.subr.mxu0 0.0
      %2752 = vmatpush1.msra.mxu0 0.0
      %2753 = vmatprep.subr.mxu0 0.0
      %2754 = vmatpush1.msra.mxu0 0.0
      %2755 = vmatprep.subr.mxu0 0.0
      %2756 = vmatpush1.msra.mxu0 0.0
      %2757 = vmatprep.mubr.f32.mxu0 0.0
      %2758 = vmatmul.mubr.f32.gmra.mrb[0].mxu0 %v2457
      %v2759 = vpop.f32.mrb[0].mxu0
      %v2760 = vadd.f32 %v2403, %v2759
      %v2761 = vpop.f32.mrb[0].mxu0
      %v2762 = vadd.f32 %v2407, %v2761
      %2763 = vmatprep.mubr.f32.mxu0 0.0
      %2764 = vmatmul.mubr.f32.gmra.mrb[0].mxu0 %v2460
      %v2765 = vpop.f32.mrb[0].mxu0
      %v2766 = vadd.f32 %v2403, %v2765
      %v2767 = vpop.f32.mrb[0].mxu0
      %v2768 = vadd.f32 %v2407, %v2767
      %2769 = vdwg.mxu0
      %2770 = vmatprep.subr.mxu0 %v2055
      %2771 = vmatpush1.msra.mxu0 %v2054
      %2772 = vmatprep.subr.mxu0 %v2071
      %2773 = vmatpush1.msra.mxu0 %v2070
      %2774 = vmatprep.subr.mxu0 %v2087
      %2775 = vmatpush1.msra.mxu0 %v2086
      %2776 = vmatprep.subr.mxu0 %v2103
      %2777 = vmatpush1.msra.mxu0 %v2102
      %2778 = vmatprep.subr.mxu0 0.0
      %2779 = vmatpush1.msra.mxu0 0.0
      %2780 = vmatprep.subr.mxu0 0.0
      %2781 = vmatpush1.msra.mxu0 0.0
      %2782 = vmatprep.subr.mxu0 0.0
      %2783 = vmatpush1.msra.mxu0 0.0
      %2784 = vmatprep.subr.mxu0 0.0
      %2785 = vmatpush1.msra.mxu0 0.0
      %2786 = vmatprep.subr.mxu0 0.0
      %2787 = vmatpush1.msra.mxu0 0.0
      %2788 = vmatprep.subr.mxu0 0.0
      %2789 = vmatpush1.msra.mxu0 0.0
      %2790 = vmatprep.subr.mxu0 0.0
      %2791 = vmatpush1.msra.mxu0 0.0
      %2792 = vmatprep.subr.mxu0 0.0
      %2793 = vmatpush1.msra.mxu0 0.0
      %2794 = vmatprep.subr.mxu0 0.0
      %2795 = vmatpush1.msra.mxu0 0.0
      %2796 = vmatprep.subr.mxu0 0.0
      %2797 = vmatpush1.msra.mxu0 0.0
      %2798 = vmatprep.subr.mxu0 0.0
      %2799 = vmatpush1.msra.mxu0 0.0
      %2800 = vmatprep.subr.mxu0 0.0
      %2801 = vmatpush1.msra.mxu0 0.0
      %2802 = vmatprep.subr.mxu0 0.0
      %2803 = vmatpush1.msra.mxu0 0.0
      %2804 = vmatprep.subr.mxu0 0.0
      %2805 = vmatpush1.msra.mxu0 0.0
      %2806 = vmatprep.subr.mxu0 0.0
      %2807 = vmatpush1.msra.mxu0 0.0
      %2808 = vmatprep.subr.mxu0 0.0
      %2809 = vmatpush1.msra.mxu0 0.0
      %2810 = vmatprep.subr.mxu0 0.0
      %2811 = vmatpush1.msra.mxu0 0.0
      %2812 = vmatprep.subr.mxu0 0.0
      %2813 = vmatpush1.msra.mxu0 0.0
      %2814 = vmatprep.subr.mxu0 0.0
      %2815 = vmatpush1.msra.mxu0 0.0
      %2816 = vmatprep.subr.mxu0 0.0
      %2817 = vmatpush1.msra.mxu0 0.0
      %2818 = vmatprep.subr.mxu0 0.0
      %2819 = vmatpush1.msra.mxu0 0.0
      %2820 = vmatprep.subr.mxu0 0.0
      %2821 = vmatpush1.msra.mxu0 0.0
      %2822 = vmatprep.subr.mxu0 0.0
      %2823 = vmatpush1.msra.mxu0 0.0
      %2824 = vmatprep.subr.mxu0 0.0
      %2825 = vmatpush1.msra.mxu0 0.0
      %2826 = vmatprep.subr.mxu0 0.0
      %2827 = vmatpush1.msra.mxu0 0.0
      %2828 = vmatprep.subr.mxu0 0.0
      %2829 = vmatpush1.msra.mxu0 0.0
      %2830 = vmatprep.subr.mxu0 0.0
      %2831 = vmatpush1.msra.mxu0 0.0
      %2832 = vmatprep.subr.mxu0 0.0
      %2833 = vmatpush1.msra.mxu0 0.0
      %2834 = vmatprep.mubr.f32.mxu0 0.0
      %2835 = vmatmul.mubr.f32.gmra.mrb[0].mxu0 %v2457
      %v2836 = vpop.f32.mrb[0].mxu0
      %v2837 = vadd.f32 %v2411, %v2836
      %v2838 = vpop.f32.mrb[0].mxu0
      %v2839 = vadd.f32 %v2415, %v2838
      %2840 = vmatprep.mubr.f32.mxu0 0.0
      %2841 = vmatmul.mubr.f32.gmra.mrb[0].mxu0 %v2460
      %v2842 = vpop.f32.mrb[0].mxu0
      %v2843 = vadd.f32 %v2411, %v2842
      %v2844 = vpop.f32.mrb[0].mxu0
      %v2845 = vadd.f32 %v2415, %v2844
      %2846 = vdwg.mxu0
      %2847 = vmatprep.subr.mxu0 %v2057
      %2848 = vmatpush1.msra.mxu0 %v2056
      %2849 = vmatprep.subr.mxu0 %v2073
      %2850 = vmatpush1.msra.mxu0 %v2072
      %2851 = vmatprep.subr.mxu0 %v2089
      %2852 = vmatpush1.msra.mxu0 %v2088
      %2853 = vmatprep.subr.mxu0 %v2105
      %2854 = vmatpush1.msra.mxu0 %v2104
      %2855 = vmatprep.subr.mxu0 0.0
      %2856 = vmatpush1.msra.mxu0 0.0
      %2857 = vmatprep.subr.mxu0 0.0
      %2858 = vmatpush1.msra.mxu0 0.0
      %2859 = vmatprep.subr.mxu0 0.0
      %2860 = vmatpush1.msra.mxu0 0.0
      %2861 = vmatprep.subr.mxu0 0.0
      %2862 = vmatpush1.msra.mxu0 0.0
      %2863 = vmatprep.subr.mxu0 0.0
      %2864 = vmatpush1.msra.mxu0 0.0
      %2865 = vmatprep.subr.mxu0 0.0
      %2866 = vmatpush1.msra.mxu0 0.0
      %2867 = vmatprep.subr.mxu0 0.0
      %2868 = vmatpush1.msra.mxu0 0.0
      %2869 = vmatprep.subr.mxu0 0.0
      %2870 = vmatpush1.msra.mxu0 0.0
      %2871 = vmatprep.subr.mxu0 0.0
      %2872 = vmatpush1.msra.mxu0 0.0
      %2873 = vmatprep.subr.mxu0 0.0
      %2874 = vmatpush1.msra.mxu0 0.0
      %2875 = vmatprep.subr.mxu0 0.0
      %2876 = vmatpush1.msra.mxu0 0.0
      %2877 = vmatprep.subr.mxu0 0.0
      %2878 = vmatpush1.msra.mxu0 0.0
      %2879 = vmatprep.subr.mxu0 0.0
      %2880 = vmatpush1.msra.mxu0 0.0
      %2881 = vmatprep.subr.mxu0 0.0
      %2882 = vmatpush1.msra.mxu0 0.0
      %2883 = vmatprep.subr.mxu0 0.0
      %2884 = vmatpush1.msra.mxu0 0.0
      %2885 = vmatprep.subr.mxu0 0.0
      %2886 = vmatpush1.msra.mxu0 0.0
      %2887 = vmatprep.subr.mxu0 0.0
      %2888 = vmatpush1.msra.mxu0 0.0
      %2889 = vmatprep.subr.mxu0 0.0
      %2890 = vmatpush1.msra.mxu0 0.0
      %2891 = vmatprep.subr.mxu0 0.0
      %2892 = vmatpush1.msra.mxu0 0.0
      %2893 = vmatprep.subr.mxu0 0.0
      %2894 = vmatpush1.msra.mxu0 0.0
      %2895 = vmatprep.subr.mxu0 0.0
      %2896 = vmatpush1.msra.mxu0 0.0
      %2897 = vmatprep.subr.mxu0 0.0
      %2898 = vmatpush1.msra.mxu0 0.0
      %2899 = vmatprep.subr.mxu0 0.0
      %2900 = vmatpush1.msra.mxu0 0.0
      %2901 = vmatprep.subr.mxu0 0.0
      %2902 = vmatpush1.msra.mxu0 0.0
      %2903 = vmatprep.subr.mxu0 0.0
      %2904 = vmatpush1.msra.mxu0 0.0
      %2905 = vmatprep.subr.mxu0 0.0
      %2906 = vmatpush1.msra.mxu0 0.0
      %2907 = vmatprep.subr.mxu0 0.0
      %2908 = vmatpush1.msra.mxu0 0.0
      %2909 = vmatprep.subr.mxu0 0.0
      %2910 = vmatpush1.msra.mxu0 0.0
      %2911 = vmatprep.mubr.f32.mxu0 0.0
      %2912 = vmatmul.mubr.f32.gmra.mrb[0].mxu0 %v2457
      %v2913 = vpop.f32.mrb[0].mxu0
      %v2914 = vadd.f32 %v2419, %v2913
      %v2915 = vpop.f32.mrb[0].mxu0
      %v2916 = vadd.f32 %v2423, %v2915
      %2917 = vmatprep.mubr.f32.mxu0 0.0
      %2918 = vmatmul.mubr.f32.gmra.mrb[0].mxu0 %v2460
      %v2919 = vpop.f32.mrb[0].mxu0
      %v2920 = vadd.f32 %v2419, %v2919
      %v2921 = vpop.f32.mrb[0].mxu0
      %v2922 = vadd.f32 %v2423, %v2921
      %2923 = vdwg.mxu0
      %2924 = vmatprep.subr.mxu0 %v2059
      %2925 = vmatpush1.msra.mxu0 %v2058
      %2926 = vmatprep.subr.mxu0 %v2075
      %2927 = vmatpush1.msra.mxu0 %v2074
      %2928 = vmatprep.subr.mxu0 %v2091
      %2929 = vmatpush1.msra.mxu0 %v2090
      %2930 = vmatprep.subr.mxu0 %v2107
      %2931 = vmatpush1.msra.mxu0 %v2106
      %2932 = vmatprep.subr.mxu0 0.0
      %2933 = vmatpush1.msra.mxu0 0.0
      %2934 = vmatprep.subr.mxu0 0.0
      %2935 = vmatpush1.msra.mxu0 0.0
      %2936 = vmatprep.subr.mxu0 0.0
      %2937 = vmatpush1.msra.mxu0 0.0
      %2938 = vmatprep.subr.mxu0 0.0
      %2939 = vmatpush1.msra.mxu0 0.0
      %2940 = vmatprep.subr.mxu0 0.0
      %2941 = vmatpush1.msra.mxu0 0.0
      %2942 = vmatprep.subr.mxu0 0.0
      %2943 = vmatpush1.msra.mxu0 0.0
      %2944 = vmatprep.subr.mxu0 0.0
      %2945 = vmatpush1.msra.mxu0 0.0
      %2946 = vmatprep.subr.mxu0 0.0
      %2947 = vmatpush1.msra.mxu0 0.0
      %2948 = vmatprep.subr.mxu0 0.0
      %2949 = vmatpush1.msra.mxu0 0.0
      %2950 = vmatprep.subr.mxu0 0.0
      %2951 = vmatpush1.msra.mxu0 0.0
      %2952 = vmatprep.subr.mxu0 0.0
      %2953 = vmatpush1.msra.mxu0 0.0
      %2954 = vmatprep.subr.mxu0 0.0
      %2955 = vmatpush1.msra.mxu0 0.0
      %2956 = vmatprep.subr.mxu0 0.0
      %2957 = vmatpush1.msra.mxu0 0.0
      %2958 = vmatprep.subr.mxu0 0.0
      %2959 = vmatpush1.msra.mxu0 0.0
      %2960 = vmatprep.subr.mxu0 0.0
      %2961 = vmatpush1.msra.mxu0 0.0
      %2962 = vmatprep.subr.mxu0 0.0
      %2963 = vmatpush1.msra.mxu0 0.0
      %2964 = vmatprep.subr.mxu0 0.0
      %2965 = vmatpush1.msra.mxu0 0.0
      %2966 = vmatprep.subr.mxu0 0.0
      %2967 = vmatpush1.msra.mxu0 0.0
      %2968 = vmatprep.subr.mxu0 0.0
      %2969 = vmatpush1.msra.mxu0 0.0
      %2970 = vmatprep.subr.mxu0 0.0
      %2971 = vmatpush1.msra.mxu0 0.0
      %2972 = vmatprep.subr.mxu0 0.0
      %2973 = vmatpush1.msra.mxu0 0.0
      %2974 = vmatprep.subr.mxu0 0.0
      %2975 = vmatpush1.msra.mxu0 0.0
      %2976 = vmatprep.subr.mxu0 0.0
      %2977 = vmatpush1.msra.mxu0 0.0
      %2978 = vmatprep.subr.mxu0 0.0
      %2979 = vmatpush1.msra.mxu0 0.0
      %2980 = vmatprep.subr.mxu0 0.0
      %2981 = vmatpush1.msra.mxu0 0.0
      %2982 = vmatprep.subr.mxu0 0.0
      %2983 = vmatpush1.msra.mxu0 0.0
      %2984 = vmatprep.subr.mxu0 0.0
      %2985 = vmatpush1.msra.mxu0 0.0
      %2986 = vmatprep.subr.mxu0 0.0
      %2987 = vmatpush1.msra.mxu0 0.0
      %2988 = vmatprep.mubr.f32.mxu0 0.0
      %2989 = vmatmul.mubr.f32.gmra.mrb[0].mxu0 %v2457
      %v2990 = vpop.f32.mrb[0].mxu0
      %v2991 = vadd.f32 %v2427, %v2990
      %v2992 = vpop.f32.mrb[0].mxu0
      %v2993 = vadd.f32 %v2431, %v2992
      %2994 = vmatprep.mubr.f32.mxu0 0.0
      %2995 = vmatmul.mubr.f32.gmra.mrb[0].mxu0 %v2460
      %v2996 = vpop.f32.mrb[0].mxu0
      %v2997 = vadd.f32 %v2427, %v2996
      %v2998 = vpop.f32.mrb[0].mxu0
      %v2999 = vadd.f32 %v2431, %v2998
      %3000 = vdwg.mxu0
      %3001 = vmatprep.subr.mxu0 %v2061
      %3002 = vmatpush1.msra.mxu0 %v2060
      %3003 = vmatprep.subr.mxu0 %v2077
      %3004 = vmatpush1.msra.mxu0 %v2076
      %3005 = vmatprep.subr.mxu0 %v2093
      %3006 = vmatpush1.msra.mxu0 %v2092
      %3007 = vmatprep.subr.mxu0 %v2109
      %3008 = vmatpush1.msra.mxu0 %v2108
      %3009 = vmatprep.subr.mxu0 0.0
      %3010 = vmatpush1.msra.mxu0 0.0
      %3011 = vmatprep.subr.mxu0 0.0
      %3012 = vmatpush1.msra.mxu0 0.0
      %3013 = vmatprep.subr.mxu0 0.0
      %3014 = vmatpush1.msra.mxu0 0.0
      %3015 = vmatprep.subr.mxu0 0.0
      %3016 = vmatpush1.msra.mxu0 0.0
      %3017 = vmatprep.subr.mxu0 0.0
      %3018 = vmatpush1.msra.mxu0 0.0
      %3019 = vmatprep.subr.mxu0 0.0
      %3020 = vmatpush1.msra.mxu0 0.0
      %3021 = vmatprep.subr.mxu0 0.0
      %3022 = vmatpush1.msra.mxu0 0.0
      %3023 = vmatprep.subr.mxu0 0.0
      %3024 = vmatpush1.msra.mxu0 0.0
      %3025 = vmatprep.subr.mxu0 0.0
      %3026 = vmatpush1.msra.mxu0 0.0
      %3027 = vmatprep.subr.mxu0 0.0
      %3028 = vmatpush1.msra.mxu0 0.0
      %3029 = vmatprep.subr.mxu0 0.0
      %3030 = vmatpush1.msra.mxu0 0.0
      %3031 = vmatprep.subr.mxu0 0.0
      %3032 = vmatpush1.msra.mxu0 0.0
      %3033 = vmatprep.subr.mxu0 0.0
      %3034 = vmatpush1.msra.mxu0 0.0
      %3035 = vmatprep.subr.mxu0 0.0
      %3036 = vmatpush1.msra.mxu0 0.0
      %3037 = vmatprep.subr.mxu0 0.0
      %3038 = vmatpush1.msra.mxu0 0.0
      %3039 = vmatprep.subr.mxu0 0.0
      %3040 = vmatpush1.msra.mxu0 0.0
      %3041 = vmatprep.subr.mxu0 0.0
      %3042 = vmatpush1.msra.mxu0 0.0
      %3043 = vmatprep.subr.mxu0 0.0
      %3044 = vmatpush1.msra.mxu0 0.0
      %3045 = vmatprep.subr.mxu0 0.0
      %3046 = vmatpush1.msra.mxu0 0.0
      %3047 = vmatprep.subr.mxu0 0.0
      %3048 = vmatpush1.msra.mxu0 0.0
      %3049 = vmatprep.subr.mxu0 0.0
      %3050 = vmatpush1.msra.mxu0 0.0
      %3051 = vmatprep.subr.mxu0 0.0
      %3052 = vmatpush1.msra.mxu0 0.0
      %3053 = vmatprep.subr.mxu0 0.0
      %3054 = vmatpush1.msra.mxu0 0.0
      %3055 = vmatprep.subr.mxu0 0.0
      %3056 = vmatpush1.msra.mxu0 0.0
      %3057 = vmatprep.subr.mxu0 0.0
      %3058 = vmatpush1.msra.mxu0 0.0
      %3059 = vmatprep.subr.mxu0 0.0
      %3060 = vmatpush1.msra.mxu0 0.0
      %3061 = vmatprep.subr.mxu0 0.0
      %3062 = vmatpush1.msra.mxu0 0.0
      %3063 = vmatprep.subr.mxu0 0.0
      %3064 = vmatpush1.msra.mxu0 0.0
      %3065 = vmatprep.mubr.f32.mxu0 0.0
      %3066 = vmatmul.mubr.f32.gmra.mrb[0].mxu0 %v2457
      %v3067 = vpop.f32.mrb[0].mxu0
      %v3068 = vadd.f32 %v2435, %v3067
      %v3069 = vpop.f32.mrb[0].mxu0
      %v3070 = vadd.f32 %v2439, %v3069
      %3071 = vmatprep.mubr.f32.mxu0 0.0
      %3072 = vmatmul.mubr.f32.gmra.mrb[0].mxu0 %v2460
      %v3073 = vpop.f32.mrb[0].mxu0
      %v3074 = vadd.f32 %v2435, %v3073
      %v3075 = vpop.f32.mrb[0].mxu0
      %v3076 = vadd.f32 %v2439, %v3075
      %3077 = vdwg.mxu0
      %v3078 = vmax.f32 %v2529, 0.0
      %v3079 = vmax.f32 %v2531, 0.0
      %v3080 = vmax.f32 %v2606, 0.0
      %v3081 = vmax.f32 %v2608, 0.0
      %v3082 = vmax.f32 %v2683, 0.0
      %v3083 = vmax.f32 %v2685, 0.0
      %v3084 = vmax.f32 %v2760, 0.0
      %v3085 = vmax.f32 %v2762, 0.0
      %v3086 = vmax.f32 %v2837, 0.0
      %v3087 = vmax.f32 %v2839, 0.0
      %v3088 = vmax.f32 %v2914, 0.0
      %v3089 = vmax.f32 %v2916, 0.0
      %v3090 = vmax.f32 %v2991, 0.0
      %v3091 = vmax.f32 %v2993, 0.0
      %v3092 = vmax.f32 %v3068, 0.0
      %v3093 = vmax.f32 %v3070, 0.0
      %v3094 = vmax.f32 %v2535, 0.0
      %v3095 = vmax.f32 %v2537, 0.0
      %v3096 = vmax.f32 %v2612, 0.0
      %v3097 = vmax.f32 %v2614, 0.0
      %v3098 = vmax.f32 %v2689, 0.0
      %v3099 = vmax.f32 %v2691, 0.0
      %v3100 = vmax.f32 %v2766, 0.0
      %v3101 = vmax.f32 %v2768, 0.0
      %v3102 = vmax.f32 %v2843, 0.0
      %v3103 = vmax.f32 %v2845, 0.0
      %v3104 = vmax.f32 %v2920, 0.0
      %v3105 = vmax.f32 %v2922, 0.0
      %v3106 = vmax.f32 %v2997, 0.0
      %v3107 = vmax.f32 %v2999, 0.0
      %v3108 = vmax.f32 %v3074, 0.0
      %v3109 = vmax.f32 %v3076, 0.0
      %v3111 = vlaneseq
      %v3112 = vshrl.u32 %v3111, 7
      %v3113 = vsub.s32 0, %v3112
      %v3114 = vrot.slane %v2373, %v3113
      %3116 = vmatprep.subr.mxu0 0.0
      %3117 = vmatpush1.msra.mxu0 %v2116
      %3118 = vmatprep.subr.mxu0 0.0
      %3119 = vmatpush1.msra.mxu0 %v2117
      %3120 = vmatprep.subr.mxu0 0.0
      %3121 = vmatpush1.msra.mxu0 %v2118
      %3122 = vmatprep.subr.mxu0 0.0
      %3123 = vmatpush1.msra.mxu0 %v2119
      %3124 = vmatprep.subr.mxu0 0.0
      %3125 = vmatpush1.msra.mxu0 %v2120
      %3126 = vmatprep.subr.mxu0 0.0
      %3127 = vmatpush1.msra.mxu0 %v2121
      %3128 = vmatprep.subr.mxu0 0.0
      %3129 = vmatpush1.msra.mxu0 %v2122
      %3130 = vmatprep.subr.mxu0 0.0
      %3131 = vmatpush1.msra.mxu0 %v2123
      %3132 = vmatprep.subr.mxu0 0.0
      %3133 = vmatpush1.msra.mxu0 %v2124
      %3134 = vmatprep.subr.mxu0 0.0
      %3135 = vmatpush1.msra.mxu0 %v2125
      %3136 = vmatprep.subr.mxu0 0.0
      %3137 = vmatpush1.msra.mxu0 %v2126
      %3138 = vmatprep.subr.mxu0 0.0
      %3139 = vmatpush1.msra.mxu0 %v2127
      %3140 = vmatprep.subr.mxu0 0.0
      %3141 = vmatpush1.msra.mxu0 %v2128
      %3142 = vmatprep.subr.mxu0 0.0
      %3143 = vmatpush1.msra.mxu0 %v2129
      %3144 = vmatprep.subr.mxu0 0.0
      %3145 = vmatpush1.msra.mxu0 %v2130
      %3146 = vmatprep.subr.mxu0 0.0
      %3147 = vmatpush1.msra.mxu0 %v2131
      %3148 = vmatprep.subr.mxu0 0.0
      %3149 = vmatpush1.msra.mxu0 %v2132
      %3150 = vmatprep.subr.mxu0 0.0
      %3151 = vmatpush1.msra.mxu0 %v2133
      %3152 = vmatprep.subr.mxu0 0.0
      %3153 = vmatpush1.msra.mxu0 %v2134
      %3154 = vmatprep.subr.mxu0 0.0
      %3155 = vmatpush1.msra.mxu0 %v2135
      %3156 = vmatprep.subr.mxu0 0.0
      %3157 = vmatpush1.msra.mxu0 %v2136
      %3158 = vmatprep.subr.mxu0 0.0
      %3159 = vmatpush1.msra.mxu0 %v2137
      %3160 = vmatprep.subr.mxu0 0.0
      %3161 = vmatpush1.msra.mxu0 %v2138
      %3162 = vmatprep.subr.mxu0 0.0
      %3163 = vmatpush1.msra.mxu0 %v2139
      %3164 = vmatprep.subr.mxu0 0.0
      %3165 = vmatpush1.msra.mxu0 %v2140
      %3166 = vmatprep.subr.mxu0 0.0
      %3167 = vmatpush1.msra.mxu0 %v2141
      %3168 = vmatprep.subr.mxu0 0.0
      %3169 = vmatpush1.msra.mxu0 %v2142
      %3170 = vmatprep.subr.mxu0 0.0
      %3171 = vmatpush1.msra.mxu0 %v2143
      %3172 = vmatprep.subr.mxu0 0.0
      %3173 = vmatpush1.msra.mxu0 %v2144
      %3174 = vmatprep.subr.mxu0 0.0
      %3175 = vmatpush1.msra.mxu0 %v2145
      %3176 = vmatprep.subr.mxu0 0.0
      %3177 = vmatpush1.msra.mxu0 %v2146
      %3178 = vmatprep.subr.mxu0 0.0
      %3179 = vmatpush1.msra.mxu0 %v2147
      %3180 = vmatprep.mubr.f32.mxu0 %v3079
      %3181 = vmatmul.mubr.f32.gmra.mrb[0].mxu0 %v3078
      %v3182 = vpop.f32.mrb[0].mxu0
      %v3183 = vadd.f32 %v3114, %v3182
      %v3184 = vpop.f32.mrb[0].mxu0
      %3185 = vmatprep.mubr.f32.mxu0 %v3095
      %3186 = vmatmul.mubr.f32.gmra.mrb[0].mxu0 %v3094
      %v3187 = vpop.f32.mrb[0].mxu0
      %v3188 = vadd.f32 %v3114, %v3187
      %v3189 = vpop.f32.mrb[0].mxu0
      %3190 = vdwg.mxu0
      %3191 = vmatprep.subr.mxu0 0.0
      %3192 = vmatpush1.msra.mxu0 %v2148
      %3193 = vmatprep.subr.mxu0 0.0
      %3194 = vmatpush1.msra.mxu0 %v2149
      %3195 = vmatprep.subr.mxu0 0.0
      %3196 = vmatpush1.msra.mxu0 %v2150
      %3197 = vmatprep.subr.mxu0 0.0
      %3198 = vmatpush1.msra.mxu0 %v2151
      %3199 = vmatprep.subr.mxu0 0.0
      %3200 = vmatpush1.msra.mxu0 %v2152
      %3201 = vmatprep.subr.mxu0 0.0
      %3202 = vmatpush1.msra.mxu0 %v2153
      %3203 = vmatprep.subr.mxu0 0.0
      %3204 = vmatpush1.msra.mxu0 %v2154
      %3205 = vmatprep.subr.mxu0 0.0
      %3206 = vmatpush1.msra.mxu0 %v2155
      %3207 = vmatprep.subr.mxu0 0.0
      %3208 = vmatpush1.msra.mxu0 %v2156
      %3209 = vmatprep.subr.mxu0 0.0
      %3210 = vmatpush1.msra.mxu0 %v2157
      %3211 = vmatprep.subr.mxu0 0.0
      %3212 = vmatpush1.msra.mxu0 %v2158
      %3213 = vmatprep.subr.mxu0 0.0
      %3214 = vmatpush1.msra.mxu0 %v2159
      %3215 = vmatprep.subr.mxu0 0.0
      %3216 = vmatpush1.msra.mxu0 %v2160
      %3217 = vmatprep.subr.mxu0 0.0
      %3218 = vmatpush1.msra.mxu0 %v2161
      %3219 = vmatprep.subr.mxu0 0.0
      %3220 = vmatpush1.msra.mxu0 %v2162
      %3221 = vmatprep.subr.mxu0 0.0
      %3222 = vmatpush1.msra.mxu0 %v2163
      %3223 = vmatprep.subr.mxu0 0.0
      %3224 = vmatpush1.msra.mxu0 %v2164
      %3225 = vmatprep.subr.mxu0 0.0
      %3226 = vmatpush1.msra.mxu0 %v2165
      %3227 = vmatprep.subr.mxu0 0.0
      %3228 = vmatpush1.msra.mxu0 %v2166
      %3229 = vmatprep.subr.mxu0 0.0
      %3230 = vmatpush1.msra.mxu0 %v2167
      %3231 = vmatprep.subr.mxu0 0.0
      %3232 = vmatpush1.msra.mxu0 %v2168
      %3233 = vmatprep.subr.mxu0 0.0
      %3234 = vmatpush1.msra.mxu0 %v2169
      %3235 = vmatprep.subr.mxu0 0.0
      %3236 = vmatpush1.msra.mxu0 %v2170
      %3237 = vmatprep.subr.mxu0 0.0
      %3238 = vmatpush1.msra.mxu0 %v2171
      %3239 = vmatprep.subr.mxu0 0.0
      %3240 = vmatpush1.msra.mxu0 %v2172
      %3241 = vmatprep.subr.mxu0 0.0
      %3242 = vmatpush1.msra.mxu0 %v2173
      %3243 = vmatprep.subr.mxu0 0.0
      %3244 = vmatpush1.msra.mxu0 %v2174
      %3245 = vmatprep.subr.mxu0 0.0
      %3246 = vmatpush1.msra.mxu0 %v2175
      %3247 = vmatprep.subr.mxu0 0.0
      %3248 = vmatpush1.msra.mxu0 %v2176
      %3249 = vmatprep.subr.mxu0 0.0
      %3250 = vmatpush1.msra.mxu0 %v2177
      %3251 = vmatprep.subr.mxu0 0.0
      %3252 = vmatpush1.msra.mxu0 %v2178
      %3253 = vmatprep.subr.mxu0 0.0
      %3254 = vmatpush1.msra.mxu0 %v2179
      %3255 = vmatprep.mubr.f32.mxu0 %v3081
      %3256 = vmatmul.mubr.f32.gmra.mrb[0].mxu0 %v3080
      %v3257 = vpop.f32.mrb[0].mxu0
      %v3258 = vadd.f32 %v3183, %v3257
      %v3259 = vpop.f32.mrb[0].mxu0
      %3260 = vmatprep.mubr.f32.mxu0 %v3097
      %3261 = vmatmul.mubr.f32.gmra.mrb[0].mxu0 %v3096
      %v3262 = vpop.f32.mrb[0].mxu0
      %v3263 = vadd.f32 %v3188, %v3262
      %v3264 = vpop.f32.mrb[0].mxu0
      %3265 = vdwg.mxu0
      %3266 = vmatprep.subr.mxu0 0.0
      %3267 = vmatpush1.msra.mxu0 %v2180
      %3268 = vmatprep.subr.mxu0 0.0
      %3269 = vmatpush1.msra.mxu0 %v2181
      %3270 = vmatprep.subr.mxu0 0.0
      %3271 = vmatpush1.msra.mxu0 %v2182
      %3272 = vmatprep.subr.mxu0 0.0
      %3273 = vmatpush1.msra.mxu0 %v2183
      %3274 = vmatprep.subr.mxu0 0.0
      %3275 = vmatpush1.msra.mxu0 %v2184
      %3276 = vmatprep.subr.mxu0 0.0
      %3277 = vmatpush1.msra.mxu0 %v2185
      %3278 = vmatprep.subr.mxu0 0.0
      %3279 = vmatpush1.msra.mxu0 %v2186
      %3280 = vmatprep.subr.mxu0 0.0
      %3281 = vmatpush1.msra.mxu0 %v2187
      %3282 = vmatprep.subr.mxu0 0.0
      %3283 = vmatpush1.msra.mxu0 %v2188
      %3284 = vmatprep.subr.mxu0 0.0
      %3285 = vmatpush1.msra.mxu0 %v2189
      %3286 = vmatprep.subr.mxu0 0.0
      %3287 = vmatpush1.msra.mxu0 %v2190
      %3288 = vmatprep.subr.mxu0 0.0
      %3289 = vmatpush1.msra.mxu0 %v2191
      %3290 = vmatprep.subr.mxu0 0.0
      %3291 = vmatpush1.msra.mxu0 %v2192
      %3292 = vmatprep.subr.mxu0 0.0
      %3293 = vmatpush1.msra.mxu0 %v2193
      %3294 = vmatprep.subr.mxu0 0.0
      %3295 = vmatpush1.msra.mxu0 %v2194
      %3296 = vmatprep.subr.mxu0 0.0
      %3297 = vmatpush1.msra.mxu0 %v2195
      %3298 = vmatprep.subr.mxu0 0.0
      %3299 = vmatpush1.msra.mxu0 %v2196
      %3300 = vmatprep.subr.mxu0 0.0
      %3301 = vmatpush1.msra.mxu0 %v2197
      %3302 = vmatprep.subr.mxu0 0.0
      %3303 = vmatpush1.msra.mxu0 %v2198
      %3304 = vmatprep.subr.mxu0 0.0
      %3305 = vmatpush1.msra.mxu0 %v2199
      %3306 = vmatprep.subr.mxu0 0.0
      %3307 = vmatpush1.msra.mxu0 %v2200
      %3308 = vmatprep.subr.mxu0 0.0
      %3309 = vmatpush1.msra.mxu0 %v2201
      %3310 = vmatprep.subr.mxu0 0.0
      %3311 = vmatpush1.msra.mxu0 %v2202
      %3312 = vmatprep.subr.mxu0 0.0
      %3313 = vmatpush1.msra.mxu0 %v2203
      %3314 = vmatprep.subr.mxu0 0.0
      %3315 = vmatpush1.msra.mxu0 %v2204
      %3316 = vmatprep.subr.mxu0 0.0
      %3317 = vmatpush1.msra.mxu0 %v2205
      %3318 = vmatprep.subr.mxu0 0.0
      %3319 = vmatpush1.msra.mxu0 %v2206
      %3320 = vmatprep.subr.mxu0 0.0
      %3321 = vmatpush1.msra.mxu0 %v2207
      %3322 = vmatprep.subr.mxu0 0.0
      %3323 = vmatpush1.msra.mxu0 %v2208
      %3324 = vmatprep.subr.mxu0 0.0
      %3325 = vmatpush1.msra.mxu0 %v2209
      %3326 = vmatprep.subr.mxu0 0.0
      %3327 = vmatpush1.msra.mxu0 %v2210
      %3328 = vmatprep.subr.mxu0 0.0
      %3329 = vmatpush1.msra.mxu0 %v2211
      %3330 = vmatprep.mubr.f32.mxu0 %v3083
      %3331 = vmatmul.mubr.f32.gmra.mrb[0].mxu0 %v3082
      %v3332 = vpop.f32.mrb[0].mxu0
      %v3333 = vadd.f32 %v3258, %v3332
      %v3334 = vpop.f32.mrb[0].mxu0
      %3335 = vmatprep.mubr.f32.mxu0 %v3099
      %3336 = vmatmul.mubr.f32.gmra.mrb[0].mxu0 %v3098
      %v3337 = vpop.f32.mrb[0].mxu0
      %v3338 = vadd.f32 %v3263, %v3337
      %v3339 = vpop.f32.mrb[0].mxu0
      %3340 = vdwg.mxu0
      %3341 = vmatprep.subr.mxu0 0.0
      %3342 = vmatpush1.msra.mxu0 %v2212
      %3343 = vmatprep.subr.mxu0 0.0
      %3344 = vmatpush1.msra.mxu0 %v2213
      %3345 = vmatprep.subr.mxu0 0.0
      %3346 = vmatpush1.msra.mxu0 %v2214
      %3347 = vmatprep.subr.mxu0 0.0
      %3348 = vmatpush1.msra.mxu0 %v2215
      %3349 = vmatprep.subr.mxu0 0.0
      %3350 = vmatpush1.msra.mxu0 %v2216
      %3351 = vmatprep.subr.mxu0 0.0
      %3352 = vmatpush1.msra.mxu0 %v2217
      %3353 = vmatprep.subr.mxu0 0.0
      %3354 = vmatpush1.msra.mxu0 %v2218
      %3355 = vmatprep.subr.mxu0 0.0
      %3356 = vmatpush1.msra.mxu0 %v2219
      %3357 = vmatprep.subr.mxu0 0.0
      %3358 = vmatpush1.msra.mxu0 %v2220
      %3359 = vmatprep.subr.mxu0 0.0
      %3360 = vmatpush1.msra.mxu0 %v2221
      %3361 = vmatprep.subr.mxu0 0.0
      %3362 = vmatpush1.msra.mxu0 %v2222
      %3363 = vmatprep.subr.mxu0 0.0
      %3364 = vmatpush1.msra.mxu0 %v2223
      %3365 = vmatprep.subr.mxu0 0.0
      %3366 = vmatpush1.msra.mxu0 %v2224
      %3367 = vmatprep.subr.mxu0 0.0
      %3368 = vmatpush1.msra.mxu0 %v2225
      %3369 = vmatprep.subr.mxu0 0.0
      %3370 = vmatpush1.msra.mxu0 %v2226
      %3371 = vmatprep.subr.mxu0 0.0
      %3372 = vmatpush1.msra.mxu0 %v2227
      %3373 = vmatprep.subr.mxu0 0.0
      %3374 = vmatpush1.msra.mxu0 %v2228
      %3375 = vmatprep.subr.mxu0 0.0
      %3376 = vmatpush1.msra.mxu0 %v2229
      %3377 = vmatprep.subr.mxu0 0.0
      %3378 = vmatpush1.msra.mxu0 %v2230
      %3379 = vmatprep.subr.mxu0 0.0
      %3380 = vmatpush1.msra.mxu0 %v2231
      %3381 = vmatprep.subr.mxu0 0.0
      %3382 = vmatpush1.msra.mxu0 %v2232
      %3383 = vmatprep.subr.mxu0 0.0
      %3384 = vmatpush1.msra.mxu0 %v2233
      %3385 = vmatprep.subr.mxu0 0.0
      %3386 = vmatpush1.msra.mxu0 %v2234
      %3387 = vmatprep.subr.mxu0 0.0
      %3388 = vmatpush1.msra.mxu0 %v2235
      %3389 = vmatprep.subr.mxu0 0.0
      %3390 = vmatpush1.msra.mxu0 %v2236
      %3391 = vmatprep.subr.mxu0 0.0
      %3392 = vmatpush1.msra.mxu0 %v2237
      %3393 = vmatprep.subr.mxu0 0.0
      %3394 = vmatpush1.msra.mxu0 %v2238
      %3395 = vmatprep.subr.mxu0 0.0
      %3396 = vmatpush1.msra.mxu0 %v2239
      %3397 = vmatprep.subr.mxu0 0.0
      %3398 = vmatpush1.msra.mxu0 %v2240
      %3399 = vmatprep.subr.mxu0 0.0
      %3400 = vmatpush1.msra.mxu0 %v2241
      %3401 = vmatprep.subr.mxu0 0.0
      %3402 = vmatpush1.msra.mxu0 %v2242
      %3403 = vmatprep.subr.mxu0 0.0
      %3404 = vmatpush1.msra.mxu0 %v2243
      %3405 = vmatprep.mubr.f32.mxu0 %v3085
      %3406 = vmatmul.mubr.f32.gmra.mrb[0].mxu0 %v3084
      %v3407 = vpop.f32.mrb[0].mxu0
      %v3408 = vadd.f32 %v3333, %v3407
      %v3409 = vpop.f32.mrb[0].mxu0
      %3410 = vmatprep.mubr.f32.mxu0 %v3101
      %3411 = vmatmul.mubr.f32.gmra.mrb[0].mxu0 %v3100
      %v3412 = vpop.f32.mrb[0].mxu0
      %v3413 = vadd.f32 %v3338, %v3412
      %v3414 = vpop.f32.mrb[0].mxu0
      %3415 = vdwg.mxu0
      %3416 = vmatprep.subr.mxu0 0.0
      %3417 = vmatpush1.msra.mxu0 %v2244
      %3418 = vmatprep.subr.mxu0 0.0
      %3419 = vmatpush1.msra.mxu0 %v2245
      %3420 = vmatprep.subr.mxu0 0.0
      %3421 = vmatpush1.msra.mxu0 %v2246
      %3422 = vmatprep.subr.mxu0 0.0
      %3423 = vmatpush1.msra.mxu0 %v2247
      %3424 = vmatprep.subr.mxu0 0.0
      %3425 = vmatpush1.msra.mxu0 %v2248
      %3426 = vmatprep.subr.mxu0 0.0
      %3427 = vmatpush1.msra.mxu0 %v2249
      %3428 = vmatprep.subr.mxu0 0.0
      %3429 = vmatpush1.msra.mxu0 %v2250
      %3430 = vmatprep.subr.mxu0 0.0
      %3431 = vmatpush1.msra.mxu0 %v2251
      %3432 = vmatprep.subr.mxu0 0.0
      %3433 = vmatpush1.msra.mxu0 %v2252
      %3434 = vmatprep.subr.mxu0 0.0
      %3435 = vmatpush1.msra.mxu0 %v2253
      %3436 = vmatprep.subr.mxu0 0.0
      %3437 = vmatpush1.msra.mxu0 %v2254
      %3438 = vmatprep.subr.mxu0 0.0
      %3439 = vmatpush1.msra.mxu0 %v2255
      %3440 = vmatprep.subr.mxu0 0.0
      %3441 = vmatpush1.msra.mxu0 %v2256
      %3442 = vmatprep.subr.mxu0 0.0
      %3443 = vmatpush1.msra.mxu0 %v2257
      %3444 = vmatprep.subr.mxu0 0.0
      %3445 = vmatpush1.msra.mxu0 %v2258
      %3446 = vmatprep.subr.mxu0 0.0
      %3447 = vmatpush1.msra.mxu0 %v2259
      %3448 = vmatprep.subr.mxu0 0.0
      %3449 = vmatpush1.msra.mxu0 %v2260
      %3450 = vmatprep.subr.mxu0 0.0
      %3451 = vmatpush1.msra.mxu0 %v2261
      %3452 = vmatprep.subr.mxu0 0.0
      %3453 = vmatpush1.msra.mxu0 %v2262
      %3454 = vmatprep.subr.mxu0 0.0
      %3455 = vmatpush1.msra.mxu0 %v2263
      %3456 = vmatprep.subr.mxu0 0.0
      %3457 = vmatpush1.msra.mxu0 %v2264
      %3458 = vmatprep.subr.mxu0 0.0
      %3459 = vmatpush1.msra.mxu0 %v2265
      %3460 = vmatprep.subr.mxu0 0.0
      %3461 = vmatpush1.msra.mxu0 %v2266
      %3462 = vmatprep.subr.mxu0 0.0
      %3463 = vmatpush1.msra.mxu0 %v2267
      %3464 = vmatprep.subr.mxu0 0.0
      %3465 = vmatpush1.msra.mxu0 %v2268
      %3466 = vmatprep.subr.mxu0 0.0
      %3467 = vmatpush1.msra.mxu0 %v2269
      %3468 = vmatprep.subr.mxu0 0.0
      %3469 = vmatpush1.msra.mxu0 %v2270
      %3470 = vmatprep.subr.mxu0 0.0
      %3471 = vmatpush1.msra.mxu0 %v2271
      %3472 = vmatprep.subr.mxu0 0.0
      %3473 = vmatpush1.msra.mxu0 %v2272
      %3474 = vmatprep.subr.mxu0 0.0
      %3475 = vmatpush1.msra.mxu0 %v2273
      %3476 = vmatprep.subr.mxu0 0.0
      %3477 = vmatpush1.msra.mxu0 %v2274
      %3478 = vmatprep.subr.mxu0 0.0
      %3479 = vmatpush1.msra.mxu0 %v2275
      %3480 = vmatprep.mubr.f32.mxu0 %v3087
      %3481 = vmatmul.mubr.f32.gmra.mrb[0].mxu0 %v3086
      %v3482 = vpop.f32.mrb[0].mxu0
      %v3483 = vadd.f32 %v3408, %v3482
      %v3484 = vpop.f32.mrb[0].mxu0
      %3485 = vmatprep.mubr.f32.mxu0 %v3103
      %3486 = vmatmul.mubr.f32.gmra.mrb[0].mxu0 %v3102
      %v3487 = vpop.f32.mrb[0].mxu0
      %v3488 = vadd.f32 %v3413, %v3487
      %v3489 = vpop.f32.mrb[0].mxu0
      %3490 = vdwg.mxu0
      %3491 = vmatprep.subr.mxu0 0.0
      %3492 = vmatpush1.msra.mxu0 %v2276
      %3493 = vmatprep.subr.mxu0 0.0
      %3494 = vmatpush1.msra.mxu0 %v2277
      %3495 = vmatprep.subr.mxu0 0.0
      %3496 = vmatpush1.msra.mxu0 %v2278
      %3497 = vmatprep.subr.mxu0 0.0
      %3498 = vmatpush1.msra.mxu0 %v2279
      %3499 = vmatprep.subr.mxu0 0.0
      %3500 = vmatpush1.msra.mxu0 %v2280
      %3501 = vmatprep.subr.mxu0 0.0
      %3502 = vmatpush1.msra.mxu0 %v2281
      %3503 = vmatprep.subr.mxu0 0.0
      %3504 = vmatpush1.msra.mxu0 %v2282
      %3505 = vmatprep.subr.mxu0 0.0
      %3506 = vmatpush1.msra.mxu0 %v2283
      %3507 = vmatprep.subr.mxu0 0.0
      %3508 = vmatpush1.msra.mxu0 %v2284
      %3509 = vmatprep.subr.mxu0 0.0
      %3510 = vmatpush1.msra.mxu0 %v2285
      %3511 = vmatprep.subr.mxu0 0.0
      %3512 = vmatpush1.msra.mxu0 %v2286
      %3513 = vmatprep.subr.mxu0 0.0
      %3514 = vmatpush1.msra.mxu0 %v2287
      %3515 = vmatprep.subr.mxu0 0.0
      %3516 = vmatpush1.msra.mxu0 %v2288
      %3517 = vmatprep.subr.mxu0 0.0
      %3518 = vmatpush1.msra.mxu0 %v2289
      %3519 = vmatprep.subr.mxu0 0.0
      %3520 = vmatpush1.msra.mxu0 %v2290
      %3521 = vmatprep.subr.mxu0 0.0
      %3522 = vmatpush1.msra.mxu0 %v2291
      %3523 = vmatprep.subr.mxu0 0.0
      %3524 = vmatpush1.msra.mxu0 %v2292
      %3525 = vmatprep.subr.mxu0 0.0
      %3526 = vmatpush1.msra.mxu0 %v2293
      %3527 = vmatprep.subr.mxu0 0.0
      %3528 = vmatpush1.msra.mxu0 %v2294
      %3529 = vmatprep.subr.mxu0 0.0
      %3530 = vmatpush1.msra.mxu0 %v2295
      %3531 = vmatprep.subr.mxu0 0.0
      %3532 = vmatpush1.msra.mxu0 %v2296
      %3533 = vmatprep.subr.mxu0 0.0
      %3534 = vmatpush1.msra.mxu0 %v2297
      %3535 = vmatprep.subr.mxu0 0.0
      %3536 = vmatpush1.msra.mxu0 %v2298
      %3537 = vmatprep.subr.mxu0 0.0
      %3538 = vmatpush1.msra.mxu0 %v2299
      %3539 = vmatprep.subr.mxu0 0.0
      %3540 = vmatpush1.msra.mxu0 %v2300
      %3541 = vmatprep.subr.mxu0 0.0
      %3542 = vmatpush1.msra.mxu0 %v2301
      %3543 = vmatprep.subr.mxu0 0.0
      %3544 = vmatpush1.msra.mxu0 %v2302
      %3545 = vmatprep.subr.mxu0 0.0
      %3546 = vmatpush1.msra.mxu0 %v2303
      %3547 = vmatprep.subr.mxu0 0.0
      %3548 = vmatpush1.msra.mxu0 %v2304
      %3549 = vmatprep.subr.mxu0 0.0
      %3550 = vmatpush1.msra.mxu0 %v2305
      %3551 = vmatprep.subr.mxu0 0.0
      %3552 = vmatpush1.msra.mxu0 %v2306
      %3553 = vmatprep.subr.mxu0 0.0
      %3554 = vmatpush1.msra.mxu0 %v2307
      %3555 = vmatprep.mubr.f32.mxu0 %v3089
      %3556 = vmatmul.mubr.f32.gmra.mrb[0].mxu0 %v3088
      %v3557 = vpop.f32.mrb[0].mxu0
      %v3558 = vadd.f32 %v3483, %v3557
      %v3559 = vpop.f32.mrb[0].mxu0
      %3560 = vmatprep.mubr.f32.mxu0 %v3105
      %3561 = vmatmul.mubr.f32.gmra.mrb[0].mxu0 %v3104
      %v3562 = vpop.f32.mrb[0].mxu0
      %v3563 = vadd.f32 %v3488, %v3562
      %v3564 = vpop.f32.mrb[0].mxu0
      %3565 = vdwg.mxu0
      %3566 = vmatprep.subr.mxu0 0.0
      %3567 = vmatpush1.msra.mxu0 %v2308
      %3568 = vmatprep.subr.mxu0 0.0
      %3569 = vmatpush1.msra.mxu0 %v2309
      %3570 = vmatprep.subr.mxu0 0.0
      %3571 = vmatpush1.msra.mxu0 %v2310
      %3572 = vmatprep.subr.mxu0 0.0
      %3573 = vmatpush1.msra.mxu0 %v2311
      %3574 = vmatprep.subr.mxu0 0.0
      %3575 = vmatpush1.msra.mxu0 %v2312
      %3576 = vmatprep.subr.mxu0 0.0
      %3577 = vmatpush1.msra.mxu0 %v2313
      %3578 = vmatprep.subr.mxu0 0.0
      %3579 = vmatpush1.msra.mxu0 %v2314
      %3580 = vmatprep.subr.mxu0 0.0
      %3581 = vmatpush1.msra.mxu0 %v2315
      %3582 = vmatprep.subr.mxu0 0.0
      %3583 = vmatpush1.msra.mxu0 %v2316
      %3584 = vmatprep.subr.mxu0 0.0
      %3585 = vmatpush1.msra.mxu0 %v2317
      %3586 = vmatprep.subr.mxu0 0.0
      %3587 = vmatpush1.msra.mxu0 %v2318
      %3588 = vmatprep.subr.mxu0 0.0
      %3589 = vmatpush1.msra.mxu0 %v2319
      %3590 = vmatprep.subr.mxu0 0.0
      %3591 = vmatpush1.msra.mxu0 %v2320
      %3592 = vmatprep.subr.mxu0 0.0
      %3593 = vmatpush1.msra.mxu0 %v2321
      %3594 = vmatprep.subr.mxu0 0.0
      %3595 = vmatpush1.msra.mxu0 %v2322
      %3596 = vmatprep.subr.mxu0 0.0
      %3597 = vmatpush1.msra.mxu0 %v2323
      %3598 = vmatprep.subr.mxu0 0.0
      %3599 = vmatpush1.msra.mxu0 %v2324
      %3600 = vmatprep.subr.mxu0 0.0
      %3601 = vmatpush1.msra.mxu0 %v2325
      %3602 = vmatprep.subr.mxu0 0.0
      %3603 = vmatpush1.msra.mxu0 %v2326
      %3604 = vmatprep.subr.mxu0 0.0
      %3605 = vmatpush1.msra.mxu0 %v2327
      %3606 = vmatprep.subr.mxu0 0.0
      %3607 = vmatpush1.msra.mxu0 %v2328
      %3608 = vmatprep.subr.mxu0 0.0
      %3609 = vmatpush1.msra.mxu0 %v2329
      %3610 = vmatprep.subr.mxu0 0.0
      %3611 = vmatpush1.msra.mxu0 %v2330
      %3612 = vmatprep.subr.mxu0 0.0
      %3613 = vmatpush1.msra.mxu0 %v2331
      %3614 = vmatprep.subr.mxu0 0.0
      %3615 = vmatpush1.msra.mxu0 %v2332
      %3616 = vmatprep.subr.mxu0 0.0
      %3617 = vmatpush1.msra.mxu0 %v2333
      %3618 = vmatprep.subr.mxu0 0.0
      %3619 = vmatpush1.msra.mxu0 %v2334
      %3620 = vmatprep.subr.mxu0 0.0
      %3621 = vmatpush1.msra.mxu0 %v2335
      %3622 = vmatprep.subr.mxu0 0.0
      %3623 = vmatpush1.msra.mxu0 %v2336
      %3624 = vmatprep.subr.mxu0 0.0
      %3625 = vmatpush1.msra.mxu0 %v2337
      %3626 = vmatprep.subr.mxu0 0.0
      %3627 = vmatpush1.msra.mxu0 %v2338
      %3628 = vmatprep.subr.mxu0 0.0
      %3629 = vmatpush1.msra.mxu0 %v2339
      %3630 = vmatprep.mubr.f32.mxu0 %v3091
      %3631 = vmatmul.mubr.f32.gmra.mrb[0].mxu0 %v3090
      %v3632 = vpop.f32.mrb[0].mxu0
      %v3633 = vadd.f32 %v3558, %v3632
      %v3634 = vpop.f32.mrb[0].mxu0
      %3635 = vmatprep.mubr.f32.mxu0 %v3107
      %3636 = vmatmul.mubr.f32.gmra.mrb[0].mxu0 %v3106
      %v3637 = vpop.f32.mrb[0].mxu0
      %v3638 = vadd.f32 %v3563, %v3637
      %v3639 = vpop.f32.mrb[0].mxu0
      %3640 = vdwg.mxu0
      %3641 = vmatprep.subr.mxu0 0.0
      %3642 = vmatpush1.msra.mxu0 %v2340
      %3643 = vmatprep.subr.mxu0 0.0
      %3644 = vmatpush1.msra.mxu0 %v2341
      %3645 = vmatprep.subr.mxu0 0.0
      %3646 = vmatpush1.msra.mxu0 %v2342
      %3647 = vmatprep.subr.mxu0 0.0
      %3648 = vmatpush1.msra.mxu0 %v2343
      %3649 = vmatprep.subr.mxu0 0.0
      %3650 = vmatpush1.msra.mxu0 %v2344
      %3651 = vmatprep.subr.mxu0 0.0
      %3652 = vmatpush1.msra.mxu0 %v2345
      %3653 = vmatprep.subr.mxu0 0.0
      %3654 = vmatpush1.msra.mxu0 %v2346
      %3655 = vmatprep.subr.mxu0 0.0
      %3656 = vmatpush1.msra.mxu0 %v2347
      %3657 = vmatprep.subr.mxu0 0.0
      %3658 = vmatpush1.msra.mxu0 %v2348
      %3659 = vmatprep.subr.mxu0 0.0
      %3660 = vmatpush1.msra.mxu0 %v2349
      %3661 = vmatprep.subr.mxu0 0.0
      %3662 = vmatpush1.msra.mxu0 %v2350
      %3663 = vmatprep.subr.mxu0 0.0
      %3664 = vmatpush1.msra.mxu0 %v2351
      %3665 = vmatprep.subr.mxu0 0.0
      %3666 = vmatpush1.msra.mxu0 %v2352
      %3667 = vmatprep.subr.mxu0 0.0
      %3668 = vmatpush1.msra.mxu0 %v2353
      %3669 = vmatprep.subr.mxu0 0.0
      %3670 = vmatpush1.msra.mxu0 %v2354
      %3671 = vmatprep.subr.mxu0 0.0
      %3672 = vmatpush1.msra.mxu0 %v2355
      %3673 = vmatprep.subr.mxu0 0.0
      %3674 = vmatpush1.msra.mxu0 %v2356
      %3675 = vmatprep.subr.mxu0 0.0
      %3676 = vmatpush1.msra.mxu0 %v2357
      %3677 = vmatprep.subr.mxu0 0.0
      %3678 = vmatpush1.msra.mxu0 %v2358
      %3679 = vmatprep.subr.mxu0 0.0
      %3680 = vmatpush1.msra.mxu0 %v2359
      %3681 = vmatprep.subr.mxu0 0.0
      %3682 = vmatpush1.msra.mxu0 %v2360
      %3683 = vmatprep.subr.mxu0 0.0
      %3684 = vmatpush1.msra.mxu0 %v2361
      %3685 = vmatprep.subr.mxu0 0.0
      %3686 = vmatpush1.msra.mxu0 %v2362
      %3687 = vmatprep.subr.mxu0 0.0
      %3688 = vmatpush1.msra.mxu0 %v2363
      %3689 = vmatprep.subr.mxu0 0.0
      %3690 = vmatpush1.msra.mxu0 %v2364
      %3691 = vmatprep.subr.mxu0 0.0
      %3692 = vmatpush1.msra.mxu0 %v2365
      %3693 = vmatprep.subr.mxu0 0.0
      %3694 = vmatpush1.msra.mxu0 %v2366
      %3695 = vmatprep.subr.mxu0 0.0
      %3696 = vmatpush1.msra.mxu0 %v2367
      %3697 = vmatprep.subr.mxu0 0.0
      %3698 = vmatpush1.msra.mxu0 %v2368
      %3699 = vmatprep.subr.mxu0 0.0
      %3700 = vmatpush1.msra.mxu0 %v2369
      %3701 = vmatprep.subr.mxu0 0.0
      %3702 = vmatpush1.msra.mxu0 %v2370
      %3703 = vmatprep.subr.mxu0 0.0
      %3704 = vmatpush1.msra.mxu0 %v2371
      %3705 = vmatprep.mubr.f32.mxu0 %v3093
      %3706 = vmatmul.mubr.f32.gmra.mrb[0].mxu0 %v3092
      %v3707 = vpop.f32.mrb[0].mxu0
      %v3708 = vadd.f32 %v3633, %v3707
      %v3709 = vpop.f32.mrb[0].mxu0
      %3710 = vmatprep.mubr.f32.mxu0 %v3109
      %3711 = vmatmul.mubr.f32.gmra.mrb[0].mxu0 %v3108
      %v3712 = vpop.f32.mrb[0].mxu0
      %v3713 = vadd.f32 %v3638, %v3712
      %v3714 = vpop.f32.mrb[0].mxu0
      %3715 = vdwg.mxu0
      %v3716 = vadd.f32 %v2041, %v3708
      %v3717 = vadd.f32 %v2042, %v3713
      %s3718 = scalar_lea.vmem %s25, %s261
      %v3719 = vld [vmem:[%s3718] sm:$0x1]
      %s3720 = scalar_lea.vmem %s27, %s261
      %v3721 = vld [vmem:[%s3720] sm:$0x1]
      %v3722 = vsel %vm289, %v3716, 0.0
      %3723 = vadd.xlane.f32.xlu0 %v3722
      %v3724 = vpop.xlane.xlu0 %3723
      %v3725 = vsel %vm289, %v3717, 0.0
      %3726 = vadd.xlane.f32.xlu0 %v3725
      %v3727 = vpop.xlane.xlu0 %3726
      %v3728 = vmul.f32 %v3724, %v2006
      %v3729 = vmul.f32 %v3727, %v2006
      %v3730 = vsub.f32 %v3716, %v3728
      %v3731 = vsub.f32 %v3717, %v3729
      %v3732 = vmul.f32 %v3730, %v3730
      %v3733 = vmul.f32 %v3731, %v3731
      %v3734 = vsel %vm289, %v3732, 0.0
      %3735 = vadd.xlane.f32.xlu0 %v3734
      %v3736 = vpop.xlane.xlu0 %3735
      %v3737 = vsel %vm289, %v3733, 0.0
      %3738 = vadd.xlane.f32.xlu0 %v3737
      %v3739 = vpop.xlane.xlu0 %3738
      %v3740 = vmul.f32 %v3736, %v2006
      %v3741 = vmul.f32 %v3739, %v2006
      %v3742 = vadd.f32 %v3740, 1e-05
      %v3743 = vadd.f32 %v3741, 1e-05
      %v3744 = vrsqrt.pop %v3742
      %v3745 = vrsqrt.pop %v3743
      %v3746 = vmul.f32 %v3730, %v3744
      %v3747 = vmul.f32 %v3731, %v3745
      %v3749 = vlaneseq
      %v3750 = vshrl.u32 %v3749, 7
      %v3751 = vsub.s32 0, %v3750
      %v3752 = vrot.slane %v3719, %v3751
      %v3754 = vmul.f32 %v3746, %v3752
      %v3755 = vmul.f32 %v3747, %v3752
      %v3757 = vlaneseq
      %v3758 = vshrl.u32 %v3757, 7
      %v3759 = vsub.s32 0, %v3758
      %v3760 = vrot.slane %v3721, %v3759
      %v3762 = vadd.f32 %v3754, %v3760
      %v3763 = vadd.f32 %v3755, %v3760
    $region158: #{chord_network_non_coop.1} parent=1 // loop_footer
      %s265 = sadd.s32 1, %s261
    $region159: #{chord_network_non_coop.1} parent=1 // loop_footer_branch
      %260 = sbr.rel target = $region155
    $region160: #{chord_network_non_coop.1} parent=1 // loop_exit
      _
    %v3764 = vld [vmem:[%s29] sm:$0x1]
    %v3765 = vld [vmem:[%s31] sm:$0x1]
    %vm3766 = vcmask 261120
    %v3767 = vsel %vm3766, %v266, 0.0
    %3768 = vadd.xlane.f32.xlu0 %v3767
    %v3769 = vpop.xlane.xlu0 %3768
    %v3770 = vsel %vm3766, %v267, 0.0
    %3771 = vadd.xlane.f32.xlu0 %v3770
    %v3772 = vpop.xlane.xlu0 %3771
    %v3773 = vrcp.pop 32.0
    %v3774 = vmul.f32 %v3769, %v3773
    %v3775 = vmul.f32 %v3772, %v3773
    %v3776 = vsub.f32 %v266, %v3774
    %v3777 = vsub.f32 %v267, %v3775
    %v3778 = vmul.f32 %v3776, %v3776
    %v3779 = vmul.f32 %v3777, %v3777
    %v3780 = vsel %vm3766, %v3778, 0.0
    %3781 = vadd.xlane.f32.xlu0 %v3780
    %v3782 = vpop.xlane.xlu0 %3781
    %v3783 = vsel %vm3766, %v3779, 0.0
    %3784 = vadd.xlane.f32.xlu0 %v3783
    %v3785 = vpop.xlane.xlu0 %3784
    %v3786 = vmul.f32 %v3782, %v3773
    %v3787 = vmul.f32 %v3785, %v3773
    %v3788 = vadd.f32 %v3786, 1e-05
    %v3789 = vadd.f32 %v3787, 1e-05
    %v3790 = vrsqrt.pop %v3788
    %v3791 = vrsqrt.pop %v3789
    %v3792 = vmul.f32 %v3776, %v3790
    %v3793 = vmul.f32 %v3777, %v3791
    %v3795 = vlaneseq
    %v3796 = vshrl.u32 %v3795, 7
    %v3797 = vsub.s32 0, %v3796
    %v3798 = vrot.slane %v3764, %v3797
    %v3800 = vmul.f32 %v3792, %v3798
    %v3801 = vmul.f32 %v3793, %v3798
    %v3803 = vlaneseq
    %v3804 = vshrl.u32 %v3803, 7
    %v3805 = vsub.s32 0, %v3804
    %v3806 = vrot.slane %v3765, %v3805
    %v3808 = vadd.f32 %v3800, %v3806
    %v3809 = vadd.f32 %v3801, %v3806
    loop: start=0, step=1, limit=6
    $region161: #{chord_network_non_coop.1} parent=1 // loop_pre_header
      _
    $region162: #{chord_network_non_coop.1} parent=1 // loop_header
      %s3811 = sphi 0, %s3815
      %p3812 = scmp.ge.s32.totalorder %s3811, 6
      %v3816 = vphi %v252, %v9086
      %v3817 = vphi %v257, %v9087
    $region163: #{chord_network_non_coop.1} parent=1 // loop_header_branch
      %3814 = sbr.rel (%p3812) target = $region167
    $region164: #{chord_network_non_coop.1} parent=1 // loop_body
      %s3818 = smul.u32 %s3811, 32
      %s3819 = scalar_lea.vmem %s33, %s3818
      %v3820 = vld [vmem:[%s3819] sm:$0xff]
      %v3821 = vld [vmem:[%s3819 + $0x8] sm:$0xff]
      %v3822 = vld [vmem:[%s3819 + $0x10] sm:$0xff]
      %v3823 = vld [vmem:[%s3819 + $0x18] sm:$0xff]
      %s3824 = scalar_lea.vmem %s35, %s3811
      %v3825 = vld [vmem:[%s3824] sm:$0x1]
      %s3826 = scalar_lea.vmem %s37, %s3818
      %v3827 = vld [vmem:[%s3826] sm:$0xff]
      %v3828 = vld [vmem:[%s3826 + $0x8] sm:$0xff]
      %v3829 = vld [vmem:[%s3826 + $0x10] sm:$0xff]
      %v3830 = vld [vmem:[%s3826 + $0x18] sm:$0xff]
      %s3831 = scalar_lea.vmem %s39, %s3811
      %v3832 = vld [vmem:[%s3831] sm:$0x1]
      %v3834 = vlaneseq
      %v3835 = vshrl.u32 %v3834, 7
      %v3836 = vsub.s32 0, %v3835
      %v3837 = vrot.slane %v3825, %v3836
      %v3840 = vsel %vm3766, %v3816, 0
      %v3843 = vsel %vm3766, %v3817, 0
      %3845 = vmatprep.subr.mxu0 0.0
      %3846 = vmatpush1.msra.mxu0 %v3820
      %3847 = vmatprep.subr.mxu0 0.0
      %3848 = vmatpush1.msra.mxu0 %v3821
      %3849 = vmatprep.subr.mxu0 0.0
      %3850 = vmatpush1.msra.mxu0 %v3822
      %3851 = vmatprep.subr.mxu0 0.0
      %3852 = vmatpush1.msra.mxu0 %v3823
      %3853 = vmatprep.subr.mxu0 0.0
      %3854 = vmatpush1.msra.mxu0 0.0
      %3855 = vmatprep.subr.mxu0 0.0
      %3856 = vmatpush1.msra.mxu0 0.0
      %3857 = vmatprep.subr.mxu0 0.0
      %3858 = vmatpush1.msra.mxu0 0.0
      %3859 = vmatprep.subr.mxu0 0.0
      %3860 = vmatpush1.msra.mxu0 0.0
      %3861 = vmatprep.subr.mxu0 0.0
      %3862 = vmatpush1.msra.mxu0 0.0
      %3863 = vmatprep.subr.mxu0 0.0
      %3864 = vmatpush1.msra.mxu0 0.0
      %3865 = vmatprep.subr.mxu0 0.0
      %3866 = vmatpush1.msra.mxu0 0.0
      %3867 = vmatprep.subr.mxu0 0.0
      %3868 = vmatpush1.msra.mxu0 0.0
      %3869 = vmatprep.subr.mxu0 0.0
      %3870 = vmatpush1.msra.mxu0 0.0
      %3871 = vmatprep.subr.mxu0 0.0
      %3872 = vmatpush1.msra.mxu0 0.0
      %3873 = vmatprep.subr.mxu0 0.0
      %3874 = vmatpush1.msra.mxu0 0.0
      %3875 = vmatprep.subr.mxu0 0.0
      %3876 = vmatpush1.msra.mxu0 0.0
      %3877 = vmatprep.subr.mxu0 0.0
      %3878 = vmatpush1.msra.mxu0 0.0
      %3879 = vmatprep.subr.mxu0 0.0
      %3880 = vmatpush1.msra.mxu0 0.0
      %3881 = vmatprep.subr.mxu0 0.0
      %3882 = vmatpush1.msra.mxu0 0.0
      %3883 = vmatprep.subr.mxu0 0.0
      %3884 = vmatpush1.msra.mxu0 0.0
      %3885 = vmatprep.subr.mxu0 0.0
      %3886 = vmatpush1.msra.mxu0 0.0
      %3887 = vmatprep.subr.mxu0 0.0
      %3888 = vmatpush1.msra.mxu0 0.0
      %3889 = vmatprep.subr.mxu0 0.0
      %3890 = vmatpush1.msra.mxu0 0.0
      %3891 = vmatprep.subr.mxu0 0.0
      %3892 = vmatpush1.msra.mxu0 0.0
      %3893 = vmatprep.subr.mxu0 0.0
      %3894 = vmatpush1.msra.mxu0 0.0
      %3895 = vmatprep.subr.mxu0 0.0
      %3896 = vmatpush1.msra.mxu0 0.0
      %3897 = vmatprep.subr.mxu0 0.0
      %3898 = vmatpush1.msra.mxu0 0.0
      %3899 = vmatprep.subr.mxu0 0.0
      %3900 = vmatpush1.msra.mxu0 0.0
      %3901 = vmatprep.subr.mxu0 0.0
      %3902 = vmatpush1.msra.mxu0 0.0
      %3903 = vmatprep.subr.mxu0 0.0
      %3904 = vmatpush1.msra.mxu0 0.0
      %3905 = vmatprep.subr.mxu0 0.0
      %3906 = vmatpush1.msra.mxu0 0.0
      %3907 = vmatprep.subr.mxu0 0.0
      %3908 = vmatpush1.msra.mxu0 0.0
      %3909 = vmatprep.mubr.f32.mxu0 0.0
      %3910 = vmatmul.mubr.f32.gmra.mrb[0].mxu0 %v3840
      %v3911 = vpop.f32.mrb[0].mxu0
      %v3912 = vadd.f32 %v3837, %v3911
      %v3913 = vpop.f32.mrb[0].mxu0
      %3914 = vmatprep.mubr.f32.mxu0 0.0
      %3915 = vmatmul.mubr.f32.gmra.mrb[0].mxu0 %v3843
      %v3916 = vpop.f32.mrb[0].mxu0
      %v3917 = vadd.f32 %v3837, %v3916
      %v3918 = vpop.f32.mrb[0].mxu0
      %3919 = vdwg.mxu0
      %3924 = vrot.lane.b32.xlu0 %v3820, 96
      %v3925 = vpop.permute.xlu0 %3924
      %3926 = vrot.lane.b32.xlu0 %v3821, 96
      %v3927 = vpop.permute.xlu0 %3926
      %3928 = vrot.lane.b32.xlu0 %v3822, 96
      %v3929 = vpop.permute.xlu0 %3928
      %3930 = vrot.lane.b32.xlu0 %v3823, 96
      %v3931 = vpop.permute.xlu0 %3930
      %3936 = vrot.lane.b32.xlu0 %v3837, 96
      %v3937 = vpop.permute.xlu0 %3936
      %3939 = vmatprep.subr.mxu0 0.0
      %3940 = vmatpush1.msra.mxu0 %v3925
      %3941 = vmatprep.subr.mxu0 0.0
      %3942 = vmatpush1.msra.mxu0 %v3927
      %3943 = vmatprep.subr.mxu0 0.0
      %3944 = vmatpush1.msra.mxu0 %v3929
      %3945 = vmatprep.subr.mxu0 0.0
      %3946 = vmatpush1.msra.mxu0 %v3931
      %3947 = vmatprep.subr.mxu0 0.0
      %3948 = vmatpush1.msra.mxu0 0.0
      %3949 = vmatprep.subr.mxu0 0.0
      %3950 = vmatpush1.msra.mxu0 0.0
      %3951 = vmatprep.subr.mxu0 0.0
      %3952 = vmatpush1.msra.mxu0 0.0
      %3953 = vmatprep.subr.mxu0 0.0
      %3954 = vmatpush1.msra.mxu0 0.0
      %3955 = vmatprep.subr.mxu0 0.0
      %3956 = vmatpush1.msra.mxu0 0.0
      %3957 = vmatprep.subr.mxu0 0.0
      %3958 = vmatpush1.msra.mxu0 0.0
      %3959 = vmatprep.subr.mxu0 0.0
      %3960 = vmatpush1.msra.mxu0 0.0
      %3961 = vmatprep.subr.mxu0 0.0
      %3962 = vmatpush1.msra.mxu0 0.0
      %3963 = vmatprep.subr.mxu0 0.0
      %3964 = vmatpush1.msra.mxu0 0.0
      %3965 = vmatprep.subr.mxu0 0.0
      %3966 = vmatpush1.msra.mxu0 0.0
      %3967 = vmatprep.subr.mxu0 0.0
      %3968 = vmatpush1.msra.mxu0 0.0
      %3969 = vmatprep.subr.mxu0 0.0
      %3970 = vmatpush1.msra.mxu0 0.0
      %3971 = vmatprep.subr.mxu0 0.0
      %3972 = vmatpush1.msra.mxu0 0.0
      %3973 = vmatprep.subr.mxu0 0.0
      %3974 = vmatpush1.msra.mxu0 0.0
      %3975 = vmatprep.subr.mxu0 0.0
      %3976 = vmatpush1.msra.mxu0 0.0
      %3977 = vmatprep.subr.mxu0 0.0
      %3978 = vmatpush1.msra.mxu0 0.0
      %3979 = vmatprep.subr.mxu0 0.0
      %3980 = vmatpush1.msra.mxu0 0.0
      %3981 = vmatprep.subr.mxu0 0.0
      %3982 = vmatpush1.msra.mxu0 0.0
      %3983 = vmatprep.subr.mxu0 0.0
      %3984 = vmatpush1.msra.mxu0 0.0
      %3985 = vmatprep.subr.mxu0 0.0
      %3986 = vmatpush1.msra.mxu0 0.0
      %3987 = vmatprep.subr.mxu0 0.0
      %3988 = vmatpush1.msra.mxu0 0.0
      %3989 = vmatprep.subr.mxu0 0.0
      %3990 = vmatpush1.msra.mxu0 0.0
      %3991 = vmatprep.subr.mxu0 0.0
      %3992 = vmatpush1.msra.mxu0 0.0
      %3993 = vmatprep.subr.mxu0 0.0
      %3994 = vmatpush1.msra.mxu0 0.0
      %3995 = vmatprep.subr.mxu0 0.0
      %3996 = vmatpush1.msra.mxu0 0.0
      %3997 = vmatprep.subr.mxu0 0.0
      %3998 = vmatpush1.msra.mxu0 0.0
      %3999 = vmatprep.subr.mxu0 0.0
      %4000 = vmatpush1.msra.mxu0 0.0
      %4001 = vmatprep.subr.mxu0 0.0
      %4002 = vmatpush1.msra.mxu0 0.0
      %4003 = vmatprep.mubr.f32.mxu0 0.0
      %4004 = vmatmul.mubr.f32.gmra.mrb[0].mxu0 %v3840
      %v4005 = vpop.f32.mrb[0].mxu0
      %v4006 = vadd.f32 %v3937, %v4005
      %v4007 = vpop.f32.mrb[0].mxu0
      %4008 = vmatprep.mubr.f32.mxu0 0.0
      %4009 = vmatmul.mubr.f32.gmra.mrb[0].mxu0 %v3843
      %v4010 = vpop.f32.mrb[0].mxu0
      %v4011 = vadd.f32 %v3937, %v4010
      %v4012 = vpop.f32.mrb[0].mxu0
      %4013 = vdwg.mxu0
      %4014 = vrot.lane.b32.xlu0 %v3820, 64
      %v4015 = vpop.permute.xlu0 %4014
      %4016 = vrot.lane.b32.xlu0 %v3821, 64
      %v4017 = vpop.permute.xlu0 %4016
      %4018 = vrot.lane.b32.xlu0 %v3822, 64
      %v4019 = vpop.permute.xlu0 %4018
      %4020 = vrot.lane.b32.xlu0 %v3823, 64
      %v4021 = vpop.permute.xlu0 %4020
      %4026 = vrot.lane.b32.xlu0 %v3837, 64
      %v4027 = vpop.permute.xlu0 %4026
      %4029 = vmatprep.subr.mxu0 0.0
      %4030 = vmatpush1.msra.mxu0 %v4015
      %4031 = vmatprep.subr.mxu0 0.0
      %4032 = vmatpush1.msra.mxu0 %v4017
      %4033 = vmatprep.subr.mxu0 0.0
      %4034 = vmatpush1.msra.mxu0 %v4019
      %4035 = vmatprep.subr.mxu0 0.0
      %4036 = vmatpush1.msra.mxu0 %v4021
      %4037 = vmatprep.subr.mxu0 0.0
      %4038 = vmatpush1.msra.mxu0 0.0
      %4039 = vmatprep.subr.mxu0 0.0
      %4040 = vmatpush1.msra.mxu0 0.0
      %4041 = vmatprep.subr.mxu0 0.0
      %4042 = vmatpush1.msra.mxu0 0.0
      %4043 = vmatprep.subr.mxu0 0.0
      %4044 = vmatpush1.msra.mxu0 0.0
      %4045 = vmatprep.subr.mxu0 0.0
      %4046 = vmatpush1.msra.mxu0 0.0
      %4047 = vmatprep.subr.mxu0 0.0
      %4048 = vmatpush1.msra.mxu0 0.0
      %4049 = vmatprep.subr.mxu0 0.0
      %4050 = vmatpush1.msra.mxu0 0.0
      %4051 = vmatprep.subr.mxu0 0.0
      %4052 = vmatpush1.msra.mxu0 0.0
      %4053 = vmatprep.subr.mxu0 0.0
      %4054 = vmatpush1.msra.mxu0 0.0
      %4055 = vmatprep.subr.mxu0 0.0
      %4056 = vmatpush1.msra.mxu0 0.0
      %4057 = vmatprep.subr.mxu0 0.0
      %4058 = vmatpush1.msra.mxu0 0.0
      %4059 = vmatprep.subr.mxu0 0.0
      %4060 = vmatpush1.msra.mxu0 0.0
      %4061 = vmatprep.subr.mxu0 0.0
      %4062 = vmatpush1.msra.mxu0 0.0
      %4063 = vmatprep.subr.mxu0 0.0
      %4064 = vmatpush1.msra.mxu0 0.0
      %4065 = vmatprep.subr.mxu0 0.0
      %4066 = vmatpush1.msra.mxu0 0.0
      %4067 = vmatprep.subr.mxu0 0.0
      %4068 = vmatpush1.msra.mxu0 0.0
      %4069 = vmatprep.subr.mxu0 0.0
      %4070 = vmatpush1.msra.mxu0 0.0
      %4071 = vmatprep.subr.mxu0 0.0
      %4072 = vmatpush1.msra.mxu0 0.0
      %4073 = vmatprep.subr.mxu0 0.0
      %4074 = vmatpush1.msra.mxu0 0.0
      %4075 = vmatprep.subr.mxu0 0.0
      %4076 = vmatpush1.msra.mxu0 0.0
      %4077 = vmatprep.subr.mxu0 0.0
      %4078 = vmatpush1.msra.mxu0 0.0
      %4079 = vmatprep.subr.mxu0 0.0
      %4080 = vmatpush1.msra.mxu0 0.0
      %4081 = vmatprep.subr.mxu0 0.0
      %4082 = vmatpush1.msra.mxu0 0.0
      %4083 = vmatprep.subr.mxu0 0.0
      %4084 = vmatpush1.msra.mxu0 0.0
      %4085 = vmatprep.subr.mxu0 0.0
      %4086 = vmatpush1.msra.mxu0 0.0
      %4087 = vmatprep.subr.mxu0 0.0
      %4088 = vmatpush1.msra.mxu0 0.0
      %4089 = vmatprep.subr.mxu0 0.0
      %4090 = vmatpush1.msra.mxu0 0.0
      %4091 = vmatprep.subr.mxu0 0.0
      %4092 = vmatpush1.msra.mxu0 0.0
      %4093 = vmatprep.mubr.f32.mxu0 0.0
      %4094 = vmatmul.mubr.f32.gmra.mrb[0].mxu0 %v3840
      %v4095 = vpop.f32.mrb[0].mxu0
      %v4096 = vadd.f32 %v4027, %v4095
      %v4097 = vpop.f32.mrb[0].mxu0
      %4098 = vmatprep.mubr.f32.mxu0 0.0
      %4099 = vmatmul.mubr.f32.gmra.mrb[0].mxu0 %v3843
      %v4100 = vpop.f32.mrb[0].mxu0
      %v4101 = vadd.f32 %v4027, %v4100
      %v4102 = vpop.f32.mrb[0].mxu0
      %4103 = vdwg.mxu0
      %vm4104 = vcmask 64512
      %v4106 = vsel %vm4104, %v3912, 0
      %v4109 = vsel %vm4104, %v4006, 0
      %4111 = vmatprep.subr.mxu0 0.0
      %4112 = vmatpush1.xpose.msra.mxu0 %v4109
      %4113 = vmatprep.subr.mxu0 0.0
      %4114 = vmatpush1.xpose.msra.mxu0 0.0
      %4115 = vmatprep.subr.mxu0 0.0
      %4116 = vmatpush1.xpose.msra.mxu0 0.0
      %4117 = vmatprep.subr.mxu0 0.0
      %4118 = vmatpush1.xpose.msra.mxu0 0.0
      %4119 = vmatprep.subr.mxu0 0.0
      %4120 = vmatpush1.xpose.msra.mxu0 0.0
      %4121 = vmatprep.subr.mxu0 0.0
      %4122 = vmatpush1.xpose.msra.mxu0 0.0
      %4123 = vmatprep.subr.mxu0 0.0
      %4124 = vmatpush1.xpose.msra.mxu0 0.0
      %4125 = vmatprep.subr.mxu0 0.0
      %4126 = vmatpush1.xpose.msra.mxu0 0.0
      %4127 = vmatprep.subr.mxu0 0.0
      %4128 = vmatpush1.xpose.msra.mxu0 0.0
      %4129 = vmatprep.subr.mxu0 0.0
      %4130 = vmatpush1.xpose.msra.mxu0 0.0
      %4131 = vmatprep.subr.mxu0 0.0
      %4132 = vmatpush1.xpose.msra.mxu0 0.0
      %4133 = vmatprep.subr.mxu0 0.0
      %4134 = vmatpush1.xpose.msra.mxu0 0.0
      %4135 = vmatprep.subr.mxu0 0.0
      %4136 = vmatpush1.xpose.msra.mxu0 0.0
      %4137 = vmatprep.subr.mxu0 0.0
      %4138 = vmatpush1.xpose.msra.mxu0 0.0
      %4139 = vmatprep.subr.mxu0 0.0
      %4140 = vmatpush1.xpose.msra.mxu0 0.0
      %4141 = vmatprep.subr.mxu0 0.0
      %4142 = vmatpush1.xpose.msra.mxu0 0.0
      %4143 = vmatprep.subr.mxu0 0.0
      %4144 = vmatpush1.xpose.msra.mxu0 0.0
      %4145 = vmatprep.subr.mxu0 0.0
      %4146 = vmatpush1.xpose.msra.mxu0 0.0
      %4147 = vmatprep.subr.mxu0 0.0
      %4148 = vmatpush1.xpose.msra.mxu0 0.0
      %4149 = vmatprep.subr.mxu0 0.0
      %4150 = vmatpush1.xpose.msra.mxu0 0.0
      %4151 = vmatprep.subr.mxu0 0.0
      %4152 = vmatpush1.xpose.msra.mxu0 0.0
      %4153 = vmatprep.subr.mxu0 0.0
      %4154 = vmatpush1.xpose.msra.mxu0 0.0
      %4155 = vmatprep.subr.mxu0 0.0
      %4156 = vmatpush1.xpose.msra.mxu0 0.0
      %4157 = vmatprep.subr.mxu0 0.0
      %4158 = vmatpush1.xpose.msra.mxu0 0.0
      %4159 = vmatprep.subr.mxu0 0.0
      %4160 = vmatpush1.xpose.msra.mxu0 0.0
      %4161 = vmatprep.subr.mxu0 0.0
      %4162 = vmatpush1.xpose.msra.mxu0 0.0
      %4163 = vmatprep.subr.mxu0 0.0
      %4164 = vmatpush1.xpose.msra.mxu0 0.0
      %4165 = vmatprep.subr.mxu0 0.0
      %4166 = vmatpush1.xpose.msra.mxu0 0.0
      %4167 = vmatprep.subr.mxu0 0.0
      %4168 = vmatpush1.xpose.msra.mxu0 0.0
      %4169 = vmatprep.subr.mxu0 0.0
      %4170 = vmatpush1.xpose.msra.mxu0 0.0
      %4171 = vmatprep.subr.mxu0 0.0
      %4172 = vmatpush1.xpose.msra.mxu0 0.0
      %4173 = vmatprep.subr.mxu0 0.0
      %4174 = vmatpush1.xpose.msra.mxu0 0.0
      %4175 = vmatprep.mubr.f32.mxu0 0.0
      %4176 = vmatmul.mubr.f32.gmra.mrb[0].mxu0 %v4106
      %v4177 = vpop.f32.mrb[0].mxu0
      %v4178 = vadd.f32 0.0, %v4177
      %v4179 = vpop.f32.mrb[0].mxu0
      %4180 = vdwg.mxu0
      %v4181 = vmul.f32 %v4178, 0.35355338
      %v4182 = vsel %vm4104, %v4181, -inf
      %4183 = vmax.xlane.f32.xlu0 %v4182
      %v4184 = vpop.xlane.xlu0 %4183
      %v4185 = vsub.f32 %v4181, %v4184
      %v4186 = vmul.f32 %v4185, 1.442695
      %v4187 = vpow.pop %v4186
      %v4188 = vsel %vm4104, %v4187, 0.0
      %4189 = vadd.xlane.f32.xlu0 %v4188
      %v4190 = vpop.xlane.xlu0 %4189
      %v4191 = vrcp.pop %v4190
      %v4192 = vmul.f32 %v4187, %v4191
      %v4194 = vsel %vm4104, %v4192, 0
      %4196 = vmatprep.subr.mxu0 0.0
      %4197 = vmatpush1.msra.mxu0 %v4096
      %4198 = vmatprep.subr.mxu0 0.0
      %4199 = vmatpush1.msra.mxu0 0.0
      %4200 = vmatprep.subr.mxu0 0.0
      %4201 = vmatpush1.msra.mxu0 0.0
      %4202 = vmatprep.subr.mxu0 0.0
      %4203 = vmatpush1.msra.mxu0 0.0
      %4204 = vmatprep.subr.mxu0 0.0
      %4205 = vmatpush1.msra.mxu0 0.0
      %4206 = vmatprep.subr.mxu0 0.0
      %4207 = vmatpush1.msra.mxu0 0.0
      %4208 = vmatprep.subr.mxu0 0.0
      %4209 = vmatpush1.msra.mxu0 0.0
      %4210 = vmatprep.subr.mxu0 0.0
      %4211 = vmatpush1.msra.mxu0 0.0
      %4212 = vmatprep.subr.mxu0 0.0
      %4213 = vmatpush1.msra.mxu0 0.0
      %4214 = vmatprep.subr.mxu0 0.0
      %4215 = vmatpush1.msra.mxu0 0.0
      %4216 = vmatprep.subr.mxu0 0.0
      %4217 = vmatpush1.msra.mxu0 0.0
      %4218 = vmatprep.subr.mxu0 0.0
      %4219 = vmatpush1.msra.mxu0 0.0
      %4220 = vmatprep.subr.mxu0 0.0
      %4221 = vmatpush1.msra.mxu0 0.0
      %4222 = vmatprep.subr.mxu0 0.0
      %4223 = vmatpush1.msra.mxu0 0.0
      %4224 = vmatprep.subr.mxu0 0.0
      %4225 = vmatpush1.msra.mxu0 0.0
      %4226 = vmatprep.subr.mxu0 0.0
      %4227 = vmatpush1.msra.mxu0 0.0
      %4228 = vmatprep.subr.mxu0 0.0
      %4229 = vmatpush1.msra.mxu0 0.0
      %4230 = vmatprep.subr.mxu0 0.0
      %4231 = vmatpush1.msra.mxu0 0.0
      %4232 = vmatprep.subr.mxu0 0.0
      %4233 = vmatpush1.msra.mxu0 0.0
      %4234 = vmatprep.subr.mxu0 0.0
      %4235 = vmatpush1.msra.mxu0 0.0
      %4236 = vmatprep.subr.mxu0 0.0
      %4237 = vmatpush1.msra.mxu0 0.0
      %4238 = vmatprep.subr.mxu0 0.0
      %4239 = vmatpush1.msra.mxu0 0.0
      %4240 = vmatprep.subr.mxu0 0.0
      %4241 = vmatpush1.msra.mxu0 0.0
      %4242 = vmatprep.subr.mxu0 0.0
      %4243 = vmatpush1.msra.mxu0 0.0
      %4244 = vmatprep.subr.mxu0 0.0
      %4245 = vmatpush1.msra.mxu0 0.0
      %4246 = vmatprep.subr.mxu0 0.0
      %4247 = vmatpush1.msra.mxu0 0.0
      %4248 = vmatprep.subr.mxu0 0.0
      %4249 = vmatpush1.msra.mxu0 0.0
      %4250 = vmatprep.subr.mxu0 0.0
      %4251 = vmatpush1.msra.mxu0 0.0
      %4252 = vmatprep.subr.mxu0 0.0
      %4253 = vmatpush1.msra.mxu0 0.0
      %4254 = vmatprep.subr.mxu0 0.0
      %4255 = vmatpush1.msra.mxu0 0.0
      %4256 = vmatprep.subr.mxu0 0.0
      %4257 = vmatpush1.msra.mxu0 0.0
      %4258 = vmatprep.subr.mxu0 0.0
      %4259 = vmatpush1.msra.mxu0 0.0
      %4260 = vmatprep.mubr.f32.mxu0 0.0
      %4261 = vmatmul.mubr.f32.gmra.mrb[0].mxu0 %v4194
      %v4262 = vpop.f32.mrb[0].mxu0
      %v4263 = vadd.f32 0.0, %v4262
      %v4264 = vpop.f32.mrb[0].mxu0
      %4265 = vdwg.mxu0
      %4266 = vrot.lane.b32.xlu0 %v3912, 120
      %v4267 = vpop.permute.xlu0 %4266
      %4268 = vrot.lane.b32.xlu0 %v4006, 120
      %v4269 = vpop.permute.xlu0 %4268
      %v4270 = vsel %vm4104, %v4267, 0
      %v4272 = vsel %vm4104, %v4269, 0
      %4274 = vmatprep.subr.mxu0 0.0
      %4275 = vmatpush1.xpose.msra.mxu0 %v4272
      %4276 = vmatprep.subr.mxu0 0.0
      %4277 = vmatpush1.xpose.msra.mxu0 0.0
      %4278 = vmatprep.subr.mxu0 0.0
      %4279 = vmatpush1.xpose.msra.mxu0 0.0
      %4280 = vmatprep.subr.mxu0 0.0
      %4281 = vmatpush1.xpose.msra.mxu0 0.0
      %4282 = vmatprep.subr.mxu0 0.0
      %4283 = vmatpush1.xpose.msra.mxu0 0.0
      %4284 = vmatprep.subr.mxu0 0.0
      %4285 = vmatpush1.xpose.msra.mxu0 0.0
      %4286 = vmatprep.subr.mxu0 0.0
      %4287 = vmatpush1.xpose.msra.mxu0 0.0
      %4288 = vmatprep.subr.mxu0 0.0
      %4289 = vmatpush1.xpose.msra.mxu0 0.0
      %4290 = vmatprep.subr.mxu0 0.0
      %4291 = vmatpush1.xpose.msra.mxu0 0.0
      %4292 = vmatprep.subr.mxu0 0.0
      %4293 = vmatpush1.xpose.msra.mxu0 0.0
      %4294 = vmatprep.subr.mxu0 0.0
      %4295 = vmatpush1.xpose.msra.mxu0 0.0
      %4296 = vmatprep.subr.mxu0 0.0
      %4297 = vmatpush1.xpose.msra.mxu0 0.0
      %4298 = vmatprep.subr.mxu0 0.0
      %4299 = vmatpush1.xpose.msra.mxu0 0.0
      %4300 = vmatprep.subr.mxu0 0.0
      %4301 = vmatpush1.xpose.msra.mxu0 0.0
      %4302 = vmatprep.subr.mxu0 0.0
      %4303 = vmatpush1.xpose.msra.mxu0 0.0
      %4304 = vmatprep.subr.mxu0 0.0
      %4305 = vmatpush1.xpose.msra.mxu0 0.0
      %4306 = vmatprep.subr.mxu0 0.0
      %4307 = vmatpush1.xpose.msra.mxu0 0.0
      %4308 = vmatprep.subr.mxu0 0.0
      %4309 = vmatpush1.xpose.msra.mxu0 0.0
      %4310 = vmatprep.subr.mxu0 0.0
      %4311 = vmatpush1.xpose.msra.mxu0 0.0
      %4312 = vmatprep.subr.mxu0 0.0
      %4313 = vmatpush1.xpose.msra.mxu0 0.0
      %4314 = vmatprep.subr.mxu0 0.0
      %4315 = vmatpush1.xpose.msra.mxu0 0.0
      %4316 = vmatprep.subr.mxu0 0.0
      %4317 = vmatpush1.xpose.msra.mxu0 0.0
      %4318 = vmatprep.subr.mxu0 0.0
      %4319 = vmatpush1.xpose.msra.mxu0 0.0
      %4320 = vmatprep.subr.mxu0 0.0
      %4321 = vmatpush1.xpose.msra.mxu0 0.0
      %4322 = vmatprep.subr.mxu0 0.0
      %4323 = vmatpush1.xpose.msra.mxu0 0.0
      %4324 = vmatprep.subr.mxu0 0.0
      %4325 = vmatpush1.xpose.msra.mxu0 0.0
      %4326 = vmatprep.subr.mxu0 0.0
      %4327 = vmatpush1.xpose.msra.mxu0 0.0
      %4328 = vmatprep.subr.mxu0 0.0
      %4329 = vmatpush1.xpose.msra.mxu0 0.0
      %4330 = vmatprep.subr.mxu0 0.0
      %4331 = vmatpush1.xpose.msra.mxu0 0.0
      %4332 = vmatprep.subr.mxu0 0.0
      %4333 = vmatpush1.xpose.msra.mxu0 0.0
      %4334 = vmatprep.subr.mxu0 0.0
      %4335 = vmatpush1.xpose.msra.mxu0 0.0
      %4336 = vmatprep.subr.mxu0 0.0
      %4337 = vmatpush1.xpose.msra.mxu0 0.0
      %4338 = vmatprep.mubr.f32.mxu0 0.0
      %4339 = vmatmul.mubr.f32.gmra.mrb[0].mxu0 %v4270
      %v4340 = vpop.f32.mrb[0].mxu0
      %v4341 = vadd.f32 0.0, %v4340
      %v4342 = vpop.f32.mrb[0].mxu0
      %4343 = vdwg.mxu0
      %v4344 = vmul.f32 %v4341, 0.35355338
      %v4345 = vsel %vm4104, %v4344, -inf
      %4346 = vmax.xlane.f32.xlu0 %v4345
      %v4347 = vpop.xlane.xlu0 %4346
      %v4348 = vsub.f32 %v4344, %v4347
      %v4349 = vmul.f32 %v4348, 1.442695
      %v4350 = vpow.pop %v4349
      %v4351 = vsel %vm4104, %v4350, 0.0
      %4352 = vadd.xlane.f32.xlu0 %v4351
      %v4353 = vpop.xlane.xlu0 %4352
      %v4354 = vrcp.pop %v4353
      %v4355 = vmul.f32 %v4350, %v4354
      %4357 = vrot.lane.b32.xlu0 %v4096, 120
      %v4358 = vpop.permute.xlu0 %4357
      %v4361 = vsel %vm4104, %v4355, 0
      %4363 = vmatprep.subr.mxu0 0.0
      %4364 = vmatpush1.msra.mxu0 %v4358
      %4365 = vmatprep.subr.mxu0 0.0
      %4366 = vmatpush1.msra.mxu0 0.0
      %4367 = vmatprep.subr.mxu0 0.0
      %4368 = vmatpush1.msra.mxu0 0.0
      %4369 = vmatprep.subr.mxu0 0.0
      %4370 = vmatpush1.msra.mxu0 0.0
      %4371 = vmatprep.subr.mxu0 0.0
      %4372 = vmatpush1.msra.mxu0 0.0
      %4373 = vmatprep.subr.mxu0 0.0
      %4374 = vmatpush1.msra.mxu0 0.0
      %4375 = vmatprep.subr.mxu0 0.0
      %4376 = vmatpush1.msra.mxu0 0.0
      %4377 = vmatprep.subr.mxu0 0.0
      %4378 = vmatpush1.msra.mxu0 0.0
      %4379 = vmatprep.subr.mxu0 0.0
      %4380 = vmatpush1.msra.mxu0 0.0
      %4381 = vmatprep.subr.mxu0 0.0
      %4382 = vmatpush1.msra.mxu0 0.0
      %4383 = vmatprep.subr.mxu0 0.0
      %4384 = vmatpush1.msra.mxu0 0.0
      %4385 = vmatprep.subr.mxu0 0.0
      %4386 = vmatpush1.msra.mxu0 0.0
      %4387 = vmatprep.subr.mxu0 0.0
      %4388 = vmatpush1.msra.mxu0 0.0
      %4389 = vmatprep.subr.mxu0 0.0
      %4390 = vmatpush1.msra.mxu0 0.0
      %4391 = vmatprep.subr.mxu0 0.0
      %4392 = vmatpush1.msra.mxu0 0.0
      %4393 = vmatprep.subr.mxu0 0.0
      %4394 = vmatpush1.msra.mxu0 0.0
      %4395 = vmatprep.subr.mxu0 0.0
      %4396 = vmatpush1.msra.mxu0 0.0
      %4397 = vmatprep.subr.mxu0 0.0
      %4398 = vmatpush1.msra.mxu0 0.0
      %4399 = vmatprep.subr.mxu0 0.0
      %4400 = vmatpush1.msra.mxu0 0.0
      %4401 = vmatprep.subr.mxu0 0.0
      %4402 = vmatpush1.msra.mxu0 0.0
      %4403 = vmatprep.subr.mxu0 0.0
      %4404 = vmatpush1.msra.mxu0 0.0
      %4405 = vmatprep.subr.mxu0 0.0
      %4406 = vmatpush1.msra.mxu0 0.0
      %4407 = vmatprep.subr.mxu0 0.0
      %4408 = vmatpush1.msra.mxu0 0.0
      %4409 = vmatprep.subr.mxu0 0.0
      %4410 = vmatpush1.msra.mxu0 0.0
      %4411 = vmatprep.subr.mxu0 0.0
      %4412 = vmatpush1.msra.mxu0 0.0
      %4413 = vmatprep.subr.mxu0 0.0
      %4414 = vmatpush1.msra.mxu0 0.0
      %4415 = vmatprep.subr.mxu0 0.0
      %4416 = vmatpush1.msra.mxu0 0.0
      %4417 = vmatprep.subr.mxu0 0.0
      %4418 = vmatpush1.msra.mxu0 0.0
      %4419 = vmatprep.subr.mxu0 0.0
      %4420 = vmatpush1.msra.mxu0 0.0
      %4421 = vmatprep.subr.mxu0 0.0
      %4422 = vmatpush1.msra.mxu0 0.0
      %4423 = vmatprep.subr.mxu0 0.0
      %4424 = vmatpush1.msra.mxu0 0.0
      %4425 = vmatprep.subr.mxu0 0.0
      %4426 = vmatpush1.msra.mxu0 0.0
      %4427 = vmatprep.mubr.f32.mxu0 0.0
      %4428 = vmatmul.mubr.f32.gmra.mrb[0].mxu0 %v4361
      %v4429 = vpop.f32.mrb[0].mxu0
      %v4430 = vadd.f32 0.0, %v4429
      %v4431 = vpop.f32.mrb[0].mxu0
      %4432 = vdwg.mxu0
      %4433 = vrot.lane.b32.xlu0 %v3912, 112
      %v4434 = vpop.permute.xlu0 %4433
      %4435 = vrot.lane.b32.xlu0 %v4006, 112
      %v4436 = vpop.permute.xlu0 %4435
      %v4437 = vsel %vm4104, %v4434, 0
      %v4439 = vsel %vm4104, %v4436, 0
      %4441 = vmatprep.subr.mxu0 0.0
      %4442 = vmatpush1.xpose.msra.mxu0 %v4439
      %4443 = vmatprep.subr.mxu0 0.0
      %4444 = vmatpush1.xpose.msra.mxu0 0.0
      %4445 = vmatprep.subr.mxu0 0.0
      %4446 = vmatpush1.xpose.msra.mxu0 0.0
      %4447 = vmatprep.subr.mxu0 0.0
      %4448 = vmatpush1.xpose.msra.mxu0 0.0
      %4449 = vmatprep.subr.mxu0 0.0
      %4450 = vmatpush1.xpose.msra.mxu0 0.0
      %4451 = vmatprep.subr.mxu0 0.0
      %4452 = vmatpush1.xpose.msra.mxu0 0.0
      %4453 = vmatprep.subr.mxu0 0.0
      %4454 = vmatpush1.xpose.msra.mxu0 0.0
      %4455 = vmatprep.subr.mxu0 0.0
      %4456 = vmatpush1.xpose.msra.mxu0 0.0
      %4457 = vmatprep.subr.mxu0 0.0
      %4458 = vmatpush1.xpose.msra.mxu0 0.0
      %4459 = vmatprep.subr.mxu0 0.0
      %4460 = vmatpush1.xpose.msra.mxu0 0.0
      %4461 = vmatprep.subr.mxu0 0.0
      %4462 = vmatpush1.xpose.msra.mxu0 0.0
      %4463 = vmatprep.subr.mxu0 0.0
      %4464 = vmatpush1.xpose.msra.mxu0 0.0
      %4465 = vmatprep.subr.mxu0 0.0
      %4466 = vmatpush1.xpose.msra.mxu0 0.0
      %4467 = vmatprep.subr.mxu0 0.0
      %4468 = vmatpush1.xpose.msra.mxu0 0.0
      %4469 = vmatprep.subr.mxu0 0.0
      %4470 = vmatpush1.xpose.msra.mxu0 0.0
      %4471 = vmatprep.subr.mxu0 0.0
      %4472 = vmatpush1.xpose.msra.mxu0 0.0
      %4473 = vmatprep.subr.mxu0 0.0
      %4474 = vmatpush1.xpose.msra.mxu0 0.0
      %4475 = vmatprep.subr.mxu0 0.0
      %4476 = vmatpush1.xpose.msra.mxu0 0.0
      %4477 = vmatprep.subr.mxu0 0.0
      %4478 = vmatpush1.xpose.msra.mxu0 0.0
      %4479 = vmatprep.subr.mxu0 0.0
      %4480 = vmatpush1.xpose.msra.mxu0 0.0
      %4481 = vmatprep.subr.mxu0 0.0
      %4482 = vmatpush1.xpose.msra.mxu0 0.0
      %4483 = vmatprep.subr.mxu0 0.0
      %4484 = vmatpush1.xpose.msra.mxu0 0.0
      %4485 = vmatprep.subr.mxu0 0.0
      %4486 = vmatpush1.xpose.msra.mxu0 0.0
      %4487 = vmatprep.subr.mxu0 0.0
      %4488 = vmatpush1.xpose.msra.mxu0 0.0
      %4489 = vmatprep.subr.mxu0 0.0
      %4490 = vmatpush1.xpose.msra.mxu0 0.0
      %4491 = vmatprep.subr.mxu0 0.0
      %4492 = vmatpush1.xpose.msra.mxu0 0.0
      %4493 = vmatprep.subr.mxu0 0.0
      %4494 = vmatpush1.xpose.msra.mxu0 0.0
      %4495 = vmatprep.subr.mxu0 0.0
      %4496 = vmatpush1.xpose.msra.mxu0 0.0
      %4497 = vmatprep.subr.mxu0 0.0
      %4498 = vmatpush1.xpose.msra.mxu0 0.0
      %4499 = vmatprep.subr.mxu0 0.0
      %4500 = vmatpush1.xpose.msra.mxu0 0.0
      %4501 = vmatprep.subr.mxu0 0.0
      %4502 = vmatpush1.xpose.msra.mxu0 0.0
      %4503 = vmatprep.subr.mxu0 0.0
      %4504 = vmatpush1.xpose.msra.mxu0 0.0
      %4505 = vmatprep.mubr.f32.mxu0 0.0
      %4506 = vmatmul.mubr.f32.gmra.mrb[0].mxu0 %v4437
      %v4507 = vpop.f32.mrb[0].mxu0
      %v4508 = vadd.f32 0.0, %v4507
      %v4509 = vpop.f32.mrb[0].mxu0
      %4510 = vdwg.mxu0
      %v4511 = vmul.f32 %v4508, 0.35355338
      %v4512 = vsel %vm4104, %v4511, -inf
      %4513 = vmax.xlane.f32.xlu0 %v4512
      %v4514 = vpop.xlane.xlu0 %4513
      %v4515 = vsub.f32 %v4511, %v4514
      %v4516 = vmul.f32 %v4515, 1.442695
      %v4517 = vpow.pop %v4516
      %v4518 = vsel %vm4104, %v4517, 0.0
      %4519 = vadd.xlane.f32.xlu0 %v4518
      %v4520 = vpop.xlane.xlu0 %4519
      %v4521 = vrcp.pop %v4520
      %v4522 = vmul.f32 %v4517, %v4521
      %4523 = vrot.lane.b32.xlu0 %v4096, 112
      %v4524 = vpop.permute.xlu0 %4523
      %v4527 = vsel %vm4104, %v4522, 0
      %4529 = vmatprep.subr.mxu0 0.0
      %4530 = vmatpush1.msra.mxu0 %v4524
      %4531 = vmatprep.subr.mxu0 0.0
      %4532 = vmatpush1.msra.mxu0 0.0
      %4533 = vmatprep.subr.mxu0 0.0
      %4534 = vmatpush1.msra.mxu0 0.0
      %4535 = vmatprep.subr.mxu0 0.0
      %4536 = vmatpush1.msra.mxu0 0.0
      %4537 = vmatprep.subr.mxu0 0.0
      %4538 = vmatpush1.msra.mxu0 0.0
      %4539 = vmatprep.subr.mxu0 0.0
      %4540 = vmatpush1.msra.mxu0 0.0
      %4541 = vmatprep.subr.mxu0 0.0
      %4542 = vmatpush1.msra.mxu0 0.0
      %4543 = vmatprep.subr.mxu0 0.0
      %4544 = vmatpush1.msra.mxu0 0.0
      %4545 = vmatprep.subr.mxu0 0.0
      %4546 = vmatpush1.msra.mxu0 0.0
      %4547 = vmatprep.subr.mxu0 0.0
      %4548 = vmatpush1.msra.mxu0 0.0
      %4549 = vmatprep.subr.mxu0 0.0
      %4550 = vmatpush1.msra.mxu0 0.0
      %4551 = vmatprep.subr.mxu0 0.0
      %4552 = vmatpush1.msra.mxu0 0.0
      %4553 = vmatprep.subr.mxu0 0.0
      %4554 = vmatpush1.msra.mxu0 0.0
      %4555 = vmatprep.subr.mxu0 0.0
      %4556 = vmatpush1.msra.mxu0 0.0
      %4557 = vmatprep.subr.mxu0 0.0
      %4558 = vmatpush1.msra.mxu0 0.0
      %4559 = vmatprep.subr.mxu0 0.0
      %4560 = vmatpush1.msra.mxu0 0.0
      %4561 = vmatprep.subr.mxu0 0.0
      %4562 = vmatpush1.msra.mxu0 0.0
      %4563 = vmatprep.subr.mxu0 0.0
      %4564 = vmatpush1.msra.mxu0 0.0
      %4565 = vmatprep.subr.mxu0 0.0
      %4566 = vmatpush1.msra.mxu0 0.0
      %4567 = vmatprep.subr.mxu0 0.0
      %4568 = vmatpush1.msra.mxu0 0.0
      %4569 = vmatprep.subr.mxu0 0.0
      %4570 = vmatpush1.msra.mxu0 0.0
      %4571 = vmatprep.subr.mxu0 0.0
      %4572 = vmatpush1.msra.mxu0 0.0
      %4573 = vmatprep.subr.mxu0 0.0
      %4574 = vmatpush1.msra.mxu0 0.0
      %4575 = vmatprep.subr.mxu0 0.0
      %4576 = vmatpush1.msra.mxu0 0.0
      %4577 = vmatprep.subr.mxu0 0.0
      %4578 = vmatpush1.msra.mxu0 0.0
      %4579 = vmatprep.subr.mxu0 0.0
      %4580 = vmatpush1.msra.mxu0 0.0
      %4581 = vmatprep.subr.mxu0 0.0
      %4582 = vmatpush1.msra.mxu0 0.0
      %4583 = vmatprep.subr.mxu0 0.0
      %4584 = vmatpush1.msra.mxu0 0.0
      %4585 = vmatprep.subr.mxu0 0.0
      %4586 = vmatpush1.msra.mxu0 0.0
      %4587 = vmatprep.subr.mxu0 0.0
      %4588 = vmatpush1.msra.mxu0 0.0
      %4589 = vmatprep.subr.mxu0 0.0
      %4590 = vmatpush1.msra.mxu0 0.0
      %4591 = vmatprep.subr.mxu0 0.0
      %4592 = vmatpush1.msra.mxu0 0.0
      %4593 = vmatprep.mubr.f32.mxu0 0.0
      %4594 = vmatmul.mubr.f32.gmra.mrb[0].mxu0 %v4527
      %v4595 = vpop.f32.mrb[0].mxu0
      %v4596 = vadd.f32 0.0, %v4595
      %v4597 = vpop.f32.mrb[0].mxu0
      %4598 = vdwg.mxu0
      %4599 = vrot.lane.b32.xlu0 %v3912, 104
      %v4600 = vpop.permute.xlu0 %4599
      %4601 = vrot.lane.b32.xlu0 %v4006, 104
      %v4602 = vpop.permute.xlu0 %4601
      %v4603 = vsel %vm4104, %v4600, 0
      %v4605 = vsel %vm4104, %v4602, 0
      %4607 = vmatprep.subr.mxu0 0.0
      %4608 = vmatpush1.xpose.msra.mxu0 %v4605
      %4609 = vmatprep.subr.mxu0 0.0
      %4610 = vmatpush1.xpose.msra.mxu0 0.0
      %4611 = vmatprep.subr.mxu0 0.0
      %4612 = vmatpush1.xpose.msra.mxu0 0.0
      %4613 = vmatprep.subr.mxu0 0.0
      %4614 = vmatpush1.xpose.msra.mxu0 0.0
      %4615 = vmatprep.subr.mxu0 0.0
      %4616 = vmatpush1.xpose.msra.mxu0 0.0
      %4617 = vmatprep.subr.mxu0 0.0
      %4618 = vmatpush1.xpose.msra.mxu0 0.0
      %4619 = vmatprep.subr.mxu0 0.0
      %4620 = vmatpush1.xpose.msra.mxu0 0.0
      %4621 = vmatprep.subr.mxu0 0.0
      %4622 = vmatpush1.xpose.msra.mxu0 0.0
      %4623 = vmatprep.subr.mxu0 0.0
      %4624 = vmatpush1.xpose.msra.mxu0 0.0
      %4625 = vmatprep.subr.mxu0 0.0
      %4626 = vmatpush1.xpose.msra.mxu0 0.0
      %4627 = vmatprep.subr.mxu0 0.0
      %4628 = vmatpush1.xpose.msra.mxu0 0.0
      %4629 = vmatprep.subr.mxu0 0.0
      %4630 = vmatpush1.xpose.msra.mxu0 0.0
      %4631 = vmatprep.subr.mxu0 0.0
      %4632 = vmatpush1.xpose.msra.mxu0 0.0
      %4633 = vmatprep.subr.mxu0 0.0
      %4634 = vmatpush1.xpose.msra.mxu0 0.0
      %4635 = vmatprep.subr.mxu0 0.0
      %4636 = vmatpush1.xpose.msra.mxu0 0.0
      %4637 = vmatprep.subr.mxu0 0.0
      %4638 = vmatpush1.xpose.msra.mxu0 0.0
      %4639 = vmatprep.subr.mxu0 0.0
      %4640 = vmatpush1.xpose.msra.mxu0 0.0
      %4641 = vmatprep.subr.mxu0 0.0
      %4642 = vmatpush1.xpose.msra.mxu0 0.0
      %4643 = vmatprep.subr.mxu0 0.0
      %4644 = vmatpush1.xpose.msra.mxu0 0.0
      %4645 = vmatprep.subr.mxu0 0.0
      %4646 = vmatpush1.xpose.msra.mxu0 0.0
      %4647 = vmatprep.subr.mxu0 0.0
      %4648 = vmatpush1.xpose.msra.mxu0 0.0
      %4649 = vmatprep.subr.mxu0 0.0
      %4650 = vmatpush1.xpose.msra.mxu0 0.0
      %4651 = vmatprep.subr.mxu0 0.0
      %4652 = vmatpush1.xpose.msra.mxu0 0.0
      %4653 = vmatprep.subr.mxu0 0.0
      %4654 = vmatpush1.xpose.msra.mxu0 0.0
      %4655 = vmatprep.subr.mxu0 0.0
      %4656 = vmatpush1.xpose.msra.mxu0 0.0
      %4657 = vmatprep.subr.mxu0 0.0
      %4658 = vmatpush1.xpose.msra.mxu0 0.0
      %4659 = vmatprep.subr.mxu0 0.0
      %4660 = vmatpush1.xpose.msra.mxu0 0.0
      %4661 = vmatprep.subr.mxu0 0.0
      %4662 = vmatpush1.xpose.msra.mxu0 0.0
      %4663 = vmatprep.subr.mxu0 0.0
      %4664 = vmatpush1.xpose.msra.mxu0 0.0
      %4665 = vmatprep.subr.mxu0 0.0
      %4666 = vmatpush1.xpose.msra.mxu0 0.0
      %4667 = vmatprep.subr.mxu0 0.0
      %4668 = vmatpush1.xpose.msra.mxu0 0.0
      %4669 = vmatprep.subr.mxu0 0.0
      %4670 = vmatpush1.xpose.msra.mxu0 0.0
      %4671 = vmatprep.mubr.f32.mxu0 0.0
      %4672 = vmatmul.mubr.f32.gmra.mrb[0].mxu0 %v4603
      %v4673 = vpop.f32.mrb[0].mxu0
      %v4674 = vadd.f32 0.0, %v4673
      %v4675 = vpop.f32.mrb[0].mxu0
      %4676 = vdwg.mxu0
      %v4677 = vmul.f32 %v4674, 0.35355338
      %v4678 = vsel %vm4104, %v4677, -inf
      %4679 = vmax.xlane.f32.xlu0 %v4678
      %v4680 = vpop.xlane.xlu0 %4679
      %v4681 = vsub.f32 %v4677, %v4680
      %v4682 = vmul.f32 %v4681, 1.442695
      %v4683 = vpow.pop %v4682
      %v4684 = vsel %vm4104, %v4683, 0.0
      %4685 = vadd.xlane.f32.xlu0 %v4684
      %v4686 = vpop.xlane.xlu0 %4685
      %v4687 = vrcp.pop %v4686
      %v4688 = vmul.f32 %v4683, %v4687
      %4689 = vrot.lane.b32.xlu0 %v4096, 104
      %v4690 = vpop.permute.xlu0 %4689
      %v4693 = vsel %vm4104, %v4688, 0
      %4695 = vmatprep.subr.mxu0 0.0
      %4696 = vmatpush1.msra.mxu0 %v4690
      %4697 = vmatprep.subr.mxu0 0.0
      %4698 = vmatpush1.msra.mxu0 0.0
      %4699 = vmatprep.subr.mxu0 0.0
      %4700 = vmatpush1.msra.mxu0 0.0
      %4701 = vmatprep.subr.mxu0 0.0
      %4702 = vmatpush1.msra.mxu0 0.0
      %4703 = vmatprep.subr.mxu0 0.0
      %4704 = vmatpush1.msra.mxu0 0.0
      %4705 = vmatprep.subr.mxu0 0.0
      %4706 = vmatpush1.msra.mxu0 0.0
      %4707 = vmatprep.subr.mxu0 0.0
      %4708 = vmatpush1.msra.mxu0 0.0
      %4709 = vmatprep.subr.mxu0 0.0
      %4710 = vmatpush1.msra.mxu0 0.0
      %4711 = vmatprep.subr.mxu0 0.0
      %4712 = vmatpush1.msra.mxu0 0.0
      %4713 = vmatprep.subr.mxu0 0.0
      %4714 = vmatpush1.msra.mxu0 0.0
      %4715 = vmatprep.subr.mxu0 0.0
      %4716 = vmatpush1.msra.mxu0 0.0
      %4717 = vmatprep.subr.mxu0 0.0
      %4718 = vmatpush1.msra.mxu0 0.0
      %4719 = vmatprep.subr.mxu0 0.0
      %4720 = vmatpush1.msra.mxu0 0.0
      %4721 = vmatprep.subr.mxu0 0.0
      %4722 = vmatpush1.msra.mxu0 0.0
      %4723 = vmatprep.subr.mxu0 0.0
      %4724 = vmatpush1.msra.mxu0 0.0
      %4725 = vmatprep.subr.mxu0 0.0
      %4726 = vmatpush1.msra.mxu0 0.0
      %4727 = vmatprep.subr.mxu0 0.0
      %4728 = vmatpush1.msra.mxu0 0.0
      %4729 = vmatprep.subr.mxu0 0.0
      %4730 = vmatpush1.msra.mxu0 0.0
      %4731 = vmatprep.subr.mxu0 0.0
      %4732 = vmatpush1.msra.mxu0 0.0
      %4733 = vmatprep.subr.mxu0 0.0
      %4734 = vmatpush1.msra.mxu0 0.0
      %4735 = vmatprep.subr.mxu0 0.0
      %4736 = vmatpush1.msra.mxu0 0.0
      %4737 = vmatprep.subr.mxu0 0.0
      %4738 = vmatpush1.msra.mxu0 0.0
      %4739 = vmatprep.subr.mxu0 0.0
      %4740 = vmatpush1.msra.mxu0 0.0
      %4741 = vmatprep.subr.mxu0 0.0
      %4742 = vmatpush1.msra.mxu0 0.0
      %4743 = vmatprep.subr.mxu0 0.0
      %4744 = vmatpush1.msra.mxu0 0.0
      %4745 = vmatprep.subr.mxu0 0.0
      %4746 = vmatpush1.msra.mxu0 0.0
      %4747 = vmatprep.subr.mxu0 0.0
      %4748 = vmatpush1.msra.mxu0 0.0
      %4749 = vmatprep.subr.mxu0 0.0
      %4750 = vmatpush1.msra.mxu0 0.0
      %4751 = vmatprep.subr.mxu0 0.0
      %4752 = vmatpush1.msra.mxu0 0.0
      %4753 = vmatprep.subr.mxu0 0.0
      %4754 = vmatpush1.msra.mxu0 0.0
      %4755 = vmatprep.subr.mxu0 0.0
      %4756 = vmatpush1.msra.mxu0 0.0
      %4757 = vmatprep.subr.mxu0 0.0
      %4758 = vmatpush1.msra.mxu0 0.0
      %4759 = vmatprep.mubr.f32.mxu0 0.0
      %4760 = vmatmul.mubr.f32.gmra.mrb[0].mxu0 %v4693
      %v4761 = vpop.f32.mrb[0].mxu0
      %v4762 = vadd.f32 0.0, %v4761
      %v4763 = vpop.f32.mrb[0].mxu0
      %4764 = vdwg.mxu0
      %4766 = vrot.lane.b32.xlu0 %v4430, 8
      %v4767 = vpop.permute.xlu0 %4766
      %4770 = vrot.lane.b32.xlu0 %v4596, 16
      %v4771 = vpop.permute.xlu0 %4770
      %4774 = vrot.lane.b32.xlu0 %v4762, 24
      %v4775 = vpop.permute.xlu0 %4774
      %v4777 = vsel %vm4104, %v4263, %v4767
      %vm4778 = vcmask 130048
      %v4779 = vsel %vm4778, %v4777, %v4771
      %v4780 = vsel %vm178, %v4779, %v4775
      %v4782 = vsel %vm4104, %v3917, 0
      %v4785 = vsel %vm4104, %v4011, 0
      %4787 = vmatprep.subr.mxu0 0.0
      %4788 = vmatpush1.xpose.msra.mxu0 %v4785
      %4789 = vmatprep.subr.mxu0 0.0
      %4790 = vmatpush1.xpose.msra.mxu0 0.0
      %4791 = vmatprep.subr.mxu0 0.0
      %4792 = vmatpush1.xpose.msra.mxu0 0.0
      %4793 = vmatprep.subr.mxu0 0.0
      %4794 = vmatpush1.xpose.msra.mxu0 0.0
      %4795 = vmatprep.subr.mxu0 0.0
      %4796 = vmatpush1.xpose.msra.mxu0 0.0
      %4797 = vmatprep.subr.mxu0 0.0
      %4798 = vmatpush1.xpose.msra.mxu0 0.0
      %4799 = vmatprep.subr.mxu0 0.0
      %4800 = vmatpush1.xpose.msra.mxu0 0.0
      %4801 = vmatprep.subr.mxu0 0.0
      %4802 = vmatpush1.xpose.msra.mxu0 0.0
      %4803 = vmatprep.subr.mxu0 0.0
      %4804 = vmatpush1.xpose.msra.mxu0 0.0
      %4805 = vmatprep.subr.mxu0 0.0
      %4806 = vmatpush1.xpose.msra.mxu0 0.0
      %4807 = vmatprep.subr.mxu0 0.0
      %4808 = vmatpush1.xpose.msra.mxu0 0.0
      %4809 = vmatprep.subr.mxu0 0.0
      %4810 = vmatpush1.xpose.msra.mxu0 0.0
      %4811 = vmatprep.subr.mxu0 0.0
      %4812 = vmatpush1.xpose.msra.mxu0 0.0
      %4813 = vmatprep.subr.mxu0 0.0
      %4814 = vmatpush1.xpose.msra.mxu0 0.0
      %4815 = vmatprep.subr.mxu0 0.0
      %4816 = vmatpush1.xpose.msra.mxu0 0.0
      %4817 = vmatprep.subr.mxu0 0.0
      %4818 = vmatpush1.xpose.msra.mxu0 0.0
      %4819 = vmatprep.subr.mxu0 0.0
      %4820 = vmatpush1.xpose.msra.mxu0 0.0
      %4821 = vmatprep.subr.mxu0 0.0
      %4822 = vmatpush1.xpose.msra.mxu0 0.0
      %4823 = vmatprep.subr.mxu0 0.0
      %4824 = vmatpush1.xpose.msra.mxu0 0.0
      %4825 = vmatprep.subr.mxu0 0.0
      %4826 = vmatpush1.xpose.msra.mxu0 0.0
      %4827 = vmatprep.subr.mxu0 0.0
      %4828 = vmatpush1.xpose.msra.mxu0 0.0
      %4829 = vmatprep.subr.mxu0 0.0
      %4830 = vmatpush1.xpose.msra.mxu0 0.0
      %4831 = vmatprep.subr.mxu0 0.0
      %4832 = vmatpush1.xpose.msra.mxu0 0.0
      %4833 = vmatprep.subr.mxu0 0.0
      %4834 = vmatpush1.xpose.msra.mxu0 0.0
      %4835 = vmatprep.subr.mxu0 0.0
      %4836 = vmatpush1.xpose.msra.mxu0 0.0
      %4837 = vmatprep.subr.mxu0 0.0
      %4838 = vmatpush1.xpose.msra.mxu0 0.0
      %4839 = vmatprep.subr.mxu0 0.0
      %4840 = vmatpush1.xpose.msra.mxu0 0.0
      %4841 = vmatprep.subr.mxu0 0.0
      %4842 = vmatpush1.xpose.msra.mxu0 0.0
      %4843 = vmatprep.subr.mxu0 0.0
      %4844 = vmatpush1.xpose.msra.mxu0 0.0
      %4845 = vmatprep.subr.mxu0 0.0
      %4846 = vmatpush1.xpose.msra.mxu0 0.0
      %4847 = vmatprep.subr.mxu0 0.0
      %4848 = vmatpush1.xpose.msra.mxu0 0.0
      %4849 = vmatprep.subr.mxu0 0.0
      %4850 = vmatpush1.xpose.msra.mxu0 0.0
      %4851 = vmatprep.mubr.f32.mxu0 0.0
      %4852 = vmatmul.mubr.f32.gmra.mrb[0].mxu0 %v4782
      %v4853 = vpop.f32.mrb[0].mxu0
      %v4854 = vadd.f32 0.0, %v4853
      %v4855 = vpop.f32.mrb[0].mxu0
      %4856 = vdwg.mxu0
      %v4857 = vmul.f32 %v4854, 0.35355338
      %v4858 = vsel %vm4104, %v4857, -inf
      %4859 = vmax.xlane.f32.xlu0 %v4858
      %v4860 = vpop.xlane.xlu0 %4859
      %v4861 = vsub.f32 %v4857, %v4860
      %v4862 = vmul.f32 %v4861, 1.442695
      %v4863 = vpow.pop %v4862
      %v4864 = vsel %vm4104, %v4863, 0.0
      %4865 = vadd.xlane.f32.xlu0 %v4864
      %v4866 = vpop.xlane.xlu0 %4865
      %v4867 = vrcp.pop %v4866
      %v4868 = vmul.f32 %v4863, %v4867
      %v4870 = vsel %vm4104, %v4868, 0
      %4872 = vmatprep.subr.mxu0 0.0
      %4873 = vmatpush1.msra.mxu0 %v4101
      %4874 = vmatprep.subr.mxu0 0.0
      %4875 = vmatpush1.msra.mxu0 0.0
      %4876 = vmatprep.subr.mxu0 0.0
      %4877 = vmatpush1.msra.mxu0 0.0
      %4878 = vmatprep.subr.mxu0 0.0
      %4879 = vmatpush1.msra.mxu0 0.0
      %4880 = vmatprep.subr.mxu0 0.0
      %4881 = vmatpush1.msra.mxu0 0.0
      %4882 = vmatprep.subr.mxu0 0.0
      %4883 = vmatpush1.msra.mxu0 0.0
      %4884 = vmatprep.subr.mxu0 0.0
      %4885 = vmatpush1.msra.mxu0 0.0
      %4886 = vmatprep.subr.mxu0 0.0
      %4887 = vmatpush1.msra.mxu0 0.0
      %4888 = vmatprep.subr.mxu0 0.0
      %4889 = vmatpush1.msra.mxu0 0.0
      %4890 = vmatprep.subr.mxu0 0.0
      %4891 = vmatpush1.msra.mxu0 0.0
      %4892 = vmatprep.subr.mxu0 0.0
      %4893 = vmatpush1.msra.mxu0 0.0
      %4894 = vmatprep.subr.mxu0 0.0
      %4895 = vmatpush1.msra.mxu0 0.0
      %4896 = vmatprep.subr.mxu0 0.0
      %4897 = vmatpush1.msra.mxu0 0.0
      %4898 = vmatprep.subr.mxu0 0.0
      %4899 = vmatpush1.msra.mxu0 0.0
      %4900 = vmatprep.subr.mxu0 0.0
      %4901 = vmatpush1.msra.mxu0 0.0
      %4902 = vmatprep.subr.mxu0 0.0
      %4903 = vmatpush1.msra.mxu0 0.0
      %4904 = vmatprep.subr.mxu0 0.0
      %4905 = vmatpush1.msra.mxu0 0.0
      %4906 = vmatprep.subr.mxu0 0.0
      %4907 = vmatpush1.msra.mxu0 0.0
      %4908 = vmatprep.subr.mxu0 0.0
      %4909 = vmatpush1.msra.mxu0 0.0
      %4910 = vmatprep.subr.mxu0 0.0
      %4911 = vmatpush1.msra.mxu0 0.0
      %4912 = vmatprep.subr.mxu0 0.0
      %4913 = vmatpush1.msra.mxu0 0.0
      %4914 = vmatprep.subr.mxu0 0.0
      %4915 = vmatpush1.msra.mxu0 0.0
      %4916 = vmatprep.subr.mxu0 0.0
      %4917 = vmatpush1.msra.mxu0 0.0
      %4918 = vmatprep.subr.mxu0 0.0
      %4919 = vmatpush1.msra.mxu0 0.0
      %4920 = vmatprep.subr.mxu0 0.0
      %4921 = vmatpush1.msra.mxu0 0.0
      %4922 = vmatprep.subr.mxu0 0.0
      %4923 = vmatpush1.msra.mxu0 0.0
      %4924 = vmatprep.subr.mxu0 0.0
      %4925 = vmatpush1.msra.mxu0 0.0
      %4926 = vmatprep.subr.mxu0 0.0
      %4927 = vmatpush1.msra.mxu0 0.0
      %4928 = vmatprep.subr.mxu0 0.0
      %4929 = vmatpush1.msra.mxu0 0.0
      %4930 = vmatprep.subr.mxu0 0.0
      %4931 = vmatpush1.msra.mxu0 0.0
      %4932 = vmatprep.subr.mxu0 0.0
      %4933 = vmatpush1.msra.mxu0 0.0
      %4934 = vmatprep.subr.mxu0 0.0
      %4935 = vmatpush1.msra.mxu0 0.0
      %4936 = vmatprep.mubr.f32.mxu0 0.0
      %4937 = vmatmul.mubr.f32.gmra.mrb[0].mxu0 %v4870
      %v4938 = vpop.f32.mrb[0].mxu0
      %v4939 = vadd.f32 0.0, %v4938
      %v4940 = vpop.f32.mrb[0].mxu0
      %4941 = vdwg.mxu0
      %4942 = vrot.lane.b32.xlu0 %v3917, 120
      %v4943 = vpop.permute.xlu0 %4942
      %4944 = vrot.lane.b32.xlu0 %v4011, 120
      %v4945 = vpop.permute.xlu0 %4944
      %v4946 = vsel %vm4104, %v4943, 0
      %v4948 = vsel %vm4104, %v4945, 0
      %4950 = vmatprep.subr.mxu0 0.0
      %4951 = vmatpush1.xpose.msra.mxu0 %v4948
      %4952 = vmatprep.subr.mxu0 0.0
      %4953 = vmatpush1.xpose.msra.mxu0 0.0
      %4954 = vmatprep.subr.mxu0 0.0
      %4955 = vmatpush1.xpose.msra.mxu0 0.0
      %4956 = vmatprep.subr.mxu0 0.0
      %4957 = vmatpush1.xpose.msra.mxu0 0.0
      %4958 = vmatprep.subr.mxu0 0.0
      %4959 = vmatpush1.xpose.msra.mxu0 0.0
      %4960 = vmatprep.subr.mxu0 0.0
      %4961 = vmatpush1.xpose.msra.mxu0 0.0
      %4962 = vmatprep.subr.mxu0 0.0
      %4963 = vmatpush1.xpose.msra.mxu0 0.0
      %4964 = vmatprep.subr.mxu0 0.0
      %4965 = vmatpush1.xpose.msra.mxu0 0.0
      %4966 = vmatprep.subr.mxu0 0.0
      %4967 = vmatpush1.xpose.msra.mxu0 0.0
      %4968 = vmatprep.subr.mxu0 0.0
      %4969 = vmatpush1.xpose.msra.mxu0 0.0
      %4970 = vmatprep.subr.mxu0 0.0
      %4971 = vmatpush1.xpose.msra.mxu0 0.0
      %4972 = vmatprep.subr.mxu0 0.0
      %4973 = vmatpush1.xpose.msra.mxu0 0.0
      %4974 = vmatprep.subr.mxu0 0.0
      %4975 = vmatpush1.xpose.msra.mxu0 0.0
      %4976 = vmatprep.subr.mxu0 0.0
      %4977 = vmatpush1.xpose.msra.mxu0 0.0
      %4978 = vmatprep.subr.mxu0 0.0
      %4979 = vmatpush1.xpose.msra.mxu0 0.0
      %4980 = vmatprep.subr.mxu0 0.0
      %4981 = vmatpush1.xpose.msra.mxu0 0.0
      %4982 = vmatprep.subr.mxu0 0.0
      %4983 = vmatpush1.xpose.msra.mxu0 0.0
      %4984 = vmatprep.subr.mxu0 0.0
      %4985 = vmatpush1.xpose.msra.mxu0 0.0
      %4986 = vmatprep.subr.mxu0 0.0
      %4987 = vmatpush1.xpose.msra.mxu0 0.0
      %4988 = vmatprep.subr.mxu0 0.0
      %4989 = vmatpush1.xpose.msra.mxu0 0.0
      %4990 = vmatprep.subr.mxu0 0.0
      %4991 = vmatpush1.xpose.msra.mxu0 0.0
      %4992 = vmatprep.subr.mxu0 0.0
      %4993 = vmatpush1.xpose.msra.mxu0 0.0
      %4994 = vmatprep.subr.mxu0 0.0
      %4995 = vmatpush1.xpose.msra.mxu0 0.0
      %4996 = vmatprep.subr.mxu0 0.0
      %4997 = vmatpush1.xpose.msra.mxu0 0.0
      %4998 = vmatprep.subr.mxu0 0.0
      %4999 = vmatpush1.xpose.msra.mxu0 0.0
      %5000 = vmatprep.subr.mxu0 0.0
      %5001 = vmatpush1.xpose.msra.mxu0 0.0
      %5002 = vmatprep.subr.mxu0 0.0
      %5003 = vmatpush1.xpose.msra.mxu0 0.0
      %5004 = vmatprep.subr.mxu0 0.0
      %5005 = vmatpush1.xpose.msra.mxu0 0.0
      %5006 = vmatprep.subr.mxu0 0.0
      %5007 = vmatpush1.xpose.msra.mxu0 0.0
      %5008 = vmatprep.subr.mxu0 0.0
      %5009 = vmatpush1.xpose.msra.mxu0 0.0
      %5010 = vmatprep.subr.mxu0 0.0
      %5011 = vmatpush1.xpose.msra.mxu0 0.0
      %5012 = vmatprep.subr.mxu0 0.0
      %5013 = vmatpush1.xpose.msra.mxu0 0.0
      %5014 = vmatprep.mubr.f32.mxu0 0.0
      %5015 = vmatmul.mubr.f32.gmra.mrb[0].mxu0 %v4946
      %v5016 = vpop.f32.mrb[0].mxu0
      %v5017 = vadd.f32 0.0, %v5016
      %v5018 = vpop.f32.mrb[0].mxu0
      %5019 = vdwg.mxu0
      %v5020 = vmul.f32 %v5017, 0.35355338
      %v5021 = vsel %vm4104, %v5020, -inf
      %5022 = vmax.xlane.f32.xlu0 %v5021
      %v5023 = vpop.xlane.xlu0 %5022
      %v5024 = vsub.f32 %v5020, %v5023
      %v5025 = vmul.f32 %v5024, 1.442695
      %v5026 = vpow.pop %v5025
      %v5027 = vsel %vm4104, %v5026, 0.0
      %5028 = vadd.xlane.f32.xlu0 %v5027
      %v5029 = vpop.xlane.xlu0 %5028
      %v5030 = vrcp.pop %v5029
      %v5031 = vmul.f32 %v5026, %v5030
      %5033 = vrot.lane.b32.xlu0 %v4101, 120
      %v5034 = vpop.permute.xlu0 %5033
      %v5037 = vsel %vm4104, %v5031, 0
      %5039 = vmatprep.subr.mxu0 0.0
      %5040 = vmatpush1.msra.mxu0 %v5034
      %5041 = vmatprep.subr.mxu0 0.0
      %5042 = vmatpush1.msra.mxu0 0.0
      %5043 = vmatprep.subr.mxu0 0.0
      %5044 = vmatpush1.msra.mxu0 0.0
      %5045 = vmatprep.subr.mxu0 0.0
      %5046 = vmatpush1.msra.mxu0 0.0
      %5047 = vmatprep.subr.mxu0 0.0
      %5048 = vmatpush1.msra.mxu0 0.0
      %5049 = vmatprep.subr.mxu0 0.0
      %5050 = vmatpush1.msra.mxu0 0.0
      %5051 = vmatprep.subr.mxu0 0.0
      %5052 = vmatpush1.msra.mxu0 0.0
      %5053 = vmatprep.subr.mxu0 0.0
      %5054 = vmatpush1.msra.mxu0 0.0
      %5055 = vmatprep.subr.mxu0 0.0
      %5056 = vmatpush1.msra.mxu0 0.0
      %5057 = vmatprep.subr.mxu0 0.0
      %5058 = vmatpush1.msra.mxu0 0.0
      %5059 = vmatprep.subr.mxu0 0.0
      %5060 = vmatpush1.msra.mxu0 0.0
      %5061 = vmatprep.subr.mxu0 0.0
      %5062 = vmatpush1.msra.mxu0 0.0
      %5063 = vmatprep.subr.mxu0 0.0
      %5064 = vmatpush1.msra.mxu0 0.0
      %5065 = vmatprep.subr.mxu0 0.0
      %5066 = vmatpush1.msra.mxu0 0.0
      %5067 = vmatprep.subr.mxu0 0.0
      %5068 = vmatpush1.msra.mxu0 0.0
      %5069 = vmatprep.subr.mxu0 0.0
      %5070 = vmatpush1.msra.mxu0 0.0
      %5071 = vmatprep.subr.mxu0 0.0
      %5072 = vmatpush1.msra.mxu0 0.0
      %5073 = vmatprep.subr.mxu0 0.0
      %5074 = vmatpush1.msra.mxu0 0.0
      %5075 = vmatprep.subr.mxu0 0.0
      %5076 = vmatpush1.msra.mxu0 0.0
      %5077 = vmatprep.subr.mxu0 0.0
      %5078 = vmatpush1.msra.mxu0 0.0
      %5079 = vmatprep.subr.mxu0 0.0
      %5080 = vmatpush1.msra.mxu0 0.0
      %5081 = vmatprep.subr.mxu0 0.0
      %5082 = vmatpush1.msra.mxu0 0.0
      %5083 = vmatprep.subr.mxu0 0.0
      %5084 = vmatpush1.msra.mxu0 0.0
      %5085 = vmatprep.subr.mxu0 0.0
      %5086 = vmatpush1.msra.mxu0 0.0
      %5087 = vmatprep.subr.mxu0 0.0
      %5088 = vmatpush1.msra.mxu0 0.0
      %5089 = vmatprep.subr.mxu0 0.0
      %5090 = vmatpush1.msra.mxu0 0.0
      %5091 = vmatprep.subr.mxu0 0.0
      %5092 = vmatpush1.msra.mxu0 0.0
      %5093 = vmatprep.subr.mxu0 0.0
      %5094 = vmatpush1.msra.mxu0 0.0
      %5095 = vmatprep.subr.mxu0 0.0
      %5096 = vmatpush1.msra.mxu0 0.0
      %5097 = vmatprep.subr.mxu0 0.0
      %5098 = vmatpush1.msra.mxu0 0.0
      %5099 = vmatprep.subr.mxu0 0.0
      %5100 = vmatpush1.msra.mxu0 0.0
      %5101 = vmatprep.subr.mxu0 0.0
      %5102 = vmatpush1.msra.mxu0 0.0
      %5103 = vmatprep.mubr.f32.mxu0 0.0
      %5104 = vmatmul.mubr.f32.gmra.mrb[0].mxu0 %v5037
      %v5105 = vpop.f32.mrb[0].mxu0
      %v5106 = vadd.f32 0.0, %v5105
      %v5107 = vpop.f32.mrb[0].mxu0
      %5108 = vdwg.mxu0
      %5109 = vrot.lane.b32.xlu0 %v3917, 112
      %v5110 = vpop.permute.xlu0 %5109
      %5111 = vrot.lane.b32.xlu0 %v4011, 112
      %v5112 = vpop.permute.xlu0 %5111
      %v5113 = vsel %vm4104, %v5110, 0
      %v5115 = vsel %vm4104, %v5112, 0
      %5117 = vmatprep.subr.mxu0 0.0
      %5118 = vmatpush1.xpose.msra.mxu0 %v5115
      %5119 = vmatprep.subr.mxu0 0.0
      %5120 = vmatpush1.xpose.msra.mxu0 0.0
      %5121 = vmatprep.subr.mxu0 0.0
      %5122 = vmatpush1.xpose.msra.mxu0 0.0
      %5123 = vmatprep.subr.mxu0 0.0
      %5124 = vmatpush1.xpose.msra.mxu0 0.0
      %5125 = vmatprep.subr.mxu0 0.0
      %5126 = vmatpush1.xpose.msra.mxu0 0.0
      %5127 = vmatprep.subr.mxu0 0.0
      %5128 = vmatpush1.xpose.msra.mxu0 0.0
      %5129 = vmatprep.subr.mxu0 0.0
      %5130 = vmatpush1.xpose.msra.mxu0 0.0
      %5131 = vmatprep.subr.mxu0 0.0
      %5132 = vmatpush1.xpose.msra.mxu0 0.0
      %5133 = vmatprep.subr.mxu0 0.0
      %5134 = vmatpush1.xpose.msra.mxu0 0.0
      %5135 = vmatprep.subr.mxu0 0.0
      %5136 = vmatpush1.xpose.msra.mxu0 0.0
      %5137 = vmatprep.subr.mxu0 0.0
      %5138 = vmatpush1.xpose.msra.mxu0 0.0
      %5139 = vmatprep.subr.mxu0 0.0
      %5140 = vmatpush1.xpose.msra.mxu0 0.0
      %5141 = vmatprep.subr.mxu0 0.0
      %5142 = vmatpush1.xpose.msra.mxu0 0.0
      %5143 = vmatprep.subr.mxu0 0.0
      %5144 = vmatpush1.xpose.msra.mxu0 0.0
      %5145 = vmatprep.subr.mxu0 0.0
      %5146 = vmatpush1.xpose.msra.mxu0 0.0
      %5147 = vmatprep.subr.mxu0 0.0
      %5148 = vmatpush1.xpose.msra.mxu0 0.0
      %5149 = vmatprep.subr.mxu0 0.0
      %5150 = vmatpush1.xpose.msra.mxu0 0.0
      %5151 = vmatprep.subr.mxu0 0.0
      %5152 = vmatpush1.xpose.msra.mxu0 0.0
      %5153 = vmatprep.subr.mxu0 0.0
      %5154 = vmatpush1.xpose.msra.mxu0 0.0
      %5155 = vmatprep.subr.mxu0 0.0
      %5156 = vmatpush1.xpose.msra.mxu0 0.0
      %5157 = vmatprep.subr.mxu0 0.0
      %5158 = vmatpush1.xpose.msra.mxu0 0.0
      %5159 = vmatprep.subr.mxu0 0.0
      %5160 = vmatpush1.xpose.msra.mxu0 0.0
      %5161 = vmatprep.subr.mxu0 0.0
      %5162 = vmatpush1.xpose.msra.mxu0 0.0
      %5163 = vmatprep.subr.mxu0 0.0
      %5164 = vmatpush1.xpose.msra.mxu0 0.0
      %5165 = vmatprep.subr.mxu0 0.0
      %5166 = vmatpush1.xpose.msra.mxu0 0.0
      %5167 = vmatprep.subr.mxu0 0.0
      %5168 = vmatpush1.xpose.msra.mxu0 0.0
      %5169 = vmatprep.subr.mxu0 0.0
      %5170 = vmatpush1.xpose.msra.mxu0 0.0
      %5171 = vmatprep.subr.mxu0 0.0
      %5172 = vmatpush1.xpose.msra.mxu0 0.0
      %5173 = vmatprep.subr.mxu0 0.0
      %5174 = vmatpush1.xpose.msra.mxu0 0.0
      %5175 = vmatprep.subr.mxu0 0.0
      %5176 = vmatpush1.xpose.msra.mxu0 0.0
      %5177 = vmatprep.subr.mxu0 0.0
      %5178 = vmatpush1.xpose.msra.mxu0 0.0
      %5179 = vmatprep.subr.mxu0 0.0
      %5180 = vmatpush1.xpose.msra.mxu0 0.0
      %5181 = vmatprep.mubr.f32.mxu0 0.0
      %5182 = vmatmul.mubr.f32.gmra.mrb[0].mxu0 %v5113
      %v5183 = vpop.f32.mrb[0].mxu0
      %v5184 = vadd.f32 0.0, %v5183
      %v5185 = vpop.f32.mrb[0].mxu0
      %5186 = vdwg.mxu0
      %v5187 = vmul.f32 %v5184, 0.35355338
      %v5188 = vsel %vm4104, %v5187, -inf
      %5189 = vmax.xlane.f32.xlu0 %v5188
      %v5190 = vpop.xlane.xlu0 %5189
      %v5191 = vsub.f32 %v5187, %v5190
      %v5192 = vmul.f32 %v5191, 1.442695
      %v5193 = vpow.pop %v5192
      %v5194 = vsel %vm4104, %v5193, 0.0
      %5195 = vadd.xlane.f32.xlu0 %v5194
      %v5196 = vpop.xlane.xlu0 %5195
      %v5197 = vrcp.pop %v5196
      %v5198 = vmul.f32 %v5193, %v5197
      %5199 = vrot.lane.b32.xlu0 %v4101, 112
      %v5200 = vpop.permute.xlu0 %5199
      %v5203 = vsel %vm4104, %v5198, 0
      %5205 = vmatprep.subr.mxu0 0.0
      %5206 = vmatpush1.msra.mxu0 %v5200
      %5207 = vmatprep.subr.mxu0 0.0
      %5208 = vmatpush1.msra.mxu0 0.0
      %5209 = vmatprep.subr.mxu0 0.0
      %5210 = vmatpush1.msra.mxu0 0.0
      %5211 = vmatprep.subr.mxu0 0.0
      %5212 = vmatpush1.msra.mxu0 0.0
      %5213 = vmatprep.subr.mxu0 0.0
      %5214 = vmatpush1.msra.mxu0 0.0
      %5215 = vmatprep.subr.mxu0 0.0
      %5216 = vmatpush1.msra.mxu0 0.0
      %5217 = vmatprep.subr.mxu0 0.0
      %5218 = vmatpush1.msra.mxu0 0.0
      %5219 = vmatprep.subr.mxu0 0.0
      %5220 = vmatpush1.msra.mxu0 0.0
      %5221 = vmatprep.subr.mxu0 0.0
      %5222 = vmatpush1.msra.mxu0 0.0
      %5223 = vmatprep.subr.mxu0 0.0
      %5224 = vmatpush1.msra.mxu0 0.0
      %5225 = vmatprep.subr.mxu0 0.0
      %5226 = vmatpush1.msra.mxu0 0.0
      %5227 = vmatprep.subr.mxu0 0.0
      %5228 = vmatpush1.msra.mxu0 0.0
      %5229 = vmatprep.subr.mxu0 0.0
      %5230 = vmatpush1.msra.mxu0 0.0
      %5231 = vmatprep.subr.mxu0 0.0
      %5232 = vmatpush1.msra.mxu0 0.0
      %5233 = vmatprep.subr.mxu0 0.0
      %5234 = vmatpush1.msra.mxu0 0.0
      %5235 = vmatprep.subr.mxu0 0.0
      %5236 = vmatpush1.msra.mxu0 0.0
      %5237 = vmatprep.subr.mxu0 0.0
      %5238 = vmatpush1.msra.mxu0 0.0
      %5239 = vmatprep.subr.mxu0 0.0
      %5240 = vmatpush1.msra.mxu0 0.0
      %5241 = vmatprep.subr.mxu0 0.0
      %5242 = vmatpush1.msra.mxu0 0.0
      %5243 = vmatprep.subr.mxu0 0.0
      %5244 = vmatpush1.msra.mxu0 0.0
      %5245 = vmatprep.subr.mxu0 0.0
      %5246 = vmatpush1.msra.mxu0 0.0
      %5247 = vmatprep.subr.mxu0 0.0
      %5248 = vmatpush1.msra.mxu0 0.0
      %5249 = vmatprep.subr.mxu0 0.0
      %5250 = vmatpush1.msra.mxu0 0.0
      %5251 = vmatprep.subr.mxu0 0.0
      %5252 = vmatpush1.msra.mxu0 0.0
      %5253 = vmatprep.subr.mxu0 0.0
      %5254 = vmatpush1.msra.mxu0 0.0
      %5255 = vmatprep.subr.mxu0 0.0
      %5256 = vmatpush1.msra.mxu0 0.0
      %5257 = vmatprep.subr.mxu0 0.0
      %5258 = vmatpush1.msra.mxu0 0.0
      %5259 = vmatprep.subr.mxu0 0.0
      %5260 = vmatpush1.msra.mxu0 0.0
      %5261 = vmatprep.subr.mxu0 0.0
      %5262 = vmatpush1.msra.mxu0 0.0
      %5263 = vmatprep.subr.mxu0 0.0
      %5264 = vmatpush1.msra.mxu0 0.0
      %5265 = vmatprep.subr.mxu0 0.0
      %5266 = vmatpush1.msra.mxu0 0.0
      %5267 = vmatprep.subr.mxu0 0.0
      %5268 = vmatpush1.msra.mxu0 0.0
      %5269 = vmatprep.mubr.f32.mxu0 0.0
      %5270 = vmatmul.mubr.f32.gmra.mrb[0].mxu0 %v5203
      %v5271 = vpop.f32.mrb[0].mxu0
      %v5272 = vadd.f32 0.0, %v5271
      %v5273 = vpop.f32.mrb[0].mxu0
      %5274 = vdwg.mxu0
      %5275 = vrot.lane.b32.xlu0 %v3917, 104
      %v5276 = vpop.permute.xlu0 %5275
      %5277 = vrot.lane.b32.xlu0 %v4011, 104
      %v5278 = vpop.permute.xlu0 %5277
      %v5279 = vsel %vm4104, %v5276, 0
      %v5281 = vsel %vm4104, %v5278, 0
      %5283 = vmatprep.subr.mxu0 0.0
      %5284 = vmatpush1.xpose.msra.mxu0 %v5281
      %5285 = vmatprep.subr.mxu0 0.0
      %5286 = vmatpush1.xpose.msra.mxu0 0.0
      %5287 = vmatprep.subr.mxu0 0.0
      %5288 = vmatpush1.xpose.msra.mxu0 0.0
      %5289 = vmatprep.subr.mxu0 0.0
      %5290 = vmatpush1.xpose.msra.mxu0 0.0
      %5291 = vmatprep.subr.mxu0 0.0
      %5292 = vmatpush1.xpose.msra.mxu0 0.0
      %5293 = vmatprep.subr.mxu0 0.0
      %5294 = vmatpush1.xpose.msra.mxu0 0.0
      %5295 = vmatprep.subr.mxu0 0.0
      %5296 = vmatpush1.xpose.msra.mxu0 0.0
      %5297 = vmatprep.subr.mxu0 0.0
      %5298 = vmatpush1.xpose.msra.mxu0 0.0
      %5299 = vmatprep.subr.mxu0 0.0
      %5300 = vmatpush1.xpose.msra.mxu0 0.0
      %5301 = vmatprep.subr.mxu0 0.0
      %5302 = vmatpush1.xpose.msra.mxu0 0.0
      %5303 = vmatprep.subr.mxu0 0.0
      %5304 = vmatpush1.xpose.msra.mxu0 0.0
      %5305 = vmatprep.subr.mxu0 0.0
      %5306 = vmatpush1.xpose.msra.mxu0 0.0
      %5307 = vmatprep.subr.mxu0 0.0
      %5308 = vmatpush1.xpose.msra.mxu0 0.0
      %5309 = vmatprep.subr.mxu0 0.0
      %5310 = vmatpush1.xpose.msra.mxu0 0.0
      %5311 = vmatprep.subr.mxu0 0.0
      %5312 = vmatpush1.xpose.msra.mxu0 0.0
      %5313 = vmatprep.subr.mxu0 0.0
      %5314 = vmatpush1.xpose.msra.mxu0 0.0
      %5315 = vmatprep.subr.mxu0 0.0
      %5316 = vmatpush1.xpose.msra.mxu0 0.0
      %5317 = vmatprep.subr.mxu0 0.0
      %5318 = vmatpush1.xpose.msra.mxu0 0.0
      %5319 = vmatprep.subr.mxu0 0.0
      %5320 = vmatpush1.xpose.msra.mxu0 0.0
      %5321 = vmatprep.subr.mxu0 0.0
      %5322 = vmatpush1.xpose.msra.mxu0 0.0
      %5323 = vmatprep.subr.mxu0 0.0
      %5324 = vmatpush1.xpose.msra.mxu0 0.0
      %5325 = vmatprep.subr.mxu0 0.0
      %5326 = vmatpush1.xpose.msra.mxu0 0.0
      %5327 = vmatprep.subr.mxu0 0.0
      %5328 = vmatpush1.xpose.msra.mxu0 0.0
      %5329 = vmatprep.subr.mxu0 0.0
      %5330 = vmatpush1.xpose.msra.mxu0 0.0
      %5331 = vmatprep.subr.mxu0 0.0
      %5332 = vmatpush1.xpose.msra.mxu0 0.0
      %5333 = vmatprep.subr.mxu0 0.0
      %5334 = vmatpush1.xpose.msra.mxu0 0.0
      %5335 = vmatprep.subr.mxu0 0.0
      %5336 = vmatpush1.xpose.msra.mxu0 0.0
      %5337 = vmatprep.subr.mxu0 0.0
      %5338 = vmatpush1.xpose.msra.mxu0 0.0
      %5339 = vmatprep.subr.mxu0 0.0
      %5340 = vmatpush1.xpose.msra.mxu0 0.0
      %5341 = vmatprep.subr.mxu0 0.0
      %5342 = vmatpush1.xpose.msra.mxu0 0.0
      %5343 = vmatprep.subr.mxu0 0.0
      %5344 = vmatpush1.xpose.msra.mxu0 0.0
      %5345 = vmatprep.subr.mxu0 0.0
      %5346 = vmatpush1.xpose.msra.mxu0 0.0
      %5347 = vmatprep.mubr.f32.mxu0 0.0
      %5348 = vmatmul.mubr.f32.gmra.mrb[0].mxu0 %v5279
      %v5349 = vpop.f32.mrb[0].mxu0
      %v5350 = vadd.f32 0.0, %v5349
      %v5351 = vpop.f32.mrb[0].mxu0
      %5352 = vdwg.mxu0
      %v5353 = vmul.f32 %v5350, 0.35355338
      %v5354 = vsel %vm4104, %v5353, -inf
      %5355 = vmax.xlane.f32.xlu0 %v5354
      %v5356 = vpop.xlane.xlu0 %5355
      %v5357 = vsub.f32 %v5353, %v5356
      %v5358 = vmul.f32 %v5357, 1.442695
      %v5359 = vpow.pop %v5358
      %v5360 = vsel %vm4104, %v5359, 0.0
      %5361 = vadd.xlane.f32.xlu0 %v5360
      %v5362 = vpop.xlane.xlu0 %5361
      %v5363 = vrcp.pop %v5362
      %v5364 = vmul.f32 %v5359, %v5363
      %5365 = vrot.lane.b32.xlu0 %v4101, 104
      %v5366 = vpop.permute.xlu0 %5365
      %v5369 = vsel %vm4104, %v5364, 0
      %5371 = vmatprep.subr.mxu0 0.0
      %5372 = vmatpush1.msra.mxu0 %v5366
      %5373 = vmatprep.subr.mxu0 0.0
      %5374 = vmatpush1.msra.mxu0 0.0
      %5375 = vmatprep.subr.mxu0 0.0
      %5376 = vmatpush1.msra.mxu0 0.0
      %5377 = vmatprep.subr.mxu0 0.0
      %5378 = vmatpush1.msra.mxu0 0.0
      %5379 = vmatprep.subr.mxu0 0.0
      %5380 = vmatpush1.msra.mxu0 0.0
      %5381 = vmatprep.subr.mxu0 0.0
      %5382 = vmatpush1.msra.mxu0 0.0
      %5383 = vmatprep.subr.mxu0 0.0
      %5384 = vmatpush1.msra.mxu0 0.0
      %5385 = vmatprep.subr.mxu0 0.0
      %5386 = vmatpush1.msra.mxu0 0.0
      %5387 = vmatprep.subr.mxu0 0.0
      %5388 = vmatpush1.msra.mxu0 0.0
      %5389 = vmatprep.subr.mxu0 0.0
      %5390 = vmatpush1.msra.mxu0 0.0
      %5391 = vmatprep.subr.mxu0 0.0
      %5392 = vmatpush1.msra.mxu0 0.0
      %5393 = vmatprep.subr.mxu0 0.0
      %5394 = vmatpush1.msra.mxu0 0.0
      %5395 = vmatprep.subr.mxu0 0.0
      %5396 = vmatpush1.msra.mxu0 0.0
      %5397 = vmatprep.subr.mxu0 0.0
      %5398 = vmatpush1.msra.mxu0 0.0
      %5399 = vmatprep.subr.mxu0 0.0
      %5400 = vmatpush1.msra.mxu0 0.0
      %5401 = vmatprep.subr.mxu0 0.0
      %5402 = vmatpush1.msra.mxu0 0.0
      %5403 = vmatprep.subr.mxu0 0.0
      %5404 = vmatpush1.msra.mxu0 0.0
      %5405 = vmatprep.subr.mxu0 0.0
      %5406 = vmatpush1.msra.mxu0 0.0
      %5407 = vmatprep.subr.mxu0 0.0
      %5408 = vmatpush1.msra.mxu0 0.0
      %5409 = vmatprep.subr.mxu0 0.0
      %5410 = vmatpush1.msra.mxu0 0.0
      %5411 = vmatprep.subr.mxu0 0.0
      %5412 = vmatpush1.msra.mxu0 0.0
      %5413 = vmatprep.subr.mxu0 0.0
      %5414 = vmatpush1.msra.mxu0 0.0
      %5415 = vmatprep.subr.mxu0 0.0
      %5416 = vmatpush1.msra.mxu0 0.0
      %5417 = vmatprep.subr.mxu0 0.0
      %5418 = vmatpush1.msra.mxu0 0.0
      %5419 = vmatprep.subr.mxu0 0.0
      %5420 = vmatpush1.msra.mxu0 0.0
      %5421 = vmatprep.subr.mxu0 0.0
      %5422 = vmatpush1.msra.mxu0 0.0
      %5423 = vmatprep.subr.mxu0 0.0
      %5424 = vmatpush1.msra.mxu0 0.0
      %5425 = vmatprep.subr.mxu0 0.0
      %5426 = vmatpush1.msra.mxu0 0.0
      %5427 = vmatprep.subr.mxu0 0.0
      %5428 = vmatpush1.msra.mxu0 0.0
      %5429 = vmatprep.subr.mxu0 0.0
      %5430 = vmatpush1.msra.mxu0 0.0
      %5431 = vmatprep.subr.mxu0 0.0
      %5432 = vmatpush1.msra.mxu0 0.0
      %5433 = vmatprep.subr.mxu0 0.0
      %5434 = vmatpush1.msra.mxu0 0.0
      %5435 = vmatprep.mubr.f32.mxu0 0.0
      %5436 = vmatmul.mubr.f32.gmra.mrb[0].mxu0 %v5369
      %v5437 = vpop.f32.mrb[0].mxu0
      %v5438 = vadd.f32 0.0, %v5437
      %v5439 = vpop.f32.mrb[0].mxu0
      %5440 = vdwg.mxu0
      %5442 = vrot.lane.b32.xlu0 %v5106, 8
      %v5443 = vpop.permute.xlu0 %5442
      %5446 = vrot.lane.b32.xlu0 %v5272, 16
      %v5447 = vpop.permute.xlu0 %5446
      %5450 = vrot.lane.b32.xlu0 %v5438, 24
      %v5451 = vpop.permute.xlu0 %5450
      %v5453 = vsel %vm4104, %v4939, %v5443
      %v5454 = vsel %vm4778, %v5453, %v5447
      %v5455 = vsel %vm178, %v5454, %v5451
      %v5457 = vlaneseq
      %v5458 = vshrl.u32 %v5457, 7
      %v5459 = vsub.s32 0, %v5458
      %v5460 = vrot.slane %v3832, %v5459
      %v5463 = vsel %vm3766, %v4780, 0
      %v5466 = vsel %vm3766, %v5455, 0
      %5468 = vmatprep.subr.mxu0 0.0
      %5469 = vmatpush1.msra.mxu0 %v3827
      %5470 = vmatprep.subr.mxu0 0.0
      %5471 = vmatpush1.msra.mxu0 %v3828
      %5472 = vmatprep.subr.mxu0 0.0
      %5473 = vmatpush1.msra.mxu0 %v3829
      %5474 = vmatprep.subr.mxu0 0.0
      %5475 = vmatpush1.msra.mxu0 %v3830
      %5476 = vmatprep.subr.mxu0 0.0
      %5477 = vmatpush1.msra.mxu0 0.0
      %5478 = vmatprep.subr.mxu0 0.0
      %5479 = vmatpush1.msra.mxu0 0.0
      %5480 = vmatprep.subr.mxu0 0.0
      %5481 = vmatpush1.msra.mxu0 0.0
      %5482 = vmatprep.subr.mxu0 0.0
      %5483 = vmatpush1.msra.mxu0 0.0
      %5484 = vmatprep.subr.mxu0 0.0
      %5485 = vmatpush1.msra.mxu0 0.0
      %5486 = vmatprep.subr.mxu0 0.0
      %5487 = vmatpush1.msra.mxu0 0.0
      %5488 = vmatprep.subr.mxu0 0.0
      %5489 = vmatpush1.msra.mxu0 0.0
      %5490 = vmatprep.subr.mxu0 0.0
      %5491 = vmatpush1.msra.mxu0 0.0
      %5492 = vmatprep.subr.mxu0 0.0
      %5493 = vmatpush1.msra.mxu0 0.0
      %5494 = vmatprep.subr.mxu0 0.0
      %5495 = vmatpush1.msra.mxu0 0.0
      %5496 = vmatprep.subr.mxu0 0.0
      %5497 = vmatpush1.msra.mxu0 0.0
      %5498 = vmatprep.subr.mxu0 0.0
      %5499 = vmatpush1.msra.mxu0 0.0
      %5500 = vmatprep.subr.mxu0 0.0
      %5501 = vmatpush1.msra.mxu0 0.0
      %5502 = vmatprep.subr.mxu0 0.0
      %5503 = vmatpush1.msra.mxu0 0.0
      %5504 = vmatprep.subr.mxu0 0.0
      %5505 = vmatpush1.msra.mxu0 0.0
      %5506 = vmatprep.subr.mxu0 0.0
      %5507 = vmatpush1.msra.mxu0 0.0
      %5508 = vmatprep.subr.mxu0 0.0
      %5509 = vmatpush1.msra.mxu0 0.0
      %5510 = vmatprep.subr.mxu0 0.0
      %5511 = vmatpush1.msra.mxu0 0.0
      %5512 = vmatprep.subr.mxu0 0.0
      %5513 = vmatpush1.msra.mxu0 0.0
      %5514 = vmatprep.subr.mxu0 0.0
      %5515 = vmatpush1.msra.mxu0 0.0
      %5516 = vmatprep.subr.mxu0 0.0
      %5517 = vmatpush1.msra.mxu0 0.0
      %5518 = vmatprep.subr.mxu0 0.0
      %5519 = vmatpush1.msra.mxu0 0.0
      %5520 = vmatprep.subr.mxu0 0.0
      %5521 = vmatpush1.msra.mxu0 0.0
      %5522 = vmatprep.subr.mxu0 0.0
      %5523 = vmatpush1.msra.mxu0 0.0
      %5524 = vmatprep.subr.mxu0 0.0
      %5525 = vmatpush1.msra.mxu0 0.0
      %5526 = vmatprep.subr.mxu0 0.0
      %5527 = vmatpush1.msra.mxu0 0.0
      %5528 = vmatprep.subr.mxu0 0.0
      %5529 = vmatpush1.msra.mxu0 0.0
      %5530 = vmatprep.subr.mxu0 0.0
      %5531 = vmatpush1.msra.mxu0 0.0
      %5532 = vmatprep.mubr.f32.mxu0 0.0
      %5533 = vmatmul.mubr.f32.gmra.mrb[0].mxu0 %v5463
      %v5534 = vpop.f32.mrb[0].mxu0
      %v5535 = vadd.f32 %v5460, %v5534
      %v5536 = vpop.f32.mrb[0].mxu0
      %5537 = vmatprep.mubr.f32.mxu0 0.0
      %5538 = vmatmul.mubr.f32.gmra.mrb[0].mxu0 %v5466
      %v5539 = vpop.f32.mrb[0].mxu0
      %v5540 = vadd.f32 %v5460, %v5539
      %v5541 = vpop.f32.mrb[0].mxu0
      %5542 = vdwg.mxu0
      %v5543 = vadd.f32 %v3816, %v5535
      %v5544 = vadd.f32 %v3817, %v5540
      %s5545 = scalar_lea.vmem %s41, %s3811
      %v5546 = vld [vmem:[%s5545] sm:$0x1]
      %s5547 = scalar_lea.vmem %s43, %s3811
      %v5548 = vld [vmem:[%s5547] sm:$0x1]
      %v5549 = vsel %vm3766, %v5543, 0.0
      %5550 = vadd.xlane.f32.xlu0 %v5549
      %v5551 = vpop.xlane.xlu0 %5550
      %v5552 = vsel %vm3766, %v5544, 0.0
      %5553 = vadd.xlane.f32.xlu0 %v5552
      %v5554 = vpop.xlane.xlu0 %5553
      %v5555 = vmul.f32 %v5551, %v3773
      %v5556 = vmul.f32 %v5554, %v3773
      %v5557 = vsub.f32 %v5543, %v5555
      %v5558 = vsub.f32 %v5544, %v5556
      %v5559 = vmul.f32 %v5557, %v5557
      %v5560 = vmul.f32 %v5558, %v5558
      %v5561 = vsel %vm3766, %v5559, 0.0
      %5562 = vadd.xlane.f32.xlu0 %v5561
      %v5563 = vpop.xlane.xlu0 %5562
      %v5564 = vsel %vm3766, %v5560, 0.0
      %5565 = vadd.xlane.f32.xlu0 %v5564
      %v5566 = vpop.xlane.xlu0 %5565
      %v5567 = vmul.f32 %v5563, %v3773
      %v5568 = vmul.f32 %v5566, %v3773
      %v5569 = vadd.f32 %v5567, 1e-05
      %v5570 = vadd.f32 %v5568, 1e-05
      %v5571 = vrsqrt.pop %v5569
      %v5572 = vrsqrt.pop %v5570
      %v5573 = vmul.f32 %v5557, %v5571
      %v5574 = vmul.f32 %v5558, %v5572
      %v5576 = vlaneseq
      %v5577 = vshrl.u32 %v5576, 7
      %v5578 = vsub.s32 0, %v5577
      %v5579 = vrot.slane %v5546, %v5578
      %v5581 = vmul.f32 %v5573, %v5579
      %v5582 = vmul.f32 %v5574, %v5579
      %v5584 = vlaneseq
      %v5585 = vshrl.u32 %v5584, 7
      %v5586 = vsub.s32 0, %v5585
      %v5587 = vrot.slane %v5548, %v5586
      %v5589 = vadd.f32 %v5581, %v5587
      %v5590 = vadd.f32 %v5582, %v5587
      %s5591 = scalar_lea.vmem %s45, %s3818
      %v5592 = vld [vmem:[%s5591] sm:$0xff]
      %v5593 = vld [vmem:[%s5591 + $0x8] sm:$0xff]
      %v5594 = vld [vmem:[%s5591 + $0x10] sm:$0xff]
      %v5595 = vld [vmem:[%s5591 + $0x18] sm:$0xff]
      %s5596 = scalar_lea.vmem %s47, %s3811
      %v5597 = vld [vmem:[%s5596] sm:$0x1]
      %s5598 = scalar_lea.vmem %s49, %s3818
      %v5599 = vld [vmem:[%s5598] sm:$0xff]
      %v5600 = vld [vmem:[%s5598 + $0x8] sm:$0xff]
      %v5601 = vld [vmem:[%s5598 + $0x10] sm:$0xff]
      %v5602 = vld [vmem:[%s5598 + $0x18] sm:$0xff]
      %s5603 = scalar_lea.vmem %s51, %s3811
      %v5604 = vld [vmem:[%s5603] sm:$0x1]
      %v5606 = vlaneseq
      %v5607 = vshrl.u32 %v5606, 7
      %v5608 = vsub.s32 0, %v5607
      %v5609 = vrot.slane %v5597, %v5608
      %v5612 = vsel %vm3766, %v5589, 0
      %v5615 = vsel %vm3766, %v5590, 0
      %5617 = vmatprep.subr.mxu0 0.0
      %5618 = vmatpush1.msra.mxu0 %v5592
      %5619 = vmatprep.subr.mxu0 0.0
      %5620 = vmatpush1.msra.mxu0 %v5593
      %5621 = vmatprep.subr.mxu0 0.0
      %5622 = vmatpush1.msra.mxu0 %v5594
      %5623 = vmatprep.subr.mxu0 0.0
      %5624 = vmatpush1.msra.mxu0 %v5595
      %5625 = vmatprep.subr.mxu0 0.0
      %5626 = vmatpush1.msra.mxu0 0.0
      %5627 = vmatprep.subr.mxu0 0.0
      %5628 = vmatpush1.msra.mxu0 0.0
      %5629 = vmatprep.subr.mxu0 0.0
      %5630 = vmatpush1.msra.mxu0 0.0
      %5631 = vmatprep.subr.mxu0 0.0
      %5632 = vmatpush1.msra.mxu0 0.0
      %5633 = vmatprep.subr.mxu0 0.0
      %5634 = vmatpush1.msra.mxu0 0.0
      %5635 = vmatprep.subr.mxu0 0.0
      %5636 = vmatpush1.msra.mxu0 0.0
      %5637 = vmatprep.subr.mxu0 0.0
      %5638 = vmatpush1.msra.mxu0 0.0
      %5639 = vmatprep.subr.mxu0 0.0
      %5640 = vmatpush1.msra.mxu0 0.0
      %5641 = vmatprep.subr.mxu0 0.0
      %5642 = vmatpush1.msra.mxu0 0.0
      %5643 = vmatprep.subr.mxu0 0.0
      %5644 = vmatpush1.msra.mxu0 0.0
      %5645 = vmatprep.subr.mxu0 0.0
      %5646 = vmatpush1.msra.mxu0 0.0
      %5647 = vmatprep.subr.mxu0 0.0
      %5648 = vmatpush1.msra.mxu0 0.0
      %5649 = vmatprep.subr.mxu0 0.0
      %5650 = vmatpush1.msra.mxu0 0.0
      %5651 = vmatprep.subr.mxu0 0.0
      %5652 = vmatpush1.msra.mxu0 0.0
      %5653 = vmatprep.subr.mxu0 0.0
      %5654 = vmatpush1.msra.mxu0 0.0
      %5655 = vmatprep.subr.mxu0 0.0
      %5656 = vmatpush1.msra.mxu0 0.0
      %5657 = vmatprep.subr.mxu0 0.0
      %5658 = vmatpush1.msra.mxu0 0.0
      %5659 = vmatprep.subr.mxu0 0.0
      %5660 = vmatpush1.msra.mxu0 0.0
      %5661 = vmatprep.subr.mxu0 0.0
      %5662 = vmatpush1.msra.mxu0 0.0
      %5663 = vmatprep.subr.mxu0 0.0
      %5664 = vmatpush1.msra.mxu0 0.0
      %5665 = vmatprep.subr.mxu0 0.0
      %5666 = vmatpush1.msra.mxu0 0.0
      %5667 = vmatprep.subr.mxu0 0.0
      %5668 = vmatpush1.msra.mxu0 0.0
      %5669 = vmatprep.subr.mxu0 0.0
      %5670 = vmatpush1.msra.mxu0 0.0
      %5671 = vmatprep.subr.mxu0 0.0
      %5672 = vmatpush1.msra.mxu0 0.0
      %5673 = vmatprep.subr.mxu0 0.0
      %5674 = vmatpush1.msra.mxu0 0.0
      %5675 = vmatprep.subr.mxu0 0.0
      %5676 = vmatpush1.msra.mxu0 0.0
      %5677 = vmatprep.subr.mxu0 0.0
      %5678 = vmatpush1.msra.mxu0 0.0
      %5679 = vmatprep.subr.mxu0 0.0
      %5680 = vmatpush1.msra.mxu0 0.0
      %5681 = vmatprep.mubr.f32.mxu0 0.0
      %5682 = vmatmul.mubr.f32.gmra.mrb[0].mxu0 %v5612
      %v5683 = vpop.f32.mrb[0].mxu0
      %v5684 = vadd.f32 %v5609, %v5683
      %v5685 = vpop.f32.mrb[0].mxu0
      %5686 = vmatprep.mubr.f32.mxu0 0.0
      %5687 = vmatmul.mubr.f32.gmra.mrb[0].mxu0 %v5615
      %v5688 = vpop.f32.mrb[0].mxu0
      %v5689 = vadd.f32 %v5609, %v5688
      %v5690 = vpop.f32.mrb[0].mxu0
      %5691 = vdwg.mxu0
      %5696 = vrot.lane.b32.xlu0 %v5592, 96
      %v5697 = vpop.permute.xlu0 %5696
      %5698 = vrot.lane.b32.xlu0 %v5593, 96
      %v5699 = vpop.permute.xlu0 %5698
      %5700 = vrot.lane.b32.xlu0 %v5594, 96
      %v5701 = vpop.permute.xlu0 %5700
      %5702 = vrot.lane.b32.xlu0 %v5595, 96
      %v5703 = vpop.permute.xlu0 %5702
      %5708 = vrot.lane.b32.xlu0 %v5609, 96
      %v5709 = vpop.permute.xlu0 %5708
      %v5712 = vsel %vm3766, %v3808, 0
      %v5715 = vsel %vm3766, %v3809, 0
      %5717 = vmatprep.subr.mxu0 0.0
      %5718 = vmatpush1.msra.mxu0 %v5697
      %5719 = vmatprep.subr.mxu0 0.0
      %5720 = vmatpush1.msra.mxu0 %v5699
      %5721 = vmatprep.subr.mxu0 0.0
      %5722 = vmatpush1.msra.mxu0 %v5701
      %5723 = vmatprep.subr.mxu0 0.0
      %5724 = vmatpush1.msra.mxu0 %v5703
      %5725 = vmatprep.subr.mxu0 0.0
      %5726 = vmatpush1.msra.mxu0 0.0
      %5727 = vmatprep.subr.mxu0 0.0
      %5728 = vmatpush1.msra.mxu0 0.0
      %5729 = vmatprep.subr.mxu0 0.0
      %5730 = vmatpush1.msra.mxu0 0.0
      %5731 = vmatprep.subr.mxu0 0.0
      %5732 = vmatpush1.msra.mxu0 0.0
      %5733 = vmatprep.subr.mxu0 0.0
      %5734 = vmatpush1.msra.mxu0 0.0
      %5735 = vmatprep.subr.mxu0 0.0
      %5736 = vmatpush1.msra.mxu0 0.0
      %5737 = vmatprep.subr.mxu0 0.0
      %5738 = vmatpush1.msra.mxu0 0.0
      %5739 = vmatprep.subr.mxu0 0.0
      %5740 = vmatpush1.msra.mxu0 0.0
      %5741 = vmatprep.subr.mxu0 0.0
      %5742 = vmatpush1.msra.mxu0 0.0
      %5743 = vmatprep.subr.mxu0 0.0
      %5744 = vmatpush1.msra.mxu0 0.0
      %5745 = vmatprep.subr.mxu0 0.0
      %5746 = vmatpush1.msra.mxu0 0.0
      %5747 = vmatprep.subr.mxu0 0.0
      %5748 = vmatpush1.msra.mxu0 0.0
      %5749 = vmatprep.subr.mxu0 0.0
      %5750 = vmatpush1.msra.mxu0 0.0
      %5751 = vmatprep.subr.mxu0 0.0
      %5752 = vmatpush1.msra.mxu0 0.0
      %5753 = vmatprep.subr.mxu0 0.0
      %5754 = vmatpush1.msra.mxu0 0.0
      %5755 = vmatprep.subr.mxu0 0.0
      %5756 = vmatpush1.msra.mxu0 0.0
      %5757 = vmatprep.subr.mxu0 0.0
      %5758 = vmatpush1.msra.mxu0 0.0
      %5759 = vmatprep.subr.mxu0 0.0
      %5760 = vmatpush1.msra.mxu0 0.0
      %5761 = vmatprep.subr.mxu0 0.0
      %5762 = vmatpush1.msra.mxu0 0.0
      %5763 = vmatprep.subr.mxu0 0.0
      %5764 = vmatpush1.msra.mxu0 0.0
      %5765 = vmatprep.subr.mxu0 0.0
      %5766 = vmatpush1.msra.mxu0 0.0
      %5767 = vmatprep.subr.mxu0 0.0
      %5768 = vmatpush1.msra.mxu0 0.0
      %5769 = vmatprep.subr.mxu0 0.0
      %5770 = vmatpush1.msra.mxu0 0.0
      %5771 = vmatprep.subr.mxu0 0.0
      %5772 = vmatpush1.msra.mxu0 0.0
      %5773 = vmatprep.subr.mxu0 0.0
      %5774 = vmatpush1.msra.mxu0 0.0
      %5775 = vmatprep.subr.mxu0 0.0
      %5776 = vmatpush1.msra.mxu0 0.0
      %5777 = vmatprep.subr.mxu0 0.0
      %5778 = vmatpush1.msra.mxu0 0.0
      %5779 = vmatprep.subr.mxu0 0.0
      %5780 = vmatpush1.msra.mxu0 0.0
      %5781 = vmatprep.mubr.f32.mxu0 0.0
      %5782 = vmatmul.mubr.f32.gmra.mrb[0].mxu0 %v5712
      %v5783 = vpop.f32.mrb[0].mxu0
      %v5784 = vadd.f32 %v5709, %v5783
      %v5785 = vpop.f32.mrb[0].mxu0
      %5786 = vmatprep.mubr.f32.mxu0 0.0
      %5787 = vmatmul.mubr.f32.gmra.mrb[0].mxu0 %v5715
      %v5788 = vpop.f32.mrb[0].mxu0
      %v5789 = vadd.f32 %v5709, %v5788
      %v5790 = vpop.f32.mrb[0].mxu0
      %5791 = vdwg.mxu0
      %5792 = vrot.lane.b32.xlu0 %v5592, 64
      %v5793 = vpop.permute.xlu0 %5792
      %5794 = vrot.lane.b32.xlu0 %v5593, 64
      %v5795 = vpop.permute.xlu0 %5794
      %5796 = vrot.lane.b32.xlu0 %v5594, 64
      %v5797 = vpop.permute.xlu0 %5796
      %5798 = vrot.lane.b32.xlu0 %v5595, 64
      %v5799 = vpop.permute.xlu0 %5798
      %5804 = vrot.lane.b32.xlu0 %v5609, 64
      %v5805 = vpop.permute.xlu0 %5804
      %5807 = vmatprep.subr.mxu0 0.0
      %5808 = vmatpush1.msra.mxu0 %v5793
      %5809 = vmatprep.subr.mxu0 0.0
      %5810 = vmatpush1.msra.mxu0 %v5795
      %5811 = vmatprep.subr.mxu0 0.0
      %5812 = vmatpush1.msra.mxu0 %v5797
      %5813 = vmatprep.subr.mxu0 0.0
      %5814 = vmatpush1.msra.mxu0 %v5799
      %5815 = vmatprep.subr.mxu0 0.0
      %5816 = vmatpush1.msra.mxu0 0.0
      %5817 = vmatprep.subr.mxu0 0.0
      %5818 = vmatpush1.msra.mxu0 0.0
      %5819 = vmatprep.subr.mxu0 0.0
      %5820 = vmatpush1.msra.mxu0 0.0
      %5821 = vmatprep.subr.mxu0 0.0
      %5822 = vmatpush1.msra.mxu0 0.0
      %5823 = vmatprep.subr.mxu0 0.0
      %5824 = vmatpush1.msra.mxu0 0.0
      %5825 = vmatprep.subr.mxu0 0.0
      %5826 = vmatpush1.msra.mxu0 0.0
      %5827 = vmatprep.subr.mxu0 0.0
      %5828 = vmatpush1.msra.mxu0 0.0
      %5829 = vmatprep.subr.mxu0 0.0
      %5830 = vmatpush1.msra.mxu0 0.0
      %5831 = vmatprep.subr.mxu0 0.0
      %5832 = vmatpush1.msra.mxu0 0.0
      %5833 = vmatprep.subr.mxu0 0.0
      %5834 = vmatpush1.msra.mxu0 0.0
      %5835 = vmatprep.subr.mxu0 0.0
      %5836 = vmatpush1.msra.mxu0 0.0
      %5837 = vmatprep.subr.mxu0 0.0
      %5838 = vmatpush1.msra.mxu0 0.0
      %5839 = vmatprep.subr.mxu0 0.0
      %5840 = vmatpush1.msra.mxu0 0.0
      %5841 = vmatprep.subr.mxu0 0.0
      %5842 = vmatpush1.msra.mxu0 0.0
      %5843 = vmatprep.subr.mxu0 0.0
      %5844 = vmatpush1.msra.mxu0 0.0
      %5845 = vmatprep.subr.mxu0 0.0
      %5846 = vmatpush1.msra.mxu0 0.0
      %5847 = vmatprep.subr.mxu0 0.0
      %5848 = vmatpush1.msra.mxu0 0.0
      %5849 = vmatprep.subr.mxu0 0.0
      %5850 = vmatpush1.msra.mxu0 0.0
      %5851 = vmatprep.subr.mxu0 0.0
      %5852 = vmatpush1.msra.mxu0 0.0
      %5853 = vmatprep.subr.mxu0 0.0
      %5854 = vmatpush1.msra.mxu0 0.0
      %5855 = vmatprep.subr.mxu0 0.0
      %5856 = vmatpush1.msra.mxu0 0.0
      %5857 = vmatprep.subr.mxu0 0.0
      %5858 = vmatpush1.msra.mxu0 0.0
      %5859 = vmatprep.subr.mxu0 0.0
      %5860 = vmatpush1.msra.mxu0 0.0
      %5861 = vmatprep.subr.mxu0 0.0
      %5862 = vmatpush1.msra.mxu0 0.0
      %5863 = vmatprep.subr.mxu0 0.0
      %5864 = vmatpush1.msra.mxu0 0.0
      %5865 = vmatprep.subr.mxu0 0.0
      %5866 = vmatpush1.msra.mxu0 0.0
      %5867 = vmatprep.subr.mxu0 0.0
      %5868 = vmatpush1.msra.mxu0 0.0
      %5869 = vmatprep.subr.mxu0 0.0
      %5870 = vmatpush1.msra.mxu0 0.0
      %5871 = vmatprep.mubr.f32.mxu0 0.0
      %5872 = vmatmul.mubr.f32.gmra.mrb[0].mxu0 %v5712
      %v5873 = vpop.f32.mrb[0].mxu0
      %v5874 = vadd.f32 %v5805, %v5873
      %v5875 = vpop.f32.mrb[0].mxu0
      %5876 = vmatprep.mubr.f32.mxu0 0.0
      %5877 = vmatmul.mubr.f32.gmra.mrb[0].mxu0 %v5715
      %v5878 = vpop.f32.mrb[0].mxu0
      %v5879 = vadd.f32 %v5805, %v5878
      %v5880 = vpop.f32.mrb[0].mxu0
      %5881 = vdwg.mxu0
      %v5883 = vsel %vm4104, %v5684, 0
      %v5886 = vsel %vm4104, %v5784, 0
      %5888 = vmatprep.subr.mxu0 0.0
      %5889 = vmatpush1.xpose.msra.mxu0 %v5886
      %5890 = vmatprep.subr.mxu0 0.0
      %5891 = vmatpush1.xpose.msra.mxu0 0.0
      %5892 = vmatprep.subr.mxu0 0.0
      %5893 = vmatpush1.xpose.msra.mxu0 0.0
      %5894 = vmatprep.subr.mxu0 0.0
      %5895 = vmatpush1.xpose.msra.mxu0 0.0
      %5896 = vmatprep.subr.mxu0 0.0
      %5897 = vmatpush1.xpose.msra.mxu0 0.0
      %5898 = vmatprep.subr.mxu0 0.0
      %5899 = vmatpush1.xpose.msra.mxu0 0.0
      %5900 = vmatprep.subr.mxu0 0.0
      %5901 = vmatpush1.xpose.msra.mxu0 0.0
      %5902 = vmatprep.subr.mxu0 0.0
      %5903 = vmatpush1.xpose.msra.mxu0 0.0
      %5904 = vmatprep.subr.mxu0 0.0
      %5905 = vmatpush1.xpose.msra.mxu0 0.0
      %5906 = vmatprep.subr.mxu0 0.0
      %5907 = vmatpush1.xpose.msra.mxu0 0.0
      %5908 = vmatprep.subr.mxu0 0.0
      %5909 = vmatpush1.xpose.msra.mxu0 0.0
      %5910 = vmatprep.subr.mxu0 0.0
      %5911 = vmatpush1.xpose.msra.mxu0 0.0
      %5912 = vmatprep.subr.mxu0 0.0
      %5913 = vmatpush1.xpose.msra.mxu0 0.0
      %5914 = vmatprep.subr.mxu0 0.0
      %5915 = vmatpush1.xpose.msra.mxu0 0.0
      %5916 = vmatprep.subr.mxu0 0.0
      %5917 = vmatpush1.xpose.msra.mxu0 0.0
      %5918 = vmatprep.subr.mxu0 0.0
      %5919 = vmatpush1.xpose.msra.mxu0 0.0
      %5920 = vmatprep.subr.mxu0 0.0
      %5921 = vmatpush1.xpose.msra.mxu0 0.0
      %5922 = vmatprep.subr.mxu0 0.0
      %5923 = vmatpush1.xpose.msra.mxu0 0.0
      %5924 = vmatprep.subr.mxu0 0.0
      %5925 = vmatpush1.xpose.msra.mxu0 0.0
      %5926 = vmatprep.subr.mxu0 0.0
      %5927 = vmatpush1.xpose.msra.mxu0 0.0
      %5928 = vmatprep.subr.mxu0 0.0
      %5929 = vmatpush1.xpose.msra.mxu0 0.0
      %5930 = vmatprep.subr.mxu0 0.0
      %5931 = vmatpush1.xpose.msra.mxu0 0.0
      %5932 = vmatprep.subr.mxu0 0.0
      %5933 = vmatpush1.xpose.msra.mxu0 0.0
      %5934 = vmatprep.subr.mxu0 0.0
      %5935 = vmatpush1.xpose.msra.mxu0 0.0
      %5936 = vmatprep.subr.mxu0 0.0
      %5937 = vmatpush1.xpose.msra.mxu0 0.0
      %5938 = vmatprep.subr.mxu0 0.0
      %5939 = vmatpush1.xpose.msra.mxu0 0.0
      %5940 = vmatprep.subr.mxu0 0.0
      %5941 = vmatpush1.xpose.msra.mxu0 0.0
      %5942 = vmatprep.subr.mxu0 0.0
      %5943 = vmatpush1.xpose.msra.mxu0 0.0
      %5944 = vmatprep.subr.mxu0 0.0
      %5945 = vmatpush1.xpose.msra.mxu0 0.0
      %5946 = vmatprep.subr.mxu0 0.0
      %5947 = vmatpush1.xpose.msra.mxu0 0.0
      %5948 = vmatprep.subr.mxu0 0.0
      %5949 = vmatpush1.xpose.msra.mxu0 0.0
      %5950 = vmatprep.subr.mxu0 0.0
      %5951 = vmatpush1.xpose.msra.mxu0 0.0
      %5952 = vmatprep.mubr.f32.mxu0 0.0
      %5953 = vmatmul.mubr.f32.gmra.mrb[0].mxu0 %v5883
      %v5954 = vpop.f32.mrb[0].mxu0
      %v5955 = vadd.f32 0.0, %v5954
      %v5956 = vpop.f32.mrb[0].mxu0
      %5957 = vdwg.mxu0
      %v5958 = vmul.f32 %v5955, 0.35355338
      %v5959 = vsel %vm4104, %v5958, -inf
      %5960 = vmax.xlane.f32.xlu0 %v5959
      %v5961 = vpop.xlane.xlu0 %5960
      %v5962 = vsub.f32 %v5958, %v5961
      %v5963 = vmul.f32 %v5962, 1.442695
      %v5964 = vpow.pop %v5963
      %v5965 = vsel %vm4104, %v5964, 0.0
      %5966 = vadd.xlane.f32.xlu0 %v5965
      %v5967 = vpop.xlane.xlu0 %5966
      %v5968 = vrcp.pop %v5967
      %v5969 = vmul.f32 %v5964, %v5968
      %v5971 = vsel %vm4104, %v5969, 0
      %5973 = vmatprep.subr.mxu0 0.0
      %5974 = vmatpush1.msra.mxu0 %v5874
      %5975 = vmatprep.subr.mxu0 0.0
      %5976 = vmatpush1.msra.mxu0 0.0
      %5977 = vmatprep.subr.mxu0 0.0
      %5978 = vmatpush1.msra.mxu0 0.0
      %5979 = vmatprep.subr.mxu0 0.0
      %5980 = vmatpush1.msra.mxu0 0.0
      %5981 = vmatprep.subr.mxu0 0.0
      %5982 = vmatpush1.msra.mxu0 0.0
      %5983 = vmatprep.subr.mxu0 0.0
      %5984 = vmatpush1.msra.mxu0 0.0
      %5985 = vmatprep.subr.mxu0 0.0
      %5986 = vmatpush1.msra.mxu0 0.0
      %5987 = vmatprep.subr.mxu0 0.0
      %5988 = vmatpush1.msra.mxu0 0.0
      %5989 = vmatprep.subr.mxu0 0.0
      %5990 = vmatpush1.msra.mxu0 0.0
      %5991 = vmatprep.subr.mxu0 0.0
      %5992 = vmatpush1.msra.mxu0 0.0
      %5993 = vmatprep.subr.mxu0 0.0
      %5994 = vmatpush1.msra.mxu0 0.0
      %5995 = vmatprep.subr.mxu0 0.0
      %5996 = vmatpush1.msra.mxu0 0.0
      %5997 = vmatprep.subr.mxu0 0.0
      %5998 = vmatpush1.msra.mxu0 0.0
      %5999 = vmatprep.subr.mxu0 0.0
      %6000 = vmatpush1.msra.mxu0 0.0
      %6001 = vmatprep.subr.mxu0 0.0
      %6002 = vmatpush1.msra.mxu0 0.0
      %6003 = vmatprep.subr.mxu0 0.0
      %6004 = vmatpush1.msra.mxu0 0.0
      %6005 = vmatprep.subr.mxu0 0.0
      %6006 = vmatpush1.msra.mxu0 0.0
      %6007 = vmatprep.subr.mxu0 0.0
      %6008 = vmatpush1.msra.mxu0 0.0
      %6009 = vmatprep.subr.mxu0 0.0
      %6010 = vmatpush1.msra.mxu0 0.0
      %6011 = vmatprep.subr.mxu0 0.0
      %6012 = vmatpush1.msra.mxu0 0.0
      %6013 = vmatprep.subr.mxu0 0.0
      %6014 = vmatpush1.msra.mxu0 0.0
      %6015 = vmatprep.subr.mxu0 0.0
      %6016 = vmatpush1.msra.mxu0 0.0
      %6017 = vmatprep.subr.mxu0 0.0
      %6018 = vmatpush1.msra.mxu0 0.0
      %6019 = vmatprep.subr.mxu0 0.0
      %6020 = vmatpush1.msra.mxu0 0.0
      %6021 = vmatprep.subr.mxu0 0.0
      %6022 = vmatpush1.msra.mxu0 0.0
      %6023 = vmatprep.subr.mxu0 0.0
      %6024 = vmatpush1.msra.mxu0 0.0
      %6025 = vmatprep.subr.mxu0 0.0
      %6026 = vmatpush1.msra.mxu0 0.0
      %6027 = vmatprep.subr.mxu0 0.0
      %6028 = vmatpush1.msra.mxu0 0.0
      %6029 = vmatprep.subr.mxu0 0.0
      %6030 = vmatpush1.msra.mxu0 0.0
      %6031 = vmatprep.subr.mxu0 0.0
      %6032 = vmatpush1.msra.mxu0 0.0
      %6033 = vmatprep.subr.mxu0 0.0
      %6034 = vmatpush1.msra.mxu0 0.0
      %6035 = vmatprep.subr.mxu0 0.0
      %6036 = vmatpush1.msra.mxu0 0.0
      %6037 = vmatprep.mubr.f32.mxu0 0.0
      %6038 = vmatmul.mubr.f32.gmra.mrb[0].mxu0 %v5971
      %v6039 = vpop.f32.mrb[0].mxu0
      %v6040 = vadd.f32 0.0, %v6039
      %v6041 = vpop.f32.mrb[0].mxu0
      %6042 = vdwg.mxu0
      %6043 = vrot.lane.b32.xlu0 %v5684, 120
      %v6044 = vpop.permute.xlu0 %6043
      %6045 = vrot.lane.b32.xlu0 %v5784, 120
      %v6046 = vpop.permute.xlu0 %6045
      %v6047 = vsel %vm4104, %v6044, 0
      %v6049 = vsel %vm4104, %v6046, 0
      %6051 = vmatprep.subr.mxu0 0.0
      %6052 = vmatpush1.xpose.msra.mxu0 %v6049
      %6053 = vmatprep.subr.mxu0 0.0
      %6054 = vmatpush1.xpose.msra.mxu0 0.0
      %6055 = vmatprep.subr.mxu0 0.0
      %6056 = vmatpush1.xpose.msra.mxu0 0.0
      %6057 = vmatprep.subr.mxu0 0.0
      %6058 = vmatpush1.xpose.msra.mxu0 0.0
      %6059 = vmatprep.subr.mxu0 0.0
      %6060 = vmatpush1.xpose.msra.mxu0 0.0
      %6061 = vmatprep.subr.mxu0 0.0
      %6062 = vmatpush1.xpose.msra.mxu0 0.0
      %6063 = vmatprep.subr.mxu0 0.0
      %6064 = vmatpush1.xpose.msra.mxu0 0.0
      %6065 = vmatprep.subr.mxu0 0.0
      %6066 = vmatpush1.xpose.msra.mxu0 0.0
      %6067 = vmatprep.subr.mxu0 0.0
      %6068 = vmatpush1.xpose.msra.mxu0 0.0
      %6069 = vmatprep.subr.mxu0 0.0
      %6070 = vmatpush1.xpose.msra.mxu0 0.0
      %6071 = vmatprep.subr.mxu0 0.0
      %6072 = vmatpush1.xpose.msra.mxu0 0.0
      %6073 = vmatprep.subr.mxu0 0.0
      %6074 = vmatpush1.xpose.msra.mxu0 0.0
      %6075 = vmatprep.subr.mxu0 0.0
      %6076 = vmatpush1.xpose.msra.mxu0 0.0
      %6077 = vmatprep.subr.mxu0 0.0
      %6078 = vmatpush1.xpose.msra.mxu0 0.0
      %6079 = vmatprep.subr.mxu0 0.0
      %6080 = vmatpush1.xpose.msra.mxu0 0.0
      %6081 = vmatprep.subr.mxu0 0.0
      %6082 = vmatpush1.xpose.msra.mxu0 0.0
      %6083 = vmatprep.subr.mxu0 0.0
      %6084 = vmatpush1.xpose.msra.mxu0 0.0
      %6085 = vmatprep.subr.mxu0 0.0
      %6086 = vmatpush1.xpose.msra.mxu0 0.0
      %6087 = vmatprep.subr.mxu0 0.0
      %6088 = vmatpush1.xpose.msra.mxu0 0.0
      %6089 = vmatprep.subr.mxu0 0.0
      %6090 = vmatpush1.xpose.msra.mxu0 0.0
      %6091 = vmatprep.subr.mxu0 0.0
      %6092 = vmatpush1.xpose.msra.mxu0 0.0
      %6093 = vmatprep.subr.mxu0 0.0
      %6094 = vmatpush1.xpose.msra.mxu0 0.0
      %6095 = vmatprep.subr.mxu0 0.0
      %6096 = vmatpush1.xpose.msra.mxu0 0.0
      %6097 = vmatprep.subr.mxu0 0.0
      %6098 = vmatpush1.xpose.msra.mxu0 0.0
      %6099 = vmatprep.subr.mxu0 0.0
      %6100 = vmatpush1.xpose.msra.mxu0 0.0
      %6101 = vmatprep.subr.mxu0 0.0
      %6102 = vmatpush1.xpose.msra.mxu0 0.0
      %6103 = vmatprep.subr.mxu0 0.0
      %6104 = vmatpush1.xpose.msra.mxu0 0.0
      %6105 = vmatprep.subr.mxu0 0.0
      %6106 = vmatpush1.xpose.msra.mxu0 0.0
      %6107 = vmatprep.subr.mxu0 0.0
      %6108 = vmatpush1.xpose.msra.mxu0 0.0
      %6109 = vmatprep.subr.mxu0 0.0
      %6110 = vmatpush1.xpose.msra.mxu0 0.0
      %6111 = vmatprep.subr.mxu0 0.0
      %6112 = vmatpush1.xpose.msra.mxu0 0.0
      %6113 = vmatprep.subr.mxu0 0.0
      %6114 = vmatpush1.xpose.msra.mxu0 0.0
      %6115 = vmatprep.mubr.f32.mxu0 0.0
      %6116 = vmatmul.mubr.f32.gmra.mrb[0].mxu0 %v6047
      %v6117 = vpop.f32.mrb[0].mxu0
      %v6118 = vadd.f32 0.0, %v6117
      %v6119 = vpop.f32.mrb[0].mxu0
      %6120 = vdwg.mxu0
      %v6121 = vmul.f32 %v6118, 0.35355338
      %v6122 = vsel %vm4104, %v6121, -inf
      %6123 = vmax.xlane.f32.xlu0 %v6122
      %v6124 = vpop.xlane.xlu0 %6123
      %v6125 = vsub.f32 %v6121, %v6124
      %v6126 = vmul.f32 %v6125, 1.442695
      %v6127 = vpow.pop %v6126
      %v6128 = vsel %vm4104, %v6127, 0.0
      %6129 = vadd.xlane.f32.xlu0 %v6128
      %v6130 = vpop.xlane.xlu0 %6129
      %v6131 = vrcp.pop %v6130
      %v6132 = vmul.f32 %v6127, %v6131
      %6134 = vrot.lane.b32.xlu0 %v5874, 120
      %v6135 = vpop.permute.xlu0 %6134
      %v6138 = vsel %vm4104, %v6132, 0
      %6140 = vmatprep.subr.mxu0 0.0
      %6141 = vmatpush1.msra.mxu0 %v6135
      %6142 = vmatprep.subr.mxu0 0.0
      %6143 = vmatpush1.msra.mxu0 0.0
      %6144 = vmatprep.subr.mxu0 0.0
      %6145 = vmatpush1.msra.mxu0 0.0
      %6146 = vmatprep.subr.mxu0 0.0
      %6147 = vmatpush1.msra.mxu0 0.0
      %6148 = vmatprep.subr.mxu0 0.0
      %6149 = vmatpush1.msra.mxu0 0.0
      %6150 = vmatprep.subr.mxu0 0.0
      %6151 = vmatpush1.msra.mxu0 0.0
      %6152 = vmatprep.subr.mxu0 0.0
      %6153 = vmatpush1.msra.mxu0 0.0
      %6154 = vmatprep.subr.mxu0 0.0
      %6155 = vmatpush1.msra.mxu0 0.0
      %6156 = vmatprep.subr.mxu0 0.0
      %6157 = vmatpush1.msra.mxu0 0.0
      %6158 = vmatprep.subr.mxu0 0.0
      %6159 = vmatpush1.msra.mxu0 0.0
      %6160 = vmatprep.subr.mxu0 0.0
      %6161 = vmatpush1.msra.mxu0 0.0
      %6162 = vmatprep.subr.mxu0 0.0
      %6163 = vmatpush1.msra.mxu0 0.0
      %6164 = vmatprep.subr.mxu0 0.0
      %6165 = vmatpush1.msra.mxu0 0.0
      %6166 = vmatprep.subr.mxu0 0.0
      %6167 = vmatpush1.msra.mxu0 0.0
      %6168 = vmatprep.subr.mxu0 0.0
      %6169 = vmatpush1.msra.mxu0 0.0
      %6170 = vmatprep.subr.mxu0 0.0
      %6171 = vmatpush1.msra.mxu0 0.0
      %6172 = vmatprep.subr.mxu0 0.0
      %6173 = vmatpush1.msra.mxu0 0.0
      %6174 = vmatprep.subr.mxu0 0.0
      %6175 = vmatpush1.msra.mxu0 0.0
      %6176 = vmatprep.subr.mxu0 0.0
      %6177 = vmatpush1.msra.mxu0 0.0
      %6178 = vmatprep.subr.mxu0 0.0
      %6179 = vmatpush1.msra.mxu0 0.0
      %6180 = vmatprep.subr.mxu0 0.0
      %6181 = vmatpush1.msra.mxu0 0.0
      %6182 = vmatprep.subr.mxu0 0.0
      %6183 = vmatpush1.msra.mxu0 0.0
      %6184 = vmatprep.subr.mxu0 0.0
      %6185 = vmatpush1.msra.mxu0 0.0
      %6186 = vmatprep.subr.mxu0 0.0
      %6187 = vmatpush1.msra.mxu0 0.0
      %6188 = vmatprep.subr.mxu0 0.0
      %6189 = vmatpush1.msra.mxu0 0.0
      %6190 = vmatprep.subr.mxu0 0.0
      %6191 = vmatpush1.msra.mxu0 0.0
      %6192 = vmatprep.subr.mxu0 0.0
      %6193 = vmatpush1.msra.mxu0 0.0
      %6194 = vmatprep.subr.mxu0 0.0
      %6195 = vmatpush1.msra.mxu0 0.0
      %6196 = vmatprep.subr.mxu0 0.0
      %6197 = vmatpush1.msra.mxu0 0.0
      %6198 = vmatprep.subr.mxu0 0.0
      %6199 = vmatpush1.msra.mxu0 0.0
      %6200 = vmatprep.subr.mxu0 0.0
      %6201 = vmatpush1.msra.mxu0 0.0
      %6202 = vmatprep.subr.mxu0 0.0
      %6203 = vmatpush1.msra.mxu0 0.0
      %6204 = vmatprep.mubr.f32.mxu0 0.0
      %6205 = vmatmul.mubr.f32.gmra.mrb[0].mxu0 %v6138
      %v6206 = vpop.f32.mrb[0].mxu0
      %v6207 = vadd.f32 0.0, %v6206
      %v6208 = vpop.f32.mrb[0].mxu0
      %6209 = vdwg.mxu0
      %6210 = vrot.lane.b32.xlu0 %v5684, 112
      %v6211 = vpop.permute.xlu0 %6210
      %6212 = vrot.lane.b32.xlu0 %v5784, 112
      %v6213 = vpop.permute.xlu0 %6212
      %v6214 = vsel %vm4104, %v6211, 0
      %v6216 = vsel %vm4104, %v6213, 0
      %6218 = vmatprep.subr.mxu0 0.0
      %6219 = vmatpush1.xpose.msra.mxu0 %v6216
      %6220 = vmatprep.subr.mxu0 0.0
      %6221 = vmatpush1.xpose.msra.mxu0 0.0
      %6222 = vmatprep.subr.mxu0 0.0
      %6223 = vmatpush1.xpose.msra.mxu0 0.0
      %6224 = vmatprep.subr.mxu0 0.0
      %6225 = vmatpush1.xpose.msra.mxu0 0.0
      %6226 = vmatprep.subr.mxu0 0.0
      %6227 = vmatpush1.xpose.msra.mxu0 0.0
      %6228 = vmatprep.subr.mxu0 0.0
      %6229 = vmatpush1.xpose.msra.mxu0 0.0
      %6230 = vmatprep.subr.mxu0 0.0
      %6231 = vmatpush1.xpose.msra.mxu0 0.0
      %6232 = vmatprep.subr.mxu0 0.0
      %6233 = vmatpush1.xpose.msra.mxu0 0.0
      %6234 = vmatprep.subr.mxu0 0.0
      %6235 = vmatpush1.xpose.msra.mxu0 0.0
      %6236 = vmatprep.subr.mxu0 0.0
      %6237 = vmatpush1.xpose.msra.mxu0 0.0
      %6238 = vmatprep.subr.mxu0 0.0
      %6239 = vmatpush1.xpose.msra.mxu0 0.0
      %6240 = vmatprep.subr.mxu0 0.0
      %6241 = vmatpush1.xpose.msra.mxu0 0.0
      %6242 = vmatprep.subr.mxu0 0.0
      %6243 = vmatpush1.xpose.msra.mxu0 0.0
      %6244 = vmatprep.subr.mxu0 0.0
      %6245 = vmatpush1.xpose.msra.mxu0 0.0
      %6246 = vmatprep.subr.mxu0 0.0
      %6247 = vmatpush1.xpose.msra.mxu0 0.0
      %6248 = vmatprep.subr.mxu0 0.0
      %6249 = vmatpush1.xpose.msra.mxu0 0.0
      %6250 = vmatprep.subr.mxu0 0.0
      %6251 = vmatpush1.xpose.msra.mxu0 0.0
      %6252 = vmatprep.subr.mxu0 0.0
      %6253 = vmatpush1.xpose.msra.mxu0 0.0
      %6254 = vmatprep.subr.mxu0 0.0
      %6255 = vmatpush1.xpose.msra.mxu0 0.0
      %6256 = vmatprep.subr.mxu0 0.0
      %6257 = vmatpush1.xpose.msra.mxu0 0.0
      %6258 = vmatprep.subr.mxu0 0.0
      %6259 = vmatpush1.xpose.msra.mxu0 0.0
      %6260 = vmatprep.subr.mxu0 0.0
      %6261 = vmatpush1.xpose.msra.mxu0 0.0
      %6262 = vmatprep.subr.mxu0 0.0
      %6263 = vmatpush1.xpose.msra.mxu0 0.0
      %6264 = vmatprep.subr.mxu0 0.0
      %6265 = vmatpush1.xpose.msra.mxu0 0.0
      %6266 = vmatprep.subr.mxu0 0.0
      %6267 = vmatpush1.xpose.msra.mxu0 0.0
      %6268 = vmatprep.subr.mxu0 0.0
      %6269 = vmatpush1.xpose.msra.mxu0 0.0
      %6270 = vmatprep.subr.mxu0 0.0
      %6271 = vmatpush1.xpose.msra.mxu0 0.0
      %6272 = vmatprep.subr.mxu0 0.0
      %6273 = vmatpush1.xpose.msra.mxu0 0.0
      %6274 = vmatprep.subr.mxu0 0.0
      %6275 = vmatpush1.xpose.msra.mxu0 0.0
      %6276 = vmatprep.subr.mxu0 0.0
      %6277 = vmatpush1.xpose.msra.mxu0 0.0
      %6278 = vmatprep.subr.mxu0 0.0
      %6279 = vmatpush1.xpose.msra.mxu0 0.0
      %6280 = vmatprep.subr.mxu0 0.0
      %6281 = vmatpush1.xpose.msra.mxu0 0.0
      %6282 = vmatprep.mubr.f32.mxu0 0.0
      %6283 = vmatmul.mubr.f32.gmra.mrb[0].mxu0 %v6214
      %v6284 = vpop.f32.mrb[0].mxu0
      %v6285 = vadd.f32 0.0, %v6284
      %v6286 = vpop.f32.mrb[0].mxu0
      %6287 = vdwg.mxu0
      %v6288 = vmul.f32 %v6285, 0.35355338
      %v6289 = vsel %vm4104, %v6288, -inf
      %6290 = vmax.xlane.f32.xlu0 %v6289
      %v6291 = vpop.xlane.xlu0 %6290
      %v6292 = vsub.f32 %v6288, %v6291
      %v6293 = vmul.f32 %v6292, 1.442695
      %v6294 = vpow.pop %v6293
      %v6295 = vsel %vm4104, %v6294, 0.0
      %6296 = vadd.xlane.f32.xlu0 %v6295
      %v6297 = vpop.xlane.xlu0 %6296
      %v6298 = vrcp.pop %v6297
      %v6299 = vmul.f32 %v6294, %v6298
      %6300 = vrot.lane.b32.xlu0 %v5874, 112
      %v6301 = vpop.permute.xlu0 %6300
      %v6304 = vsel %vm4104, %v6299, 0
      %6306 = vmatprep.subr.mxu0 0.0
      %6307 = vmatpush1.msra.mxu0 %v6301
      %6308 = vmatprep.subr.mxu0 0.0
      %6309 = vmatpush1.msra.mxu0 0.0
      %6310 = vmatprep.subr.mxu0 0.0
      %6311 = vmatpush1.msra.mxu0 0.0
      %6312 = vmatprep.subr.mxu0 0.0
      %6313 = vmatpush1.msra.mxu0 0.0
      %6314 = vmatprep.subr.mxu0 0.0
      %6315 = vmatpush1.msra.mxu0 0.0
      %6316 = vmatprep.subr.mxu0 0.0
      %6317 = vmatpush1.msra.mxu0 0.0
      %6318 = vmatprep.subr.mxu0 0.0
      %6319 = vmatpush1.msra.mxu0 0.0
      %6320 = vmatprep.subr.mxu0 0.0
      %6321 = vmatpush1.msra.mxu0 0.0
      %6322 = vmatprep.subr.mxu0 0.0
      %6323 = vmatpush1.msra.mxu0 0.0
      %6324 = vmatprep.subr.mxu0 0.0
      %6325 = vmatpush1.msra.mxu0 0.0
      %6326 = vmatprep.subr.mxu0 0.0
      %6327 = vmatpush1.msra.mxu0 0.0
      %6328 = vmatprep.subr.mxu0 0.0
      %6329 = vmatpush1.msra.mxu0 0.0
      %6330 = vmatprep.subr.mxu0 0.0
      %6331 = vmatpush1.msra.mxu0 0.0
      %6332 = vmatprep.subr.mxu0 0.0
      %6333 = vmatpush1.msra.mxu0 0.0
      %6334 = vmatprep.subr.mxu0 0.0
      %6335 = vmatpush1.msra.mxu0 0.0
      %6336 = vmatprep.subr.mxu0 0.0
      %6337 = vmatpush1.msra.mxu0 0.0
      %6338 = vmatprep.subr.mxu0 0.0
      %6339 = vmatpush1.msra.mxu0 0.0
      %6340 = vmatprep.subr.mxu0 0.0
      %6341 = vmatpush1.msra.mxu0 0.0
      %6342 = vmatprep.subr.mxu0 0.0
      %6343 = vmatpush1.msra.mxu0 0.0
      %6344 = vmatprep.subr.mxu0 0.0
      %6345 = vmatpush1.msra.mxu0 0.0
      %6346 = vmatprep.subr.mxu0 0.0
      %6347 = vmatpush1.msra.mxu0 0.0
      %6348 = vmatprep.subr.mxu0 0.0
      %6349 = vmatpush1.msra.mxu0 0.0
      %6350 = vmatprep.subr.mxu0 0.0
      %6351 = vmatpush1.msra.mxu0 0.0
      %6352 = vmatprep.subr.mxu0 0.0
      %6353 = vmatpush1.msra.mxu0 0.0
      %6354 = vmatprep.subr.mxu0 0.0
      %6355 = vmatpush1.msra.mxu0 0.0
      %6356 = vmatprep.subr.mxu0 0.0
      %6357 = vmatpush1.msra.mxu0 0.0
      %6358 = vmatprep.subr.mxu0 0.0
      %6359 = vmatpush1.msra.mxu0 0.0
      %6360 = vmatprep.subr.mxu0 0.0
      %6361 = vmatpush1.msra.mxu0 0.0
      %6362 = vmatprep.subr.mxu0 0.0
      %6363 = vmatpush1.msra.mxu0 0.0
      %6364 = vmatprep.subr.mxu0 0.0
      %6365 = vmatpush1.msra.mxu0 0.0
      %6366 = vmatprep.subr.mxu0 0.0
      %6367 = vmatpush1.msra.mxu0 0.0
      %6368 = vmatprep.subr.mxu0 0.0
      %6369 = vmatpush1.msra.mxu0 0.0
      %6370 = vmatprep.mubr.f32.mxu0 0.0
      %6371 = vmatmul.mubr.f32.gmra.mrb[0].mxu0 %v6304
      %v6372 = vpop.f32.mrb[0].mxu0
      %v6373 = vadd.f32 0.0, %v6372
      %v6374 = vpop.f32.mrb[0].mxu0
      %6375 = vdwg.mxu0
      %6376 = vrot.lane.b32.xlu0 %v5684, 104
      %v6377 = vpop.permute.xlu0 %6376
      %6378 = vrot.lane.b32.xlu0 %v5784, 104
      %v6379 = vpop.permute.xlu0 %6378
      %v6380 = vsel %vm4104, %v6377, 0
      %v6382 = vsel %vm4104, %v6379, 0
      %6384 = vmatprep.subr.mxu0 0.0
      %6385 = vmatpush1.xpose.msra.mxu0 %v6382
      %6386 = vmatprep.subr.mxu0 0.0
      %6387 = vmatpush1.xpose.msra.mxu0 0.0
      %6388 = vmatprep.subr.mxu0 0.0
      %6389 = vmatpush1.xpose.msra.mxu0 0.0
      %6390 = vmatprep.subr.mxu0 0.0
      %6391 = vmatpush1.xpose.msra.mxu0 0.0
      %6392 = vmatprep.subr.mxu0 0.0
      %6393 = vmatpush1.xpose.msra.mxu0 0.0
      %6394 = vmatprep.subr.mxu0 0.0
      %6395 = vmatpush1.xpose.msra.mxu0 0.0
      %6396 = vmatprep.subr.mxu0 0.0
      %6397 = vmatpush1.xpose.msra.mxu0 0.0
      %6398 = vmatprep.subr.mxu0 0.0
      %6399 = vmatpush1.xpose.msra.mxu0 0.0
      %6400 = vmatprep.subr.mxu0 0.0
      %6401 = vmatpush1.xpose.msra.mxu0 0.0
      %6402 = vmatprep.subr.mxu0 0.0
      %6403 = vmatpush1.xpose.msra.mxu0 0.0
      %6404 = vmatprep.subr.mxu0 0.0
      %6405 = vmatpush1.xpose.msra.mxu0 0.0
      %6406 = vmatprep.subr.mxu0 0.0
      %6407 = vmatpush1.xpose.msra.mxu0 0.0
      %6408 = vmatprep.subr.mxu0 0.0
      %6409 = vmatpush1.xpose.msra.mxu0 0.0
      %6410 = vmatprep.subr.mxu0 0.0
      %6411 = vmatpush1.xpose.msra.mxu0 0.0
      %6412 = vmatprep.subr.mxu0 0.0
      %6413 = vmatpush1.xpose.msra.mxu0 0.0
      %6414 = vmatprep.subr.mxu0 0.0
      %6415 = vmatpush1.xpose.msra.mxu0 0.0
      %6416 = vmatprep.subr.mxu0 0.0
      %6417 = vmatpush1.xpose.msra.mxu0 0.0
      %6418 = vmatprep.subr.mxu0 0.0
      %6419 = vmatpush1.xpose.msra.mxu0 0.0
      %6420 = vmatprep.subr.mxu0 0.0
      %6421 = vmatpush1.xpose.msra.mxu0 0.0
      %6422 = vmatprep.subr.mxu0 0.0
      %6423 = vmatpush1.xpose.msra.mxu0 0.0
      %6424 = vmatprep.subr.mxu0 0.0
      %6425 = vmatpush1.xpose.msra.mxu0 0.0
      %6426 = vmatprep.subr.mxu0 0.0
      %6427 = vmatpush1.xpose.msra.mxu0 0.0
      %6428 = vmatprep.subr.mxu0 0.0
      %6429 = vmatpush1.xpose.msra.mxu0 0.0
      %6430 = vmatprep.subr.mxu0 0.0
      %6431 = vmatpush1.xpose.msra.mxu0 0.0
      %6432 = vmatprep.subr.mxu0 0.0
      %6433 = vmatpush1.xpose.msra.mxu0 0.0
      %6434 = vmatprep.subr.mxu0 0.0
      %6435 = vmatpush1.xpose.msra.mxu0 0.0
      %6436 = vmatprep.subr.mxu0 0.0
      %6437 = vmatpush1.xpose.msra.mxu0 0.0
      %6438 = vmatprep.subr.mxu0 0.0
      %6439 = vmatpush1.xpose.msra.mxu0 0.0
      %6440 = vmatprep.subr.mxu0 0.0
      %6441 = vmatpush1.xpose.msra.mxu0 0.0
      %6442 = vmatprep.subr.mxu0 0.0
      %6443 = vmatpush1.xpose.msra.mxu0 0.0
      %6444 = vmatprep.subr.mxu0 0.0
      %6445 = vmatpush1.xpose.msra.mxu0 0.0
      %6446 = vmatprep.subr.mxu0 0.0
      %6447 = vmatpush1.xpose.msra.mxu0 0.0
      %6448 = vmatprep.mubr.f32.mxu0 0.0
      %6449 = vmatmul.mubr.f32.gmra.mrb[0].mxu0 %v6380
      %v6450 = vpop.f32.mrb[0].mxu0
      %v6451 = vadd.f32 0.0, %v6450
      %v6452 = vpop.f32.mrb[0].mxu0
      %6453 = vdwg.mxu0
      %v6454 = vmul.f32 %v6451, 0.35355338
      %v6455 = vsel %vm4104, %v6454, -inf
      %6456 = vmax.xlane.f32.xlu0 %v6455
      %v6457 = vpop.xlane.xlu0 %6456
      %v6458 = vsub.f32 %v6454, %v6457
      %v6459 = vmul.f32 %v6458, 1.442695
      %v6460 = vpow.pop %v6459
      %v6461 = vsel %vm4104, %v6460, 0.0
      %6462 = vadd.xlane.f32.xlu0 %v6461
      %v6463 = vpop.xlane.xlu0 %6462
      %v6464 = vrcp.pop %v6463
      %v6465 = vmul.f32 %v6460, %v6464
      %6466 = vrot.lane.b32.xlu0 %v5874, 104
      %v6467 = vpop.permute.xlu0 %6466
      %v6470 = vsel %vm4104, %v6465, 0
      %6472 = vmatprep.subr.mxu0 0.0
      %6473 = vmatpush1.msra.mxu0 %v6467
      %6474 = vmatprep.subr.mxu0 0.0
      %6475 = vmatpush1.msra.mxu0 0.0
      %6476 = vmatprep.subr.mxu0 0.0
      %6477 = vmatpush1.msra.mxu0 0.0
      %6478 = vmatprep.subr.mxu0 0.0
      %6479 = vmatpush1.msra.mxu0 0.0
      %6480 = vmatprep.subr.mxu0 0.0
      %6481 = vmatpush1.msra.mxu0 0.0
      %6482 = vmatprep.subr.mxu0 0.0
      %6483 = vmatpush1.msra.mxu0 0.0
      %6484 = vmatprep.subr.mxu0 0.0
      %6485 = vmatpush1.msra.mxu0 0.0
      %6486 = vmatprep.subr.mxu0 0.0
      %6487 = vmatpush1.msra.mxu0 0.0
      %6488 = vmatprep.subr.mxu0 0.0
      %6489 = vmatpush1.msra.mxu0 0.0
      %6490 = vmatprep.subr.mxu0 0.0
      %6491 = vmatpush1.msra.mxu0 0.0
      %6492 = vmatprep.subr.mxu0 0.0
      %6493 = vmatpush1.msra.mxu0 0.0
      %6494 = vmatprep.subr.mxu0 0.0
      %6495 = vmatpush1.msra.mxu0 0.0
      %6496 = vmatprep.subr.mxu0 0.0
      %6497 = vmatpush1.msra.mxu0 0.0
      %6498 = vmatprep.subr.mxu0 0.0
      %6499 = vmatpush1.msra.mxu0 0.0
      %6500 = vmatprep.subr.mxu0 0.0
      %6501 = vmatpush1.msra.mxu0 0.0
      %6502 = vmatprep.subr.mxu0 0.0
      %6503 = vmatpush1.msra.mxu0 0.0
      %6504 = vmatprep.subr.mxu0 0.0
      %6505 = vmatpush1.msra.mxu0 0.0
      %6506 = vmatprep.subr.mxu0 0.0
      %6507 = vmatpush1.msra.mxu0 0.0
      %6508 = vmatprep.subr.mxu0 0.0
      %6509 = vmatpush1.msra.mxu0 0.0
      %6510 = vmatprep.subr.mxu0 0.0
      %6511 = vmatpush1.msra.mxu0 0.0
      %6512 = vmatprep.subr.mxu0 0.0
      %6513 = vmatpush1.msra.mxu0 0.0
      %6514 = vmatprep.subr.mxu0 0.0
      %6515 = vmatpush1.msra.mxu0 0.0
      %6516 = vmatprep.subr.mxu0 0.0
      %6517 = vmatpush1.msra.mxu0 0.0
      %6518 = vmatprep.subr.mxu0 0.0
      %6519 = vmatpush1.msra.mxu0 0.0
      %6520 = vmatprep.subr.mxu0 0.0
      %6521 = vmatpush1.msra.mxu0 0.0
      %6522 = vmatprep.subr.mxu0 0.0
      %6523 = vmatpush1.msra.mxu0 0.0
      %6524 = vmatprep.subr.mxu0 0.0
      %6525 = vmatpush1.msra.mxu0 0.0
      %6526 = vmatprep.subr.mxu0 0.0
      %6527 = vmatpush1.msra.mxu0 0.0
      %6528 = vmatprep.subr.mxu0 0.0
      %6529 = vmatpush1.msra.mxu0 0.0
      %6530 = vmatprep.subr.mxu0 0.0
      %6531 = vmatpush1.msra.mxu0 0.0
      %6532 = vmatprep.subr.mxu0 0.0
      %6533 = vmatpush1.msra.mxu0 0.0
      %6534 = vmatprep.subr.mxu0 0.0
      %6535 = vmatpush1.msra.mxu0 0.0
      %6536 = vmatprep.mubr.f32.mxu0 0.0
      %6537 = vmatmul.mubr.f32.gmra.mrb[0].mxu0 %v6470
      %v6538 = vpop.f32.mrb[0].mxu0
      %v6539 = vadd.f32 0.0, %v6538
      %v6540 = vpop.f32.mrb[0].mxu0
      %6541 = vdwg.mxu0
      %6543 = vrot.lane.b32.xlu0 %v6207, 8
      %v6544 = vpop.permute.xlu0 %6543
      %6547 = vrot.lane.b32.xlu0 %v6373, 16
      %v6548 = vpop.permute.xlu0 %6547
      %6551 = vrot.lane.b32.xlu0 %v6539, 24
      %v6552 = vpop.permute.xlu0 %6551
      %v6554 = vsel %vm4104, %v6040, %v6544
      %v6555 = vsel %vm4778, %v6554, %v6548
      %v6556 = vsel %vm178, %v6555, %v6552
      %v6558 = vsel %vm4104, %v5689, 0
      %v6561 = vsel %vm4104, %v5789, 0
      %6563 = vmatprep.subr.mxu0 0.0
      %6564 = vmatpush1.xpose.msra.mxu0 %v6561
      %6565 = vmatprep.subr.mxu0 0.0
      %6566 = vmatpush1.xpose.msra.mxu0 0.0
      %6567 = vmatprep.subr.mxu0 0.0
      %6568 = vmatpush1.xpose.msra.mxu0 0.0
      %6569 = vmatprep.subr.mxu0 0.0
      %6570 = vmatpush1.xpose.msra.mxu0 0.0
      %6571 = vmatprep.subr.mxu0 0.0
      %6572 = vmatpush1.xpose.msra.mxu0 0.0
      %6573 = vmatprep.subr.mxu0 0.0
      %6574 = vmatpush1.xpose.msra.mxu0 0.0
      %6575 = vmatprep.subr.mxu0 0.0
      %6576 = vmatpush1.xpose.msra.mxu0 0.0
      %6577 = vmatprep.subr.mxu0 0.0
      %6578 = vmatpush1.xpose.msra.mxu0 0.0
      %6579 = vmatprep.subr.mxu0 0.0
      %6580 = vmatpush1.xpose.msra.mxu0 0.0
      %6581 = vmatprep.subr.mxu0 0.0
      %6582 = vmatpush1.xpose.msra.mxu0 0.0
      %6583 = vmatprep.subr.mxu0 0.0
      %6584 = vmatpush1.xpose.msra.mxu0 0.0
      %6585 = vmatprep.subr.mxu0 0.0
      %6586 = vmatpush1.xpose.msra.mxu0 0.0
      %6587 = vmatprep.subr.mxu0 0.0
      %6588 = vmatpush1.xpose.msra.mxu0 0.0
      %6589 = vmatprep.subr.mxu0 0.0
      %6590 = vmatpush1.xpose.msra.mxu0 0.0
      %6591 = vmatprep.subr.mxu0 0.0
      %6592 = vmatpush1.xpose.msra.mxu0 0.0
      %6593 = vmatprep.subr.mxu0 0.0
      %6594 = vmatpush1.xpose.msra.mxu0 0.0
      %6595 = vmatprep.subr.mxu0 0.0
      %6596 = vmatpush1.xpose.msra.mxu0 0.0
      %6597 = vmatprep.subr.mxu0 0.0
      %6598 = vmatpush1.xpose.msra.mxu0 0.0
      %6599 = vmatprep.subr.mxu0 0.0
      %6600 = vmatpush1.xpose.msra.mxu0 0.0
      %6601 = vmatprep.subr.mxu0 0.0
      %6602 = vmatpush1.xpose.msra.mxu0 0.0
      %6603 = vmatprep.subr.mxu0 0.0
      %6604 = vmatpush1.xpose.msra.mxu0 0.0
      %6605 = vmatprep.subr.mxu0 0.0
      %6606 = vmatpush1.xpose.msra.mxu0 0.0
      %6607 = vmatprep.subr.mxu0 0.0
      %6608 = vmatpush1.xpose.msra.mxu0 0.0
      %6609 = vmatprep.subr.mxu0 0.0
      %6610 = vmatpush1.xpose.msra.mxu0 0.0
      %6611 = vmatprep.subr.mxu0 0.0
      %6612 = vmatpush1.xpose.msra.mxu0 0.0
      %6613 = vmatprep.subr.mxu0 0.0
      %6614 = vmatpush1.xpose.msra.mxu0 0.0
      %6615 = vmatprep.subr.mxu0 0.0
      %6616 = vmatpush1.xpose.msra.mxu0 0.0
      %6617 = vmatprep.subr.mxu0 0.0
      %6618 = vmatpush1.xpose.msra.mxu0 0.0
      %6619 = vmatprep.subr.mxu0 0.0
      %6620 = vmatpush1.xpose.msra.mxu0 0.0
      %6621 = vmatprep.subr.mxu0 0.0
      %6622 = vmatpush1.xpose.msra.mxu0 0.0
      %6623 = vmatprep.subr.mxu0 0.0
      %6624 = vmatpush1.xpose.msra.mxu0 0.0
      %6625 = vmatprep.subr.mxu0 0.0
      %6626 = vmatpush1.xpose.msra.mxu0 0.0
      %6627 = vmatprep.mubr.f32.mxu0 0.0
      %6628 = vmatmul.mubr.f32.gmra.mrb[0].mxu0 %v6558
      %v6629 = vpop.f32.mrb[0].mxu0
      %v6630 = vadd.f32 0.0, %v6629
      %v6631 = vpop.f32.mrb[0].mxu0
      %6632 = vdwg.mxu0
      %v6633 = vmul.f32 %v6630, 0.35355338
      %v6634 = vsel %vm4104, %v6633, -inf
      %6635 = vmax.xlane.f32.xlu0 %v6634
      %v6636 = vpop.xlane.xlu0 %6635
      %v6637 = vsub.f32 %v6633, %v6636
      %v6638 = vmul.f32 %v6637, 1.442695
      %v6639 = vpow.pop %v6638
      %v6640 = vsel %vm4104, %v6639, 0.0
      %6641 = vadd.xlane.f32.xlu0 %v6640
      %v6642 = vpop.xlane.xlu0 %6641
      %v6643 = vrcp.pop %v6642
      %v6644 = vmul.f32 %v6639, %v6643
      %v6646 = vsel %vm4104, %v6644, 0
      %6648 = vmatprep.subr.mxu0 0.0
      %6649 = vmatpush1.msra.mxu0 %v5879
      %6650 = vmatprep.subr.mxu0 0.0
      %6651 = vmatpush1.msra.mxu0 0.0
      %6652 = vmatprep.subr.mxu0 0.0
      %6653 = vmatpush1.msra.mxu0 0.0
      %6654 = vmatprep.subr.mxu0 0.0
      %6655 = vmatpush1.msra.mxu0 0.0
      %6656 = vmatprep.subr.mxu0 0.0
      %6657 = vmatpush1.msra.mxu0 0.0
      %6658 = vmatprep.subr.mxu0 0.0
      %6659 = vmatpush1.msra.mxu0 0.0
      %6660 = vmatprep.subr.mxu0 0.0
      %6661 = vmatpush1.msra.mxu0 0.0
      %6662 = vmatprep.subr.mxu0 0.0
      %6663 = vmatpush1.msra.mxu0 0.0
      %6664 = vmatprep.subr.mxu0 0.0
      %6665 = vmatpush1.msra.mxu0 0.0
      %6666 = vmatprep.subr.mxu0 0.0
      %6667 = vmatpush1.msra.mxu0 0.0
      %6668 = vmatprep.subr.mxu0 0.0
      %6669 = vmatpush1.msra.mxu0 0.0
      %6670 = vmatprep.subr.mxu0 0.0
      %6671 = vmatpush1.msra.mxu0 0.0
      %6672 = vmatprep.subr.mxu0 0.0
      %6673 = vmatpush1.msra.mxu0 0.0
      %6674 = vmatprep.subr.mxu0 0.0
      %6675 = vmatpush1.msra.mxu0 0.0
      %6676 = vmatprep.subr.mxu0 0.0
      %6677 = vmatpush1.msra.mxu0 0.0
      %6678 = vmatprep.subr.mxu0 0.0
      %6679 = vmatpush1.msra.mxu0 0.0
      %6680 = vmatprep.subr.mxu0 0.0
      %6681 = vmatpush1.msra.mxu0 0.0
      %6682 = vmatprep.subr.mxu0 0.0
      %6683 = vmatpush1.msra.mxu0 0.0
      %6684 = vmatprep.subr.mxu0 0.0
      %6685 = vmatpush1.msra.mxu0 0.0
      %6686 = vmatprep.subr.mxu0 0.0
      %6687 = vmatpush1.msra.mxu0 0.0
      %6688 = vmatprep.subr.mxu0 0.0
      %6689 = vmatpush1.msra.mxu0 0.0
      %6690 = vmatprep.subr.mxu0 0.0
      %6691 = vmatpush1.msra.mxu0 0.0
      %6692 = vmatprep.subr.mxu0 0.0
      %6693 = vmatpush1.msra.mxu0 0.0
      %6694 = vmatprep.subr.mxu0 0.0
      %6695 = vmatpush1.msra.mxu0 0.0
      %6696 = vmatprep.subr.mxu0 0.0
      %6697 = vmatpush1.msra.mxu0 0.0
      %6698 = vmatprep.subr.mxu0 0.0
      %6699 = vmatpush1.msra.mxu0 0.0
      %6700 = vmatprep.subr.mxu0 0.0
      %6701 = vmatpush1.msra.mxu0 0.0
      %6702 = vmatprep.subr.mxu0 0.0
      %6703 = vmatpush1.msra.mxu0 0.0
      %6704 = vmatprep.subr.mxu0 0.0
      %6705 = vmatpush1.msra.mxu0 0.0
      %6706 = vmatprep.subr.mxu0 0.0
      %6707 = vmatpush1.msra.mxu0 0.0
      %6708 = vmatprep.subr.mxu0 0.0
      %6709 = vmatpush1.msra.mxu0 0.0
      %6710 = vmatprep.subr.mxu0 0.0
      %6711 = vmatpush1.msra.mxu0 0.0
      %6712 = vmatprep.mubr.f32.mxu0 0.0
      %6713 = vmatmul.mubr.f32.gmra.mrb[0].mxu0 %v6646
      %v6714 = vpop.f32.mrb[0].mxu0
      %v6715 = vadd.f32 0.0, %v6714
      %v6716 = vpop.f32.mrb[0].mxu0
      %6717 = vdwg.mxu0
      %6718 = vrot.lane.b32.xlu0 %v5689, 120
      %v6719 = vpop.permute.xlu0 %6718
      %6720 = vrot.lane.b32.xlu0 %v5789, 120
      %v6721 = vpop.permute.xlu0 %6720
      %v6722 = vsel %vm4104, %v6719, 0
      %v6724 = vsel %vm4104, %v6721, 0
      %6726 = vmatprep.subr.mxu0 0.0
      %6727 = vmatpush1.xpose.msra.mxu0 %v6724
      %6728 = vmatprep.subr.mxu0 0.0
      %6729 = vmatpush1.xpose.msra.mxu0 0.0
      %6730 = vmatprep.subr.mxu0 0.0
      %6731 = vmatpush1.xpose.msra.mxu0 0.0
      %6732 = vmatprep.subr.mxu0 0.0
      %6733 = vmatpush1.xpose.msra.mxu0 0.0
      %6734 = vmatprep.subr.mxu0 0.0
      %6735 = vmatpush1.xpose.msra.mxu0 0.0
      %6736 = vmatprep.subr.mxu0 0.0
      %6737 = vmatpush1.xpose.msra.mxu0 0.0
      %6738 = vmatprep.subr.mxu0 0.0
      %6739 = vmatpush1.xpose.msra.mxu0 0.0
      %6740 = vmatprep.subr.mxu0 0.0
      %6741 = vmatpush1.xpose.msra.mxu0 0.0
      %6742 = vmatprep.subr.mxu0 0.0
      %6743 = vmatpush1.xpose.msra.mxu0 0.0
      %6744 = vmatprep.subr.mxu0 0.0
      %6745 = vmatpush1.xpose.msra.mxu0 0.0
      %6746 = vmatprep.subr.mxu0 0.0
      %6747 = vmatpush1.xpose.msra.mxu0 0.0
      %6748 = vmatprep.subr.mxu0 0.0
      %6749 = vmatpush1.xpose.msra.mxu0 0.0
      %6750 = vmatprep.subr.mxu0 0.0
      %6751 = vmatpush1.xpose.msra.mxu0 0.0
      %6752 = vmatprep.subr.mxu0 0.0
      %6753 = vmatpush1.xpose.msra.mxu0 0.0
      %6754 = vmatprep.subr.mxu0 0.0
      %6755 = vmatpush1.xpose.msra.mxu0 0.0
      %6756 = vmatprep.subr.mxu0 0.0
      %6757 = vmatpush1.xpose.msra.mxu0 0.0
      %6758 = vmatprep.subr.mxu0 0.0
      %6759 = vmatpush1.xpose.msra.mxu0 0.0
      %6760 = vmatprep.subr.mxu0 0.0
      %6761 = vmatpush1.xpose.msra.mxu0 0.0
      %6762 = vmatprep.subr.mxu0 0.0
      %6763 = vmatpush1.xpose.msra.mxu0 0.0
      %6764 = vmatprep.subr.mxu0 0.0
      %6765 = vmatpush1.xpose.msra.mxu0 0.0
      %6766 = vmatprep.subr.mxu0 0.0
      %6767 = vmatpush1.xpose.msra.mxu0 0.0
      %6768 = vmatprep.subr.mxu0 0.0
      %6769 = vmatpush1.xpose.msra.mxu0 0.0
      %6770 = vmatprep.subr.mxu0 0.0
      %6771 = vmatpush1.xpose.msra.mxu0 0.0
      %6772 = vmatprep.subr.mxu0 0.0
      %6773 = vmatpush1.xpose.msra.mxu0 0.0
      %6774 = vmatprep.subr.mxu0 0.0
      %6775 = vmatpush1.xpose.msra.mxu0 0.0
      %6776 = vmatprep.subr.mxu0 0.0
      %6777 = vmatpush1.xpose.msra.mxu0 0.0
      %6778 = vmatprep.subr.mxu0 0.0
      %6779 = vmatpush1.xpose.msra.mxu0 0.0
      %6780 = vmatprep.subr.mxu0 0.0
      %6781 = vmatpush1.xpose.msra.mxu0 0.0
      %6782 = vmatprep.subr.mxu0 0.0
      %6783 = vmatpush1.xpose.msra.mxu0 0.0
      %6784 = vmatprep.subr.mxu0 0.0
      %6785 = vmatpush1.xpose.msra.mxu0 0.0
      %6786 = vmatprep.subr.mxu0 0.0
      %6787 = vmatpush1.xpose.msra.mxu0 0.0
      %6788 = vmatprep.subr.mxu0 0.0
      %6789 = vmatpush1.xpose.msra.mxu0 0.0
      %6790 = vmatprep.mubr.f32.mxu0 0.0
      %6791 = vmatmul.mubr.f32.gmra.mrb[0].mxu0 %v6722
      %v6792 = vpop.f32.mrb[0].mxu0
      %v6793 = vadd.f32 0.0, %v6792
      %v6794 = vpop.f32.mrb[0].mxu0
      %6795 = vdwg.mxu0
      %v6796 = vmul.f32 %v6793, 0.35355338
      %v6797 = vsel %vm4104, %v6796, -inf
      %6798 = vmax.xlane.f32.xlu0 %v6797
      %v6799 = vpop.xlane.xlu0 %6798
      %v6800 = vsub.f32 %v6796, %v6799
      %v6801 = vmul.f32 %v6800, 1.442695
      %v6802 = vpow.pop %v6801
      %v6803 = vsel %vm4104, %v6802, 0.0
      %6804 = vadd.xlane.f32.xlu0 %v6803
      %v6805 = vpop.xlane.xlu0 %6804
      %v6806 = vrcp.pop %v6805
      %v6807 = vmul.f32 %v6802, %v6806
      %6809 = vrot.lane.b32.xlu0 %v5879, 120
      %v6810 = vpop.permute.xlu0 %6809
      %v6813 = vsel %vm4104, %v6807, 0
      %6815 = vmatprep.subr.mxu0 0.0
      %6816 = vmatpush1.msra.mxu0 %v6810
      %6817 = vmatprep.subr.mxu0 0.0
      %6818 = vmatpush1.msra.mxu0 0.0
      %6819 = vmatprep.subr.mxu0 0.0
      %6820 = vmatpush1.msra.mxu0 0.0
      %6821 = vmatprep.subr.mxu0 0.0
      %6822 = vmatpush1.msra.mxu0 0.0
      %6823 = vmatprep.subr.mxu0 0.0
      %6824 = vmatpush1.msra.mxu0 0.0
      %6825 = vmatprep.subr.mxu0 0.0
      %6826 = vmatpush1.msra.mxu0 0.0
      %6827 = vmatprep.subr.mxu0 0.0
      %6828 = vmatpush1.msra.mxu0 0.0
      %6829 = vmatprep.subr.mxu0 0.0
      %6830 = vmatpush1.msra.mxu0 0.0
      %6831 = vmatprep.subr.mxu0 0.0
      %6832 = vmatpush1.msra.mxu0 0.0
      %6833 = vmatprep.subr.mxu0 0.0
      %6834 = vmatpush1.msra.mxu0 0.0
      %6835 = vmatprep.subr.mxu0 0.0
      %6836 = vmatpush1.msra.mxu0 0.0
      %6837 = vmatprep.subr.mxu0 0.0
      %6838 = vmatpush1.msra.mxu0 0.0
      %6839 = vmatprep.subr.mxu0 0.0
      %6840 = vmatpush1.msra.mxu0 0.0
      %6841 = vmatprep.subr.mxu0 0.0
      %6842 = vmatpush1.msra.mxu0 0.0
      %6843 = vmatprep.subr.mxu0 0.0
      %6844 = vmatpush1.msra.mxu0 0.0
      %6845 = vmatprep.subr.mxu0 0.0
      %6846 = vmatpush1.msra.mxu0 0.0
      %6847 = vmatprep.subr.mxu0 0.0
      %6848 = vmatpush1.msra.mxu0 0.0
      %6849 = vmatprep.subr.mxu0 0.0
      %6850 = vmatpush1.msra.mxu0 0.0
      %6851 = vmatprep.subr.mxu0 0.0
      %6852 = vmatpush1.msra.mxu0 0.0
      %6853 = vmatprep.subr.mxu0 0.0
      %6854 = vmatpush1.msra.mxu0 0.0
      %6855 = vmatprep.subr.mxu0 0.0
      %6856 = vmatpush1.msra.mxu0 0.0
      %6857 = vmatprep.subr.mxu0 0.0
      %6858 = vmatpush1.msra.mxu0 0.0
      %6859 = vmatprep.subr.mxu0 0.0
      %6860 = vmatpush1.msra.mxu0 0.0
      %6861 = vmatprep.subr.mxu0 0.0
      %6862 = vmatpush1.msra.mxu0 0.0
      %6863 = vmatprep.subr.mxu0 0.0
      %6864 = vmatpush1.msra.mxu0 0.0
      %6865 = vmatprep.subr.mxu0 0.0
      %6866 = vmatpush1.msra.mxu0 0.0
      %6867 = vmatprep.subr.mxu0 0.0
      %6868 = vmatpush1.msra.mxu0 0.0
      %6869 = vmatprep.subr.mxu0 0.0
      %6870 = vmatpush1.msra.mxu0 0.0
      %6871 = vmatprep.subr.mxu0 0.0
      %6872 = vmatpush1.msra.mxu0 0.0
      %6873 = vmatprep.subr.mxu0 0.0
      %6874 = vmatpush1.msra.mxu0 0.0
      %6875 = vmatprep.subr.mxu0 0.0
      %6876 = vmatpush1.msra.mxu0 0.0
      %6877 = vmatprep.subr.mxu0 0.0
      %6878 = vmatpush1.msra.mxu0 0.0
      %6879 = vmatprep.mubr.f32.mxu0 0.0
      %6880 = vmatmul.mubr.f32.gmra.mrb[0].mxu0 %v6813
      %v6881 = vpop.f32.mrb[0].mxu0
      %v6882 = vadd.f32 0.0, %v6881
      %v6883 = vpop.f32.mrb[0].mxu0
      %6884 = vdwg.mxu0
      %6885 = vrot.lane.b32.xlu0 %v5689, 112
      %v6886 = vpop.permute.xlu0 %6885
      %6887 = vrot.lane.b32.xlu0 %v5789, 112
      %v6888 = vpop.permute.xlu0 %6887
      %v6889 = vsel %vm4104, %v6886, 0
      %v6891 = vsel %vm4104, %v6888, 0
      %6893 = vmatprep.subr.mxu0 0.0
      %6894 = vmatpush1.xpose.msra.mxu0 %v6891
      %6895 = vmatprep.subr.mxu0 0.0
      %6896 = vmatpush1.xpose.msra.mxu0 0.0
      %6897 = vmatprep.subr.mxu0 0.0
      %6898 = vmatpush1.xpose.msra.mxu0 0.0
      %6899 = vmatprep.subr.mxu0 0.0
      %6900 = vmatpush1.xpose.msra.mxu0 0.0
      %6901 = vmatprep.subr.mxu0 0.0
      %6902 = vmatpush1.xpose.msra.mxu0 0.0
      %6903 = vmatprep.subr.mxu0 0.0
      %6904 = vmatpush1.xpose.msra.mxu0 0.0
      %6905 = vmatprep.subr.mxu0 0.0
      %6906 = vmatpush1.xpose.msra.mxu0 0.0
      %6907 = vmatprep.subr.mxu0 0.0
      %6908 = vmatpush1.xpose.msra.mxu0 0.0
      %6909 = vmatprep.subr.mxu0 0.0
      %6910 = vmatpush1.xpose.msra.mxu0 0.0
      %6911 = vmatprep.subr.mxu0 0.0
      %6912 = vmatpush1.xpose.msra.mxu0 0.0
      %6913 = vmatprep.subr.mxu0 0.0
      %6914 = vmatpush1.xpose.msra.mxu0 0.0
      %6915 = vmatprep.subr.mxu0 0.0
      %6916 = vmatpush1.xpose.msra.mxu0 0.0
      %6917 = vmatprep.subr.mxu0 0.0
      %6918 = vmatpush1.xpose.msra.mxu0 0.0
      %6919 = vmatprep.subr.mxu0 0.0
      %6920 = vmatpush1.xpose.msra.mxu0 0.0
      %6921 = vmatprep.subr.mxu0 0.0
      %6922 = vmatpush1.xpose.msra.mxu0 0.0
      %6923 = vmatprep.subr.mxu0 0.0
      %6924 = vmatpush1.xpose.msra.mxu0 0.0
      %6925 = vmatprep.subr.mxu0 0.0
      %6926 = vmatpush1.xpose.msra.mxu0 0.0
      %6927 = vmatprep.subr.mxu0 0.0
      %6928 = vmatpush1.xpose.msra.mxu0 0.0
      %6929 = vmatprep.subr.mxu0 0.0
      %6930 = vmatpush1.xpose.msra.mxu0 0.0
      %6931 = vmatprep.subr.mxu0 0.0
      %6932 = vmatpush1.xpose.msra.mxu0 0.0
      %6933 = vmatprep.subr.mxu0 0.0
      %6934 = vmatpush1.xpose.msra.mxu0 0.0
      %6935 = vmatprep.subr.mxu0 0.0
      %6936 = vmatpush1.xpose.msra.mxu0 0.0
      %6937 = vmatprep.subr.mxu0 0.0
      %6938 = vmatpush1.xpose.msra.mxu0 0.0
      %6939 = vmatprep.subr.mxu0 0.0
      %6940 = vmatpush1.xpose.msra.mxu0 0.0
      %6941 = vmatprep.subr.mxu0 0.0
      %6942 = vmatpush1.xpose.msra.mxu0 0.0
      %6943 = vmatprep.subr.mxu0 0.0
      %6944 = vmatpush1.xpose.msra.mxu0 0.0
      %6945 = vmatprep.subr.mxu0 0.0
      %6946 = vmatpush1.xpose.msra.mxu0 0.0
      %6947 = vmatprep.subr.mxu0 0.0
      %6948 = vmatpush1.xpose.msra.mxu0 0.0
      %6949 = vmatprep.subr.mxu0 0.0
      %6950 = vmatpush1.xpose.msra.mxu0 0.0
      %6951 = vmatprep.subr.mxu0 0.0
      %6952 = vmatpush1.xpose.msra.mxu0 0.0
      %6953 = vmatprep.subr.mxu0 0.0
      %6954 = vmatpush1.xpose.msra.mxu0 0.0
      %6955 = vmatprep.subr.mxu0 0.0
      %6956 = vmatpush1.xpose.msra.mxu0 0.0
      %6957 = vmatprep.mubr.f32.mxu0 0.0
      %6958 = vmatmul.mubr.f32.gmra.mrb[0].mxu0 %v6889
      %v6959 = vpop.f32.mrb[0].mxu0
      %v6960 = vadd.f32 0.0, %v6959
      %v6961 = vpop.f32.mrb[0].mxu0
      %6962 = vdwg.mxu0
      %v6963 = vmul.f32 %v6960, 0.35355338
      %v6964 = vsel %vm4104, %v6963, -inf
      %6965 = vmax.xlane.f32.xlu0 %v6964
      %v6966 = vpop.xlane.xlu0 %6965
      %v6967 = vsub.f32 %v6963, %v6966
      %v6968 = vmul.f32 %v6967, 1.442695
      %v6969 = vpow.pop %v6968
      %v6970 = vsel %vm4104, %v6969, 0.0
      %6971 = vadd.xlane.f32.xlu0 %v6970
      %v6972 = vpop.xlane.xlu0 %6971
      %v6973 = vrcp.pop %v6972
      %v6974 = vmul.f32 %v6969, %v6973
      %6975 = vrot.lane.b32.xlu0 %v5879, 112
      %v6976 = vpop.permute.xlu0 %6975
      %v6979 = vsel %vm4104, %v6974, 0
      %6981 = vmatprep.subr.mxu0 0.0
      %6982 = vmatpush1.msra.mxu0 %v6976
      %6983 = vmatprep.subr.mxu0 0.0
      %6984 = vmatpush1.msra.mxu0 0.0
      %6985 = vmatprep.subr.mxu0 0.0
      %6986 = vmatpush1.msra.mxu0 0.0
      %6987 = vmatprep.subr.mxu0 0.0
      %6988 = vmatpush1.msra.mxu0 0.0
      %6989 = vmatprep.subr.mxu0 0.0
      %6990 = vmatpush1.msra.mxu0 0.0
      %6991 = vmatprep.subr.mxu0 0.0
      %6992 = vmatpush1.msra.mxu0 0.0
      %6993 = vmatprep.subr.mxu0 0.0
      %6994 = vmatpush1.msra.mxu0 0.0
      %6995 = vmatprep.subr.mxu0 0.0
      %6996 = vmatpush1.msra.mxu0 0.0
      %6997 = vmatprep.subr.mxu0 0.0
      %6998 = vmatpush1.msra.mxu0 0.0
      %6999 = vmatprep.subr.mxu0 0.0
      %7000 = vmatpush1.msra.mxu0 0.0
      %7001 = vmatprep.subr.mxu0 0.0
      %7002 = vmatpush1.msra.mxu0 0.0
      %7003 = vmatprep.subr.mxu0 0.0
      %7004 = vmatpush1.msra.mxu0 0.0
      %7005 = vmatprep.subr.mxu0 0.0
      %7006 = vmatpush1.msra.mxu0 0.0
      %7007 = vmatprep.subr.mxu0 0.0
      %7008 = vmatpush1.msra.mxu0 0.0
      %7009 = vmatprep.subr.mxu0 0.0
      %7010 = vmatpush1.msra.mxu0 0.0
      %7011 = vmatprep.subr.mxu0 0.0
      %7012 = vmatpush1.msra.mxu0 0.0
      %7013 = vmatprep.subr.mxu0 0.0
      %7014 = vmatpush1.msra.mxu0 0.0
      %7015 = vmatprep.subr.mxu0 0.0
      %7016 = vmatpush1.msra.mxu0 0.0
      %7017 = vmatprep.subr.mxu0 0.0
      %7018 = vmatpush1.msra.mxu0 0.0
      %7019 = vmatprep.subr.mxu0 0.0
      %7020 = vmatpush1.msra.mxu0 0.0
      %7021 = vmatprep.subr.mxu0 0.0
      %7022 = vmatpush1.msra.mxu0 0.0
      %7023 = vmatprep.subr.mxu0 0.0
      %7024 = vmatpush1.msra.mxu0 0.0
      %7025 = vmatprep.subr.mxu0 0.0
      %7026 = vmatpush1.msra.mxu0 0.0
      %7027 = vmatprep.subr.mxu0 0.0
      %7028 = vmatpush1.msra.mxu0 0.0
      %7029 = vmatprep.subr.mxu0 0.0
      %7030 = vmatpush1.msra.mxu0 0.0
      %7031 = vmatprep.subr.mxu0 0.0
      %7032 = vmatpush1.msra.mxu0 0.0
      %7033 = vmatprep.subr.mxu0 0.0
      %7034 = vmatpush1.msra.mxu0 0.0
      %7035 = vmatprep.subr.mxu0 0.0
      %7036 = vmatpush1.msra.mxu0 0.0
      %7037 = vmatprep.subr.mxu0 0.0
      %7038 = vmatpush1.msra.mxu0 0.0
      %7039 = vmatprep.subr.mxu0 0.0
      %7040 = vmatpush1.msra.mxu0 0.0
      %7041 = vmatprep.subr.mxu0 0.0
      %7042 = vmatpush1.msra.mxu0 0.0
      %7043 = vmatprep.subr.mxu0 0.0
      %7044 = vmatpush1.msra.mxu0 0.0
      %7045 = vmatprep.mubr.f32.mxu0 0.0
      %7046 = vmatmul.mubr.f32.gmra.mrb[0].mxu0 %v6979
      %v7047 = vpop.f32.mrb[0].mxu0
      %v7048 = vadd.f32 0.0, %v7047
      %v7049 = vpop.f32.mrb[0].mxu0
      %7050 = vdwg.mxu0
      %7051 = vrot.lane.b32.xlu0 %v5689, 104
      %v7052 = vpop.permute.xlu0 %7051
      %7053 = vrot.lane.b32.xlu0 %v5789, 104
      %v7054 = vpop.permute.xlu0 %7053
      %v7055 = vsel %vm4104, %v7052, 0
      %v7057 = vsel %vm4104, %v7054, 0
      %7059 = vmatprep.subr.mxu0 0.0
      %7060 = vmatpush1.xpose.msra.mxu0 %v7057
      %7061 = vmatprep.subr.mxu0 0.0
      %7062 = vmatpush1.xpose.msra.mxu0 0.0
      %7063 = vmatprep.subr.mxu0 0.0
      %7064 = vmatpush1.xpose.msra.mxu0 0.0
      %7065 = vmatprep.subr.mxu0 0.0
      %7066 = vmatpush1.xpose.msra.mxu0 0.0
      %7067 = vmatprep.subr.mxu0 0.0
      %7068 = vmatpush1.xpose.msra.mxu0 0.0
      %7069 = vmatprep.subr.mxu0 0.0
      %7070 = vmatpush1.xpose.msra.mxu0 0.0
      %7071 = vmatprep.subr.mxu0 0.0
      %7072 = vmatpush1.xpose.msra.mxu0 0.0
      %7073 = vmatprep.subr.mxu0 0.0
      %7074 = vmatpush1.xpose.msra.mxu0 0.0
      %7075 = vmatprep.subr.mxu0 0.0
      %7076 = vmatpush1.xpose.msra.mxu0 0.0
      %7077 = vmatprep.subr.mxu0 0.0
      %7078 = vmatpush1.xpose.msra.mxu0 0.0
      %7079 = vmatprep.subr.mxu0 0.0
      %7080 = vmatpush1.xpose.msra.mxu0 0.0
      %7081 = vmatprep.subr.mxu0 0.0
      %7082 = vmatpush1.xpose.msra.mxu0 0.0
      %7083 = vmatprep.subr.mxu0 0.0
      %7084 = vmatpush1.xpose.msra.mxu0 0.0
      %7085 = vmatprep.subr.mxu0 0.0
      %7086 = vmatpush1.xpose.msra.mxu0 0.0
      %7087 = vmatprep.subr.mxu0 0.0
      %7088 = vmatpush1.xpose.msra.mxu0 0.0
      %7089 = vmatprep.subr.mxu0 0.0
      %7090 = vmatpush1.xpose.msra.mxu0 0.0
      %7091 = vmatprep.subr.mxu0 0.0
      %7092 = vmatpush1.xpose.msra.mxu0 0.0
      %7093 = vmatprep.subr.mxu0 0.0
      %7094 = vmatpush1.xpose.msra.mxu0 0.0
      %7095 = vmatprep.subr.mxu0 0.0
      %7096 = vmatpush1.xpose.msra.mxu0 0.0
      %7097 = vmatprep.subr.mxu0 0.0
      %7098 = vmatpush1.xpose.msra.mxu0 0.0
      %7099 = vmatprep.subr.mxu0 0.0
      %7100 = vmatpush1.xpose.msra.mxu0 0.0
      %7101 = vmatprep.subr.mxu0 0.0
      %7102 = vmatpush1.xpose.msra.mxu0 0.0
      %7103 = vmatprep.subr.mxu0 0.0
      %7104 = vmatpush1.xpose.msra.mxu0 0.0
      %7105 = vmatprep.subr.mxu0 0.0
      %7106 = vmatpush1.xpose.msra.mxu0 0.0
      %7107 = vmatprep.subr.mxu0 0.0
      %7108 = vmatpush1.xpose.msra.mxu0 0.0
      %7109 = vmatprep.subr.mxu0 0.0
      %7110 = vmatpush1.xpose.msra.mxu0 0.0
      %7111 = vmatprep.subr.mxu0 0.0
      %7112 = vmatpush1.xpose.msra.mxu0 0.0
      %7113 = vmatprep.subr.mxu0 0.0
      %7114 = vmatpush1.xpose.msra.mxu0 0.0
      %7115 = vmatprep.subr.mxu0 0.0
      %7116 = vmatpush1.xpose.msra.mxu0 0.0
      %7117 = vmatprep.subr.mxu0 0.0
      %7118 = vmatpush1.xpose.msra.mxu0 0.0
      %7119 = vmatprep.subr.mxu0 0.0
      %7120 = vmatpush1.xpose.msra.mxu0 0.0
      %7121 = vmatprep.subr.mxu0 0.0
      %7122 = vmatpush1.xpose.msra.mxu0 0.0
      %7123 = vmatprep.mubr.f32.mxu0 0.0
      %7124 = vmatmul.mubr.f32.gmra.mrb[0].mxu0 %v7055
      %v7125 = vpop.f32.mrb[0].mxu0
      %v7126 = vadd.f32 0.0, %v7125
      %v7127 = vpop.f32.mrb[0].mxu0
      %7128 = vdwg.mxu0
      %v7129 = vmul.f32 %v7126, 0.35355338
      %v7130 = vsel %vm4104, %v7129, -inf
      %7131 = vmax.xlane.f32.xlu0 %v7130
      %v7132 = vpop.xlane.xlu0 %7131
      %v7133 = vsub.f32 %v7129, %v7132
      %v7134 = vmul.f32 %v7133, 1.442695
      %v7135 = vpow.pop %v7134
      %v7136 = vsel %vm4104, %v7135, 0.0
      %7137 = vadd.xlane.f32.xlu0 %v7136
      %v7138 = vpop.xlane.xlu0 %7137
      %v7139 = vrcp.pop %v7138
      %v7140 = vmul.f32 %v7135, %v7139
      %7141 = vrot.lane.b32.xlu0 %v5879, 104
      %v7142 = vpop.permute.xlu0 %7141
      %v7145 = vsel %vm4104, %v7140, 0
      %7147 = vmatprep.subr.mxu0 0.0
      %7148 = vmatpush1.msra.mxu0 %v7142
      %7149 = vmatprep.subr.mxu0 0.0
      %7150 = vmatpush1.msra.mxu0 0.0
      %7151 = vmatprep.subr.mxu0 0.0
      %7152 = vmatpush1.msra.mxu0 0.0
      %7153 = vmatprep.subr.mxu0 0.0
      %7154 = vmatpush1.msra.mxu0 0.0
      %7155 = vmatprep.subr.mxu0 0.0
      %7156 = vmatpush1.msra.mxu0 0.0
      %7157 = vmatprep.subr.mxu0 0.0
      %7158 = vmatpush1.msra.mxu0 0.0
      %7159 = vmatprep.subr.mxu0 0.0
      %7160 = vmatpush1.msra.mxu0 0.0
      %7161 = vmatprep.subr.mxu0 0.0
      %7162 = vmatpush1.msra.mxu0 0.0
      %7163 = vmatprep.subr.mxu0 0.0
      %7164 = vmatpush1.msra.mxu0 0.0
      %7165 = vmatprep.subr.mxu0 0.0
      %7166 = vmatpush1.msra.mxu0 0.0
      %7167 = vmatprep.subr.mxu0 0.0
      %7168 = vmatpush1.msra.mxu0 0.0
      %7169 = vmatprep.subr.mxu0 0.0
      %7170 = vmatpush1.msra.mxu0 0.0
      %7171 = vmatprep.subr.mxu0 0.0
      %7172 = vmatpush1.msra.mxu0 0.0
      %7173 = vmatprep.subr.mxu0 0.0
      %7174 = vmatpush1.msra.mxu0 0.0
      %7175 = vmatprep.subr.mxu0 0.0
      %7176 = vmatpush1.msra.mxu0 0.0
      %7177 = vmatprep.subr.mxu0 0.0
      %7178 = vmatpush1.msra.mxu0 0.0
      %7179 = vmatprep.subr.mxu0 0.0
      %7180 = vmatpush1.msra.mxu0 0.0
      %7181 = vmatprep.subr.mxu0 0.0
      %7182 = vmatpush1.msra.mxu0 0.0
      %7183 = vmatprep.subr.mxu0 0.0
      %7184 = vmatpush1.msra.mxu0 0.0
      %7185 = vmatprep.subr.mxu0 0.0
      %7186 = vmatpush1.msra.mxu0 0.0
      %7187 = vmatprep.subr.mxu0 0.0
      %7188 = vmatpush1.msra.mxu0 0.0
      %7189 = vmatprep.subr.mxu0 0.0
      %7190 = vmatpush1.msra.mxu0 0.0
      %7191 = vmatprep.subr.mxu0 0.0
      %7192 = vmatpush1.msra.mxu0 0.0
      %7193 = vmatprep.subr.mxu0 0.0
      %7194 = vmatpush1.msra.mxu0 0.0
      %7195 = vmatprep.subr.mxu0 0.0
      %7196 = vmatpush1.msra.mxu0 0.0
      %7197 = vmatprep.subr.mxu0 0.0
      %7198 = vmatpush1.msra.mxu0 0.0
      %7199 = vmatprep.subr.mxu0 0.0
      %7200 = vmatpush1.msra.mxu0 0.0
      %7201 = vmatprep.subr.mxu0 0.0
      %7202 = vmatpush1.msra.mxu0 0.0
      %7203 = vmatprep.subr.mxu0 0.0
      %7204 = vmatpush1.msra.mxu0 0.0
      %7205 = vmatprep.subr.mxu0 0.0
      %7206 = vmatpush1.msra.mxu0 0.0
      %7207 = vmatprep.subr.mxu0 0.0
      %7208 = vmatpush1.msra.mxu0 0.0
      %7209 = vmatprep.subr.mxu0 0.0
      %7210 = vmatpush1.msra.mxu0 0.0
      %7211 = vmatprep.mubr.f32.mxu0 0.0
      %7212 = vmatmul.mubr.f32.gmra.mrb[0].mxu0 %v7145
      %v7213 = vpop.f32.mrb[0].mxu0
      %v7214 = vadd.f32 0.0, %v7213
      %v7215 = vpop.f32.mrb[0].mxu0
      %7216 = vdwg.mxu0
      %7218 = vrot.lane.b32.xlu0 %v6882, 8
      %v7219 = vpop.permute.xlu0 %7218
      %7222 = vrot.lane.b32.xlu0 %v7048, 16
      %v7223 = vpop.permute.xlu0 %7222
      %7226 = vrot.lane.b32.xlu0 %v7214, 24
      %v7227 = vpop.permute.xlu0 %7226
      %v7229 = vsel %vm4104, %v6715, %v7219
      %v7230 = vsel %vm4778, %v7229, %v7223
      %v7231 = vsel %vm178, %v7230, %v7227
      %v7233 = vlaneseq
      %v7234 = vshrl.u32 %v7233, 7
      %v7235 = vsub.s32 0, %v7234
      %v7236 = vrot.slane %v5604, %v7235
      %v7239 = vsel %vm3766, %v6556, 0
      %v7242 = vsel %vm3766, %v7231, 0
      %7244 = vmatprep.subr.mxu0 0.0
      %7245 = vmatpush1.msra.mxu0 %v5599
      %7246 = vmatprep.subr.mxu0 0.0
      %7247 = vmatpush1.msra.mxu0 %v5600
      %7248 = vmatprep.subr.mxu0 0.0
      %7249 = vmatpush1.msra.mxu0 %v5601
      %7250 = vmatprep.subr.mxu0 0.0
      %7251 = vmatpush1.msra.mxu0 %v5602
      %7252 = vmatprep.subr.mxu0 0.0
      %7253 = vmatpush1.msra.mxu0 0.0
      %7254 = vmatprep.subr.mxu0 0.0
      %7255 = vmatpush1.msra.mxu0 0.0
      %7256 = vmatprep.subr.mxu0 0.0
      %7257 = vmatpush1.msra.mxu0 0.0
      %7258 = vmatprep.subr.mxu0 0.0
      %7259 = vmatpush1.msra.mxu0 0.0
      %7260 = vmatprep.subr.mxu0 0.0
      %7261 = vmatpush1.msra.mxu0 0.0
      %7262 = vmatprep.subr.mxu0 0.0
      %7263 = vmatpush1.msra.mxu0 0.0
      %7264 = vmatprep.subr.mxu0 0.0
      %7265 = vmatpush1.msra.mxu0 0.0
      %7266 = vmatprep.subr.mxu0 0.0
      %7267 = vmatpush1.msra.mxu0 0.0
      %7268 = vmatprep.subr.mxu0 0.0
      %7269 = vmatpush1.msra.mxu0 0.0
      %7270 = vmatprep.subr.mxu0 0.0
      %7271 = vmatpush1.msra.mxu0 0.0
      %7272 = vmatprep.subr.mxu0 0.0
      %7273 = vmatpush1.msra.mxu0 0.0
      %7274 = vmatprep.subr.mxu0 0.0
      %7275 = vmatpush1.msra.mxu0 0.0
      %7276 = vmatprep.subr.mxu0 0.0
      %7277 = vmatpush1.msra.mxu0 0.0
      %7278 = vmatprep.subr.mxu0 0.0
      %7279 = vmatpush1.msra.mxu0 0.0
      %7280 = vmatprep.subr.mxu0 0.0
      %7281 = vmatpush1.msra.mxu0 0.0
      %7282 = vmatprep.subr.mxu0 0.0
      %7283 = vmatpush1.msra.mxu0 0.0
      %7284 = vmatprep.subr.mxu0 0.0
      %7285 = vmatpush1.msra.mxu0 0.0
      %7286 = vmatprep.subr.mxu0 0.0
      %7287 = vmatpush1.msra.mxu0 0.0
      %7288 = vmatprep.subr.mxu0 0.0
      %7289 = vmatpush1.msra.mxu0 0.0
      %7290 = vmatprep.subr.mxu0 0.0
      %7291 = vmatpush1.msra.mxu0 0.0
      %7292 = vmatprep.subr.mxu0 0.0
      %7293 = vmatpush1.msra.mxu0 0.0
      %7294 = vmatprep.subr.mxu0 0.0
      %7295 = vmatpush1.msra.mxu0 0.0
      %7296 = vmatprep.subr.mxu0 0.0
      %7297 = vmatpush1.msra.mxu0 0.0
      %7298 = vmatprep.subr.mxu0 0.0
      %7299 = vmatpush1.msra.mxu0 0.0
      %7300 = vmatprep.subr.mxu0 0.0
      %7301 = vmatpush1.msra.mxu0 0.0
      %7302 = vmatprep.subr.mxu0 0.0
      %7303 = vmatpush1.msra.mxu0 0.0
      %7304 = vmatprep.subr.mxu0 0.0
      %7305 = vmatpush1.msra.mxu0 0.0
      %7306 = vmatprep.subr.mxu0 0.0
      %7307 = vmatpush1.msra.mxu0 0.0
      %7308 = vmatprep.mubr.f32.mxu0 0.0
      %7309 = vmatmul.mubr.f32.gmra.mrb[0].mxu0 %v7239
      %v7310 = vpop.f32.mrb[0].mxu0
      %v7311 = vadd.f32 %v7236, %v7310
      %v7312 = vpop.f32.mrb[0].mxu0
      %7313 = vmatprep.mubr.f32.mxu0 0.0
      %7314 = vmatmul.mubr.f32.gmra.mrb[0].mxu0 %v7242
      %v7315 = vpop.f32.mrb[0].mxu0
      %v7316 = vadd.f32 %v7236, %v7315
      %v7317 = vpop.f32.mrb[0].mxu0
      %7318 = vdwg.mxu0
      %v7319 = vadd.f32 %v5589, %v7311
      %v7320 = vadd.f32 %v5590, %v7316
      %s7321 = scalar_lea.vmem %s53, %s3811
      %v7322 = vld [vmem:[%s7321] sm:$0x1]
      %s7323 = scalar_lea.vmem %s55, %s3811
      %v7324 = vld [vmem:[%s7323] sm:$0x1]
      %v7325 = vsel %vm3766, %v7319, 0.0
      %7326 = vadd.xlane.f32.xlu0 %v7325
      %v7327 = vpop.xlane.xlu0 %7326
      %v7328 = vsel %vm3766, %v7320, 0.0
      %7329 = vadd.xlane.f32.xlu0 %v7328
      %v7330 = vpop.xlane.xlu0 %7329
      %v7331 = vmul.f32 %v7327, %v3773
      %v7332 = vmul.f32 %v7330, %v3773
      %v7333 = vsub.f32 %v7319, %v7331
      %v7334 = vsub.f32 %v7320, %v7332
      %v7335 = vmul.f32 %v7333, %v7333
      %v7336 = vmul.f32 %v7334, %v7334
      %v7337 = vsel %vm3766, %v7335, 0.0
      %7338 = vadd.xlane.f32.xlu0 %v7337
      %v7339 = vpop.xlane.xlu0 %7338
      %v7340 = vsel %vm3766, %v7336, 0.0
      %7341 = vadd.xlane.f32.xlu0 %v7340
      %v7342 = vpop.xlane.xlu0 %7341
      %v7343 = vmul.f32 %v7339, %v3773
      %v7344 = vmul.f32 %v7342, %v3773
      %v7345 = vadd.f32 %v7343, 1e-05
      %v7346 = vadd.f32 %v7344, 1e-05
      %v7347 = vrsqrt.pop %v7345
      %v7348 = vrsqrt.pop %v7346
      %v7349 = vmul.f32 %v7333, %v7347
      %v7350 = vmul.f32 %v7334, %v7348
      %v7352 = vlaneseq
      %v7353 = vshrl.u32 %v7352, 7
      %v7354 = vsub.s32 0, %v7353
      %v7355 = vrot.slane %v7322, %v7354
      %v7357 = vmul.f32 %v7349, %v7355
      %v7358 = vmul.f32 %v7350, %v7355
      %v7360 = vlaneseq
      %v7361 = vshrl.u32 %v7360, 7
      %v7362 = vsub.s32 0, %v7361
      %v7363 = vrot.slane %v7324, %v7362
      %v7365 = vadd.f32 %v7357, %v7363
      %v7366 = vadd.f32 %v7358, %v7363
      %s7367 = smul.u32 %s3811, 64
      %s7368 = smul.addr %s7367, 8
      %s7369 = scalar_lea.vmem %s57, %s7368
      %v7370 = vld [vmem:[%s7369] sm:$0xff]
      %v7371 = vld [vmem:[%s7369 + $0x8] sm:$0xff]
      %v7372 = vld [vmem:[%s7369 + $0x10] sm:$0xff]
      %v7373 = vld [vmem:[%s7369 + $0x18] sm:$0xff]
      %v7374 = vld [vmem:[%s7369 + $0x20] sm:$0xff]
      %v7375 = vld [vmem:[%s7369 + $0x28] sm:$0xff]
      %v7376 = vld [vmem:[%s7369 + $0x30] sm:$0xff]
      %v7377 = vld [vmem:[%s7369 + $0x38] sm:$0xff]
      %v7378 = vld [vmem:[%s7369 + $0x40] sm:$0xff]
      %v7379 = vld [vmem:[%s7369 + $0x48] sm:$0xff]
      %v7380 = vld [vmem:[%s7369 + $0x50] sm:$0xff]
      %v7381 = vld [vmem:[%s7369 + $0x58] sm:$0xff]
      %v7382 = vld [vmem:[%s7369 + $0x60] sm:$0xff]
      %v7383 = vld [vmem:[%s7369 + $0x68] sm:$0xff]
      %v7384 = vld [vmem:[%s7369 + $0x70] sm:$0xff]
      %v7385 = vld [vmem:[%s7369 + $0x78] sm:$0xff]
      %v7386 = vld [vmem:[%s7369 + $0x80] sm:$0xff]
      %v7387 = vld [vmem:[%s7369 + $0x88] sm:$0xff]
      %v7388 = vld [vmem:[%s7369 + $0x90] sm:$0xff]
      %v7389 = vld [vmem:[%s7369 + $0x98] sm:$0xff]
      %v7390 = vld [vmem:[%s7369 + $0xa0] sm:$0xff]
      %v7391 = vld [vmem:[%s7369 + $0xa8] sm:$0xff]
      %v7392 = vld [vmem:[%s7369 + $0xb0] sm:$0xff]
      %v7393 = vld [vmem:[%s7369 + $0xb8] sm:$0xff]
      %v7394 = vld [vmem:[%s7369 + $0xc0] sm:$0xff]
      %v7395 = vld [vmem:[%s7369 + $0xc8] sm:$0xff]
      %v7396 = vld [vmem:[%s7369 + $0xd0] sm:$0xff]
      %v7397 = vld [vmem:[%s7369 + $0xd8] sm:$0xff]
      %v7398 = vld [vmem:[%s7369 + $0xe0] sm:$0xff]
      %v7399 = vld [vmem:[%s7369 + $0xe8] sm:$0xff]
      %v7400 = vld [vmem:[%s7369 + $0xf0] sm:$0xff]
      %v7401 = vld [vmem:[%s7369 + $0xf8] sm:$0xff]
      %v7402 = vld [vmem:[%s7369 + $0x100] sm:$0xff]
      %v7403 = vld [vmem:[%s7369 + $0x108] sm:$0xff]
      %v7404 = vld [vmem:[%s7369 + $0x110] sm:$0xff]
      %v7405 = vld [vmem:[%s7369 + $0x118] sm:$0xff]
      %v7406 = vld [vmem:[%s7369 + $0x120] sm:$0xff]
      %v7407 = vld [vmem:[%s7369 + $0x128] sm:$0xff]
      %v7408 = vld [vmem:[%s7369 + $0x130] sm:$0xff]
      %v7409 = vld [vmem:[%s7369 + $0x138] sm:$0xff]
      %v7410 = vld [vmem:[%s7369 + $0x140] sm:$0xff]
      %v7411 = vld [vmem:[%s7369 + $0x148] sm:$0xff]
      %v7412 = vld [vmem:[%s7369 + $0x150] sm:$0xff]
      %v7413 = vld [vmem:[%s7369 + $0x158] sm:$0xff]
      %v7414 = vld [vmem:[%s7369 + $0x160] sm:$0xff]
      %v7415 = vld [vmem:[%s7369 + $0x168] sm:$0xff]
      %v7416 = vld [vmem:[%s7369 + $0x170] sm:$0xff]
      %v7417 = vld [vmem:[%s7369 + $0x178] sm:$0xff]
      %v7418 = vld [vmem:[%s7369 + $0x180] sm:$0xff]
      %v7419 = vld [vmem:[%s7369 + $0x188] sm:$0xff]
      %v7420 = vld [vmem:[%s7369 + $0x190] sm:$0xff]
      %v7421 = vld [vmem:[%s7369 + $0x198] sm:$0xff]
      %v7422 = vld [vmem:[%s7369 + $0x1a0] sm:$0xff]
      %v7423 = vld [vmem:[%s7369 + $0x1a8] sm:$0xff]
      %v7424 = vld [vmem:[%s7369 + $0x1b0] sm:$0xff]
      %v7425 = vld [vmem:[%s7369 + $0x1b8] sm:$0xff]
      %v7426 = vld [vmem:[%s7369 + $0x1c0] sm:$0xff]
      %v7427 = vld [vmem:[%s7369 + $0x1c8] sm:$0xff]
      %v7428 = vld [vmem:[%s7369 + $0x1d0] sm:$0xff]
      %v7429 = vld [vmem:[%s7369 + $0x1d8] sm:$0xff]
      %v7430 = vld [vmem:[%s7369 + $0x1e0] sm:$0xff]
      %v7431 = vld [vmem:[%s7369 + $0x1e8] sm:$0xff]
      %v7432 = vld [vmem:[%s7369 + $0x1f0] sm:$0xff]
      %v7433 = vld [vmem:[%s7369 + $0x1f8] sm:$0xff]
      %s7434 = smul.u32 %s3811, 16
      %s7435 = scalar_lea.vmem %s59, %s7434
      %v7436 = vld [vmem:[%s7435] sm:$0xff]
      %v7437 = vld [vmem:[%s7435 + $0x8] sm:$0xff]
      %s7438 = smul.u32 %s3811, 2048
      %s7439 = scalar_lea.vmem %s61, %s7438
      %v7440 = vld [vmem:[%s7439] sm:$0xff]
      %v7441 = vld [vmem:[%s7439 + $0x8] sm:$0xff]
      %v7442 = vld [vmem:[%s7439 + $0x10] sm:$0xff]
      %v7443 = vld [vmem:[%s7439 + $0x18] sm:$0xff]
      %v7444 = vld [vmem:[%s7439 + $0x20] sm:$0xff]
      %v7445 = vld [vmem:[%s7439 + $0x28] sm:$0xff]
      %v7446 = vld [vmem:[%s7439 + $0x30] sm:$0xff]
      %v7447 = vld [vmem:[%s7439 + $0x38] sm:$0xff]
      %v7448 = vld [vmem:[%s7439 + $0x40] sm:$0xff]
      %v7449 = vld [vmem:[%s7439 + $0x48] sm:$0xff]
      %v7450 = vld [vmem:[%s7439 + $0x50] sm:$0xff]
      %v7451 = vld [vmem:[%s7439 + $0x58] sm:$0xff]
      %v7452 = vld [vmem:[%s7439 + $0x60] sm:$0xff]
      %v7453 = vld [vmem:[%s7439 + $0x68] sm:$0xff]
      %v7454 = vld [vmem:[%s7439 + $0x70] sm:$0xff]
      %v7455 = vld [vmem:[%s7439 + $0x78] sm:$0xff]
      %v7456 = vld [vmem:[%s7439 + $0x80] sm:$0xff]
      %v7457 = vld [vmem:[%s7439 + $0x88] sm:$0xff]
      %v7458 = vld [vmem:[%s7439 + $0x90] sm:$0xff]
      %v7459 = vld [vmem:[%s7439 + $0x98] sm:$0xff]
      %v7460 = vld [vmem:[%s7439 + $0xa0] sm:$0xff]
      %v7461 = vld [vmem:[%s7439 + $0xa8] sm:$0xff]
      %v7462 = vld [vmem:[%s7439 + $0xb0] sm:$0xff]
      %v7463 = vld [vmem:[%s7439 + $0xb8] sm:$0xff]
      %v7464 = vld [vmem:[%s7439 + $0xc0] sm:$0xff]
      %v7465 = vld [vmem:[%s7439 + $0xc8] sm:$0xff]
      %v7466 = vld [vmem:[%s7439 + $0xd0] sm:$0xff]
      %v7467 = vld [vmem:[%s7439 + $0xd8] sm:$0xff]
      %v7468 = vld [vmem:[%s7439 + $0xe0] sm:$0xff]
      %v7469 = vld [vmem:[%s7439 + $0xe8] sm:$0xff]
      %v7470 = vld [vmem:[%s7439 + $0xf0] sm:$0xff]
      %v7471 = vld [vmem:[%s7439 + $0xf8] sm:$0xff]
      %v7472 = vld [vmem:[%s7439 + $0x100] sm:$0xff]
      %v7473 = vld [vmem:[%s7439 + $0x108] sm:$0xff]
      %v7474 = vld [vmem:[%s7439 + $0x110] sm:$0xff]
      %v7475 = vld [vmem:[%s7439 + $0x118] sm:$0xff]
      %v7476 = vld [vmem:[%s7439 + $0x120] sm:$0xff]
      %v7477 = vld [vmem:[%s7439 + $0x128] sm:$0xff]
      %v7478 = vld [vmem:[%s7439 + $0x130] sm:$0xff]
      %v7479 = vld [vmem:[%s7439 + $0x138] sm:$0xff]
      %v7480 = vld [vmem:[%s7439 + $0x140] sm:$0xff]
      %v7481 = vld [vmem:[%s7439 + $0x148] sm:$0xff]
      %v7482 = vld [vmem:[%s7439 + $0x150] sm:$0xff]
      %v7483 = vld [vmem:[%s7439 + $0x158] sm:$0xff]
      %v7484 = vld [vmem:[%s7439 + $0x160] sm:$0xff]
      %v7485 = vld [vmem:[%s7439 + $0x168] sm:$0xff]
      %v7486 = vld [vmem:[%s7439 + $0x170] sm:$0xff]
      %v7487 = vld [vmem:[%s7439 + $0x178] sm:$0xff]
      %v7488 = vld [vmem:[%s7439 + $0x180] sm:$0xff]
      %v7489 = vld [vmem:[%s7439 + $0x188] sm:$0xff]
      %v7490 = vld [vmem:[%s7439 + $0x190] sm:$0xff]
      %v7491 = vld [vmem:[%s7439 + $0x198] sm:$0xff]
      %v7492 = vld [vmem:[%s7439 + $0x1a0] sm:$0xff]
      %v7493 = vld [vmem:[%s7439 + $0x1a8] sm:$0xff]
      %v7494 = vld [vmem:[%s7439 + $0x1b0] sm:$0xff]
      %v7495 = vld [vmem:[%s7439 + $0x1b8] sm:$0xff]
      %v7496 = vld [vmem:[%s7439 + $0x1c0] sm:$0xff]
      %v7497 = vld [vmem:[%s7439 + $0x1c8] sm:$0xff]
      %v7498 = vld [vmem:[%s7439 + $0x1d0] sm:$0xff]
      %v7499 = vld [vmem:[%s7439 + $0x1d8] sm:$0xff]
      %v7500 = vld [vmem:[%s7439 + $0x1e0] sm:$0xff]
      %v7501 = vld [vmem:[%s7439 + $0x1e8] sm:$0xff]
      %v7502 = vld [vmem:[%s7439 + $0x1f0] sm:$0xff]
      %v7503 = vld [vmem:[%s7439 + $0x1f8] sm:$0xff]
      %v7504 = vld [vmem:[%s7439 + $0x200] sm:$0xff]
      %v7505 = vld [vmem:[%s7439 + $0x208] sm:$0xff]
      %v7506 = vld [vmem:[%s7439 + $0x210] sm:$0xff]
      %v7507 = vld [vmem:[%s7439 + $0x218] sm:$0xff]
      %v7508 = vld [vmem:[%s7439 + $0x220] sm:$0xff]
      %v7509 = vld [vmem:[%s7439 + $0x228] sm:$0xff]
      %v7510 = vld [vmem:[%s7439 + $0x230] sm:$0xff]
      %v7511 = vld [vmem:[%s7439 + $0x238] sm:$0xff]
      %v7512 = vld [vmem:[%s7439 + $0x240] sm:$0xff]
      %v7513 = vld [vmem:[%s7439 + $0x248] sm:$0xff]
      %v7514 = vld [vmem:[%s7439 + $0x250] sm:$0xff]
      %v7515 = vld [vmem:[%s7439 + $0x258] sm:$0xff]
      %v7516 = vld [vmem:[%s7439 + $0x260] sm:$0xff]
      %v7517 = vld [vmem:[%s7439 + $0x268] sm:$0xff]
      %v7518 = vld [vmem:[%s7439 + $0x270] sm:$0xff]
      %v7519 = vld [vmem:[%s7439 + $0x278] sm:$0xff]
      %v7520 = vld [vmem:[%s7439 + $0x280] sm:$0xff]
      %v7521 = vld [vmem:[%s7439 + $0x288] sm:$0xff]
      %v7522 = vld [vmem:[%s7439 + $0x290] sm:$0xff]
      %v7523 = vld [vmem:[%s7439 + $0x298] sm:$0xff]
      %v7524 = vld [vmem:[%s7439 + $0x2a0] sm:$0xff]
      %v7525 = vld [vmem:[%s7439 + $0x2a8] sm:$0xff]
      %v7526 = vld [vmem:[%s7439 + $0x2b0] sm:$0xff]
      %v7527 = vld [vmem:[%s7439 + $0x2b8] sm:$0xff]
      %v7528 = vld [vmem:[%s7439 + $0x2c0] sm:$0xff]
      %v7529 = vld [vmem:[%s7439 + $0x2c8] sm:$0xff]
      %v7530 = vld [vmem:[%s7439 + $0x2d0] sm:$0xff]
      %v7531 = vld [vmem:[%s7439 + $0x2d8] sm:$0xff]
      %v7532 = vld [vmem:[%s7439 + $0x2e0] sm:$0xff]
      %v7533 = vld [vmem:[%s7439 + $0x2e8] sm:$0xff]
      %v7534 = vld [vmem:[%s7439 + $0x2f0] sm:$0xff]
      %v7535 = vld [vmem:[%s7439 + $0x2f8] sm:$0xff]
      %v7536 = vld [vmem:[%s7439 + $0x300] sm:$0xff]
      %v7537 = vld [vmem:[%s7439 + $0x308] sm:$0xff]
      %v7538 = vld [vmem:[%s7439 + $0x310] sm:$0xff]
      %v7539 = vld [vmem:[%s7439 + $0x318] sm:$0xff]
      %v7540 = vld [vmem:[%s7439 + $0x320] sm:$0xff]
      %v7541 = vld [vmem:[%s7439 + $0x328] sm:$0xff]
      %v7542 = vld [vmem:[%s7439 + $0x330] sm:$0xff]
      %v7543 = vld [vmem:[%s7439 + $0x338] sm:$0xff]
      %v7544 = vld [vmem:[%s7439 + $0x340] sm:$0xff]
      %v7545 = vld [vmem:[%s7439 + $0x348] sm:$0xff]
      %v7546 = vld [vmem:[%s7439 + $0x350] sm:$0xff]
      %v7547 = vld [vmem:[%s7439 + $0x358] sm:$0xff]
      %v7548 = vld [vmem:[%s7439 + $0x360] sm:$0xff]
      %v7549 = vld [vmem:[%s7439 + $0x368] sm:$0xff]
      %v7550 = vld [vmem:[%s7439 + $0x370] sm:$0xff]
      %v7551 = vld [vmem:[%s7439 + $0x378] sm:$0xff]
      %v7552 = vld [vmem:[%s7439 + $0x380] sm:$0xff]
      %v7553 = vld [vmem:[%s7439 + $0x388] sm:$0xff]
      %v7554 = vld [vmem:[%s7439 + $0x390] sm:$0xff]
      %v7555 = vld [vmem:[%s7439 + $0x398] sm:$0xff]
      %v7556 = vld [vmem:[%s7439 + $0x3a0] sm:$0xff]
      %v7557 = vld [vmem:[%s7439 + $0x3a8] sm:$0xff]
      %v7558 = vld [vmem:[%s7439 + $0x3b0] sm:$0xff]
      %v7559 = vld [vmem:[%s7439 + $0x3b8] sm:$0xff]
      %v7560 = vld [vmem:[%s7439 + $0x3c0] sm:$0xff]
      %v7561 = vld [vmem:[%s7439 + $0x3c8] sm:$0xff]
      %v7562 = vld [vmem:[%s7439 + $0x3d0] sm:$0xff]
      %v7563 = vld [vmem:[%s7439 + $0x3d8] sm:$0xff]
      %v7564 = vld [vmem:[%s7439 + $0x3e0] sm:$0xff]
      %v7565 = vld [vmem:[%s7439 + $0x3e8] sm:$0xff]
      %v7566 = vld [vmem:[%s7439 + $0x3f0] sm:$0xff]
      %v7567 = vld [vmem:[%s7439 + $0x3f8] sm:$0xff]
      %v7568 = vld [vmem:[%s7439 + $0x400] sm:$0xff]
      %v7569 = vld [vmem:[%s7439 + $0x408] sm:$0xff]
      %v7570 = vld [vmem:[%s7439 + $0x410] sm:$0xff]
      %v7571 = vld [vmem:[%s7439 + $0x418] sm:$0xff]
      %v7572 = vld [vmem:[%s7439 + $0x420] sm:$0xff]
      %v7573 = vld [vmem:[%s7439 + $0x428] sm:$0xff]
      %v7574 = vld [vmem:[%s7439 + $0x430] sm:$0xff]
      %v7575 = vld [vmem:[%s7439 + $0x438] sm:$0xff]
      %v7576 = vld [vmem:[%s7439 + $0x440] sm:$0xff]
      %v7577 = vld [vmem:[%s7439 + $0x448] sm:$0xff]
      %v7578 = vld [vmem:[%s7439 + $0x450] sm:$0xff]
      %v7579 = vld [vmem:[%s7439 + $0x458] sm:$0xff]
      %v7580 = vld [vmem:[%s7439 + $0x460] sm:$0xff]
      %v7581 = vld [vmem:[%s7439 + $0x468] sm:$0xff]
      %v7582 = vld [vmem:[%s7439 + $0x470] sm:$0xff]
      %v7583 = vld [vmem:[%s7439 + $0x478] sm:$0xff]
      %v7584 = vld [vmem:[%s7439 + $0x480] sm:$0xff]
      %v7585 = vld [vmem:[%s7439 + $0x488] sm:$0xff]
      %v7586 = vld [vmem:[%s7439 + $0x490] sm:$0xff]
      %v7587 = vld [vmem:[%s7439 + $0x498] sm:$0xff]
      %v7588 = vld [vmem:[%s7439 + $0x4a0] sm:$0xff]
      %v7589 = vld [vmem:[%s7439 + $0x4a8] sm:$0xff]
      %v7590 = vld [vmem:[%s7439 + $0x4b0] sm:$0xff]
      %v7591 = vld [vmem:[%s7439 + $0x4b8] sm:$0xff]
      %v7592 = vld [vmem:[%s7439 + $0x4c0] sm:$0xff]
      %v7593 = vld [vmem:[%s7439 + $0x4c8] sm:$0xff]
      %v7594 = vld [vmem:[%s7439 + $0x4d0] sm:$0xff]
      %v7595 = vld [vmem:[%s7439 + $0x4d8] sm:$0xff]
      %v7596 = vld [vmem:[%s7439 + $0x4e0] sm:$0xff]
      %v7597 = vld [vmem:[%s7439 + $0x4e8] sm:$0xff]
      %v7598 = vld [vmem:[%s7439 + $0x4f0] sm:$0xff]
      %v7599 = vld [vmem:[%s7439 + $0x4f8] sm:$0xff]
      %v7600 = vld [vmem:[%s7439 + $0x500] sm:$0xff]
      %v7601 = vld [vmem:[%s7439 + $0x508] sm:$0xff]
      %v7602 = vld [vmem:[%s7439 + $0x510] sm:$0xff]
      %v7603 = vld [vmem:[%s7439 + $0x518] sm:$0xff]
      %v7604 = vld [vmem:[%s7439 + $0x520] sm:$0xff]
      %v7605 = vld [vmem:[%s7439 + $0x528] sm:$0xff]
      %v7606 = vld [vmem:[%s7439 + $0x530] sm:$0xff]
      %v7607 = vld [vmem:[%s7439 + $0x538] sm:$0xff]
      %v7608 = vld [vmem:[%s7439 + $0x540] sm:$0xff]
      %v7609 = vld [vmem:[%s7439 + $0x548] sm:$0xff]
      %v7610 = vld [vmem:[%s7439 + $0x550] sm:$0xff]
      %v7611 = vld [vmem:[%s7439 + $0x558] sm:$0xff]
      %v7612 = vld [vmem:[%s7439 + $0x560] sm:$0xff]
      %v7613 = vld [vmem:[%s7439 + $0x568] sm:$0xff]
      %v7614 = vld [vmem:[%s7439 + $0x570] sm:$0xff]
      %v7615 = vld [vmem:[%s7439 + $0x578] sm:$0xff]
      %v7616 = vld [vmem:[%s7439 + $0x580] sm:$0xff]
      %v7617 = vld [vmem:[%s7439 + $0x588] sm:$0xff]
      %v7618 = vld [vmem:[%s7439 + $0x590] sm:$0xff]
      %v7619 = vld [vmem:[%s7439 + $0x598] sm:$0xff]
      %v7620 = vld [vmem:[%s7439 + $0x5a0] sm:$0xff]
      %v7621 = vld [vmem:[%s7439 + $0x5a8] sm:$0xff]
      %v7622 = vld [vmem:[%s7439 + $0x5b0] sm:$0xff]
      %v7623 = vld [vmem:[%s7439 + $0x5b8] sm:$0xff]
      %v7624 = vld [vmem:[%s7439 + $0x5c0] sm:$0xff]
      %v7625 = vld [vmem:[%s7439 + $0x5c8] sm:$0xff]
      %v7626 = vld [vmem:[%s7439 + $0x5d0] sm:$0xff]
      %v7627 = vld [vmem:[%s7439 + $0x5d8] sm:$0xff]
      %v7628 = vld [vmem:[%s7439 + $0x5e0] sm:$0xff]
      %v7629 = vld [vmem:[%s7439 + $0x5e8] sm:$0xff]
      %v7630 = vld [vmem:[%s7439 + $0x5f0] sm:$0xff]
      %v7631 = vld [vmem:[%s7439 + $0x5f8] sm:$0xff]
      %v7632 = vld [vmem:[%s7439 + $0x600] sm:$0xff]
      %v7633 = vld [vmem:[%s7439 + $0x608] sm:$0xff]
      %v7634 = vld [vmem:[%s7439 + $0x610] sm:$0xff]
      %v7635 = vld [vmem:[%s7439 + $0x618] sm:$0xff]
      %v7636 = vld [vmem:[%s7439 + $0x620] sm:$0xff]
      %v7637 = vld [vmem:[%s7439 + $0x628] sm:$0xff]
      %v7638 = vld [vmem:[%s7439 + $0x630] sm:$0xff]
      %v7639 = vld [vmem:[%s7439 + $0x638] sm:$0xff]
      %v7640 = vld [vmem:[%s7439 + $0x640] sm:$0xff]
      %v7641 = vld [vmem:[%s7439 + $0x648] sm:$0xff]
      %v7642 = vld [vmem:[%s7439 + $0x650] sm:$0xff]
      %v7643 = vld [vmem:[%s7439 + $0x658] sm:$0xff]
      %v7644 = vld [vmem:[%s7439 + $0x660] sm:$0xff]
      %v7645 = vld [vmem:[%s7439 + $0x668] sm:$0xff]
      %v7646 = vld [vmem:[%s7439 + $0x670] sm:$0xff]
      %v7647 = vld [vmem:[%s7439 + $0x678] sm:$0xff]
      %v7648 = vld [vmem:[%s7439 + $0x680] sm:$0xff]
      %v7649 = vld [vmem:[%s7439 + $0x688] sm:$0xff]
      %v7650 = vld [vmem:[%s7439 + $0x690] sm:$0xff]
      %v7651 = vld [vmem:[%s7439 + $0x698] sm:$0xff]
      %v7652 = vld [vmem:[%s7439 + $0x6a0] sm:$0xff]
      %v7653 = vld [vmem:[%s7439 + $0x6a8] sm:$0xff]
      %v7654 = vld [vmem:[%s7439 + $0x6b0] sm:$0xff]
      %v7655 = vld [vmem:[%s7439 + $0x6b8] sm:$0xff]
      %v7656 = vld [vmem:[%s7439 + $0x6c0] sm:$0xff]
      %v7657 = vld [vmem:[%s7439 + $0x6c8] sm:$0xff]
      %v7658 = vld [vmem:[%s7439 + $0x6d0] sm:$0xff]
      %v7659 = vld [vmem:[%s7439 + $0x6d8] sm:$0xff]
      %v7660 = vld [vmem:[%s7439 + $0x6e0] sm:$0xff]
      %v7661 = vld [vmem:[%s7439 + $0x6e8] sm:$0xff]
      %v7662 = vld [vmem:[%s7439 + $0x6f0] sm:$0xff]
      %v7663 = vld [vmem:[%s7439 + $0x6f8] sm:$0xff]
      %v7664 = vld [vmem:[%s7439 + $0x700] sm:$0xff]
      %v7665 = vld [vmem:[%s7439 + $0x708] sm:$0xff]
      %v7666 = vld [vmem:[%s7439 + $0x710] sm:$0xff]
      %v7667 = vld [vmem:[%s7439 + $0x718] sm:$0xff]
      %v7668 = vld [vmem:[%s7439 + $0x720] sm:$0xff]
      %v7669 = vld [vmem:[%s7439 + $0x728] sm:$0xff]
      %v7670 = vld [vmem:[%s7439 + $0x730] sm:$0xff]
      %v7671 = vld [vmem:[%s7439 + $0x738] sm:$0xff]
      %v7672 = vld [vmem:[%s7439 + $0x740] sm:$0xff]
      %v7673 = vld [vmem:[%s7439 + $0x748] sm:$0xff]
      %v7674 = vld [vmem:[%s7439 + $0x750] sm:$0xff]
      %v7675 = vld [vmem:[%s7439 + $0x758] sm:$0xff]
      %v7676 = vld [vmem:[%s7439 + $0x760] sm:$0xff]
      %v7677 = vld [vmem:[%s7439 + $0x768] sm:$0xff]
      %v7678 = vld [vmem:[%s7439 + $0x770] sm:$0xff]
      %v7679 = vld [vmem:[%s7439 + $0x778] sm:$0xff]
      %v7680 = vld [vmem:[%s7439 + $0x780] sm:$0xff]
      %v7681 = vld [vmem:[%s7439 + $0x788] sm:$0xff]
      %v7682 = vld [vmem:[%s7439 + $0x790] sm:$0xff]
      %v7683 = vld [vmem:[%s7439 + $0x798] sm:$0xff]
      %v7684 = vld [vmem:[%s7439 + $0x7a0] sm:$0xff]
      %v7685 = vld [vmem:[%s7439 + $0x7a8] sm:$0xff]
      %v7686 = vld [vmem:[%s7439 + $0x7b0] sm:$0xff]
      %v7687 = vld [vmem:[%s7439 + $0x7b8] sm:$0xff]
      %v7688 = vld [vmem:[%s7439 + $0x7c0] sm:$0xff]
      %v7689 = vld [vmem:[%s7439 + $0x7c8] sm:$0xff]
      %v7690 = vld [vmem:[%s7439 + $0x7d0] sm:$0xff]
      %v7691 = vld [vmem:[%s7439 + $0x7d8] sm:$0xff]
      %v7692 = vld [vmem:[%s7439 + $0x7e0] sm:$0xff]
      %v7693 = vld [vmem:[%s7439 + $0x7e8] sm:$0xff]
      %v7694 = vld [vmem:[%s7439 + $0x7f0] sm:$0xff]
      %v7695 = vld [vmem:[%s7439 + $0x7f8] sm:$0xff]
      %s7696 = scalar_lea.vmem %s63, %s3811
      %v7697 = vld [vmem:[%s7696] sm:$0x1]
      %v7700 = vlaneseq
      %v7701 = vshrl.u32 %v7700, 7
      %v7702 = vsub.s32 0, %v7701
      %v7703 = vrot.slane %v7436, %v7702
      %v7704 = vlaneseq
      %v7705 = vshrl.u32 %v7704, 7
      %v7706 = vsub.s32 1, %v7705
      %v7707 = vrot.slane %v7436, %v7706
      %v7708 = vlaneseq
      %v7709 = vshrl.u32 %v7708, 7
      %v7710 = vsub.s32 2, %v7709
      %v7711 = vrot.slane %v7436, %v7710
      %v7712 = vlaneseq
      %v7713 = vshrl.u32 %v7712, 7
      %v7714 = vsub.s32 3, %v7713
      %v7715 = vrot.slane %v7436, %v7714
      %v7716 = vlaneseq
      %v7717 = vshrl.u32 %v7716, 7
      %v7718 = vsub.s32 4, %v7717
      %v7719 = vrot.slane %v7436, %v7718
      %v7720 = vlaneseq
      %v7721 = vshrl.u32 %v7720, 7
      %v7722 = vsub.s32 5, %v7721
      %v7723 = vrot.slane %v7436, %v7722
      %v7724 = vlaneseq
      %v7725 = vshrl.u32 %v7724, 7
      %v7726 = vsub.s32 6, %v7725
      %v7727 = vrot.slane %v7436, %v7726
      %v7728 = vlaneseq
      %v7729 = vshrl.u32 %v7728, 7
      %v7730 = vsub.s32 7, %v7729
      %v7731 = vrot.slane %v7436, %v7730
      %v7732 = vlaneseq
      %v7733 = vshrl.u32 %v7732, 7
      %v7734 = vsub.s32 0, %v7733
      %v7735 = vrot.slane %v7437, %v7734
      %v7736 = vlaneseq
      %v7737 = vshrl.u32 %v7736, 7
      %v7738 = vsub.s32 1, %v7737
      %v7739 = vrot.slane %v7437, %v7738
      %v7740 = vlaneseq
      %v7741 = vshrl.u32 %v7740, 7
      %v7742 = vsub.s32 2, %v7741
      %v7743 = vrot.slane %v7437, %v7742
      %v7744 = vlaneseq
      %v7745 = vshrl.u32 %v7744, 7
      %v7746 = vsub.s32 3, %v7745
      %v7747 = vrot.slane %v7437, %v7746
      %v7748 = vlaneseq
      %v7749 = vshrl.u32 %v7748, 7
      %v7750 = vsub.s32 4, %v7749
      %v7751 = vrot.slane %v7437, %v7750
      %v7752 = vlaneseq
      %v7753 = vshrl.u32 %v7752, 7
      %v7754 = vsub.s32 5, %v7753
      %v7755 = vrot.slane %v7437, %v7754
      %v7756 = vlaneseq
      %v7757 = vshrl.u32 %v7756, 7
      %v7758 = vsub.s32 6, %v7757
      %v7759 = vrot.slane %v7437, %v7758
      %v7760 = vlaneseq
      %v7761 = vshrl.u32 %v7760, 7
      %v7762 = vsub.s32 7, %v7761
      %v7763 = vrot.slane %v7437, %v7762
      %v7781 = vsel %vm3766, %v7365, 0
      %v7784 = vsel %vm3766, %v7366, 0
      %7786 = vmatprep.subr.mxu0 %v7371
      %7787 = vmatpush1.msra.mxu0 %v7370
      %7788 = vmatprep.subr.mxu0 %v7387
      %7789 = vmatpush1.msra.mxu0 %v7386
      %7790 = vmatprep.subr.mxu0 %v7403
      %7791 = vmatpush1.msra.mxu0 %v7402
      %7792 = vmatprep.subr.mxu0 %v7419
      %7793 = vmatpush1.msra.mxu0 %v7418
      %7794 = vmatprep.subr.mxu0 0.0
      %7795 = vmatpush1.msra.mxu0 0.0
      %7796 = vmatprep.subr.mxu0 0.0
      %7797 = vmatpush1.msra.mxu0 0.0
      %7798 = vmatprep.subr.mxu0 0.0
      %7799 = vmatpush1.msra.mxu0 0.0
      %7800 = vmatprep.subr.mxu0 0.0
      %7801 = vmatpush1.msra.mxu0 0.0
      %7802 = vmatprep.subr.mxu0 0.0
      %7803 = vmatpush1.msra.mxu0 0.0
      %7804 = vmatprep.subr.mxu0 0.0
      %7805 = vmatpush1.msra.mxu0 0.0
      %7806 = vmatprep.subr.mxu0 0.0
      %7807 = vmatpush1.msra.mxu0 0.0
      %7808 = vmatprep.subr.mxu0 0.0
      %7809 = vmatpush1.msra.mxu0 0.0
      %7810 = vmatprep.subr.mxu0 0.0
      %7811 = vmatpush1.msra.mxu0 0.0
      %7812 = vmatprep.subr.mxu0 0.0
      %7813 = vmatpush1.msra.mxu0 0.0
      %7814 = vmatprep.subr.mxu0 0.0
      %7815 = vmatpush1.msra.mxu0 0.0
      %7816 = vmatprep.subr.mxu0 0.0
      %7817 = vmatpush1.msra.mxu0 0.0
      %7818 = vmatprep.subr.mxu0 0.0
      %7819 = vmatpush1.msra.mxu0 0.0
      %7820 = vmatprep.subr.mxu0 0.0
      %7821 = vmatpush1.msra.mxu0 0.0
      %7822 = vmatprep.subr.mxu0 0.0
      %7823 = vmatpush1.msra.mxu0 0.0
      %7824 = vmatprep.subr.mxu0 0.0
      %7825 = vmatpush1.msra.mxu0 0.0
      %7826 = vmatprep.subr.mxu0 0.0
      %7827 = vmatpush1.msra.mxu0 0.0
      %7828 = vmatprep.subr.mxu0 0.0
      %7829 = vmatpush1.msra.mxu0 0.0
      %7830 = vmatprep.subr.mxu0 0.0
      %7831 = vmatpush1.msra.mxu0 0.0
      %7832 = vmatprep.subr.mxu0 0.0
      %7833 = vmatpush1.msra.mxu0 0.0
      %7834 = vmatprep.subr.mxu0 0.0
      %7835 = vmatpush1.msra.mxu0 0.0
      %7836 = vmatprep.subr.mxu0 0.0
      %7837 = vmatpush1.msra.mxu0 0.0
      %7838 = vmatprep.subr.mxu0 0.0
      %7839 = vmatpush1.msra.mxu0 0.0
      %7840 = vmatprep.subr.mxu0 0.0
      %7841 = vmatpush1.msra.mxu0 0.0
      %7842 = vmatprep.subr.mxu0 0.0
      %7843 = vmatpush1.msra.mxu0 0.0
      %7844 = vmatprep.subr.mxu0 0.0
      %7845 = vmatpush1.msra.mxu0 0.0
      %7846 = vmatprep.subr.mxu0 0.0
      %7847 = vmatpush1.msra.mxu0 0.0
      %7848 = vmatprep.subr.mxu0 0.0
      %7849 = vmatpush1.msra.mxu0 0.0
      %7850 = vmatprep.mubr.f32.mxu0 0.0
      %7851 = vmatmul.mubr.f32.gmra.mrb[0].mxu0 %v7781
      %v7852 = vpop.f32.mrb[0].mxu0
      %v7853 = vadd.f32 %v7703, %v7852
      %v7854 = vpop.f32.mrb[0].mxu0
      %v7855 = vadd.f32 %v7707, %v7854
      %7856 = vmatprep.mubr.f32.mxu0 0.0
      %7857 = vmatmul.mubr.f32.gmra.mrb[0].mxu0 %v7784
      %v7858 = vpop.f32.mrb[0].mxu0
      %v7859 = vadd.f32 %v7703, %v7858
      %v7860 = vpop.f32.mrb[0].mxu0
      %v7861 = vadd.f32 %v7707, %v7860
      %7862 = vdwg.mxu0
      %7863 = vmatprep.subr.mxu0 %v7373
      %7864 = vmatpush1.msra.mxu0 %v7372
      %7865 = vmatprep.subr.mxu0 %v7389
      %7866 = vmatpush1.msra.mxu0 %v7388
      %7867 = vmatprep.subr.mxu0 %v7405
      %7868 = vmatpush1.msra.mxu0 %v7404
      %7869 = vmatprep.subr.mxu0 %v7421
      %7870 = vmatpush1.msra.mxu0 %v7420
      %7871 = vmatprep.subr.mxu0 0.0
      %7872 = vmatpush1.msra.mxu0 0.0
      %7873 = vmatprep.subr.mxu0 0.0
      %7874 = vmatpush1.msra.mxu0 0.0
      %7875 = vmatprep.subr.mxu0 0.0
      %7876 = vmatpush1.msra.mxu0 0.0
      %7877 = vmatprep.subr.mxu0 0.0
      %7878 = vmatpush1.msra.mxu0 0.0
      %7879 = vmatprep.subr.mxu0 0.0
      %7880 = vmatpush1.msra.mxu0 0.0
      %7881 = vmatprep.subr.mxu0 0.0
      %7882 = vmatpush1.msra.mxu0 0.0
      %7883 = vmatprep.subr.mxu0 0.0
      %7884 = vmatpush1.msra.mxu0 0.0
      %7885 = vmatprep.subr.mxu0 0.0
      %7886 = vmatpush1.msra.mxu0 0.0
      %7887 = vmatprep.subr.mxu0 0.0
      %7888 = vmatpush1.msra.mxu0 0.0
      %7889 = vmatprep.subr.mxu0 0.0
      %7890 = vmatpush1.msra.mxu0 0.0
      %7891 = vmatprep.subr.mxu0 0.0
      %7892 = vmatpush1.msra.mxu0 0.0
      %7893 = vmatprep.subr.mxu0 0.0
      %7894 = vmatpush1.msra.mxu0 0.0
      %7895 = vmatprep.subr.mxu0 0.0
      %7896 = vmatpush1.msra.mxu0 0.0
      %7897 = vmatprep.subr.mxu0 0.0
      %7898 = vmatpush1.msra.mxu0 0.0
      %7899 = vmatprep.subr.mxu0 0.0
      %7900 = vmatpush1.msra.mxu0 0.0
      %7901 = vmatprep.subr.mxu0 0.0
      %7902 = vmatpush1.msra.mxu0 0.0
      %7903 = vmatprep.subr.mxu0 0.0
      %7904 = vmatpush1.msra.mxu0 0.0
      %7905 = vmatprep.subr.mxu0 0.0
      %7906 = vmatpush1.msra.mxu0 0.0
      %7907 = vmatprep.subr.mxu0 0.0
      %7908 = vmatpush1.msra.mxu0 0.0
      %7909 = vmatprep.subr.mxu0 0.0
      %7910 = vmatpush1.msra.mxu0 0.0
      %7911 = vmatprep.subr.mxu0 0.0
      %7912 = vmatpush1.msra.mxu0 0.0
      %7913 = vmatprep.subr.mxu0 0.0
      %7914 = vmatpush1.msra.mxu0 0.0
      %7915 = vmatprep.subr.mxu0 0.0
      %7916 = vmatpush1.msra.mxu0 0.0
      %7917 = vmatprep.subr.mxu0 0.0
      %7918 = vmatpush1.msra.mxu0 0.0
      %7919 = vmatprep.subr.mxu0 0.0
      %7920 = vmatpush1.msra.mxu0 0.0
      %7921 = vmatprep.subr.mxu0 0.0
      %7922 = vmatpush1.msra.mxu0 0.0
      %7923 = vmatprep.subr.mxu0 0.0
      %7924 = vmatpush1.msra.mxu0 0.0
      %7925 = vmatprep.subr.mxu0 0.0
      %7926 = vmatpush1.msra.mxu0 0.0
      %7927 = vmatprep.mubr.f32.mxu0 0.0
      %7928 = vmatmul.mubr.f32.gmra.mrb[0].mxu0 %v7781
      %v7929 = vpop.f32.mrb[0].mxu0
      %v7930 = vadd.f32 %v7711, %v7929
      %v7931 = vpop.f32.mrb[0].mxu0
      %v7932 = vadd.f32 %v7715, %v7931
      %7933 = vmatprep.mubr.f32.mxu0 0.0
      %7934 = vmatmul.mubr.f32.gmra.mrb[0].mxu0 %v7784
      %v7935 = vpop.f32.mrb[0].mxu0
      %v7936 = vadd.f32 %v7711, %v7935
      %v7937 = vpop.f32.mrb[0].mxu0
      %v7938 = vadd.f32 %v7715, %v7937
      %7939 = vdwg.mxu0
      %7940 = vmatprep.subr.mxu0 %v7375
      %7941 = vmatpush1.msra.mxu0 %v7374
      %7942 = vmatprep.subr.mxu0 %v7391
      %7943 = vmatpush1.msra.mxu0 %v7390
      %7944 = vmatprep.subr.mxu0 %v7407
      %7945 = vmatpush1.msra.mxu0 %v7406
      %7946 = vmatprep.subr.mxu0 %v7423
      %7947 = vmatpush1.msra.mxu0 %v7422
      %7948 = vmatprep.subr.mxu0 0.0
      %7949 = vmatpush1.msra.mxu0 0.0
      %7950 = vmatprep.subr.mxu0 0.0
      %7951 = vmatpush1.msra.mxu0 0.0
      %7952 = vmatprep.subr.mxu0 0.0
      %7953 = vmatpush1.msra.mxu0 0.0
      %7954 = vmatprep.subr.mxu0 0.0
      %7955 = vmatpush1.msra.mxu0 0.0
      %7956 = vmatprep.subr.mxu0 0.0
      %7957 = vmatpush1.msra.mxu0 0.0
      %7958 = vmatprep.subr.mxu0 0.0
      %7959 = vmatpush1.msra.mxu0 0.0
      %7960 = vmatprep.subr.mxu0 0.0
      %7961 = vmatpush1.msra.mxu0 0.0
      %7962 = vmatprep.subr.mxu0 0.0
      %7963 = vmatpush1.msra.mxu0 0.0
      %7964 = vmatprep.subr.mxu0 0.0
      %7965 = vmatpush1.msra.mxu0 0.0
      %7966 = vmatprep.subr.mxu0 0.0
      %7967 = vmatpush1.msra.mxu0 0.0
      %7968 = vmatprep.subr.mxu0 0.0
      %7969 = vmatpush1.msra.mxu0 0.0
      %7970 = vmatprep.subr.mxu0 0.0
      %7971 = vmatpush1.msra.mxu0 0.0
      %7972 = vmatprep.subr.mxu0 0.0
      %7973 = vmatpush1.msra.mxu0 0.0
      %7974 = vmatprep.subr.mxu0 0.0
      %7975 = vmatpush1.msra.mxu0 0.0
      %7976 = vmatprep.subr.mxu0 0.0
      %7977 = vmatpush1.msra.mxu0 0.0
      %7978 = vmatprep.subr.mxu0 0.0
      %7979 = vmatpush1.msra.mxu0 0.0
      %7980 = vmatprep.subr.mxu0 0.0
      %7981 = vmatpush1.msra.mxu0 0.0
      %7982 = vmatprep.subr.mxu0 0.0
      %7983 = vmatpush1.msra.mxu0 0.0
      %7984 = vmatprep.subr.mxu0 0.0
      %7985 = vmatpush1.msra.mxu0 0.0
      %7986 = vmatprep.subr.mxu0 0.0
      %7987 = vmatpush1.msra.mxu0 0.0
      %7988 = vmatprep.subr.mxu0 0.0
      %7989 = vmatpush1.msra.mxu0 0.0
      %7990 = vmatprep.subr.mxu0 0.0
      %7991 = vmatpush1.msra.mxu0 0.0
      %7992 = vmatprep.subr.mxu0 0.0
      %7993 = vmatpush1.msra.mxu0 0.0
      %7994 = vmatprep.subr.mxu0 0.0
      %7995 = vmatpush1.msra.mxu0 0.0
      %7996 = vmatprep.subr.mxu0 0.0
      %7997 = vmatpush1.msra.mxu0 0.0
      %7998 = vmatprep.subr.mxu0 0.0
      %7999 = vmatpush1.msra.mxu0 0.0
      %8000 = vmatprep.subr.mxu0 0.0
      %8001 = vmatpush1.msra.mxu0 0.0
      %8002 = vmatprep.subr.mxu0 0.0
      %8003 = vmatpush1.msra.mxu0 0.0
      %8004 = vmatprep.mubr.f32.mxu0 0.0
      %8005 = vmatmul.mubr.f32.gmra.mrb[0].mxu0 %v7781
      %v8006 = vpop.f32.mrb[0].mxu0
      %v8007 = vadd.f32 %v7719, %v8006
      %v8008 = vpop.f32.mrb[0].mxu0
      %v8009 = vadd.f32 %v7723, %v8008
      %8010 = vmatprep.mubr.f32.mxu0 0.0
      %8011 = vmatmul.mubr.f32.gmra.mrb[0].mxu0 %v7784
      %v8012 = vpop.f32.mrb[0].mxu0
      %v8013 = vadd.f32 %v7719, %v8012
      %v8014 = vpop.f32.mrb[0].mxu0
      %v8015 = vadd.f32 %v7723, %v8014
      %8016 = vdwg.mxu0
      %8017 = vmatprep.subr.mxu0 %v7377
      %8018 = vmatpush1.msra.mxu0 %v7376
      %8019 = vmatprep.subr.mxu0 %v7393
      %8020 = vmatpush1.msra.mxu0 %v7392
      %8021 = vmatprep.subr.mxu0 %v7409
      %8022 = vmatpush1.msra.mxu0 %v7408
      %8023 = vmatprep.subr.mxu0 %v7425
      %8024 = vmatpush1.msra.mxu0 %v7424
      %8025 = vmatprep.subr.mxu0 0.0
      %8026 = vmatpush1.msra.mxu0 0.0
      %8027 = vmatprep.subr.mxu0 0.0
      %8028 = vmatpush1.msra.mxu0 0.0
      %8029 = vmatprep.subr.mxu0 0.0
      %8030 = vmatpush1.msra.mxu0 0.0
      %8031 = vmatprep.subr.mxu0 0.0
      %8032 = vmatpush1.msra.mxu0 0.0
      %8033 = vmatprep.subr.mxu0 0.0
      %8034 = vmatpush1.msra.mxu0 0.0
      %8035 = vmatprep.subr.mxu0 0.0
      %8036 = vmatpush1.msra.mxu0 0.0
      %8037 = vmatprep.subr.mxu0 0.0
      %8038 = vmatpush1.msra.mxu0 0.0
      %8039 = vmatprep.subr.mxu0 0.0
      %8040 = vmatpush1.msra.mxu0 0.0
      %8041 = vmatprep.subr.mxu0 0.0
      %8042 = vmatpush1.msra.mxu0 0.0
      %8043 = vmatprep.subr.mxu0 0.0
      %8044 = vmatpush1.msra.mxu0 0.0
      %8045 = vmatprep.subr.mxu0 0.0
      %8046 = vmatpush1.msra.mxu0 0.0
      %8047 = vmatprep.subr.mxu0 0.0
      %8048 = vmatpush1.msra.mxu0 0.0
      %8049 = vmatprep.subr.mxu0 0.0
      %8050 = vmatpush1.msra.mxu0 0.0
      %8051 = vmatprep.subr.mxu0 0.0
      %8052 = vmatpush1.msra.mxu0 0.0
      %8053 = vmatprep.subr.mxu0 0.0
      %8054 = vmatpush1.msra.mxu0 0.0
      %8055 = vmatprep.subr.mxu0 0.0
      %8056 = vmatpush1.msra.mxu0 0.0
      %8057 = vmatprep.subr.mxu0 0.0
      %8058 = vmatpush1.msra.mxu0 0.0
      %8059 = vmatprep.subr.mxu0 0.0
      %8060 = vmatpush1.msra.mxu0 0.0
      %8061 = vmatprep.subr.mxu0 0.0
      %8062 = vmatpush1.msra.mxu0 0.0
      %8063 = vmatprep.subr.mxu0 0.0
      %8064 = vmatpush1.msra.mxu0 0.0
      %8065 = vmatprep.subr.mxu0 0.0
      %8066 = vmatpush1.msra.mxu0 0.0
      %8067 = vmatprep.subr.mxu0 0.0
      %8068 = vmatpush1.msra.mxu0 0.0
      %8069 = vmatprep.subr.mxu0 0.0
      %8070 = vmatpush1.msra.mxu0 0.0
      %8071 = vmatprep.subr.mxu0 0.0
      %8072 = vmatpush1.msra.mxu0 0.0
      %8073 = vmatprep.subr.mxu0 0.0
      %8074 = vmatpush1.msra.mxu0 0.0
      %8075 = vmatprep.subr.mxu0 0.0
      %8076 = vmatpush1.msra.mxu0 0.0
      %8077 = vmatprep.subr.mxu0 0.0
      %8078 = vmatpush1.msra.mxu0 0.0
      %8079 = vmatprep.subr.mxu0 0.0
      %8080 = vmatpush1.msra.mxu0 0.0
      %8081 = vmatprep.mubr.f32.mxu0 0.0
      %8082 = vmatmul.mubr.f32.gmra.mrb[0].mxu0 %v7781
      %v8083 = vpop.f32.mrb[0].mxu0
      %v8084 = vadd.f32 %v7727, %v8083
      %v8085 = vpop.f32.mrb[0].mxu0
      %v8086 = vadd.f32 %v7731, %v8085
      %8087 = vmatprep.mubr.f32.mxu0 0.0
      %8088 = vmatmul.mubr.f32.gmra.mrb[0].mxu0 %v7784
      %v8089 = vpop.f32.mrb[0].mxu0
      %v8090 = vadd.f32 %v7727, %v8089
      %v8091 = vpop.f32.mrb[0].mxu0
      %v8092 = vadd.f32 %v7731, %v8091
      %8093 = vdwg.mxu0
      %8094 = vmatprep.subr.mxu0 %v7379
      %8095 = vmatpush1.msra.mxu0 %v7378
      %8096 = vmatprep.subr.mxu0 %v7395
      %8097 = vmatpush1.msra.mxu0 %v7394
      %8098 = vmatprep.subr.mxu0 %v7411
      %8099 = vmatpush1.msra.mxu0 %v7410
      %8100 = vmatprep.subr.mxu0 %v7427
      %8101 = vmatpush1.msra.mxu0 %v7426
      %8102 = vmatprep.subr.mxu0 0.0
      %8103 = vmatpush1.msra.mxu0 0.0
      %8104 = vmatprep.subr.mxu0 0.0
      %8105 = vmatpush1.msra.mxu0 0.0
      %8106 = vmatprep.subr.mxu0 0.0
      %8107 = vmatpush1.msra.mxu0 0.0
      %8108 = vmatprep.subr.mxu0 0.0
      %8109 = vmatpush1.msra.mxu0 0.0
      %8110 = vmatprep.subr.mxu0 0.0
      %8111 = vmatpush1.msra.mxu0 0.0
      %8112 = vmatprep.subr.mxu0 0.0
      %8113 = vmatpush1.msra.mxu0 0.0
      %8114 = vmatprep.subr.mxu0 0.0
      %8115 = vmatpush1.msra.mxu0 0.0
      %8116 = vmatprep.subr.mxu0 0.0
      %8117 = vmatpush1.msra.mxu0 0.0
      %8118 = vmatprep.subr.mxu0 0.0
      %8119 = vmatpush1.msra.mxu0 0.0
      %8120 = vmatprep.subr.mxu0 0.0
      %8121 = vmatpush1.msra.mxu0 0.0
      %8122 = vmatprep.subr.mxu0 0.0
      %8123 = vmatpush1.msra.mxu0 0.0
      %8124 = vmatprep.subr.mxu0 0.0
      %8125 = vmatpush1.msra.mxu0 0.0
      %8126 = vmatprep.subr.mxu0 0.0
      %8127 = vmatpush1.msra.mxu0 0.0
      %8128 = vmatprep.subr.mxu0 0.0
      %8129 = vmatpush1.msra.mxu0 0.0
      %8130 = vmatprep.subr.mxu0 0.0
      %8131 = vmatpush1.msra.mxu0 0.0
      %8132 = vmatprep.subr.mxu0 0.0
      %8133 = vmatpush1.msra.mxu0 0.0
      %8134 = vmatprep.subr.mxu0 0.0
      %8135 = vmatpush1.msra.mxu0 0.0
      %8136 = vmatprep.subr.mxu0 0.0
      %8137 = vmatpush1.msra.mxu0 0.0
      %8138 = vmatprep.subr.mxu0 0.0
      %8139 = vmatpush1.msra.mxu0 0.0
      %8140 = vmatprep.subr.mxu0 0.0
      %8141 = vmatpush1.msra.mxu0 0.0
      %8142 = vmatprep.subr.mxu0 0.0
      %8143 = vmatpush1.msra.mxu0 0.0
      %8144 = vmatprep.subr.mxu0 0.0
      %8145 = vmatpush1.msra.mxu0 0.0
      %8146 = vmatprep.subr.mxu0 0.0
      %8147 = vmatpush1.msra.mxu0 0.0
      %8148 = vmatprep.subr.mxu0 0.0
      %8149 = vmatpush1.msra.mxu0 0.0
      %8150 = vmatprep.subr.mxu0 0.0
      %8151 = vmatpush1.msra.mxu0 0.0
      %8152 = vmatprep.subr.mxu0 0.0
      %8153 = vmatpush1.msra.mxu0 0.0
      %8154 = vmatprep.subr.mxu0 0.0
      %8155 = vmatpush1.msra.mxu0 0.0
      %8156 = vmatprep.subr.mxu0 0.0
      %8157 = vmatpush1.msra.mxu0 0.0
      %8158 = vmatprep.mubr.f32.mxu0 0.0
      %8159 = vmatmul.mubr.f32.gmra.mrb[0].mxu0 %v7781
      %v8160 = vpop.f32.mrb[0].mxu0
      %v8161 = vadd.f32 %v7735, %v8160
      %v8162 = vpop.f32.mrb[0].mxu0
      %v8163 = vadd.f32 %v7739, %v8162
      %8164 = vmatprep.mubr.f32.mxu0 0.0
      %8165 = vmatmul.mubr.f32.gmra.mrb[0].mxu0 %v7784
      %v8166 = vpop.f32.mrb[0].mxu0
      %v8167 = vadd.f32 %v7735, %v8166
      %v8168 = vpop.f32.mrb[0].mxu0
      %v8169 = vadd.f32 %v7739, %v8168
      %8170 = vdwg.mxu0
      %8171 = vmatprep.subr.mxu0 %v7381
      %8172 = vmatpush1.msra.mxu0 %v7380
      %8173 = vmatprep.subr.mxu0 %v7397
      %8174 = vmatpush1.msra.mxu0 %v7396
      %8175 = vmatprep.subr.mxu0 %v7413
      %8176 = vmatpush1.msra.mxu0 %v7412
      %8177 = vmatprep.subr.mxu0 %v7429
      %8178 = vmatpush1.msra.mxu0 %v7428
      %8179 = vmatprep.subr.mxu0 0.0
      %8180 = vmatpush1.msra.mxu0 0.0
      %8181 = vmatprep.subr.mxu0 0.0
      %8182 = vmatpush1.msra.mxu0 0.0
      %8183 = vmatprep.subr.mxu0 0.0
      %8184 = vmatpush1.msra.mxu0 0.0
      %8185 = vmatprep.subr.mxu0 0.0
      %8186 = vmatpush1.msra.mxu0 0.0
      %8187 = vmatprep.subr.mxu0 0.0
      %8188 = vmatpush1.msra.mxu0 0.0
      %8189 = vmatprep.subr.mxu0 0.0
      %8190 = vmatpush1.msra.mxu0 0.0
      %8191 = vmatprep.subr.mxu0 0.0
      %8192 = vmatpush1.msra.mxu0 0.0
      %8193 = vmatprep.subr.mxu0 0.0
      %8194 = vmatpush1.msra.mxu0 0.0
      %8195 = vmatprep.subr.mxu0 0.0
      %8196 = vmatpush1.msra.mxu0 0.0
      %8197 = vmatprep.subr.mxu0 0.0
      %8198 = vmatpush1.msra.mxu0 0.0
      %8199 = vmatprep.subr.mxu0 0.0
      %8200 = vmatpush1.msra.mxu0 0.0
      %8201 = vmatprep.subr.mxu0 0.0
      %8202 = vmatpush1.msra.mxu0 0.0
      %8203 = vmatprep.subr.mxu0 0.0
      %8204 = vmatpush1.msra.mxu0 0.0
      %8205 = vmatprep.subr.mxu0 0.0
      %8206 = vmatpush1.msra.mxu0 0.0
      %8207 = vmatprep.subr.mxu0 0.0
      %8208 = vmatpush1.msra.mxu0 0.0
      %8209 = vmatprep.subr.mxu0 0.0
      %8210 = vmatpush1.msra.mxu0 0.0
      %8211 = vmatprep.subr.mxu0 0.0
      %8212 = vmatpush1.msra.mxu0 0.0
      %8213 = vmatprep.subr.mxu0 0.0
      %8214 = vmatpush1.msra.mxu0 0.0
      %8215 = vmatprep.subr.mxu0 0.0
      %8216 = vmatpush1.msra.mxu0 0.0
      %8217 = vmatprep.subr.mxu0 0.0
      %8218 = vmatpush1.msra.mxu0 0.0
      %8219 = vmatprep.subr.mxu0 0.0
      %8220 = vmatpush1.msra.mxu0 0.0
      %8221 = vmatprep.subr.mxu0 0.0
      %8222 = vmatpush1.msra.mxu0 0.0
      %8223 = vmatprep.subr.mxu0 0.0
      %8224 = vmatpush1.msra.mxu0 0.0
      %8225 = vmatprep.subr.mxu0 0.0
      %8226 = vmatpush1.msra.mxu0 0.0
      %8227 = vmatprep.subr.mxu0 0.0
      %8228 = vmatpush1.msra.mxu0 0.0
      %8229 = vmatprep.subr.mxu0 0.0
      %8230 = vmatpush1.msra.mxu0 0.0
      %8231 = vmatprep.subr.mxu0 0.0
      %8232 = vmatpush1.msra.mxu0 0.0
      %8233 = vmatprep.subr.mxu0 0.0
      %8234 = vmatpush1.msra.mxu0 0.0
      %8235 = vmatprep.mubr.f32.mxu0 0.0
      %8236 = vmatmul.mubr.f32.gmra.mrb[0].mxu0 %v7781
      %v8237 = vpop.f32.mrb[0].mxu0
      %v8238 = vadd.f32 %v7743, %v8237
      %v8239 = vpop.f32.mrb[0].mxu0
      %v8240 = vadd.f32 %v7747, %v8239
      %8241 = vmatprep.mubr.f32.mxu0 0.0
      %8242 = vmatmul.mubr.f32.gmra.mrb[0].mxu0 %v7784
      %v8243 = vpop.f32.mrb[0].mxu0
      %v8244 = vadd.f32 %v7743, %v8243
      %v8245 = vpop.f32.mrb[0].mxu0
      %v8246 = vadd.f32 %v7747, %v8245
      %8247 = vdwg.mxu0
      %8248 = vmatprep.subr.mxu0 %v7383
      %8249 = vmatpush1.msra.mxu0 %v7382
      %8250 = vmatprep.subr.mxu0 %v7399
      %8251 = vmatpush1.msra.mxu0 %v7398
      %8252 = vmatprep.subr.mxu0 %v7415
      %8253 = vmatpush1.msra.mxu0 %v7414
      %8254 = vmatprep.subr.mxu0 %v7431
      %8255 = vmatpush1.msra.mxu0 %v7430
      %8256 = vmatprep.subr.mxu0 0.0
      %8257 = vmatpush1.msra.mxu0 0.0
      %8258 = vmatprep.subr.mxu0 0.0
      %8259 = vmatpush1.msra.mxu0 0.0
      %8260 = vmatprep.subr.mxu0 0.0
      %8261 = vmatpush1.msra.mxu0 0.0
      %8262 = vmatprep.subr.mxu0 0.0
      %8263 = vmatpush1.msra.mxu0 0.0
      %8264 = vmatprep.subr.mxu0 0.0
      %8265 = vmatpush1.msra.mxu0 0.0
      %8266 = vmatprep.subr.mxu0 0.0
      %8267 = vmatpush1.msra.mxu0 0.0
      %8268 = vmatprep.subr.mxu0 0.0
      %8269 = vmatpush1.msra.mxu0 0.0
      %8270 = vmatprep.subr.mxu0 0.0
      %8271 = vmatpush1.msra.mxu0 0.0
      %8272 = vmatprep.subr.mxu0 0.0
      %8273 = vmatpush1.msra.mxu0 0.0
      %8274 = vmatprep.subr.mxu0 0.0
      %8275 = vmatpush1.msra.mxu0 0.0
      %8276 = vmatprep.subr.mxu0 0.0
      %8277 = vmatpush1.msra.mxu0 0.0
      %8278 = vmatprep.subr.mxu0 0.0
      %8279 = vmatpush1.msra.mxu0 0.0
      %8280 = vmatprep.subr.mxu0 0.0
      %8281 = vmatpush1.msra.mxu0 0.0
      %8282 = vmatprep.subr.mxu0 0.0
      %8283 = vmatpush1.msra.mxu0 0.0
      %8284 = vmatprep.subr.mxu0 0.0
      %8285 = vmatpush1.msra.mxu0 0.0
      %8286 = vmatprep.subr.mxu0 0.0
      %8287 = vmatpush1.msra.mxu0 0.0
      %8288 = vmatprep.subr.mxu0 0.0
      %8289 = vmatpush1.msra.mxu0 0.0
      %8290 = vmatprep.subr.mxu0 0.0
      %8291 = vmatpush1.msra.mxu0 0.0
      %8292 = vmatprep.subr.mxu0 0.0
      %8293 = vmatpush1.msra.mxu0 0.0
      %8294 = vmatprep.subr.mxu0 0.0
      %8295 = vmatpush1.msra.mxu0 0.0
      %8296 = vmatprep.subr.mxu0 0.0
      %8297 = vmatpush1.msra.mxu0 0.0
      %8298 = vmatprep.subr.mxu0 0.0
      %8299 = vmatpush1.msra.mxu0 0.0
      %8300 = vmatprep.subr.mxu0 0.0
      %8301 = vmatpush1.msra.mxu0 0.0
      %8302 = vmatprep.subr.mxu0 0.0
      %8303 = vmatpush1.msra.mxu0 0.0
      %8304 = vmatprep.subr.mxu0 0.0
      %8305 = vmatpush1.msra.mxu0 0.0
      %8306 = vmatprep.subr.mxu0 0.0
      %8307 = vmatpush1.msra.mxu0 0.0
      %8308 = vmatprep.subr.mxu0 0.0
      %8309 = vmatpush1.msra.mxu0 0.0
      %8310 = vmatprep.subr.mxu0 0.0
      %8311 = vmatpush1.msra.mxu0 0.0
      %8312 = vmatprep.mubr.f32.mxu0 0.0
      %8313 = vmatmul.mubr.f32.gmra.mrb[0].mxu0 %v7781
      %v8314 = vpop.f32.mrb[0].mxu0
      %v8315 = vadd.f32 %v7751, %v8314
      %v8316 = vpop.f32.mrb[0].mxu0
      %v8317 = vadd.f32 %v7755, %v8316
      %8318 = vmatprep.mubr.f32.mxu0 0.0
      %8319 = vmatmul.mubr.f32.gmra.mrb[0].mxu0 %v7784
      %v8320 = vpop.f32.mrb[0].mxu0
      %v8321 = vadd.f32 %v7751, %v8320
      %v8322 = vpop.f32.mrb[0].mxu0
      %v8323 = vadd.f32 %v7755, %v8322
      %8324 = vdwg.mxu0
      %8325 = vmatprep.subr.mxu0 %v7385
      %8326 = vmatpush1.msra.mxu0 %v7384
      %8327 = vmatprep.subr.mxu0 %v7401
      %8328 = vmatpush1.msra.mxu0 %v7400
      %8329 = vmatprep.subr.mxu0 %v7417
      %8330 = vmatpush1.msra.mxu0 %v7416
      %8331 = vmatprep.subr.mxu0 %v7433
      %8332 = vmatpush1.msra.mxu0 %v7432
      %8333 = vmatprep.subr.mxu0 0.0
      %8334 = vmatpush1.msra.mxu0 0.0
      %8335 = vmatprep.subr.mxu0 0.0
      %8336 = vmatpush1.msra.mxu0 0.0
      %8337 = vmatprep.subr.mxu0 0.0
      %8338 = vmatpush1.msra.mxu0 0.0
      %8339 = vmatprep.subr.mxu0 0.0
      %8340 = vmatpush1.msra.mxu0 0.0
      %8341 = vmatprep.subr.mxu0 0.0
      %8342 = vmatpush1.msra.mxu0 0.0
      %8343 = vmatprep.subr.mxu0 0.0
      %8344 = vmatpush1.msra.mxu0 0.0
      %8345 = vmatprep.subr.mxu0 0.0
      %8346 = vmatpush1.msra.mxu0 0.0
      %8347 = vmatprep.subr.mxu0 0.0
      %8348 = vmatpush1.msra.mxu0 0.0
      %8349 = vmatprep.subr.mxu0 0.0
      %8350 = vmatpush1.msra.mxu0 0.0
      %8351 = vmatprep.subr.mxu0 0.0
      %8352 = vmatpush1.msra.mxu0 0.0
      %8353 = vmatprep.subr.mxu0 0.0
      %8354 = vmatpush1.msra.mxu0 0.0
      %8355 = vmatprep.subr.mxu0 0.0
      %8356 = vmatpush1.msra.mxu0 0.0
      %8357 = vmatprep.subr.mxu0 0.0
      %8358 = vmatpush1.msra.mxu0 0.0
      %8359 = vmatprep.subr.mxu0 0.0
      %8360 = vmatpush1.msra.mxu0 0.0
      %8361 = vmatprep.subr.mxu0 0.0
      %8362 = vmatpush1.msra.mxu0 0.0
      %8363 = vmatprep.subr.mxu0 0.0
      %8364 = vmatpush1.msra.mxu0 0.0
      %8365 = vmatprep.subr.mxu0 0.0
      %8366 = vmatpush1.msra.mxu0 0.0
      %8367 = vmatprep.subr.mxu0 0.0
      %8368 = vmatpush1.msra.mxu0 0.0
      %8369 = vmatprep.subr.mxu0 0.0
      %8370 = vmatpush1.msra.mxu0 0.0
      %8371 = vmatprep.subr.mxu0 0.0
      %8372 = vmatpush1.msra.mxu0 0.0
      %8373 = vmatprep.subr.mxu0 0.0
      %8374 = vmatpush1.msra.mxu0 0.0
      %8375 = vmatprep.subr.mxu0 0.0
      %8376 = vmatpush1.msra.mxu0 0.0
      %8377 = vmatprep.subr.mxu0 0.0
      %8378 = vmatpush1.msra.mxu0 0.0
      %8379 = vmatprep.subr.mxu0 0.0
      %8380 = vmatpush1.msra.mxu0 0.0
      %8381 = vmatprep.subr.mxu0 0.0
      %8382 = vmatpush1.msra.mxu0 0.0
      %8383 = vmatprep.subr.mxu0 0.0
      %8384 = vmatpush1.msra.mxu0 0.0
      %8385 = vmatprep.subr.mxu0 0.0
      %8386 = vmatpush1.msra.mxu0 0.0
      %8387 = vmatprep.subr.mxu0 0.0
      %8388 = vmatpush1.msra.mxu0 0.0
      %8389 = vmatprep.mubr.f32.mxu0 0.0
      %8390 = vmatmul.mubr.f32.gmra.mrb[0].mxu0 %v7781
      %v8391 = vpop.f32.mrb[0].mxu0
      %v8392 = vadd.f32 %v7759, %v8391
      %v8393 = vpop.f32.mrb[0].mxu0
      %v8394 = vadd.f32 %v7763, %v8393
      %8395 = vmatprep.mubr.f32.mxu0 0.0
      %8396 = vmatmul.mubr.f32.gmra.mrb[0].mxu0 %v7784
      %v8397 = vpop.f32.mrb[0].mxu0
      %v8398 = vadd.f32 %v7759, %v8397
      %v8399 = vpop.f32.mrb[0].mxu0
      %v8400 = vadd.f32 %v7763, %v8399
      %8401 = vdwg.mxu0
      %v8402 = vmax.f32 %v7853, 0.0
      %v8403 = vmax.f32 %v7855, 0.0
      %v8404 = vmax.f32 %v7930, 0.0
      %v8405 = vmax.f32 %v7932, 0.0
      %v8406 = vmax.f32 %v8007, 0.0
      %v8407 = vmax.f32 %v8009, 0.0
      %v8408 = vmax.f32 %v8084, 0.0
      %v8409 = vmax.f32 %v8086, 0.0
      %v8410 = vmax.f32 %v8161, 0.0
      %v8411 = vmax.f32 %v8163, 0.0
      %v8412 = vmax.f32 %v8238, 0.0
      %v8413 = vmax.f32 %v8240, 0.0
      %v8414 = vmax.f32 %v8315, 0.0
      %v8415 = vmax.f32 %v8317, 0.0
      %v8416 = vmax.f32 %v8392, 0.0
      %v8417 = vmax.f32 %v8394, 0.0
      %v8418 = vmax.f32 %v7859, 0.0
      %v8419 = vmax.f32 %v7861, 0.0
      %v8420 = vmax.f32 %v7936, 0.0
      %v8421 = vmax.f32 %v7938, 0.0
      %v8422 = vmax.f32 %v8013, 0.0
      %v8423 = vmax.f32 %v8015, 0.0
      %v8424 = vmax.f32 %v8090, 0.0
      %v8425 = vmax.f32 %v8092, 0.0
      %v8426 = vmax.f32 %v8167, 0.0
      %v8427 = vmax.f32 %v8169, 0.0
      %v8428 = vmax.f32 %v8244, 0.0
      %v8429 = vmax.f32 %v8246, 0.0
      %v8430 = vmax.f32 %v8321, 0.0
      %v8431 = vmax.f32 %v8323, 0.0
      %v8432 = vmax.f32 %v8398, 0.0
      %v8433 = vmax.f32 %v8400, 0.0
      %v8435 = vlaneseq
      %v8436 = vshrl.u32 %v8435, 7
      %v8437 = vsub.s32 0, %v8436
      %v8438 = vrot.slane %v7697, %v8437
      %8440 = vmatprep.subr.mxu0 0.0
      %8441 = vmatpush1.msra.mxu0 %v7440
      %8442 = vmatprep.subr.mxu0 0.0
      %8443 = vmatpush1.msra.mxu0 %v7441
      %8444 = vmatprep.subr.mxu0 0.0
      %8445 = vmatpush1.msra.mxu0 %v7442
      %8446 = vmatprep.subr.mxu0 0.0
      %8447 = vmatpush1.msra.mxu0 %v7443
      %8448 = vmatprep.subr.mxu0 0.0
      %8449 = vmatpush1.msra.mxu0 %v7444
      %8450 = vmatprep.subr.mxu0 0.0
      %8451 = vmatpush1.msra.mxu0 %v7445
      %8452 = vmatprep.subr.mxu0 0.0
      %8453 = vmatpush1.msra.mxu0 %v7446
      %8454 = vmatprep.subr.mxu0 0.0
      %8455 = vmatpush1.msra.mxu0 %v7447
      %8456 = vmatprep.subr.mxu0 0.0
      %8457 = vmatpush1.msra.mxu0 %v7448
      %8458 = vmatprep.subr.mxu0 0.0
      %8459 = vmatpush1.msra.mxu0 %v7449
      %8460 = vmatprep.subr.mxu0 0.0
      %8461 = vmatpush1.msra.mxu0 %v7450
      %8462 = vmatprep.subr.mxu0 0.0
      %8463 = vmatpush1.msra.mxu0 %v7451
      %8464 = vmatprep.subr.mxu0 0.0
      %8465 = vmatpush1.msra.mxu0 %v7452
      %8466 = vmatprep.subr.mxu0 0.0
      %8467 = vmatpush1.msra.mxu0 %v7453
      %8468 = vmatprep.subr.mxu0 0.0
      %8469 = vmatpush1.msra.mxu0 %v7454
      %8470 = vmatprep.subr.mxu0 0.0
      %8471 = vmatpush1.msra.mxu0 %v7455
      %8472 = vmatprep.subr.mxu0 0.0
      %8473 = vmatpush1.msra.mxu0 %v7456
      %8474 = vmatprep.subr.mxu0 0.0
      %8475 = vmatpush1.msra.mxu0 %v7457
      %8476 = vmatprep.subr.mxu0 0.0
      %8477 = vmatpush1.msra.mxu0 %v7458
      %8478 = vmatprep.subr.mxu0 0.0
      %8479 = vmatpush1.msra.mxu0 %v7459
      %8480 = vmatprep.subr.mxu0 0.0
      %8481 = vmatpush1.msra.mxu0 %v7460
      %8482 = vmatprep.subr.mxu0 0.0
      %8483 = vmatpush1.msra.mxu0 %v7461
      %8484 = vmatprep.subr.mxu0 0.0
      %8485 = vmatpush1.msra.mxu0 %v7462
      %8486 = vmatprep.subr.mxu0 0.0
      %8487 = vmatpush1.msra.mxu0 %v7463
      %8488 = vmatprep.subr.mxu0 0.0
      %8489 = vmatpush1.msra.mxu0 %v7464
      %8490 = vmatprep.subr.mxu0 0.0
      %8491 = vmatpush1.msra.mxu0 %v7465
      %8492 = vmatprep.subr.mxu0 0.0
      %8493 = vmatpush1.msra.mxu0 %v7466
      %8494 = vmatprep.subr.mxu0 0.0
      %8495 = vmatpush1.msra.mxu0 %v7467
      %8496 = vmatprep.subr.mxu0 0.0
      %8497 = vmatpush1.msra.mxu0 %v7468
      %8498 = vmatprep.subr.mxu0 0.0
      %8499 = vmatpush1.msra.mxu0 %v7469
      %8500 = vmatprep.subr.mxu0 0.0
      %8501 = vmatpush1.msra.mxu0 %v7470
      %8502 = vmatprep.subr.mxu0 0.0
      %8503 = vmatpush1.msra.mxu0 %v7471
      %8504 = vmatprep.mubr.f32.mxu0 %v8403
      %8505 = vmatmul.mubr.f32.gmra.mrb[0].mxu0 %v8402
      %v8506 = vpop.f32.mrb[0].mxu0
      %v8507 = vadd.f32 %v8438, %v8506
      %v8508 = vpop.f32.mrb[0].mxu0
      %8509 = vmatprep.mubr.f32.mxu0 %v8419
      %8510 = vmatmul.mubr.f32.gmra.mrb[0].mxu0 %v8418
      %v8511 = vpop.f32.mrb[0].mxu0
      %v8512 = vadd.f32 %v8438, %v8511
      %v8513 = vpop.f32.mrb[0].mxu0
      %8514 = vdwg.mxu0
      %8515 = vmatprep.subr.mxu0 0.0
      %8516 = vmatpush1.msra.mxu0 %v7472
      %8517 = vmatprep.subr.mxu0 0.0
      %8518 = vmatpush1.msra.mxu0 %v7473
      %8519 = vmatprep.subr.mxu0 0.0
      %8520 = vmatpush1.msra.mxu0 %v7474
      %8521 = vmatprep.subr.mxu0 0.0
      %8522 = vmatpush1.msra.mxu0 %v7475
      %8523 = vmatprep.subr.mxu0 0.0
      %8524 = vmatpush1.msra.mxu0 %v7476
      %8525 = vmatprep.subr.mxu0 0.0
      %8526 = vmatpush1.msra.mxu0 %v7477
      %8527 = vmatprep.subr.mxu0 0.0
      %8528 = vmatpush1.msra.mxu0 %v7478
      %8529 = vmatprep.subr.mxu0 0.0
      %8530 = vmatpush1.msra.mxu0 %v7479
      %8531 = vmatprep.subr.mxu0 0.0
      %8532 = vmatpush1.msra.mxu0 %v7480
      %8533 = vmatprep.subr.mxu0 0.0
      %8534 = vmatpush1.msra.mxu0 %v7481
      %8535 = vmatprep.subr.mxu0 0.0
      %8536 = vmatpush1.msra.mxu0 %v7482
      %8537 = vmatprep.subr.mxu0 0.0
      %8538 = vmatpush1.msra.mxu0 %v7483
      %8539 = vmatprep.subr.mxu0 0.0
      %8540 = vmatpush1.msra.mxu0 %v7484
      %8541 = vmatprep.subr.mxu0 0.0
      %8542 = vmatpush1.msra.mxu0 %v7485
      %8543 = vmatprep.subr.mxu0 0.0
      %8544 = vmatpush1.msra.mxu0 %v7486
      %8545 = vmatprep.subr.mxu0 0.0
      %8546 = vmatpush1.msra.mxu0 %v7487
      %8547 = vmatprep.subr.mxu0 0.0
      %8548 = vmatpush1.msra.mxu0 %v7488
      %8549 = vmatprep.subr.mxu0 0.0
      %8550 = vmatpush1.msra.mxu0 %v7489
      %8551 = vmatprep.subr.mxu0 0.0
      %8552 = vmatpush1.msra.mxu0 %v7490
      %8553 = vmatprep.subr.mxu0 0.0
      %8554 = vmatpush1.msra.mxu0 %v7491
      %8555 = vmatprep.subr.mxu0 0.0
      %8556 = vmatpush1.msra.mxu0 %v7492
      %8557 = vmatprep.subr.mxu0 0.0
      %8558 = vmatpush1.msra.mxu0 %v7493
      %8559 = vmatprep.subr.mxu0 0.0
      %8560 = vmatpush1.msra.mxu0 %v7494
      %8561 = vmatprep.subr.mxu0 0.0
      %8562 = vmatpush1.msra.mxu0 %v7495
      %8563 = vmatprep.subr.mxu0 0.0
      %8564 = vmatpush1.msra.mxu0 %v7496
      %8565 = vmatprep.subr.mxu0 0.0
      %8566 = vmatpush1.msra.mxu0 %v7497
      %8567 = vmatprep.subr.mxu0 0.0
      %8568 = vmatpush1.msra.mxu0 %v7498
      %8569 = vmatprep.subr.mxu0 0.0
      %8570 = vmatpush1.msra.mxu0 %v7499
      %8571 = vmatprep.subr.mxu0 0.0
      %8572 = vmatpush1.msra.mxu0 %v7500
      %8573 = vmatprep.subr.mxu0 0.0
      %8574 = vmatpush1.msra.mxu0 %v7501
      %8575 = vmatprep.subr.mxu0 0.0
      %8576 = vmatpush1.msra.mxu0 %v7502
      %8577 = vmatprep.subr.mxu0 0.0
      %8578 = vmatpush1.msra.mxu0 %v7503
      %8579 = vmatprep.mubr.f32.mxu0 %v8405
      %8580 = vmatmul.mubr.f32.gmra.mrb[0].mxu0 %v8404
      %v8581 = vpop.f32.mrb[0].mxu0
      %v8582 = vadd.f32 %v8507, %v8581
      %v8583 = vpop.f32.mrb[0].mxu0
      %8584 = vmatprep.mubr.f32.mxu0 %v8421
      %8585 = vmatmul.mubr.f32.gmra.mrb[0].mxu0 %v8420
      %v8586 = vpop.f32.mrb[0].mxu0
      %v8587 = vadd.f32 %v8512, %v8586
      %v8588 = vpop.f32.mrb[0].mxu0
      %8589 = vdwg.mxu0
      %8590 = vmatprep.subr.mxu0 0.0
      %8591 = vmatpush1.msra.mxu0 %v7504
      %8592 = vmatprep.subr.mxu0 0.0
      %8593 = vmatpush1.msra.mxu0 %v7505
      %8594 = vmatprep.subr.mxu0 0.0
      %8595 = vmatpush1.msra.mxu0 %v7506
      %8596 = vmatprep.subr.mxu0 0.0
      %8597 = vmatpush1.msra.mxu0 %v7507
      %8598 = vmatprep.subr.mxu0 0.0
      %8599 = vmatpush1.msra.mxu0 %v7508
      %8600 = vmatprep.subr.mxu0 0.0
      %8601 = vmatpush1.msra.mxu0 %v7509
      %8602 = vmatprep.subr.mxu0 0.0
      %8603 = vmatpush1.msra.mxu0 %v7510
      %8604 = vmatprep.subr.mxu0 0.0
      %8605 = vmatpush1.msra.mxu0 %v7511
      %8606 = vmatprep.subr.mxu0 0.0
      %8607 = vmatpush1.msra.mxu0 %v7512
      %8608 = vmatprep.subr.mxu0 0.0
      %8609 = vmatpush1.msra.mxu0 %v7513
      %8610 = vmatprep.subr.mxu0 0.0
      %8611 = vmatpush1.msra.mxu0 %v7514
      %8612 = vmatprep.subr.mxu0 0.0
      %8613 = vmatpush1.msra.mxu0 %v7515
      %8614 = vmatprep.subr.mxu0 0.0
      %8615 = vmatpush1.msra.mxu0 %v7516
      %8616 = vmatprep.subr.mxu0 0.0
      %8617 = vmatpush1.msra.mxu0 %v7517
      %8618 = vmatprep.subr.mxu0 0.0
      %8619 = vmatpush1.msra.mxu0 %v7518
      %8620 = vmatprep.subr.mxu0 0.0
      %8621 = vmatpush1.msra.mxu0 %v7519
      %8622 = vmatprep.subr.mxu0 0.0
      %8623 = vmatpush1.msra.mxu0 %v7520
      %8624 = vmatprep.subr.mxu0 0.0
      %8625 = vmatpush1.msra.mxu0 %v7521
      %8626 = vmatprep.subr.mxu0 0.0
      %8627 = vmatpush1.msra.mxu0 %v7522
      %8628 = vmatprep.subr.mxu0 0.0
      %8629 = vmatpush1.msra.mxu0 %v7523
      %8630 = vmatprep.subr.mxu0 0.0
      %8631 = vmatpush1.msra.mxu0 %v7524
      %8632 = vmatprep.subr.mxu0 0.0
      %8633 = vmatpush1.msra.mxu0 %v7525
      %8634 = vmatprep.subr.mxu0 0.0
      %8635 = vmatpush1.msra.mxu0 %v7526
      %8636 = vmatprep.subr.mxu0 0.0
      %8637 = vmatpush1.msra.mxu0 %v7527
      %8638 = vmatprep.subr.mxu0 0.0
      %8639 = vmatpush1.msra.mxu0 %v7528
      %8640 = vmatprep.subr.mxu0 0.0
      %8641 = vmatpush1.msra.mxu0 %v7529
      %8642 = vmatprep.subr.mxu0 0.0
      %8643 = vmatpush1.msra.mxu0 %v7530
      %8644 = vmatprep.subr.mxu0 0.0
      %8645 = vmatpush1.msra.mxu0 %v7531
      %8646 = vmatprep.subr.mxu0 0.0
      %8647 = vmatpush1.msra.mxu0 %v7532
      %8648 = vmatprep.subr.mxu0 0.0
      %8649 = vmatpush1.msra.mxu0 %v7533
      %8650 = vmatprep.subr.mxu0 0.0
      %8651 = vmatpush1.msra.mxu0 %v7534
      %8652 = vmatprep.subr.mxu0 0.0
      %8653 = vmatpush1.msra.mxu0 %v7535
      %8654 = vmatprep.mubr.f32.mxu0 %v8407
      %8655 = vmatmul.mubr.f32.gmra.mrb[0].mxu0 %v8406
      %v8656 = vpop.f32.mrb[0].mxu0
      %v8657 = vadd.f32 %v8582, %v8656
      %v8658 = vpop.f32.mrb[0].mxu0
      %8659 = vmatprep.mubr.f32.mxu0 %v8423
      %8660 = vmatmul.mubr.f32.gmra.mrb[0].mxu0 %v8422
      %v8661 = vpop.f32.mrb[0].mxu0
      %v8662 = vadd.f32 %v8587, %v8661
      %v8663 = vpop.f32.mrb[0].mxu0
      %8664 = vdwg.mxu0
      %8665 = vmatprep.subr.mxu0 0.0
      %8666 = vmatpush1.msra.mxu0 %v7536
      %8667 = vmatprep.subr.mxu0 0.0
      %8668 = vmatpush1.msra.mxu0 %v7537
      %8669 = vmatprep.subr.mxu0 0.0
      %8670 = vmatpush1.msra.mxu0 %v7538
      %8671 = vmatprep.subr.mxu0 0.0
      %8672 = vmatpush1.msra.mxu0 %v7539
      %8673 = vmatprep.subr.mxu0 0.0
      %8674 = vmatpush1.msra.mxu0 %v7540
      %8675 = vmatprep.subr.mxu0 0.0
      %8676 = vmatpush1.msra.mxu0 %v7541
      %8677 = vmatprep.subr.mxu0 0.0
      %8678 = vmatpush1.msra.mxu0 %v7542
      %8679 = vmatprep.subr.mxu0 0.0
      %8680 = vmatpush1.msra.mxu0 %v7543
      %8681 = vmatprep.subr.mxu0 0.0
      %8682 = vmatpush1.msra.mxu0 %v7544
      %8683 = vmatprep.subr.mxu0 0.0
      %8684 = vmatpush1.msra.mxu0 %v7545
      %8685 = vmatprep.subr.mxu0 0.0
      %8686 = vmatpush1.msra.mxu0 %v7546
      %8687 = vmatprep.subr.mxu0 0.0
      %8688 = vmatpush1.msra.mxu0 %v7547
      %8689 = vmatprep.subr.mxu0 0.0
      %8690 = vmatpush1.msra.mxu0 %v7548
      %8691 = vmatprep.subr.mxu0 0.0
      %8692 = vmatpush1.msra.mxu0 %v7549
      %8693 = vmatprep.subr.mxu0 0.0
      %8694 = vmatpush1.msra.mxu0 %v7550
      %8695 = vmatprep.subr.mxu0 0.0
      %8696 = vmatpush1.msra.mxu0 %v7551
      %8697 = vmatprep.subr.mxu0 0.0
      %8698 = vmatpush1.msra.mxu0 %v7552
      %8699 = vmatprep.subr.mxu0 0.0
      %8700 = vmatpush1.msra.mxu0 %v7553
      %8701 = vmatprep.subr.mxu0 0.0
      %8702 = vmatpush1.msra.mxu0 %v7554
      %8703 = vmatprep.subr.mxu0 0.0
      %8704 = vmatpush1.msra.mxu0 %v7555
      %8705 = vmatprep.subr.mxu0 0.0
      %8706 = vmatpush1.msra.mxu0 %v7556
      %8707 = vmatprep.subr.mxu0 0.0
      %8708 = vmatpush1.msra.mxu0 %v7557
      %8709 = vmatprep.subr.mxu0 0.0
      %8710 = vmatpush1.msra.mxu0 %v7558
      %8711 = vmatprep.subr.mxu0 0.0
      %8712 = vmatpush1.msra.mxu0 %v7559
      %8713 = vmatprep.subr.mxu0 0.0
      %8714 = vmatpush1.msra.mxu0 %v7560
      %8715 = vmatprep.subr.mxu0 0.0
      %8716 = vmatpush1.msra.mxu0 %v7561
      %8717 = vmatprep.subr.mxu0 0.0
      %8718 = vmatpush1.msra.mxu0 %v7562
      %8719 = vmatprep.subr.mxu0 0.0
      %8720 = vmatpush1.msra.mxu0 %v7563
      %8721 = vmatprep.subr.mxu0 0.0
      %8722 = vmatpush1.msra.mxu0 %v7564
      %8723 = vmatprep.subr.mxu0 0.0
      %8724 = vmatpush1.msra.mxu0 %v7565
      %8725 = vmatprep.subr.mxu0 0.0
      %8726 = vmatpush1.msra.mxu0 %v7566
      %8727 = vmatprep.subr.mxu0 0.0
      %8728 = vmatpush1.msra.mxu0 %v7567
      %8729 = vmatprep.mubr.f32.mxu0 %v8409
      %8730 = vmatmul.mubr.f32.gmra.mrb[0].mxu0 %v8408
      %v8731 = vpop.f32.mrb[0].mxu0
      %v8732 = vadd.f32 %v8657, %v8731
      %v8733 = vpop.f32.mrb[0].mxu0
      %8734 = vmatprep.mubr.f32.mxu0 %v8425
      %8735 = vmatmul.mubr.f32.gmra.mrb[0].mxu0 %v8424
      %v8736 = vpop.f32.mrb[0].mxu0
      %v8737 = vadd.f32 %v8662, %v8736
      %v8738 = vpop.f32.mrb[0].mxu0
      %8739 = vdwg.mxu0
      %8740 = vmatprep.subr.mxu0 0.0
      %8741 = vmatpush1.msra.mxu0 %v7568
      %8742 = vmatprep.subr.mxu0 0.0
      %8743 = vmatpush1.msra.mxu0 %v7569
      %8744 = vmatprep.subr.mxu0 0.0
      %8745 = vmatpush1.msra.mxu0 %v7570
      %8746 = vmatprep.subr.mxu0 0.0
      %8747 = vmatpush1.msra.mxu0 %v7571
      %8748 = vmatprep.subr.mxu0 0.0
      %8749 = vmatpush1.msra.mxu0 %v7572
      %8750 = vmatprep.subr.mxu0 0.0
      %8751 = vmatpush1.msra.mxu0 %v7573
      %8752 = vmatprep.subr.mxu0 0.0
      %8753 = vmatpush1.msra.mxu0 %v7574
      %8754 = vmatprep.subr.mxu0 0.0
      %8755 = vmatpush1.msra.mxu0 %v7575
      %8756 = vmatprep.subr.mxu0 0.0
      %8757 = vmatpush1.msra.mxu0 %v7576
      %8758 = vmatprep.subr.mxu0 0.0
      %8759 = vmatpush1.msra.mxu0 %v7577
      %8760 = vmatprep.subr.mxu0 0.0
      %8761 = vmatpush1.msra.mxu0 %v7578
      %8762 = vmatprep.subr.mxu0 0.0
      %8763 = vmatpush1.msra.mxu0 %v7579
      %8764 = vmatprep.subr.mxu0 0.0
      %8765 = vmatpush1.msra.mxu0 %v7580
      %8766 = vmatprep.subr.mxu0 0.0
      %8767 = vmatpush1.msra.mxu0 %v7581
      %8768 = vmatprep.subr.mxu0 0.0
      %8769 = vmatpush1.msra.mxu0 %v7582
      %8770 = vmatprep.subr.mxu0 0.0
      %8771 = vmatpush1.msra.mxu0 %v7583
      %8772 = vmatprep.subr.mxu0 0.0
      %8773 = vmatpush1.msra.mxu0 %v7584
      %8774 = vmatprep.subr.mxu0 0.0
      %8775 = vmatpush1.msra.mxu0 %v7585
      %8776 = vmatprep.subr.mxu0 0.0
      %8777 = vmatpush1.msra.mxu0 %v7586
      %8778 = vmatprep.subr.mxu0 0.0
      %8779 = vmatpush1.msra.mxu0 %v7587
      %8780 = vmatprep.subr.mxu0 0.0
      %8781 = vmatpush1.msra.mxu0 %v7588
      %8782 = vmatprep.subr.mxu0 0.0
      %8783 = vmatpush1.msra.mxu0 %v7589
      %8784 = vmatprep.subr.mxu0 0.0
      %8785 = vmatpush1.msra.mxu0 %v7590
      %8786 = vmatprep.subr.mxu0 0.0
      %8787 = vmatpush1.msra.mxu0 %v7591
      %8788 = vmatprep.subr.mxu0 0.0
      %8789 = vmatpush1.msra.mxu0 %v7592
      %8790 = vmatprep.subr.mxu0 0.0
      %8791 = vmatpush1.msra.mxu0 %v7593
      %8792 = vmatprep.subr.mxu0 0.0
      %8793 = vmatpush1.msra.mxu0 %v7594
      %8794 = vmatprep.subr.mxu0 0.0
      %8795 = vmatpush1.msra.mxu0 %v7595
      %8796 = vmatprep.subr.mxu0 0.0
      %8797 = vmatpush1.msra.mxu0 %v7596
      %8798 = vmatprep.subr.mxu0 0.0
      %8799 = vmatpush1.msra.mxu0 %v7597
      %8800 = vmatprep.subr.mxu0 0.0
      %8801 = vmatpush1.msra.mxu0 %v7598
      %8802 = vmatprep.subr.mxu0 0.0
      %8803 = vmatpush1.msra.mxu0 %v7599
      %8804 = vmatprep.mubr.f32.mxu0 %v8411
      %8805 = vmatmul.mubr.f32.gmra.mrb[0].mxu0 %v8410
      %v8806 = vpop.f32.mrb[0].mxu0
      %v8807 = vadd.f32 %v8732, %v8806
      %v8808 = vpop.f32.mrb[0].mxu0
      %8809 = vmatprep.mubr.f32.mxu0 %v8427
      %8810 = vmatmul.mubr.f32.gmra.mrb[0].mxu0 %v8426
      %v8811 = vpop.f32.mrb[0].mxu0
      %v8812 = vadd.f32 %v8737, %v8811
      %v8813 = vpop.f32.mrb[0].mxu0
      %8814 = vdwg.mxu0
      %8815 = vmatprep.subr.mxu0 0.0
      %8816 = vmatpush1.msra.mxu0 %v7600
      %8817 = vmatprep.subr.mxu0 0.0
      %8818 = vmatpush1.msra.mxu0 %v7601
      %8819 = vmatprep.subr.mxu0 0.0
      %8820 = vmatpush1.msra.mxu0 %v7602
      %8821 = vmatprep.subr.mxu0 0.0
      %8822 = vmatpush1.msra.mxu0 %v7603
      %8823 = vmatprep.subr.mxu0 0.0
      %8824 = vmatpush1.msra.mxu0 %v7604
      %8825 = vmatprep.subr.mxu0 0.0
      %8826 = vmatpush1.msra.mxu0 %v7605
      %8827 = vmatprep.subr.mxu0 0.0
      %8828 = vmatpush1.msra.mxu0 %v7606
      %8829 = vmatprep.subr.mxu0 0.0
      %8830 = vmatpush1.msra.mxu0 %v7607
      %8831 = vmatprep.subr.mxu0 0.0
      %8832 = vmatpush1.msra.mxu0 %v7608
      %8833 = vmatprep.subr.mxu0 0.0
      %8834 = vmatpush1.msra.mxu0 %v7609
      %8835 = vmatprep.subr.mxu0 0.0
      %8836 = vmatpush1.msra.mxu0 %v7610
      %8837 = vmatprep.subr.mxu0 0.0
      %8838 = vmatpush1.msra.mxu0 %v7611
      %8839 = vmatprep.subr.mxu0 0.0
      %8840 = vmatpush1.msra.mxu0 %v7612
      %8841 = vmatprep.subr.mxu0 0.0
      %8842 = vmatpush1.msra.mxu0 %v7613
      %8843 = vmatprep.subr.mxu0 0.0
      %8844 = vmatpush1.msra.mxu0 %v7614
      %8845 = vmatprep.subr.mxu0 0.0
      %8846 = vmatpush1.msra.mxu0 %v7615
      %8847 = vmatprep.subr.mxu0 0.0
      %8848 = vmatpush1.msra.mxu0 %v7616
      %8849 = vmatprep.subr.mxu0 0.0
      %8850 = vmatpush1.msra.mxu0 %v7617
      %8851 = vmatprep.subr.mxu0 0.0
      %8852 = vmatpush1.msra.mxu0 %v7618
      %8853 = vmatprep.subr.mxu0 0.0
      %8854 = vmatpush1.msra.mxu0 %v7619
      %8855 = vmatprep.subr.mxu0 0.0
      %8856 = vmatpush1.msra.mxu0 %v7620
      %8857 = vmatprep.subr.mxu0 0.0
      %8858 = vmatpush1.msra.mxu0 %v7621
      %8859 = vmatprep.subr.mxu0 0.0
      %8860 = vmatpush1.msra.mxu0 %v7622
      %8861 = vmatprep.subr.mxu0 0.0
      %8862 = vmatpush1.msra.mxu0 %v7623
      %8863 = vmatprep.subr.mxu0 0.0
      %8864 = vmatpush1.msra.mxu0 %v7624
      %8865 = vmatprep.subr.mxu0 0.0
      %8866 = vmatpush1.msra.mxu0 %v7625
      %8867 = vmatprep.subr.mxu0 0.0
      %8868 = vmatpush1.msra.mxu0 %v7626
      %8869 = vmatprep.subr.mxu0 0.0
      %8870 = vmatpush1.msra.mxu0 %v7627
      %8871 = vmatprep.subr.mxu0 0.0
      %8872 = vmatpush1.msra.mxu0 %v7628
      %8873 = vmatprep.subr.mxu0 0.0
      %8874 = vmatpush1.msra.mxu0 %v7629
      %8875 = vmatprep.subr.mxu0 0.0
      %8876 = vmatpush1.msra.mxu0 %v7630
      %8877 = vmatprep.subr.mxu0 0.0
      %8878 = vmatpush1.msra.mxu0 %v7631
      %8879 = vmatprep.mubr.f32.mxu0 %v8413
      %8880 = vmatmul.mubr.f32.gmra.mrb[0].mxu0 %v8412
      %v8881 = vpop.f32.mrb[0].mxu0
      %v8882 = vadd.f32 %v8807, %v8881
      %v8883 = vpop.f32.mrb[0].mxu0
      %8884 = vmatprep.mubr.f32.mxu0 %v8429
      %8885 = vmatmul.mubr.f32.gmra.mrb[0].mxu0 %v8428
      %v8886 = vpop.f32.mrb[0].mxu0
      %v8887 = vadd.f32 %v8812, %v8886
      %v8888 = vpop.f32.mrb[0].mxu0
      %8889 = vdwg.mxu0
      %8890 = vmatprep.subr.mxu0 0.0
      %8891 = vmatpush1.msra.mxu0 %v7632
      %8892 = vmatprep.subr.mxu0 0.0
      %8893 = vmatpush1.msra.mxu0 %v7633
      %8894 = vmatprep.subr.mxu0 0.0
      %8895 = vmatpush1.msra.mxu0 %v7634
      %8896 = vmatprep.subr.mxu0 0.0
      %8897 = vmatpush1.msra.mxu0 %v7635
      %8898 = vmatprep.subr.mxu0 0.0
      %8899 = vmatpush1.msra.mxu0 %v7636
      %8900 = vmatprep.subr.mxu0 0.0
      %8901 = vmatpush1.msra.mxu0 %v7637
      %8902 = vmatprep.subr.mxu0 0.0
      %8903 = vmatpush1.msra.mxu0 %v7638
      %8904 = vmatprep.subr.mxu0 0.0
      %8905 = vmatpush1.msra.mxu0 %v7639
      %8906 = vmatprep.subr.mxu0 0.0
      %8907 = vmatpush1.msra.mxu0 %v7640
      %8908 = vmatprep.subr.mxu0 0.0
      %8909 = vmatpush1.msra.mxu0 %v7641
      %8910 = vmatprep.subr.mxu0 0.0
      %8911 = vmatpush1.msra.mxu0 %v7642
      %8912 = vmatprep.subr.mxu0 0.0
      %8913 = vmatpush1.msra.mxu0 %v7643
      %8914 = vmatprep.subr.mxu0 0.0
      %8915 = vmatpush1.msra.mxu0 %v7644
      %8916 = vmatprep.subr.mxu0 0.0
      %8917 = vmatpush1.msra.mxu0 %v7645
      %8918 = vmatprep.subr.mxu0 0.0
      %8919 = vmatpush1.msra.mxu0 %v7646
      %8920 = vmatprep.subr.mxu0 0.0
      %8921 = vmatpush1.msra.mxu0 %v7647
      %8922 = vmatprep.subr.mxu0 0.0
      %8923 = vmatpush1.msra.mxu0 %v7648
      %8924 = vmatprep.subr.mxu0 0.0
      %8925 = vmatpush1.msra.mxu0 %v7649
      %8926 = vmatprep.subr.mxu0 0.0
      %8927 = vmatpush1.msra.mxu0 %v7650
      %8928 = vmatprep.subr.mxu0 0.0
      %8929 = vmatpush1.msra.mxu0 %v7651
      %8930 = vmatprep.subr.mxu0 0.0
      %8931 = vmatpush1.msra.mxu0 %v7652
      %8932 = vmatprep.subr.mxu0 0.0
      %8933 = vmatpush1.msra.mxu0 %v7653
      %8934 = vmatprep.subr.mxu0 0.0
      %8935 = vmatpush1.msra.mxu0 %v7654
      %8936 = vmatprep.subr.mxu0 0.0
      %8937 = vmatpush1.msra.mxu0 %v7655
      %8938 = vmatprep.subr.mxu0 0.0
      %8939 = vmatpush1.msra.mxu0 %v7656
      %8940 = vmatprep.subr.mxu0 0.0
      %8941 = vmatpush1.msra.mxu0 %v7657
      %8942 = vmatprep.subr.mxu0 0.0
      %8943 = vmatpush1.msra.mxu0 %v7658
      %8944 = vmatprep.subr.mxu0 0.0
      %8945 = vmatpush1.msra.mxu0 %v7659
      %8946 = vmatprep.subr.mxu0 0.0
      %8947 = vmatpush1.msra.mxu0 %v7660
      %8948 = vmatprep.subr.mxu0 0.0
      %8949 = vmatpush1.msra.mxu0 %v7661
      %8950 = vmatprep.subr.mxu0 0.0
      %8951 = vmatpush1.msra.mxu0 %v7662
      %8952 = vmatprep.subr.mxu0 0.0
      %8953 = vmatpush1.msra.mxu0 %v7663
      %8954 = vmatprep.mubr.f32.mxu0 %v8415
      %8955 = vmatmul.mubr.f32.gmra.mrb[0].mxu0 %v8414
      %v8956 = vpop.f32.mrb[0].mxu0
      %v8957 = vadd.f32 %v8882, %v8956
      %v8958 = vpop.f32.mrb[0].mxu0
      %8959 = vmatprep.mubr.f32.mxu0 %v8431
      %8960 = vmatmul.mubr.f32.gmra.mrb[0].mxu0 %v8430
      %v8961 = vpop.f32.mrb[0].mxu0
      %v8962 = vadd.f32 %v8887, %v8961
      %v8963 = vpop.f32.mrb[0].mxu0
      %8964 = vdwg.mxu0
      %8965 = vmatprep.subr.mxu0 0.0
      %8966 = vmatpush1.msra.mxu0 %v7664
      %8967 = vmatprep.subr.mxu0 0.0
      %8968 = vmatpush1.msra.mxu0 %v7665
      %8969 = vmatprep.subr.mxu0 0.0
      %8970 = vmatpush1.msra.mxu0 %v7666
      %8971 = vmatprep.subr.mxu0 0.0
      %8972 = vmatpush1.msra.mxu0 %v7667
      %8973 = vmatprep.subr.mxu0 0.0
      %8974 = vmatpush1.msra.mxu0 %v7668
      %8975 = vmatprep.subr.mxu0 0.0
      %8976 = vmatpush1.msra.mxu0 %v7669
      %8977 = vmatprep.subr.mxu0 0.0
      %8978 = vmatpush1.msra.mxu0 %v7670
      %8979 = vmatprep.subr.mxu0 0.0
      %8980 = vmatpush1.msra.mxu0 %v7671
      %8981 = vmatprep.subr.mxu0 0.0
      %8982 = vmatpush1.msra.mxu0 %v7672
      %8983 = vmatprep.subr.mxu0 0.0
      %8984 = vmatpush1.msra.mxu0 %v7673
      %8985 = vmatprep.subr.mxu0 0.0
      %8986 = vmatpush1.msra.mxu0 %v7674
      %8987 = vmatprep.subr.mxu0 0.0
      %8988 = vmatpush1.msra.mxu0 %v7675
      %8989 = vmatprep.subr.mxu0 0.0
      %8990 = vmatpush1.msra.mxu0 %v7676
      %8991 = vmatprep.subr.mxu0 0.0
      %8992 = vmatpush1.msra.mxu0 %v7677
      %8993 = vmatprep.subr.mxu0 0.0
      %8994 = vmatpush1.msra.mxu0 %v7678
      %8995 = vmatprep.subr.mxu0 0.0
      %8996 = vmatpush1.msra.mxu0 %v7679
      %8997 = vmatprep.subr.mxu0 0.0
      %8998 = vmatpush1.msra.mxu0 %v7680
      %8999 = vmatprep.subr.mxu0 0.0
      %9000 = vmatpush1.msra.mxu0 %v7681
      %9001 = vmatprep.subr.mxu0 0.0
      %9002 = vmatpush1.msra.mxu0 %v7682
      %9003 = vmatprep.subr.mxu0 0.0
      %9004 = vmatpush1.msra.mxu0 %v7683
      %9005 = vmatprep.subr.mxu0 0.0
      %9006 = vmatpush1.msra.mxu0 %v7684
      %9007 = vmatprep.subr.mxu0 0.0
      %9008 = vmatpush1.msra.mxu0 %v7685
      %9009 = vmatprep.subr.mxu0 0.0
      %9010 = vmatpush1.msra.mxu0 %v7686
      %9011 = vmatprep.subr.mxu0 0.0
      %9012 = vmatpush1.msra.mxu0 %v7687
      %9013 = vmatprep.subr.mxu0 0.0
      %9014 = vmatpush1.msra.mxu0 %v7688
      %9015 = vmatprep.subr.mxu0 0.0
      %9016 = vmatpush1.msra.mxu0 %v7689
      %9017 = vmatprep.subr.mxu0 0.0
      %9018 = vmatpush1.msra.mxu0 %v7690
      %9019 = vmatprep.subr.mxu0 0.0
      %9020 = vmatpush1.msra.mxu0 %v7691
      %9021 = vmatprep.subr.mxu0 0.0
      %9022 = vmatpush1.msra.mxu0 %v7692
      %9023 = vmatprep.subr.mxu0 0.0
      %9024 = vmatpush1.msra.mxu0 %v7693
      %9025 = vmatprep.subr.mxu0 0.0
      %9026 = vmatpush1.msra.mxu0 %v7694
      %9027 = vmatprep.subr.mxu0 0.0
      %9028 = vmatpush1.msra.mxu0 %v7695
      %9029 = vmatprep.mubr.f32.mxu0 %v8417
      %9030 = vmatmul.mubr.f32.gmra.mrb[0].mxu0 %v8416
      %v9031 = vpop.f32.mrb[0].mxu0
      %v9032 = vadd.f32 %v8957, %v9031
      %v9033 = vpop.f32.mrb[0].mxu0
      %9034 = vmatprep.mubr.f32.mxu0 %v8433
      %9035 = vmatmul.mubr.f32.gmra.mrb[0].mxu0 %v8432
      %v9036 = vpop.f32.mrb[0].mxu0
      %v9037 = vadd.f32 %v8962, %v9036
      %v9038 = vpop.f32.mrb[0].mxu0
      %9039 = vdwg.mxu0
      %v9040 = vadd.f32 %v7365, %v9032
      %v9041 = vadd.f32 %v7366, %v9037
      %s9042 = scalar_lea.vmem %s65, %s3811
      %v9043 = vld [vmem:[%s9042] sm:$0x1]
      %s9044 = scalar_lea.vmem %s67, %s3811
      %v9045 = vld [vmem:[%s9044] sm:$0x1]
      %v9046 = vsel %vm3766, %v9040, 0.0
      %9047 = vadd.xlane.f32.xlu0 %v9046
      %v9048 = vpop.xlane.xlu0 %9047
      %v9049 = vsel %vm3766, %v9041, 0.0
      %9050 = vadd.xlane.f32.xlu0 %v9049
      %v9051 = vpop.xlane.xlu0 %9050
      %v9052 = vmul.f32 %v9048, %v3773
      %v9053 = vmul.f32 %v9051, %v3773
      %v9054 = vsub.f32 %v9040, %v9052
      %v9055 = vsub.f32 %v9041, %v9053
      %v9056 = vmul.f32 %v9054, %v9054
      %v9057 = vmul.f32 %v9055, %v9055
      %v9058 = vsel %vm3766, %v9056, 0.0
      %9059 = vadd.xlane.f32.xlu0 %v9058
      %v9060 = vpop.xlane.xlu0 %9059
      %v9061 = vsel %vm3766, %v9057, 0.0
      %9062 = vadd.xlane.f32.xlu0 %v9061
      %v9063 = vpop.xlane.xlu0 %9062
      %v9064 = vmul.f32 %v9060, %v3773
      %v9065 = vmul.f32 %v9063, %v3773
      %v9066 = vadd.f32 %v9064, 1e-05
      %v9067 = vadd.f32 %v9065, 1e-05
      %v9068 = vrsqrt.pop %v9066
      %v9069 = vrsqrt.pop %v9067
      %v9070 = vmul.f32 %v9054, %v9068
      %v9071 = vmul.f32 %v9055, %v9069
      %v9073 = vlaneseq
      %v9074 = vshrl.u32 %v9073, 7
      %v9075 = vsub.s32 0, %v9074
      %v9076 = vrot.slane %v9043, %v9075
      %v9078 = vmul.f32 %v9070, %v9076
      %v9079 = vmul.f32 %v9071, %v9076
      %v9081 = vlaneseq
      %v9082 = vshrl.u32 %v9081, 7
      %v9083 = vsub.s32 0, %v9082
      %v9084 = vrot.slane %v9045, %v9083
      %v9086 = vadd.f32 %v9078, %v9084
      %v9087 = vadd.f32 %v9079, %v9084
    $region165: #{chord_network_non_coop.1} parent=1 // loop_footer
      %s3815 = sadd.s32 1, %s3811
    $region166: #{chord_network_non_coop.1} parent=1 // loop_footer_branch
      %3810 = sbr.rel target = $region162
    $region167: #{chord_network_non_coop.1} parent=1 // loop_exit
      _
    %v9088 = vld [vmem:[%s69] sm:$0x1]
    %v9089 = vld [vmem:[%s71] sm:$0x1]
    %v9090 = vsel %vm3766, %v3816, 0.0
    %9091 = vadd.xlane.f32.xlu0 %v9090
    %v9092 = vpop.xlane.xlu0 %9091
    %v9093 = vsel %vm3766, %v3817, 0.0
    %9094 = vadd.xlane.f32.xlu0 %v9093
    %v9095 = vpop.xlane.xlu0 %9094
    %v9096 = vmul.f32 %v9092, %v3773
    %v9097 = vmul.f32 %v9095, %v3773
    %v9098 = vsub.f32 %v3816, %v9096
    %v9099 = vsub.f32 %v3817, %v9097
    %v9100 = vmul.f32 %v9098, %v9098
    %v9101 = vmul.f32 %v9099, %v9099
    %v9102 = vsel %vm3766, %v9100, 0.0
    %9103 = vadd.xlane.f32.xlu0 %v9102
    %v9104 = vpop.xlane.xlu0 %9103
    %v9105 = vsel %vm3766, %v9101, 0.0
    %9106 = vadd.xlane.f32.xlu0 %v9105
    %v9107 = vpop.xlane.xlu0 %9106
    %v9108 = vmul.f32 %v9104, %v3773
    %v9109 = vmul.f32 %v9107, %v3773
    %v9110 = vadd.f32 %v9108, 1e-05
    %v9111 = vadd.f32 %v9109, 1e-05
    %v9112 = vrsqrt.pop %v9110
    %v9113 = vrsqrt.pop %v9111
    %v9114 = vmul.f32 %v9098, %v9112
    %v9115 = vmul.f32 %v9099, %v9113
    %v9117 = vlaneseq
    %v9118 = vshrl.u32 %v9117, 7
    %v9119 = vsub.s32 0, %v9118
    %v9120 = vrot.slane %v9088, %v9119
    %v9122 = vmul.f32 %v9114, %v9120
    %v9123 = vmul.f32 %v9115, %v9120
    %v9125 = vlaneseq
    %v9126 = vshrl.u32 %v9125, 7
    %v9127 = vsub.s32 0, %v9126
    %v9128 = vrot.slane %v9089, %v9127
    %v9130 = vadd.f32 %v9122, %v9128
    %v9131 = vadd.f32 %v9123, %v9128
    %v9133 = vrot.slane %v9130, 7
    %v9136 = vrot.slane %v9131, 6
    %vm9138 = vcmask 1040384
    %v9139 = vsel %vm9138, %v9133, %v9136
    %v9140 = vld [vmem:[%s73] sm:$0xff]
    %v9141 = vld [vmem:[%s73 + $0x8] sm:$0xff]
    %v9142 = vld [vmem:[%s73 + $0x10] sm:$0xff]
    %v9143 = vld [vmem:[%s73 + $0x18] sm:$0xff]
    %v9144 = vld [vmem:[%s75] sm:$0x1]
    %v9146 = vlaneseq
    %v9147 = vshrl.u32 %v9146, 7
    %v9148 = vsub.s32 0, %v9147
    %v9149 = vrot.slane %v9144, %v9148
    %v9152 = vsel %vm3766, %v9139, 0
    %9154 = vmatprep.subr.mxu0 0.0
    %9155 = vmatpush1.msra.mxu0 %v9140
    %9156 = vmatprep.subr.mxu0 0.0
    %9157 = vmatpush1.msra.mxu0 %v9141
    %9158 = vmatprep.subr.mxu0 0.0
    %9159 = vmatpush1.msra.mxu0 %v9142
    %9160 = vmatprep.subr.mxu0 0.0
    %9161 = vmatpush1.msra.mxu0 %v9143
    %9162 = vmatprep.subr.mxu0 0.0
    %9163 = vmatpush1.msra.mxu0 0.0
    %9164 = vmatprep.subr.mxu0 0.0
    %9165 = vmatpush1.msra.mxu0 0.0
    %9166 = vmatprep.subr.mxu0 0.0
    %9167 = vmatpush1.msra.mxu0 0.0
    %9168 = vmatprep.subr.mxu0 0.0
    %9169 = vmatpush1.msra.mxu0 0.0
    %9170 = vmatprep.subr.mxu0 0.0
    %9171 = vmatpush1.msra.mxu0 0.0
    %9172 = vmatprep.subr.mxu0 0.0
    %9173 = vmatpush1.msra.mxu0 0.0
    %9174 = vmatprep.subr.mxu0 0.0
    %9175 = vmatpush1.msra.mxu0 0.0
    %9176 = vmatprep.subr.mxu0 0.0
    %9177 = vmatpush1.msra.mxu0 0.0
    %9178 = vmatprep.subr.mxu0 0.0
    %9179 = vmatpush1.msra.mxu0 0.0
    %9180 = vmatprep.subr.mxu0 0.0
    %9181 = vmatpush1.msra.mxu0 0.0
    %9182 = vmatprep.subr.mxu0 0.0
    %9183 = vmatpush1.msra.mxu0 0.0
    %9184 = vmatprep.subr.mxu0 0.0
    %9185 = vmatpush1.msra.mxu0 0.0
    %9186 = vmatprep.subr.mxu0 0.0
    %9187 = vmatpush1.msra.mxu0 0.0
    %9188 = vmatprep.subr.mxu0 0.0
    %9189 = vmatpush1.msra.mxu0 0.0
    %9190 = vmatprep.subr.mxu0 0.0
    %9191 = vmatpush1.msra.mxu0 0.0
    %9192 = vmatprep.subr.mxu0 0.0
    %9193 = vmatpush1.msra.mxu0 0.0
    %9194 = vmatprep.subr.mxu0 0.0
    %9195 = vmatpush1.msra.mxu0 0.0
    %9196 = vmatprep.subr.mxu0 0.0
    %9197 = vmatpush1.msra.mxu0 0.0
    %9198 = vmatprep.subr.mxu0 0.0
    %9199 = vmatpush1.msra.mxu0 0.0
    %9200 = vmatprep.subr.mxu0 0.0
    %9201 = vmatpush1.msra.mxu0 0.0
    %9202 = vmatprep.subr.mxu0 0.0
    %9203 = vmatpush1.msra.mxu0 0.0
    %9204 = vmatprep.subr.mxu0 0.0
    %9205 = vmatpush1.msra.mxu0 0.0
    %9206 = vmatprep.subr.mxu0 0.0
    %9207 = vmatpush1.msra.mxu0 0.0
    %9208 = vmatprep.subr.mxu0 0.0
    %9209 = vmatpush1.msra.mxu0 0.0
    %9210 = vmatprep.subr.mxu0 0.0
    %9211 = vmatpush1.msra.mxu0 0.0
    %9212 = vmatprep.subr.mxu0 0.0
    %9213 = vmatpush1.msra.mxu0 0.0
    %9214 = vmatprep.subr.mxu0 0.0
    %9215 = vmatpush1.msra.mxu0 0.0
    %9216 = vmatprep.subr.mxu0 0.0
    %9217 = vmatpush1.msra.mxu0 0.0
    %9218 = vmatprep.mubr.f32.mxu0 0.0
    %9219 = vmatmul.mubr.f32.gmra.mrb[0].mxu0 %v9152
    %v9220 = vpop.f32.mrb[0].mxu0
    %v9221 = vadd.f32 %v9149, %v9220
    %v9222 = vpop.f32.mrb[0].mxu0
    %9223 = vdwg.mxu0
    %vm9224 = vcmask 189440
    %9225 = vst.msk [vmem:[#allocation2] sm:$0x3] %vm9224, %v9221
    // Predicated region
    $region168: #{chord_network_non_coop.1} parent=1 // pred_check
      _
    $region169: #{chord_network_non_coop.1} parent=1 // pred_check_branch
      %9227 = sbr.rel (0) target = $region171
    $region170: #{chord_network_non_coop.1} parent=1 // pred_region
      %s9229 = ssub.s32 32, 32
      %9230 = vsyncadd [#allocation3], %s9229
      %s9232 = sshll.u32 [#allocation2], 4
      %s9233 = int_to_ptr.vmem [resolvable:$true] %s9232
      %9235 = dma.vmem_to_hbm [thread:$0]  %s9233, 32, %s77, [#allocation3]
    $region171: #{chord_network_non_coop.1} parent=1 // pred_fallthru
      _
    // Predicated region
    $region172: #{chord_network_non_coop.1} parent=1 // pred_check
      _
    $region173: #{chord_network_non_coop.1} parent=1 // pred_check_branch
      %9237 = sbr.rel (0) target = $region175
    $region174: #{chord_network_non_coop.1} parent=1 // pred_region
      %9238 = dma.done [#allocation3], 32
    $region175: #{chord_network_non_coop.1} parent=1 // pred_fallthru
      _
    %9239 = vsyncpa [#allocation3], 1

</llo_original>
